<compile_context>
chip_gen: v7x
topology: tpu7x:2x2x1
jax: 0.10.0
libtpu: 0.0.40
codegen_flags: <defaults>
</compile_context>

<pallas_src>
import jax
import jax.numpy as jnp
from jax import lax
from jax.experimental import pallas as pl
from jax.experimental.pallas import tpu as pltpu

F32 = jnp.float32
BF16 = jnp.bfloat16


# ---------------------------------------------------------------------------
# Kernel
# ---------------------------------------------------------------------------
def textcnn_kernel(xcol_ref, w1_ref, b1_ref, w2_ref, b2_ref,
                   wfc1_ref, bfc1_ref, wfc2_ref, bfc2_ref,
                   o_ref, h1pad_ref, fc1in_ref):
    tb = o_ref.shape[0]
    L2 = h1pad_ref.shape[1] - 2              # embedding_dim // 4

    # ---- conv1: 4 output positions per row live in lane quarters of ONE
    # (tb*L2, 6) @ (6, 512) matmul.  pool1 = max of adjacent quarters, taken
    # BEFORE bias+ReLU (exact: every position shares the same per-channel bias).
    h1 = jnp.dot(xcol_ref[...], w1_ref[...],
                 preferred_element_type=jnp.float32)             # (tb*L2, 512)
    b1 = b1_ref[...]                                             # (1, 128)
    pe = jnp.maximum(jnp.maximum(h1[:, 0:128], h1[:, 128:256]) + b1, 0.0)
    po = jnp.maximum(jnp.maximum(h1[:, 256:384], h1[:, 384:512]) + b1, 0.0)
    pe = pe.astype(BF16)                     # pool1 position 2q   (tb*L2,128)
    po = po.astype(BF16)                     # pool1 position 2q+1 (tb*L2,128)

    # ---- per-sample zero padding for conv2: scratch rows 1..L2 hold the
    # pool1 output (lane halves = [pos 2q | pos 2q+1]); rows 0 / L2+1 stay 0.
    h1pad_ref[:, 0:1, :] = jnp.zeros((tb, 1, 256), BF16)
    h1pad_ref[:, L2 + 1:L2 + 2, :] = jnp.zeros((tb, 1, 256), BF16)
    h1pad_ref[:, 1:L2 + 1, 0:128] = pe.reshape(tb, L2, 128)
    h1pad_ref[:, 1:L2 + 1, 128:256] = po.reshape(tb, L2, 128)

    # ---- conv2 with pool2 folded into lane halves of an N=128 output:
    # lanes 0:64 = conv2 position 2q, lanes 64:128 = position 2q+1.
    # Four accumulated K=128 dots from registers / static ref slices
    # (no concatenate-materialised LHS, full MXU column width).
    po_prev = h1pad_ref[:, 0:L2, 128:256].reshape(tb * L2, 128)    # pos 2q-1
    pe_next = h1pad_ref[:, 2:L2 + 2, 0:128].reshape(tb * L2, 128)  # pos 2q+2
    acc = jnp.dot(pe, w2_ref[0:128, :], preferred_element_type=jnp.float32)
    acc = acc + jnp.dot(po, w2_ref[128:256, :],
                        preferred_element_type=jnp.float32)
    acc = acc + jnp.dot(po_prev, w2_ref[256:384, :],
                        preferred_element_type=jnp.float32)
    acc = acc + jnp.dot(pe_next, w2_ref[384:512, :],
                        preferred_element_type=jnp.float32)

    # pool2 = max of lane halves, then bias + ReLU (exact, shared bias).
    p2 = jnp.maximum(jnp.maximum(acc[:, 0:64], acc[:, 64:128]) + b2_ref[...],
                     0.0)
    p2 = p2.reshape(tb, L2, 64)                                   # f32

    # ---- flatten: two pooled positions per iteration -> dense, 128-lane
    # aligned stores straight from registers (no conv2-output scratch).
    for p in range(L2 // 2):
        pair = jnp.concatenate([p2[:, 2 * p, :], p2[:, 2 * p + 1, :]],
                               axis=-1).astype(BF16)              # (tb, 128)
        fc1in_ref[:, 128 * p:128 * (p + 1)] = pair

    # ---- fc1 as one long-K matmul, fc2 into a lane-dense 128-padded slab.
    f1 = jnp.dot(fc1in_ref[...], wfc1_ref[...],
                 preferred_element_type=jnp.float32)              # (tb, 256)
    f1 = jnp.maximum(f1 + bfc1_ref[...], 0.0)
    out = jnp.dot(f1.astype(BF16), wfc2_ref[...],
                  preferred_element_type=jnp.float32)
    o_ref[...] = out + bfc2_ref[...]


# ---------------------------------------------------------------------------
# One-time weight re-layout (hoisted out of the per-call path)
# ---------------------------------------------------------------------------
def prepare_params(params):
    """Re-layout PyTorch-layout weights into the kernel layouts (call once)."""
    w1, b1, w2, b2, fw1, fb1, fw2, fb2 = params
    nhid = fw1.shape[0]                       # 256
    ncls = fw2.shape[0]
    feat = fw1.shape[1]                       # 64 * L2
    L2 = feat // 64
    ncp = pl.cdiv(ncls, 128) * 128

    # conv1 block weight: im2col column r feeds output position j (lane block
    # j, j=0..3) iff r-j in {0,1,2}:  w1blk[r, 128*j + o] = w1[o, 0, r - j].
    w1m = jnp.transpose(w1[:, 0, :])                         # (3, 128)
    w1blk = jnp.zeros((6, 512), F32)
    for j in range(4):
        w1blk = w1blk.at[j:j + 3, 128 * j:128 * (j + 1)].set(w1m)
    w1blk = w1blk.astype(BF16)
    b1r = b1.reshape(1, 128).astype(F32)

    # conv2: four K=128 row blocks feeding output lane halves
    # [even pos | odd pos] = [W1|W0], [W2|W1], [W0|0], [0|W2];
    # Wk[i, o] = w2[o, i, k].
    Wk = [jnp.transpose(w2[:, :, k]) for k in range(3)]      # each (128, 64)
    Z = jnp.zeros((128, 64), F32)
    w2blk = jnp.concatenate([
        jnp.concatenate([Wk[1], Wk[0]], axis=1),
        jnp.concatenate([Wk[2], Wk[1]], axis=1),
        jnp.concatenate([Wk[0], Z], axis=1),
        jnp.concatenate([Z, Wk[2]], axis=1),
    ], axis=0).astype(BF16)                                   # (512, 128)
    b2r = b2.reshape(1, 64).astype(F32)

    # fc1: fold torch's channel-major Flatten (index c*L2 + m) into the
    # weight layout: wfc1[m*64 + c, j] = fw1[j, c*L2 + m].
    wfc1 = jnp.transpose(fw1.reshape(nhid, 64, L2),
                         (2, 1, 0)).reshape(L2 * 64, nhid).astype(BF16)
    bfc1 = fb1.reshape(1, nhid).astype(F32)

    # fc2: pad classes to a full 128-lane group for a dense output store.
    wfc2 = jnp.zeros((nhid, ncp), F32).at[:, :ncls].set(
        jnp.transpose(fw2)).astype(BF16)
    bfc2 = jnp.zeros((1, ncp), F32).at[:, :ncls].set(fb2.reshape(1, ncls))

    return (w1blk, b1r, w2blk, b2r, wfc1, bfc1, wfc2, bfc2, ncls)


# ---------------------------------------------------------------------------
# VMEM sizing + batch-tile selection
# ---------------------------------------------------------------------------
def _pad(n, m):
    return -(-n // m) * m


def _vmem_bytes_estimate(tb, L2, nhid, ncp):
    bf, f4 = 2, 4
    rows = _pad(tb * L2, 8)
    xcol = 2 * rows * 128 * bf                       # (tb*L2, 6) lane-padded
    out = 2 * _pad(tb, 8) * ncp * f4
    consts = (8 * 512 * bf + 8 * 128 * f4 +          # w1blk, b1
              512 * 128 * bf + 8 * 128 * f4 +        # w2blk, b2
              L2 * 64 * nhid * bf + 8 * _pad(nhid, 128) * f4 +   # wfc1, bfc1
              nhid * ncp * bf + 8 * ncp * f4)        # wfc2, bfc2
    scratch = tb * _pad(L2 + 2, 8) * 256 * bf + _pad(tb, 8) * L2 * 64 * bf
    temps = rows * 512 * f4 + 3 * rows * 128 * f4    # h1 + pooled + conv2 acc
    return xcol + out + consts + scratch + temps


def _pick_tb(B, L2, nhid, ncp, budget):
    valid = [d for d in range(1, B + 1)
             if B % d == 0 and (d % 8 == 0 or d == B)]
    fitting = [d for d in valid
               if _vmem_bytes_estimate(d, L2, nhid, ncp) <= budget]
    pool = fitting or valid
    multi = [d for d in pool if B // d >= 2]         # >=2 steps for megacore
    return max(multi) if multi else max(pool)


# ---------------------------------------------------------------------------
# Forward wrapper
# ---------------------------------------------------------------------------
def textcnn_forward(x, prepped, *, tb=None,
                    vmem_budget_bytes=48 * 1024 * 1024, interpret=False):
    """x: (B, E) float. prepped = prepare_params(torch_params)."""
    w1blk, b1r, w2blk, b2r, wfc1, bfc1, wfc2, bfc2, ncls = prepped
    B, E = x.shape
    assert E % 64 == 0, "embedding_dim must be a multiple of 64"
    L2 = E // 4
    nhid = wfc1.shape[1]
    ncp = wfc2.shape[1]
    assert wfc1.shape[0] == L2 * 64, "params / embedding_dim mismatch"

    if tb is None:
        tb = _pick_tb(B, L2, nhid, ncp, vmem_budget_bytes)
    tb = min(tb, B)
    assert B % tb == 0, "batch must be divisible by the batch tile"
    assert tb % 8 == 0 or tb == B

    # im2col glue in bf16: one row per FOUR conv1 positions (6 taps), i.e.
    # 1.5x the input elements at half the width -> low pre-kernel HBM traffic.
    xp = jnp.pad(x.astype(F32), ((0, 0), (1, 1)))             # (B, E+2)
    xcol = jnp.stack([xp[:, r:r + 4 * (L2 - 1) + 1:4] for r in range(6)],
                     axis=-1)                                 # (B, L2, 6)
    xcol = xcol.reshape(B * L2, 6).astype(BF16)

    est = _vmem_bytes_estimate(tb, L2, nhid, ncp)
    vmem_limit = int(min(max(est + (16 << 20), 32 << 20), 100 << 20))

    def build(single_buffer_consts):
        def cspec(shape):
            if single_buffer_consts:
                return pl.BlockSpec(shape, lambda i: (0, 0),
                                    pipeline_mode=pl.Buffered(1))
            return pl.BlockSpec(shape, lambda i: (0, 0))

        grid_spec = pltpu.PrefetchScalarGridSpec(
            num_scalar_prefetch=0,
            grid=(B // tb,),
            in_specs=[
                pl.BlockSpec((tb * L2, 6), lambda i: (i, 0)),  # im2col input
                cspec((6, 512)),                               # conv1 weight
                cspec((1, 128)),                               # conv1 bias
                cspec((512, 128)),                             # conv2 weight
                cspec((1, 64)),                                # conv2 bias
                cspec((L2 * 64, nhid)),                        # fc1 weight
                cspec((1, nhid)),                              # fc1 bias
                cspec((nhid, ncp)),                            # fc2 weight
                cspec((1, ncp)),                               # fc2 bias
            ],
            out_specs=pl.BlockSpec((tb, ncp), lambda i: (i, 0)),
            scratch_shapes=[
                pltpu.VMEM((tb, L2 + 2, 256), BF16),   # padded pool1 output
                pltpu.VMEM((tb, L2 * 64), BF16),       # flattened fc1 input
            ],
        )
        return pl.pallas_call(
            textcnn_kernel,
            out_shape=jax.ShapeDtypeStruct((B, ncp), F32),
            grid_spec=grid_spec,
            compiler_params=pltpu.CompilerParams(
                dimension_semantics=("parallel",),
                vmem_limit_bytes=vmem_limit),
            interpret=interpret,
        )

    args = (xcol, w1blk, b1r, w2blk, b2r, wfc1, bfc1, wfc2, bfc2)
    try:
        out = jax.block_until_ready(build(True)(*args))
    except Exception:
        # pl.Buffered(1) single-buffering unsupported -> default pipelining.
        out = build(False)(*args)
    return out[:, :ncls]


# ---------------------------------------------------------------------------
# Pure-JAX reference mirroring the PyTorch module exactly (f32)
# ---------------------------------------------------------------------------
def textcnn_reference(x, params):
    w1, b1, w2, b2, fw1, fb1, fw2, fb2 = params
    B, E = x.shape
    P = lax.Precision.HIGHEST
    xp = jnp.pad(x, ((0, 0), (1, 1)))
    win1 = jnp.stack([xp[:, 0:E], xp[:, 1:E + 1], xp[:, 2:E + 2]], axis=1)
    h1 = jnp.einsum('ok,bkl->bol', w1[:, 0, :], win1,
                    precision=P) + b1[None, :, None]
    h1 = jnp.maximum(h1, 0.0)
    h1p = h1.reshape(B, 128, E // 2, 2).max(axis=-1)
    L1 = E // 2
    hp = jnp.pad(h1p, ((0, 0), (0, 0), (1, 1)))
    h2 = (jnp.einsum('oi,bil->bol', w2[:, :, 0], hp[:, :, 0:L1], precision=P)
          + jnp.einsum('oi,bil->bol', w2[:, :, 1], hp[:, :, 1:L1 + 1],
                       precision=P)
          + jnp.einsum('oi,bil->bol', w2[:, :, 2], hp[:, :, 2:L1 + 2],
                       precision=P)
          + b2[None, :, None])
    h2 = jnp.maximum(h2, 0.0)
    h2p = h2.reshape(B, 64, L1 // 2, 2).max(axis=-1)
    flat = h2p.reshape(B, -1)
    f1 = jnp.maximum(jnp.dot(flat, fw1.T, precision=P) + fb1, 0.0)
    return jnp.dot(f1, fw2.T, precision=P) + fb2


def make_params(key, embedding_dim, num_classes):
    def u(k, shape, fan_in):
        b = 1.0 / (fan_in ** 0.5)
        return jax.random.uniform(k, shape, jnp.float32, -b, b)

    ks = jax.random.split(key, 8)
    feat = 64 * (embedding_dim // 4)
    w1 = u(ks[0], (128, 1, 3), 1 * 3)
    b1 = u(ks[1], (128,), 1 * 3)
    w2 = u(ks[2], (64, 128, 3), 128 * 3)
    b2 = u(ks[3], (64,), 128 * 3)
    fw1 = u(ks[4], (256, feat), feat)
    fb1 = u(ks[5], (256,), feat)
    fw2 = u(ks[6], (num_classes, 256), 256)
    fb2 = u(ks[7], (num_classes,), 256)
    return (w1, b1, w2, b2, fw1, fb1, fw2, fb2)


if __name__ == "__main__":
    # Small demo shapes (module default embedding_dim is 768; 64 keeps the
    # test fast).  B=16 keeps a multi-step 'parallel' grid for megacore.
    B, E, NCLS = 16, 64, 2
    root = jax.random.PRNGKey(0)
    kx, kp = jax.random.split(root)
    x = jax.random.normal(kx, (B, E), jnp.float32)
    params = make_params(kp, E, NCLS)

    prepped = prepare_params(params)          # one-time weight re-layout
    out = jax.block_until_ready(textcnn_forward(x, prepped))
    ref = textcnn_reference(x, params)

    assert out.shape == (B, NCLS), out.shape
    # bf16 MXU operands (f32 accumulation) vs f32 HIGHEST reference.
    if not jnp.allclose(out, ref, atol=2e-2, rtol=2e-2):
        err = jnp.max(jnp.abs(out - ref))
        raise AssertionError(f"mismatch: max|diff|={err}\n{out}\n{ref}")
    print("KERNEL_OK")
</pallas_src>

<mosaic_0001>
module attributes {stable_mosaic.version = 11 : i64} {
  func.func @textcnn_kernel(%arg0: i32, %arg1: memref<128x6xbf16, #tpu.memory_space<vmem>>, %arg2: memref<6x512xbf16, #tpu.memory_space<vmem>>, %arg3: memref<1x128xf32, #tpu.memory_space<vmem>>, %arg4: memref<512x128xbf16, #tpu.memory_space<vmem>>, %arg5: memref<1x64xf32, #tpu.memory_space<vmem>>, %arg6: memref<1024x256xbf16, #tpu.memory_space<vmem>>, %arg7: memref<1x256xf32, #tpu.memory_space<vmem>>, %arg8: memref<256x128xbf16, #tpu.memory_space<vmem>>, %arg9: memref<1x128xf32, #tpu.memory_space<vmem>>, %arg10: memref<8x128xf32, #tpu.memory_space<vmem>>, %arg11: memref<8x18x256xbf16, #tpu.memory_space<vmem>>, %arg12: memref<8x1024xbf16, #tpu.memory_space<vmem>>) attributes {dimension_semantics = [#tpu.dimension_semantics<parallel>], iteration_bounds = array<i64: 2>, scalar_prefetch = 0 : i64, scratch_operands = 2 : i64, tpu.core_type = #tpu.core_type<tc>, window_params = [{transform_indices = @transform_0, window_bounds = array<i64: 128, 6>}, {pipeline_mode = #tpu.pipeline_mode<synchronous>, transform_indices = @transform_1, window_bounds = array<i64: 6, 512>}, {pipeline_mode = #tpu.pipeline_mode<synchronous>, transform_indices = @transform_2, window_bounds = array<i64: 1, 128>}, {pipeline_mode = #tpu.pipeline_mode<synchronous>, transform_indices = @transform_3, window_bounds = array<i64: 512, 128>}, {pipeline_mode = #tpu.pipeline_mode<synchronous>, transform_indices = @transform_4, window_bounds = array<i64: 1, 64>}, {pipeline_mode = #tpu.pipeline_mode<synchronous>, transform_indices = @transform_5, window_bounds = array<i64: 1024, 256>}, {pipeline_mode = #tpu.pipeline_mode<synchronous>, transform_indices = @transform_6, window_bounds = array<i64: 1, 256>}, {pipeline_mode = #tpu.pipeline_mode<synchronous>, transform_indices = @transform_7, window_bounds = array<i64: 256, 128>}, {pipeline_mode = #tpu.pipeline_mode<synchronous>, transform_indices = @transform_8, window_bounds = array<i64: 1, 128>}, {transform_indices = @transform_9, window_bounds = array<i64: 8, 128>}]} {
    %c0 = arith.constant 0 : index
    %c0_0 = arith.constant 0 : index
    %0 = vector.load %arg1[%c0, %c0_0] : memref<128x6xbf16, #tpu.memory_space<vmem>>, vector<128x6xbf16>
    %c0_1 = arith.constant 0 : index
    %c0_2 = arith.constant 0 : index
    %1 = vector.load %arg2[%c0_1, %c0_2] : memref<6x512xbf16, #tpu.memory_space<vmem>>, vector<6x512xbf16>
    %cst = arith.constant dense<0.000000e+00> : vector<128x512xf32>
    %2 = tpu.matmul %0, %1, %cst {dimension_numbers = #tpu.dot_dimension_numbers<[1], [0], [0], [1], [0, 0, 1, 1], [], []>} : vector<128x6xbf16>, vector<6x512xbf16>, vector<128x512xf32> -> vector<128x512xf32>
    %c0_3 = arith.constant 0 : index
    %c0_4 = arith.constant 0 : index
    %3 = vector.load %arg3[%c0_3, %c0_4] : memref<1x128xf32, #tpu.memory_space<vmem>>, vector<1x128xf32>
    %4 = vector.extract_strided_slice %2 {offsets = [0, 0], sizes = [128, 128], strides = [1, 1]} : vector<128x512xf32> to vector<128x128xf32>
    %5 = vector.extract_strided_slice %2 {offsets = [0, 128], sizes = [128, 128], strides = [1, 1]} : vector<128x512xf32> to vector<128x128xf32>
    %6 = arith.maximumf %4, %5 : vector<128x128xf32>
    %7 = vector.broadcast %3 : vector<1x128xf32> to vector<128x128xf32>
    %8 = arith.addf %6, %7 : vector<128x128xf32>
    %cst_5 = arith.constant 0.000000e+00 : f32
    %9 = vector.broadcast %cst_5 : f32 to vector<128x128xf32>
    %10 = arith.maximumf %8, %9 : vector<128x128xf32>
    %11 = vector.extract_strided_slice %2 {offsets = [0, 256], sizes = [128, 128], strides = [1, 1]} : vector<128x512xf32> to vector<128x128xf32>
    %12 = vector.extract_strided_slice %2 {offsets = [0, 384], sizes = [128, 128], strides = [1, 1]} : vector<128x512xf32> to vector<128x128xf32>
    %13 = arith.maximumf %11, %12 : vector<128x128xf32>
    %14 = vector.broadcast %3 : vector<1x128xf32> to vector<128x128xf32>
    %15 = arith.addf %13, %14 : vector<128x128xf32>
    %cst_6 = arith.constant 0.000000e+00 : f32
    %16 = vector.broadcast %cst_6 : f32 to vector<128x128xf32>
    %17 = arith.maximumf %15, %16 : vector<128x128xf32>
    %18 = arith.truncf %10 : vector<128x128xf32> to vector<128x128xbf16>
    %19 = arith.truncf %17 : vector<128x128xf32> to vector<128x128xbf16>
    %cst_7 = arith.constant 0.000000e+00 : bf16
    %20 = vector.broadcast %cst_7 : bf16 to vector<8x1x256xbf16>
    %c0_8 = arith.constant 0 : index
    %c0_9 = arith.constant 0 : index
    %c0_10 = arith.constant 0 : index
    %21 = vector.load %arg11[%c0_8, %c0_9, %c0_10] : memref<8x18x256xbf16, #tpu.memory_space<vmem>>, vector<8x1x256xbf16>
    tpu.vector_store %arg11[%c0_8, %c0_9, %c0_10], %20 {strides = array<i32>} : memref<8x18x256xbf16, #tpu.memory_space<vmem>>, vector<8x1x256xbf16>,
    %cst_11 = arith.constant 0.000000e+00 : bf16
    %22 = vector.broadcast %cst_11 : bf16 to vector<8x1x256xbf16>
    %c0_12 = arith.constant 0 : index
    %c17 = arith.constant 17 : index
    %c0_13 = arith.constant 0 : index
    %23 = vector.load %arg11[%c0_12, %c17, %c0_13] : memref<8x18x256xbf16, #tpu.memory_space<vmem>>, vector<8x1x256xbf16>
    tpu.vector_store %arg11[%c0_12, %c17, %c0_13], %22 {strides = array<i32>} : memref<8x18x256xbf16, #tpu.memory_space<vmem>>, vector<8x1x256xbf16>,
    %24 = vector.shape_cast %18 : vector<128x128xbf16> to vector<8x16x128xbf16>
    %c0_14 = arith.constant 0 : index
    %c1 = arith.constant 1 : index
    %c0_15 = arith.constant 0 : index
    %25 = vector.load %arg11[%c0_14, %c1, %c0_15] : memref<8x18x256xbf16, #tpu.memory_space<vmem>>, vector<8x16x128xbf16>
    tpu.vector_store %arg11[%c0_14, %c1, %c0_15], %24 {strides = array<i32>} : memref<8x18x256xbf16, #tpu.memory_space<vmem>>, vector<8x16x128xbf16>,
    %26 = vector.shape_cast %19 : vector<128x128xbf16> to vector<8x16x128xbf16>
    %c0_16 = arith.constant 0 : index
    %c1_17 = arith.constant 1 : index
    %c128 = arith.constant 128 : index
    %27 = vector.load %arg11[%c0_16, %c1_17, %c128] : memref<8x18x256xbf16, #tpu.memory_space<vmem>>, vector<8x16x128xbf16>
    tpu.vector_store %arg11[%c0_16, %c1_17, %c128], %26 {strides = array<i32>} : memref<8x18x256xbf16, #tpu.memory_space<vmem>>, vector<8x16x128xbf16>,
    %c0_18 = arith.constant 0 : index
    %c0_19 = arith.constant 0 : index
    %c128_20 = arith.constant 128 : index
    %28 = vector.load %arg11[%c0_18, %c0_19, %c128_20] : memref<8x18x256xbf16, #tpu.memory_space<vmem>>, vector<8x16x128xbf16>
    %29 = vector.shape_cast %28 : vector<8x16x128xbf16> to vector<128x128xbf16>
    %c0_21 = arith.constant 0 : index
    %c2 = arith.constant 2 : index
    %c0_22 = arith.constant 0 : index
    %30 = vector.load %arg11[%c0_21, %c2, %c0_22] : memref<8x18x256xbf16, #tpu.memory_space<vmem>>, vector<8x16x128xbf16>
    %31 = vector.shape_cast %30 : vector<8x16x128xbf16> to vector<128x128xbf16>
    %c0_23 = arith.constant 0 : index
    %c0_24 = arith.constant 0 : index
    %32 = vector.load %arg4[%c0_23, %c0_24] : memref<512x128xbf16, #tpu.memory_space<vmem>>, vector<128x128xbf16>
    %cst_25 = arith.constant dense<0.000000e+00> : vector<128x128xf32>
    %33 = tpu.matmul %18, %32, %cst_25 {dimension_numbers = #tpu.dot_dimension_numbers<[1], [0], [0], [1], [0, 0, 1, 1], [], []>} : vector<128x128xbf16>, vector<128x128xbf16>, vector<128x128xf32> -> vector<128x128xf32>
    %c128_26 = arith.constant 128 : index
    %c0_27 = arith.constant 0 : index
    %34 = vector.load %arg4[%c128_26, %c0_27] : memref<512x128xbf16, #tpu.memory_space<vmem>>, vector<128x128xbf16>
    %cst_28 = arith.constant dense<0.000000e+00> : vector<128x128xf32>
    %35 = tpu.matmul %19, %34, %cst_28 {dimension_numbers = #tpu.dot_dimension_numbers<[1], [0], [0], [1], [0, 0, 1, 1], [], []>} : vector<128x128xbf16>, vector<128x128xbf16>, vector<128x128xf32> -> vector<128x128xf32>
    %36 = arith.addf %33, %35 : vector<128x128xf32>
    %c256 = arith.constant 256 : index
    %c0_29 = arith.constant 0 : index
    %37 = vector.load %arg4[%c256, %c0_29] : memref<512x128xbf16, #tpu.memory_space<vmem>>, vector<128x128xbf16>
    %cst_30 = arith.constant dense<0.000000e+00> : vector<128x128xf32>
    %38 = tpu.matmul %29, %37, %cst_30 {dimension_numbers = #tpu.dot_dimension_numbers<[1], [0], [0], [1], [0, 0, 1, 1], [], []>} : vector<128x128xbf16>, vector<128x128xbf16>, vector<128x128xf32> -> vector<128x128xf32>
    %39 = arith.addf %36, %38 : vector<128x128xf32>
    %c384 = arith.constant 384 : index
    %c0_31 = arith.constant 0 : index
    %40 = vector.load %arg4[%c384, %c0_31] : memref<512x128xbf16, #tpu.memory_space<vmem>>, vector<128x128xbf16>
    %cst_32 = arith.constant dense<0.000000e+00> : vector<128x128xf32>
    %41 = tpu.matmul %31, %40, %cst_32 {dimension_numbers = #tpu.dot_dimension_numbers<[1], [0], [0], [1], [0, 0, 1, 1], [], []>} : vector<128x128xbf16>, vector<128x128xbf16>, vector<128x128xf32> -> vector<128x128xf32>
    %42 = arith.addf %39, %41 : vector<128x128xf32>
    %43 = vector.extract_strided_slice %42 {offsets = [0, 0], sizes = [128, 64], strides = [1, 1]} : vector<128x128xf32> to vector<128x64xf32>
    %44 = vector.extract_strided_slice %42 {offsets = [0, 64], sizes = [128, 64], strides = [1, 1]} : vector<128x128xf32> to vector<128x64xf32>
    %45 = arith.maximumf %43, %44 : vector<128x64xf32>
    %c0_33 = arith.constant 0 : index
    %c0_34 = arith.constant 0 : index
    %46 = vector.load %arg5[%c0_33, %c0_34] : memref<1x64xf32, #tpu.memory_space<vmem>>, vector<1x64xf32>
    %47 = vector.broadcast %46 : vector<1x64xf32> to vector<128x64xf32>
    %48 = arith.addf %45, %47 : vector<128x64xf32>
    %cst_35 = arith.constant 0.000000e+00 : f32
    %49 = vector.broadcast %cst_35 : f32 to vector<128x64xf32>
    %50 = arith.maximumf %48, %49 : vector<128x64xf32>
    %51 = vector.shape_cast %50 : vector<128x64xf32> to vector<8x16x64xf32>
    %52 = vector.extract_strided_slice %51 {offsets = [0, 0, 0], sizes = [8, 1, 64], strides = [1, 1, 1]} : vector<8x16x64xf32> to vector<8x1x64xf32>
    %53 = vector.shape_cast %52 : vector<8x1x64xf32> to vector<8x64xf32>
    %54 = vector.extract_strided_slice %51 {offsets = [0, 1, 0], sizes = [8, 1, 64], strides = [1, 1, 1]} : vector<8x16x64xf32> to vector<8x1x64xf32>
    %55 = vector.shape_cast %54 : vector<8x1x64xf32> to vector<8x64xf32>
    %56 = tpu.concatenate %53, %55 in 1 : vector<8x64xf32>, vector<8x64xf32> -> vector<8x128xf32>
    %57 = arith.truncf %56 : vector<8x128xf32> to vector<8x128xbf16>
    %c0_36 = arith.constant 0 : index
    %c0_37 = arith.constant 0 : index
    %58 = vector.load %arg12[%c0_36, %c0_37] : memref<8x1024xbf16, #tpu.memory_space<vmem>>, vector<8x128xbf16>
    tpu.vector_store %arg12[%c0_36, %c0_37], %57 {strides = array<i32>} : memref<8x1024xbf16, #tpu.memory_space<vmem>>, vector<8x128xbf16>,
    %59 = vector.extract_strided_slice %51 {offsets = [0, 2, 0], sizes = [8, 1, 64], strides = [1, 1, 1]} : vector<8x16x64xf32> to vector<8x1x64xf32>
    %60 = vector.shape_cast %59 : vector<8x1x64xf32> to vector<8x64xf32>
    %61 = vector.extract_strided_slice %51 {offsets = [0, 3, 0], sizes = [8, 1, 64], strides = [1, 1, 1]} : vector<8x16x64xf32> to vector<8x1x64xf32>
    %62 = vector.shape_cast %61 : vector<8x1x64xf32> to vector<8x64xf32>
    %63 = tpu.concatenate %60, %62 in 1 : vector<8x64xf32>, vector<8x64xf32> -> vector<8x128xf32>
    %64 = arith.truncf %63 : vector<8x128xf32> to vector<8x128xbf16>
    %c0_38 = arith.constant 0 : index
    %c128_39 = arith.constant 128 : index
    %65 = vector.load %arg12[%c0_38, %c128_39] : memref<8x1024xbf16, #tpu.memory_space<vmem>>, vector<8x128xbf16>
    tpu.vector_store %arg12[%c0_38, %c128_39], %64 {strides = array<i32>} : memref<8x1024xbf16, #tpu.memory_space<vmem>>, vector<8x128xbf16>,
    %66 = vector.extract_strided_slice %51 {offsets = [0, 4, 0], sizes = [8, 1, 64], strides = [1, 1, 1]} : vector<8x16x64xf32> to vector<8x1x64xf32>
    %67 = vector.shape_cast %66 : vector<8x1x64xf32> to vector<8x64xf32>
    %68 = vector.extract_strided_slice %51 {offsets = [0, 5, 0], sizes = [8, 1, 64], strides = [1, 1, 1]} : vector<8x16x64xf32> to vector<8x1x64xf32>
    %69 = vector.shape_cast %68 : vector<8x1x64xf32> to vector<8x64xf32>
    %70 = tpu.concatenate %67, %69 in 1 : vector<8x64xf32>, vector<8x64xf32> -> vector<8x128xf32>
    %71 = arith.truncf %70 : vector<8x128xf32> to vector<8x128xbf16>
    %c0_40 = arith.constant 0 : index
    %c256_41 = arith.constant 256 : index
    %72 = vector.load %arg12[%c0_40, %c256_41] : memref<8x1024xbf16, #tpu.memory_space<vmem>>, vector<8x128xbf16>
    tpu.vector_store %arg12[%c0_40, %c256_41], %71 {strides = array<i32>} : memref<8x1024xbf16, #tpu.memory_space<vmem>>, vector<8x128xbf16>,
    %73 = vector.extract_strided_slice %51 {offsets = [0, 6, 0], sizes = [8, 1, 64], strides = [1, 1, 1]} : vector<8x16x64xf32> to vector<8x1x64xf32>
    %74 = vector.shape_cast %73 : vector<8x1x64xf32> to vector<8x64xf32>
    %75 = vector.extract_strided_slice %51 {offsets = [0, 7, 0], sizes = [8, 1, 64], strides = [1, 1, 1]} : vector<8x16x64xf32> to vector<8x1x64xf32>
    %76 = vector.shape_cast %75 : vector<8x1x64xf32> to vector<8x64xf32>
    %77 = tpu.concatenate %74, %76 in 1 : vector<8x64xf32>, vector<8x64xf32> -> vector<8x128xf32>
    %78 = arith.truncf %77 : vector<8x128xf32> to vector<8x128xbf16>
    %c0_42 = arith.constant 0 : index
    %c384_43 = arith.constant 384 : index
    %79 = vector.load %arg12[%c0_42, %c384_43] : memref<8x1024xbf16, #tpu.memory_space<vmem>>, vector<8x128xbf16>
    tpu.vector_store %arg12[%c0_42, %c384_43], %78 {strides = array<i32>} : memref<8x1024xbf16, #tpu.memory_space<vmem>>, vector<8x128xbf16>,
    %80 = vector.extract_strided_slice %51 {offsets = [0, 8, 0], sizes = [8, 1, 64], strides = [1, 1, 1]} : vector<8x16x64xf32> to vector<8x1x64xf32>
    %81 = vector.shape_cast %80 : vector<8x1x64xf32> to vector<8x64xf32>
    %82 = vector.extract_strided_slice %51 {offsets = [0, 9, 0], sizes = [8, 1, 64], strides = [1, 1, 1]} : vector<8x16x64xf32> to vector<8x1x64xf32>
    %83 = vector.shape_cast %82 : vector<8x1x64xf32> to vector<8x64xf32>
    %84 = tpu.concatenate %81, %83 in 1 : vector<8x64xf32>, vector<8x64xf32> -> vector<8x128xf32>
    %85 = arith.truncf %84 : vector<8x128xf32> to vector<8x128xbf16>
    %c0_44 = arith.constant 0 : index
    %c512 = arith.constant 512 : index
    %86 = vector.load %arg12[%c0_44, %c512] : memref<8x1024xbf16, #tpu.memory_space<vmem>>, vector<8x128xbf16>
    tpu.vector_store %arg12[%c0_44, %c512], %85 {strides = array<i32>} : memref<8x1024xbf16, #tpu.memory_space<vmem>>, vector<8x128xbf16>,
    %87 = vector.extract_strided_slice %51 {offsets = [0, 10, 0], sizes = [8, 1, 64], strides = [1, 1, 1]} : vector<8x16x64xf32> to vector<8x1x64xf32>
    %88 = vector.shape_cast %87 : vector<8x1x64xf32> to vector<8x64xf32>
    %89 = vector.extract_strided_slice %51 {offsets = [0, 11, 0], sizes = [8, 1, 64], strides = [1, 1, 1]} : vector<8x16x64xf32> to vector<8x1x64xf32>
    %90 = vector.shape_cast %89 : vector<8x1x64xf32> to vector<8x64xf32>
    %91 = tpu.concatenate %88, %90 in 1 : vector<8x64xf32>, vector<8x64xf32> -> vector<8x128xf32>
    %92 = arith.truncf %91 : vector<8x128xf32> to vector<8x128xbf16>
    %c0_45 = arith.constant 0 : index
    %c640 = arith.constant 640 : index
    %93 = vector.load %arg12[%c0_45, %c640] : memref<8x1024xbf16, #tpu.memory_space<vmem>>, vector<8x128xbf16>
    tpu.vector_store %arg12[%c0_45, %c640], %92 {strides = array<i32>} : memref<8x1024xbf16, #tpu.memory_space<vmem>>, vector<8x128xbf16>,
    %94 = vector.extract_strided_slice %51 {offsets = [0, 12, 0], sizes = [8, 1, 64], strides = [1, 1, 1]} : vector<8x16x64xf32> to vector<8x1x64xf32>
    %95 = vector.shape_cast %94 : vector<8x1x64xf32> to vector<8x64xf32>
    %96 = vector.extract_strided_slice %51 {offsets = [0, 13, 0], sizes = [8, 1, 64], strides = [1, 1, 1]} : vector<8x16x64xf32> to vector<8x1x64xf32>
    %97 = vector.shape_cast %96 : vector<8x1x64xf32> to vector<8x64xf32>
    %98 = tpu.concatenate %95, %97 in 1 : vector<8x64xf32>, vector<8x64xf32> -> vector<8x128xf32>
    %99 = arith.truncf %98 : vector<8x128xf32> to vector<8x128xbf16>
    %c0_46 = arith.constant 0 : index
    %c768 = arith.constant 768 : index
    %100 = vector.load %arg12[%c0_46, %c768] : memref<8x1024xbf16, #tpu.memory_space<vmem>>, vector<8x128xbf16>
    tpu.vector_store %arg12[%c0_46, %c768], %99 {strides = array<i32>} : memref<8x1024xbf16, #tpu.memory_space<vmem>>, vector<8x128xbf16>,
    %101 = vector.extract_strided_slice %51 {offsets = [0, 14, 0], sizes = [8, 1, 64], strides = [1, 1, 1]} : vector<8x16x64xf32> to vector<8x1x64xf32>
    %102 = vector.shape_cast %101 : vector<8x1x64xf32> to vector<8x64xf32>
    %103 = vector.extract_strided_slice %51 {offsets = [0, 15, 0], sizes = [8, 1, 64], strides = [1, 1, 1]} : vector<8x16x64xf32> to vector<8x1x64xf32>
    %104 = vector.shape_cast %103 : vector<8x1x64xf32> to vector<8x64xf32>
    %105 = tpu.concatenate %102, %104 in 1 : vector<8x64xf32>, vector<8x64xf32> -> vector<8x128xf32>
    %106 = arith.truncf %105 : vector<8x128xf32> to vector<8x128xbf16>
    %c0_47 = arith.constant 0 : index
    %c896 = arith.constant 896 : index
    %107 = vector.load %arg12[%c0_47, %c896] : memref<8x1024xbf16, #tpu.memory_space<vmem>>, vector<8x128xbf16>
    tpu.vector_store %arg12[%c0_47, %c896], %106 {strides = array<i32>} : memref<8x1024xbf16, #tpu.memory_space<vmem>>, vector<8x128xbf16>,
    %c0_48 = arith.constant 0 : index
    %c0_49 = arith.constant 0 : index
    %108 = vector.load %arg12[%c0_48, %c0_49] : memref<8x1024xbf16, #tpu.memory_space<vmem>>, vector<8x1024xbf16>
    %c0_50 = arith.constant 0 : index
    %c0_51 = arith.constant 0 : index
    %109 = vector.load %arg6[%c0_50, %c0_51] : memref<1024x256xbf16, #tpu.memory_space<vmem>>, vector<1024x256xbf16>
    %cst_52 = arith.constant dense<0.000000e+00> : vector<8x256xf32>
    %110 = tpu.matmul %108, %109, %cst_52 {dimension_numbers = #tpu.dot_dimension_numbers<[1], [0], [0], [1], [0, 0, 1, 1], [], []>} : vector<8x1024xbf16>, vector<1024x256xbf16>, vector<8x256xf32> -> vector<8x256xf32>
    %c0_53 = arith.constant 0 : index
    %c0_54 = arith.constant 0 : index
    %111 = vector.load %arg7[%c0_53, %c0_54] : memref<1x256xf32, #tpu.memory_space<vmem>>, vector<1x256xf32>
    %112 = vector.broadcast %111 : vector<1x256xf32> to vector<8x256xf32>
    %113 = arith.addf %110, %112 : vector<8x256xf32>
    %cst_55 = arith.constant 0.000000e+00 : f32
    %114 = vector.broadcast %cst_55 : f32 to vector<8x256xf32>
    %115 = arith.maximumf %113, %114 : vector<8x256xf32>
    %116 = arith.truncf %115 : vector<8x256xf32> to vector<8x256xbf16>
    %c0_56 = arith.constant 0 : index
    %c0_57 = arith.constant 0 : index
    %117 = vector.load %arg8[%c0_56, %c0_57] : memref<256x128xbf16, #tpu.memory_space<vmem>>, vector<256x128xbf16>
    %cst_58 = arith.constant dense<0.000000e+00> : vector<8x128xf32>
    %118 = tpu.matmul %116, %117, %cst_58 {dimension_numbers = #tpu.dot_dimension_numbers<[1], [0], [0], [1], [0, 0, 1, 1], [], []>} : vector<8x256xbf16>, vector<256x128xbf16>, vector<8x128xf32> -> vector<8x128xf32>
    %c0_59 = arith.constant 0 : index
    %c0_60 = arith.constant 0 : index
    %119 = vector.load %arg9[%c0_59, %c0_60] : memref<1x128xf32, #tpu.memory_space<vmem>>, vector<1x128xf32>
    %120 = vector.broadcast %119 : vector<1x128xf32> to vector<8x128xf32>
    %121 = arith.addf %118, %120 : vector<8x128xf32>
    %c0_61 = arith.constant 0 : index
    %c0_62 = arith.constant 0 : index
    %122 = vector.load %arg10[%c0_61, %c0_62] : memref<8x128xf32, #tpu.memory_space<vmem>>, vector<8x128xf32>
    tpu.vector_store %arg10[%c0_61, %c0_62], %121 {strides = array<i32>} : memref<8x128xf32, #tpu.memory_space<vmem>>, vector<8x128xf32>,
    return
  }
  func.func @transform_0(%arg0: i32) -> (i32, i32) {
    %c0_i32 = arith.constant 0 : i32
    %c0_i32_0 = arith.constant 0 : i32
    return %arg0, %c0_i32 : i32, i32
  }
  func.func @transform_1(%arg0: i32) -> (i32, i32) {
    %c0_i32 = arith.constant 0 : i32
    %c0_i32_0 = arith.constant 0 : i32
    %c0_i32_1 = arith.constant 0 : i32
    return %c0_i32, %c0_i32_0 : i32, i32
  }
  func.func @transform_2(%arg0: i32) -> (i32, i32) {
    %c0_i32 = arith.constant 0 : i32
    %c0_i32_0 = arith.constant 0 : i32
    %c0_i32_1 = arith.constant 0 : i32
    return %c0_i32, %c0_i32_0 : i32, i32
  }
  func.func @transform_3(%arg0: i32) -> (i32, i32) {
    %c0_i32 = arith.constant 0 : i32
    %c0_i32_0 = arith.constant 0 : i32
    %c0_i32_1 = arith.constant 0 : i32
    return %c0_i32, %c0_i32_0 : i32, i32
  }
  func.func @transform_4(%arg0: i32) -> (i32, i32) {
    %c0_i32 = arith.constant 0 : i32
    %c0_i32_0 = arith.constant 0 : i32
    %c0_i32_1 = arith.constant 0 : i32
    return %c0_i32, %c0_i32_0 : i32, i32
  }
  func.func @transform_5(%arg0: i32) -> (i32, i32) {
    %c0_i32 = arith.constant 0 : i32
    %c0_i32_0 = arith.constant 0 : i32
    %c0_i32_1 = arith.constant 0 : i32
    return %c0_i32, %c0_i32_0 : i32, i32
  }
  func.func @transform_6(%arg0: i32) -> (i32, i32) {
    %c0_i32 = arith.constant 0 : i32
    %c0_i32_0 = arith.constant 0 : i32
    %c0_i32_1 = arith.constant 0 : i32
    return %c0_i32, %c0_i32_0 : i32, i32
  }
  func.func @transform_7(%arg0: i32) -> (i32, i32) {
    %c0_i32 = arith.constant 0 : i32
    %c0_i32_0 = arith.constant 0 : i32
    %c0_i32_1 = arith.constant 0 : i32
    return %c0_i32, %c0_i32_0 : i32, i32
  }
  func.func @transform_8(%arg0: i32) -> (i32, i32) {
    %c0_i32 = arith.constant 0 : i32
    %c0_i32_0 = arith.constant 0 : i32
    %c0_i32_1 = arith.constant 0 : i32
    return %c0_i32, %c0_i32_0 : i32, i32
  }
  func.func @transform_9(%arg0: i32) -> (i32, i32) {
    %c0_i32 = arith.constant 0 : i32
    %c0_i32_0 = arith.constant 0 : i32
    return %arg0, %c0_i32 : i32, i32
  }
}

module attributes {stable_mosaic.version = 11 : i64} {
  func.func @textcnn_kernel(%arg0: i32, %arg1: memref<128x6xbf16, #tpu.memory_space<vmem>>, %arg2: memref<6x512xbf16, #tpu.memory_space<vmem>>, %arg3: memref<1x128xf32, #tpu.memory_space<vmem>>, %arg4: memref<512x128xbf16, #tpu.memory_space<vmem>>, %arg5: memref<1x64xf32, #tpu.memory_space<vmem>>, %arg6: memref<1024x256xbf16, #tpu.memory_space<vmem>>, %arg7: memref<1x256xf32, #tpu.memory_space<vmem>>, %arg8: memref<256x128xbf16, #tpu.memory_space<vmem>>, %arg9: memref<1x128xf32, #tpu.memory_space<vmem>>, %arg10: memref<8x128xf32, #tpu.memory_space<vmem>>, %arg11: memref<8x18x256xbf16, #tpu.memory_space<vmem>>, %arg12: memref<8x1024xbf16, #tpu.memory_space<vmem>>) attributes {dimension_semantics = [#tpu.dimension_semantics<parallel>], iteration_bounds = array<i64: 2>, scalar_prefetch = 0 : i64, scratch_operands = 2 : i64, tpu.core_type = #tpu.core_type<tc>, window_params = [{transform_indices = @transform_0, window_bounds = array<i64: 128, 6>}, {pipeline_mode = #tpu.pipeline_mode<synchronous>, transform_indices = @transform_1, window_bounds = array<i64: 6, 512>}, {pipeline_mode = #tpu.pipeline_mode<synchronous>, transform_indices = @transform_2, window_bounds = array<i64: 1, 128>}, {pipeline_mode = #tpu.pipeline_mode<synchronous>, transform_indices = @transform_3, window_bounds = array<i64: 512, 128>}, {pipeline_mode = #tpu.pipeline_mode<synchronous>, transform_indices = @transform_4, window_bounds = array<i64: 1, 64>}, {pipeline_mode = #tpu.pipeline_mode<synchronous>, transform_indices = @transform_5, window_bounds = array<i64: 1024, 256>}, {pipeline_mode = #tpu.pipeline_mode<synchronous>, transform_indices = @transform_6, window_bounds = array<i64: 1, 256>}, {pipeline_mode = #tpu.pipeline_mode<synchronous>, transform_indices = @transform_7, window_bounds = array<i64: 256, 128>}, {pipeline_mode = #tpu.pipeline_mode<synchronous>, transform_indices = @transform_8, window_bounds = array<i64: 1, 128>}, {transform_indices = @transform_9, window_bounds = array<i64: 8, 128>}]} {
    %c0 = arith.constant 0 : index
    %c0_0 = arith.constant 0 : index
    %0 = vector.load %arg1[%c0, %c0_0] : memref<128x6xbf16, #tpu.memory_space<vmem>>, vector<128x6xbf16>
    %c0_1 = arith.constant 0 : index
    %c0_2 = arith.constant 0 : index
    %1 = vector.load %arg2[%c0_1, %c0_2] : memref<6x512xbf16, #tpu.memory_space<vmem>>, vector<6x512xbf16>
    %cst = arith.constant dense<0.000000e+00> : vector<128x512xf32>
    %2 = tpu.matmul %0, %1, %cst {dimension_numbers = #tpu.dot_dimension_numbers<[1], [0], [0], [1], [0, 0, 1, 1], [], []>} : vector<128x6xbf16>, vector<6x512xbf16>, vector<128x512xf32> -> vector<128x512xf32>
    %c0_3 = arith.constant 0 : index
    %c0_4 = arith.constant 0 : index
    %3 = vector.load %arg3[%c0_3, %c0_4] : memref<1x128xf32, #tpu.memory_space<vmem>>, vector<1x128xf32>
    %4 = vector.extract_strided_slice %2 {offsets = [0, 0], sizes = [128, 128], strides = [1, 1]} : vector<128x512xf32> to vector<128x128xf32>
    %5 = vector.extract_strided_slice %2 {offsets = [0, 128], sizes = [128, 128], strides = [1, 1]} : vector<128x512xf32> to vector<128x128xf32>
    %6 = arith.maximumf %4, %5 : vector<128x128xf32>
    %7 = vector.broadcast %3 : vector<1x128xf32> to vector<128x128xf32>
    %8 = arith.addf %6, %7 : vector<128x128xf32>
    %cst_5 = arith.constant 0.000000e+00 : f32
    %9 = vector.broadcast %cst_5 : f32 to vector<128x128xf32>
    %10 = arith.maximumf %8, %9 : vector<128x128xf32>
    %11 = vector.extract_strided_slice %2 {offsets = [0, 256], sizes = [128, 128], strides = [1, 1]} : vector<128x512xf32> to vector<128x128xf32>
    %12 = vector.extract_strided_slice %2 {offsets = [0, 384], sizes = [128, 128], strides = [1, 1]} : vector<128x512xf32> to vector<128x128xf32>
    %13 = arith.maximumf %11, %12 : vector<128x128xf32>
    %14 = vector.broadcast %3 : vector<1x128xf32> to vector<128x128xf32>
    %15 = arith.addf %13, %14 : vector<128x128xf32>
    %cst_6 = arith.constant 0.000000e+00 : f32
    %16 = vector.broadcast %cst_6 : f32 to vector<128x128xf32>
    %17 = arith.maximumf %15, %16 : vector<128x128xf32>
    %18 = arith.truncf %10 : vector<128x128xf32> to vector<128x128xbf16>
    %19 = arith.truncf %17 : vector<128x128xf32> to vector<128x128xbf16>
    %cst_7 = arith.constant 0.000000e+00 : bf16
    %20 = vector.broadcast %cst_7 : bf16 to vector<8x1x256xbf16>
    %c0_8 = arith.constant 0 : index
    %c0_9 = arith.constant 0 : index
    %c0_10 = arith.constant 0 : index
    %21 = vector.load %arg11[%c0_8, %c0_9, %c0_10] : memref<8x18x256xbf16, #tpu.memory_space<vmem>>, vector<8x1x256xbf16>
    tpu.vector_store %arg11[%c0_8, %c0_9, %c0_10], %20 {strides = array<i32>} : memref<8x18x256xbf16, #tpu.memory_space<vmem>>, vector<8x1x256xbf16>,
    %cst_11 = arith.constant 0.000000e+00 : bf16
    %22 = vector.broadcast %cst_11 : bf16 to vector<8x1x256xbf16>
    %c0_12 = arith.constant 0 : index
    %c17 = arith.constant 17 : index
    %c0_13 = arith.constant 0 : index
    %23 = vector.load %arg11[%c0_12, %c17, %c0_13] : memref<8x18x256xbf16, #tpu.memory_space<vmem>>, vector<8x1x256xbf16>
    tpu.vector_store %arg11[%c0_12, %c17, %c0_13], %22 {strides = array<i32>} : memref<8x18x256xbf16, #tpu.memory_space<vmem>>, vector<8x1x256xbf16>,
    %24 = vector.shape_cast %18 : vector<128x128xbf16> to vector<8x16x128xbf16>
    %c0_14 = arith.constant 0 : index
    %c1 = arith.constant 1 : index
    %c0_15 = arith.constant 0 : index
    %25 = vector.load %arg11[%c0_14, %c1, %c0_15] : memref<8x18x256xbf16, #tpu.memory_space<vmem>>, vector<8x16x128xbf16>
    tpu.vector_store %arg11[%c0_14, %c1, %c0_15], %24 {strides = array<i32>} : memref<8x18x256xbf16, #tpu.memory_space<vmem>>, vector<8x16x128xbf16>,
    %26 = vector.shape_cast %19 : vector<128x128xbf16> to vector<8x16x128xbf16>
    %c0_16 = arith.constant 0 : index
    %c1_17 = arith.constant 1 : index
    %c128 = arith.constant 128 : index
    %27 = vector.load %arg11[%c0_16, %c1_17, %c128] : memref<8x18x256xbf16, #tpu.memory_space<vmem>>, vector<8x16x128xbf16>
    tpu.vector_store %arg11[%c0_16, %c1_17, %c128], %26 {strides = array<i32>} : memref<8x18x256xbf16, #tpu.memory_space<vmem>>, vector<8x16x128xbf16>,
    %c0_18 = arith.constant 0 : index
    %c0_19 = arith.constant 0 : index
    %c128_20 = arith.constant 128 : index
    %28 = vector.load %arg11[%c0_18, %c0_19, %c128_20] : memref<8x18x256xbf16, #tpu.memory_space<vmem>>, vector<8x16x128xbf16>
    %29 = vector.shape_cast %28 : vector<8x16x128xbf16> to vector<128x128xbf16>
    %c0_21 = arith.constant 0 : index
    %c2 = arith.constant 2 : index
    %c0_22 = arith.constant 0 : index
    %30 = vector.load %arg11[%c0_21, %c2, %c0_22] : memref<8x18x256xbf16, #tpu.memory_space<vmem>>, vector<8x16x128xbf16>
    %31 = vector.shape_cast %30 : vector<8x16x128xbf16> to vector<128x128xbf16>
    %c0_23 = arith.constant 0 : index
    %c0_24 = arith.constant 0 : index
    %32 = vector.load %arg4[%c0_23, %c0_24] : memref<512x128xbf16, #tpu.memory_space<vmem>>, vector<128x128xbf16>
    %cst_25 = arith.constant dense<0.000000e+00> : vector<128x128xf32>
    %33 = tpu.matmul %18, %32, %cst_25 {dimension_numbers = #tpu.dot_dimension_numbers<[1], [0], [0], [1], [0, 0, 1, 1], [], []>} : vector<128x128xbf16>, vector<128x128xbf16>, vector<128x128xf32> -> vector<128x128xf32>
    %c128_26 = arith.constant 128 : index
    %c0_27 = arith.constant 0 : index
    %34 = vector.load %arg4[%c128_26, %c0_27] : memref<512x128xbf16, #tpu.memory_space<vmem>>, vector<128x128xbf16>
    %cst_28 = arith.constant dense<0.000000e+00> : vector<128x128xf32>
    %35 = tpu.matmul %19, %34, %cst_28 {dimension_numbers = #tpu.dot_dimension_numbers<[1], [0], [0], [1], [0, 0, 1, 1], [], []>} : vector<128x128xbf16>, vector<128x128xbf16>, vector<128x128xf32> -> vector<128x128xf32>
    %36 = arith.addf %33, %35 : vector<128x128xf32>
    %c256 = arith.constant 256 : index
    %c0_29 = arith.constant 0 : index
    %37 = vector.load %arg4[%c256, %c0_29] : memref<512x128xbf16, #tpu.memory_space<vmem>>, vector<128x128xbf16>
    %cst_30 = arith.constant dense<0.000000e+00> : vector<128x128xf32>
    %38 = tpu.matmul %29, %37, %cst_30 {dimension_numbers = #tpu.dot_dimension_numbers<[1], [0], [0], [1], [0, 0, 1, 1], [], []>} : vector<128x128xbf16>, vector<128x128xbf16>, vector<128x128xf32> -> vector<128x128xf32>
    %39 = arith.addf %36, %38 : vector<128x128xf32>
    %c384 = arith.constant 384 : index
    %c0_31 = arith.constant 0 : index
    %40 = vector.load %arg4[%c384, %c0_31] : memref<512x128xbf16, #tpu.memory_space<vmem>>, vector<128x128xbf16>
    %cst_32 = arith.constant dense<0.000000e+00> : vector<128x128xf32>
    %41 = tpu.matmul %31, %40, %cst_32 {dimension_numbers = #tpu.dot_dimension_numbers<[1], [0], [0], [1], [0, 0, 1, 1], [], []>} : vector<128x128xbf16>, vector<128x128xbf16>, vector<128x128xf32> -> vector<128x128xf32>
    %42 = arith.addf %39, %41 : vector<128x128xf32>
    %43 = vector.extract_strided_slice %42 {offsets = [0, 0], sizes = [128, 64], strides = [1, 1]} : vector<128x128xf32> to vector<128x64xf32>
    %44 = vector.extract_strided_slice %42 {offsets = [0, 64], sizes = [128, 64], strides = [1, 1]} : vector<128x128xf32> to vector<128x64xf32>
    %45 = arith.maximumf %43, %44 : vector<128x64xf32>
    %c0_33 = arith.constant 0 : index
    %c0_34 = arith.constant 0 : index
    %46 = vector.load %arg5[%c0_33, %c0_34] : memref<1x64xf32, #tpu.memory_space<vmem>>, vector<1x64xf32>
    %47 = vector.broadcast %46 : vector<1x64xf32> to vector<128x64xf32>
    %48 = arith.addf %45, %47 : vector<128x64xf32>
    %cst_35 = arith.constant 0.000000e+00 : f32
    %49 = vector.broadcast %cst_35 : f32 to vector<128x64xf32>
    %50 = arith.maximumf %48, %49 : vector<128x64xf32>
    %51 = vector.shape_cast %50 : vector<128x64xf32> to vector<8x16x64xf32>
    %52 = vector.extract_strided_slice %51 {offsets = [0, 0, 0], sizes = [8, 1, 64], strides = [1, 1, 1]} : vector<8x16x64xf32> to vector<8x1x64xf32>
    %53 = vector.shape_cast %52 : vector<8x1x64xf32> to vector<8x64xf32>
    %54 = vector.extract_strided_slice %51 {offsets = [0, 1, 0], sizes = [8, 1, 64], strides = [1, 1, 1]} : vector<8x16x64xf32> to vector<8x1x64xf32>
    %55 = vector.shape_cast %54 : vector<8x1x64xf32> to vector<8x64xf32>
    %56 = tpu.concatenate %53, %55 in 1 : vector<8x64xf32>, vector<8x64xf32> -> vector<8x128xf32>
    %57 = arith.truncf %56 : vector<8x128xf32> to vector<8x128xbf16>
    %c0_36 = arith.constant 0 : index
    %c0_37 = arith.constant 0 : index
    %58 = vector.load %arg12[%c0_36, %c0_37] : memref<8x1024xbf16, #tpu.memory_space<vmem>>, vector<8x128xbf16>
    tpu.vector_store %arg12[%c0_36, %c0_37], %57 {strides = array<i32>} : memref<8x1024xbf16, #tpu.memory_space<vmem>>, vector<8x128xbf16>,
    %59 = vector.extract_strided_slice %51 {offsets = [0, 2, 0], sizes = [8, 1, 64], strides = [1, 1, 1]} : vector<8x16x64xf32> to vector<8x1x64xf32>
    %60 = vector.shape_cast %59 : vector<8x1x64xf32> to vector<8x64xf32>
    %61 = vector.extract_strided_slice %51 {offsets = [0, 3, 0], sizes = [8, 1, 64], strides = [1, 1, 1]} : vector<8x16x64xf32> to vector<8x1x64xf32>
    %62 = vector.shape_cast %61 : vector<8x1x64xf32> to vector<8x64xf32>
    %63 = tpu.concatenate %60, %62 in 1 : vector<8x64xf32>, vector<8x64xf32> -> vector<8x128xf32>
    %64 = arith.truncf %63 : vector<8x128xf32> to vector<8x128xbf16>
    %c0_38 = arith.constant 0 : index
    %c128_39 = arith.constant 128 : index
    %65 = vector.load %arg12[%c0_38, %c128_39] : memref<8x1024xbf16, #tpu.memory_space<vmem>>, vector<8x128xbf16>
    tpu.vector_store %arg12[%c0_38, %c128_39], %64 {strides = array<i32>} : memref<8x1024xbf16, #tpu.memory_space<vmem>>, vector<8x128xbf16>,
    %66 = vector.extract_strided_slice %51 {offsets = [0, 4, 0], sizes = [8, 1, 64], strides = [1, 1, 1]} : vector<8x16x64xf32> to vector<8x1x64xf32>
    %67 = vector.shape_cast %66 : vector<8x1x64xf32> to vector<8x64xf32>
    %68 = vector.extract_strided_slice %51 {offsets = [0, 5, 0], sizes = [8, 1, 64], strides = [1, 1, 1]} : vector<8x16x64xf32> to vector<8x1x64xf32>
    %69 = vector.shape_cast %68 : vector<8x1x64xf32> to vector<8x64xf32>
    %70 = tpu.concatenate %67, %69 in 1 : vector<8x64xf32>, vector<8x64xf32> -> vector<8x128xf32>
    %71 = arith.truncf %70 : vector<8x128xf32> to vector<8x128xbf16>
    %c0_40 = arith.constant 0 : index
    %c256_41 = arith.constant 256 : index
    %72 = vector.load %arg12[%c0_40, %c256_41] : memref<8x1024xbf16, #tpu.memory_space<vmem>>, vector<8x128xbf16>
    tpu.vector_store %arg12[%c0_40, %c256_41], %71 {strides = array<i32>} : memref<8x1024xbf16, #tpu.memory_space<vmem>>, vector<8x128xbf16>,
    %73 = vector.extract_strided_slice %51 {offsets = [0, 6, 0], sizes = [8, 1, 64], strides = [1, 1, 1]} : vector<8x16x64xf32> to vector<8x1x64xf32>
    %74 = vector.shape_cast %73 : vector<8x1x64xf32> to vector<8x64xf32>
    %75 = vector.extract_strided_slice %51 {offsets = [0, 7, 0], sizes = [8, 1, 64], strides = [1, 1, 1]} : vector<8x16x64xf32> to vector<8x1x64xf32>
    %76 = vector.shape_cast %75 : vector<8x1x64xf32> to vector<8x64xf32>
    %77 = tpu.concatenate %74, %76 in 1 : vector<8x64xf32>, vector<8x64xf32> -> vector<8x128xf32>
    %78 = arith.truncf %77 : vector<8x128xf32> to vector<8x128xbf16>
    %c0_42 = arith.constant 0 : index
    %c384_43 = arith.constant 384 : index
    %79 = vector.load %arg12[%c0_42, %c384_43] : memref<8x1024xbf16, #tpu.memory_space<vmem>>, vector<8x128xbf16>
    tpu.vector_store %arg12[%c0_42, %c384_43], %78 {strides = array<i32>} : memref<8x1024xbf16, #tpu.memory_space<vmem>>, vector<8x128xbf16>,
    %80 = vector.extract_strided_slice %51 {offsets = [0, 8, 0], sizes = [8, 1, 64], strides = [1, 1, 1]} : vector<8x16x64xf32> to vector<8x1x64xf32>
    %81 = vector.shape_cast %80 : vector<8x1x64xf32> to vector<8x64xf32>
    %82 = vector.extract_strided_slice %51 {offsets = [0, 9, 0], sizes = [8, 1, 64], strides = [1, 1, 1]} : vector<8x16x64xf32> to vector<8x1x64xf32>
    %83 = vector.shape_cast %82 : vector<8x1x64xf32> to vector<8x64xf32>
    %84 = tpu.concatenate %81, %83 in 1 : vector<8x64xf32>, vector<8x64xf32> -> vector<8x128xf32>
    %85 = arith.truncf %84 : vector<8x128xf32> to vector<8x128xbf16>
    %c0_44 = arith.constant 0 : index
    %c512 = arith.constant 512 : index
    %86 = vector.load %arg12[%c0_44, %c512] : memref<8x1024xbf16, #tpu.memory_space<vmem>>, vector<8x128xbf16>
    tpu.vector_store %arg12[%c0_44, %c512], %85 {strides = array<i32>} : memref<8x1024xbf16, #tpu.memory_space<vmem>>, vector<8x128xbf16>,
    %87 = vector.extract_strided_slice %51 {offsets = [0, 10, 0], sizes = [8, 1, 64], strides = [1, 1, 1]} : vector<8x16x64xf32> to vector<8x1x64xf32>
    %88 = vector.shape_cast %87 : vector<8x1x64xf32> to vector<8x64xf32>
    %89 = vector.extract_strided_slice %51 {offsets = [0, 11, 0], sizes = [8, 1, 64], strides = [1, 1, 1]} : vector<8x16x64xf32> to vector<8x1x64xf32>
    %90 = vector.shape_cast %89 : vector<8x1x64xf32> to vector<8x64xf32>
    %91 = tpu.concatenate %88, %90 in 1 : vector<8x64xf32>, vector<8x64xf32> -> vector<8x128xf32>
    %92 = arith.truncf %91 : vector<8x128xf32> to vector<8x128xbf16>
    %c0_45 = arith.constant 0 : index
    %c640 = arith.constant 640 : index
    %93 = vector.load %arg12[%c0_45, %c640] : memref<8x1024xbf16, #tpu.memory_space<vmem>>, vector<8x128xbf16>
    tpu.vector_store %arg12[%c0_45, %c640], %92 {strides = array<i32>} : memref<8x1024xbf16, #tpu.memory_space<vmem>>, vector<8x128xbf16>,
    %94 = vector.extract_strided_slice %51 {offsets = [0, 12, 0], sizes = [8, 1, 64], strides = [1, 1, 1]} : vector<8x16x64xf32> to vector<8x1x64xf32>
    %95 = vector.shape_cast %94 : vector<8x1x64xf32> to vector<8x64xf32>
    %96 = vector.extract_strided_slice %51 {offsets = [0, 13, 0], sizes = [8, 1, 64], strides = [1, 1, 1]} : vector<8x16x64xf32> to vector<8x1x64xf32>
    %97 = vector.shape_cast %96 : vector<8x1x64xf32> to vector<8x64xf32>
    %98 = tpu.concatenate %95, %97 in 1 : vector<8x64xf32>, vector<8x64xf32> -> vector<8x128xf32>
    %99 = arith.truncf %98 : vector<8x128xf32> to vector<8x128xbf16>
    %c0_46 = arith.constant 0 : index
    %c768 = arith.constant 768 : index
    %100 = vector.load %arg12[%c0_46, %c768] : memref<8x1024xbf16, #tpu.memory_space<vmem>>, vector<8x128xbf16>
    tpu.vector_store %arg12[%c0_46, %c768], %99 {strides = array<i32>} : memref<8x1024xbf16, #tpu.memory_space<vmem>>, vector<8x128xbf16>,
    %101 = vector.extract_strided_slice %51 {offsets = [0, 14, 0], sizes = [8, 1, 64], strides = [1, 1, 1]} : vector<8x16x64xf32> to vector<8x1x64xf32>
    %102 = vector.shape_cast %101 : vector<8x1x64xf32> to vector<8x64xf32>
    %103 = vector.extract_strided_slice %51 {offsets = [0, 15, 0], sizes = [8, 1, 64], strides = [1, 1, 1]} : vector<8x16x64xf32> to vector<8x1x64xf32>
    %104 = vector.shape_cast %103 : vector<8x1x64xf32> to vector<8x64xf32>
    %105 = tpu.concatenate %102, %104 in 1 : vector<8x64xf32>, vector<8x64xf32> -> vector<8x128xf32>
    %106 = arith.truncf %105 : vector<8x128xf32> to vector<8x128xbf16>
    %c0_47 = arith.constant 0 : index
    %c896 = arith.constant 896 : index
    %107 = vector.load %arg12[%c0_47, %c896] : memref<8x1024xbf16, #tpu.memory_space<vmem>>, vector<8x128xbf16>
    tpu.vector_store %arg12[%c0_47, %c896], %106 {strides = array<i32>} : memref<8x1024xbf16, #tpu.memory_space<vmem>>, vector<8x128xbf16>,
    %c0_48 = arith.constant 0 : index
    %c0_49 = arith.constant 0 : index
    %108 = vector.load %arg12[%c0_48, %c0_49] : memref<8x1024xbf16, #tpu.memory_space<vmem>>, vector<8x1024xbf16>
    %c0_50 = arith.constant 0 : index
    %c0_51 = arith.constant 0 : index
    %109 = vector.load %arg6[%c0_50, %c0_51] : memref<1024x256xbf16, #tpu.memory_space<vmem>>, vector<1024x256xbf16>
    %cst_52 = arith.constant dense<0.000000e+00> : vector<8x256xf32>
    %110 = tpu.matmul %108, %109, %cst_52 {dimension_numbers = #tpu.dot_dimension_numbers<[1], [0], [0], [1], [0, 0, 1, 1], [], []>} : vector<8x1024xbf16>, vector<1024x256xbf16>, vector<8x256xf32> -> vector<8x256xf32>
    %c0_53 = arith.constant 0 : index
    %c0_54 = arith.constant 0 : index
    %111 = vector.load %arg7[%c0_53, %c0_54] : memref<1x256xf32, #tpu.memory_space<vmem>>, vector<1x256xf32>
    %112 = vector.broadcast %111 : vector<1x256xf32> to vector<8x256xf32>
    %113 = arith.addf %110, %112 : vector<8x256xf32>
    %cst_55 = arith.constant 0.000000e+00 : f32
    %114 = vector.broadcast %cst_55 : f32 to vector<8x256xf32>
    %115 = arith.maximumf %113, %114 : vector<8x256xf32>
    %116 = arith.truncf %115 : vector<8x256xf32> to vector<8x256xbf16>
    %c0_56 = arith.constant 0 : index
    %c0_57 = arith.constant 0 : index
    %117 = vector.load %arg8[%c0_56, %c0_57] : memref<256x128xbf16, #tpu.memory_space<vmem>>, vector<256x128xbf16>
    %cst_58 = arith.constant dense<0.000000e+00> : vector<8x128xf32>
    %118 = tpu.matmul %116, %117, %cst_58 {dimension_numbers = #tpu.dot_dimension_numbers<[1], [0], [0], [1], [0, 0, 1, 1], [], []>} : vector<8x256xbf16>, vector<256x128xbf16>, vector<8x128xf32> -> vector<8x128xf32>
    %c0_59 = arith.constant 0 : index
    %c0_60 = arith.constant 0 : index
    %119 = vector.load %arg9[%c0_59, %c0_60] : memref<1x128xf32, #tpu.memory_space<vmem>>, vector<1x128xf32>
    %120 = vector.broadcast %119 : vector<1x128xf32> to vector<8x128xf32>
    %121 = arith.addf %118, %120 : vector<8x128xf32>
    %c0_61 = arith.constant 0 : index
    %c0_62 = arith.constant 0 : index
    %122 = vector.load %arg10[%c0_61, %c0_62] : memref<8x128xf32, #tpu.memory_space<vmem>>, vector<8x128xf32>
    tpu.vector_store %arg10[%c0_61, %c0_62], %121 {strides = array<i32>} : memref<8x128xf32, #tpu.memory_space<vmem>>, vector<8x128xf32>,
    return
  }
  func.func @transform_0(%arg0: i32) -> (i32, i32) {
    %c0_i32 = arith.constant 0 : i32
    %c0_i32_0 = arith.constant 0 : i32
    return %arg0, %c0_i32 : i32, i32
  }
  func.func @transform_1(%arg0: i32) -> (i32, i32) {
    %c0_i32 = arith.constant 0 : i32
    %c0_i32_0 = arith.constant 0 : i32
    %c0_i32_1 = arith.constant 0 : i32
    return %c0_i32, %c0_i32_0 : i32, i32
  }
  func.func @transform_2(%arg0: i32) -> (i32, i32) {
    %c0_i32 = arith.constant 0 : i32
    %c0_i32_0 = arith.constant 0 : i32
    %c0_i32_1 = arith.constant 0 : i32
    return %c0_i32, %c0_i32_0 : i32, i32
  }
  func.func @transform_3(%arg0: i32) -> (i32, i32) {
    %c0_i32 = arith.constant 0 : i32
    %c0_i32_0 = arith.constant 0 : i32
    %c0_i32_1 = arith.constant 0 : i32
    return %c0_i32, %c0_i32_0 : i32, i32
  }
  func.func @transform_4(%arg0: i32) -> (i32, i32) {
    %c0_i32 = arith.constant 0 : i32
    %c0_i32_0 = arith.constant 0 : i32
    %c0_i32_1 = arith.constant 0 : i32
    return %c0_i32, %c0_i32_0 : i32, i32
  }
  func.func @transform_5(%arg0: i32) -> (i32, i32) {
    %c0_i32 = arith.constant 0 : i32
    %c0_i32_0 = arith.constant 0 : i32
    %c0_i32_1 = arith.constant 0 : i32
    return %c0_i32, %c0_i32_0 : i32, i32
  }
  func.func @transform_6(%arg0: i32) -> (i32, i32) {
    %c0_i32 = arith.constant 0 : i32
    %c0_i32_0 = arith.constant 0 : i32
    %c0_i32_1 = arith.constant 0 : i32
    return %c0_i32, %c0_i32_0 : i32, i32
  }
  func.func @transform_7(%arg0: i32) -> (i32, i32) {
    %c0_i32 = arith.constant 0 : i32
    %c0_i32_0 = arith.constant 0 : i32
    %c0_i32_1 = arith.constant 0 : i32
    return %c0_i32, %c0_i32_0 : i32, i32
  }
  func.func @transform_8(%arg0: i32) -> (i32, i32) {
    %c0_i32 = arith.constant 0 : i32
    %c0_i32_0 = arith.constant 0 : i32
    %c0_i32_1 = arith.constant 0 : i32
    return %c0_i32, %c0_i32_0 : i32, i32
  }
  func.func @transform_9(%arg0: i32) -> (i32, i32) {
    %c0_i32 = arith.constant 0 : i32
    %c0_i32_0 = arith.constant 0 : i32
    return %arg0, %c0_i32 : i32, i32
  }
}

</mosaic_0001>

<llo_original>
// kernel: tpu_custom_call.1
$region0: #{tpu_custom_call.1}
  #allocation0 [shape = 'u32[]', space=smem, size = 0x4, offset = 0x4, fixed_abs, tag = 'smem constant byte address 0x4 - core index']
  #allocation1 [shape = 'u32[144,128]{1,0:T(1,128)}', space=vmem, size = 0x12000, scoped, tag = 'internal scratch']
  #allocation2 [shape = 'bf16[8,18,256]{2,1,0:T(8,128)(2,1)}', space=vmem, size = 0x18000, scoped, tag = 'scratch operand']
  #allocation3 [shape = 'bf16[8,1024]{1,0:T(8,128)(2,1)}', space=vmem, size = 0x4000, scoped, tag = 'scratch operand']
  %s0 = inlined_call_operand.vmem [shape: bf16[256,6], index: 0, kind: input, shape index: {}]
  %s1 = inlined_call_operand.vmem [shape: bf16[6,512], index: 1, kind: input, shape index: {}]
  %s2 = inlined_call_operand.vmem [shape: f32[1,128], index: 2, kind: input, shape index: {}]
  %s3 = inlined_call_operand.hbm [shape: bf16[512,128], index: 3, kind: input, shape index: {}]
  %s4 = inlined_call_operand.vmem [shape: f32[1,64], index: 4, kind: input, shape index: {}]
  %s5 = inlined_call_operand.hbm [shape: bf16[1024,256], index: 5, kind: input, shape index: {}]
  %s6 = inlined_call_operand.vmem [shape: f32[1,256], index: 6, kind: input, shape index: {}]
  %s7 = inlined_call_operand.vmem [shape: bf16[256,128], index: 7, kind: input, shape index: {}]
  %s8 = inlined_call_operand.vmem [shape: f32[1,128], index: 8, kind: input, shape index: {}]
  %s9 = inlined_call_operand.hbm [shape: f32[16,128], index: 9, kind: output, shape index: {}]
  %s10 = sld [smem:[#allocation0]]
  $region77: #{tpu_custom_call.1} parent=0
    _
  %s12 = ssub.s32 1, %s10
  %s13 = scalar_select 0, %s12, %s10
  $region1: #{tpu_custom_call.1} parent=0
    #allocation4 [shape = 'u8[131072]{0}', space=vmem, size = 0x20000, scoped, tag = 'input window, operand 3, single buffered']
    #allocation5 [shape = 's32[2]{0}', space=sflag, size = 0x8, scoped, tag = 'scoped memory for tpu_custom_call.1']
    #allocation6 [shape = 's32[2]{0}', space=sflag, size = 0x8, scoped, tag = 'scoped memory for tpu_custom_call.1']
    #allocation7 [shape = 'u8[524288]{0}', space=vmem, size = 0x80000, scoped, tag = 'input window, operand 5, single buffered']
    #allocation8 [shape = 's32[1]{0}', space=sflag, size = 0x4, scoped, tag = 'scoped memory for tpu_custom_call.1']
    #allocation9 [shape = 'u8[8192]{0}', space=vmem, size = 0x2000, scoped, tag = 'output window, operand 0']
    %14 = vsyncpa [#allocation5], 0
    %15 = vsyncpa [#allocation8], 0
    %16 = vsyncpa [#allocation6], 0
    %s17 = scalar_lea.sflag [#allocation6], 1
    %18 = vsyncpa %s17, 0
    loop: start=0, step=1, limit=4
    $region2: #{tpu_custom_call.1} parent=1 // loop_pre_header
      _
    $region3: #{tpu_custom_call.1} parent=1 // loop_header
      %s20 = sphi 0, %s24
      %p21 = scmp.ge.s32.totalorder %s20, 4
      %s30 = sphi 0, %s32
      %s33 = sphi 0, %s30
      %s34 = sphi 0, %s33
      %s50 = sphi 0, %s34
      %s54 = sphi 0, %s54
      %s56 = sphi 0, %s54
      %s57 = sphi 0, %s56
      %s71 = sphi 0, %s57
      %s75 = sphi 0, %s75
      %s77 = sphi 0, %s75
      %s78 = sphi 0, %s77
      %s92 = sphi 0, %s78
      %s96 = sphi 0, %s96
      %s98 = sphi 0, %s96
      %s99 = sphi 0, %s98
      %s113 = sphi 0, %s99
      %s117 = sphi 0, %s117
      %s119 = sphi 0, %s117
      %s120 = sphi 0, %s119
      %s134 = sphi 0, %s120
      %s138 = sphi 0, %s138
      %s140 = sphi 0, %s138
      %s141 = sphi 0, %s140
      %s155 = sphi 0, %s141
      %s159 = sphi 0, %s159
      %s161 = sphi 0, %s159
      %s162 = sphi 0, %s161
      %s176 = sphi 0, %s162
      %s180 = sphi 0, %s180
      %s182 = sphi 0, %s180
      %s183 = sphi 0, %s182
      %s197 = sphi 0, %s183
      %s201 = sphi 0, %s201
      %s203 = sphi 0, %s201
      %s204 = sphi 0, %s203
      %s218 = sphi 0, %s204
      %s224 = sphi 0, %s226
      %s227 = sphi 0, %s224
      %s228 = sphi 0, %s227
      %s244 = sphi 0, %s228
    $region4: #{tpu_custom_call.1} parent=1 // loop_header_branch
      %23 = sbr.rel (%p21) target = $region8
    $region5: #{tpu_custom_call.1} parent=1 // loop_body
      %s25 = ssub.s32 %s20, 1
      %s26 = ssub.s32 %s20, 2
      %s27 = sadd.s32 %s20, 1
      %s28 = ssub.s32 %s20, %s27
      %p29 = scmp.eq.s32.totalorder %s28, 0
      %s31 = sadd.s32 %s30, 1
      %s32 = scalar_select %p29, %s30, %s31
      %p35 = pneg %p29
      %p36 = scmp.eq.s32.totalorder %s20, 1
      %p37 = por %p35, %p36
      %p38 = scmp.ne.s32.totalorder %s30, %s33
      %p39 = scmp.eq.s32.totalorder %s20, 0
      %p40 = por %p38, %p39
      %p41 = scmp.ne.s32.totalorder %s30, %s33
      %p42 = scmp.eq.s32.totalorder %s25, 1
      %p43 = por %p41, %p42
      %p44 = scmp.ne.s32.totalorder %s33, %s34
      %p45 = scmp.eq.s32.totalorder %s25, 0
      %p46 = por %p44, %p45
      %p47 = scmp.ne.s32.totalorder %s33, %s34
      %p48 = scmp.eq.s32.totalorder %s26, 1
      %p49 = por %p47, %p48
      %p51 = scmp.ne.s32.totalorder %s34, %s50
      %p52 = scmp.eq.s32.totalorder %s26, 0
      %p53 = por %p51, %p52
      %s55 = sadd.s32 %s54, 1
      %p58 = scmp.eq.s32.totalorder %s20, 1
      %p59 = scmp.ne.s32.totalorder %s54, %s56
      %p60 = scmp.eq.s32.totalorder %s20, 0
      %p61 = por %p59, %p60
      %p62 = scmp.ne.s32.totalorder %s54, %s56
      %p63 = scmp.eq.s32.totalorder %s25, 1
      %p64 = por %p62, %p63
      %p65 = scmp.ne.s32.totalorder %s56, %s57
      %p66 = scmp.eq.s32.totalorder %s25, 0
      %p67 = por %p65, %p66
      %p68 = scmp.ne.s32.totalorder %s56, %s57
      %p69 = scmp.eq.s32.totalorder %s26, 1
      %p70 = por %p68, %p69
      %p72 = scmp.ne.s32.totalorder %s57, %s71
      %p73 = scmp.eq.s32.totalorder %s26, 0
      %p74 = por %p72, %p73
      %s76 = sadd.s32 %s75, 1
      %p79 = scmp.eq.s32.totalorder %s20, 1
      %p80 = scmp.ne.s32.totalorder %s75, %s77
      %p81 = scmp.eq.s32.totalorder %s20, 0
      %p82 = por %p80, %p81
      %p83 = scmp.ne.s32.totalorder %s75, %s77
      %p84 = scmp.eq.s32.totalorder %s25, 1
      %p85 = por %p83, %p84
      %p86 = scmp.ne.s32.totalorder %s77, %s78
      %p87 = scmp.eq.s32.totalorder %s25, 0
      %p88 = por %p86, %p87
      %p89 = scmp.ne.s32.totalorder %s77, %s78
      %p90 = scmp.eq.s32.totalorder %s26, 1
      %p91 = por %p89, %p90
      %p93 = scmp.ne.s32.totalorder %s78, %s92
      %p94 = scmp.eq.s32.totalorder %s26, 0
      %p95 = por %p93, %p94
      %s97 = sadd.s32 %s96, 1
      %p100 = scmp.eq.s32.totalorder %s20, 1
      %p101 = scmp.ne.s32.totalorder %s96, %s98
      %p102 = scmp.eq.s32.totalorder %s20, 0
      %p103 = por %p101, %p102
      %p104 = scmp.ne.s32.totalorder %s96, %s98
      %p105 = scmp.eq.s32.totalorder %s25, 1
      %p106 = por %p104, %p105
      %p107 = scmp.ne.s32.totalorder %s98, %s99
      %p108 = scmp.eq.s32.totalorder %s25, 0
      %p109 = por %p107, %p108
      %p110 = scmp.ne.s32.totalorder %s98, %s99
      %p111 = scmp.eq.s32.totalorder %s26, 1
      %p112 = por %p110, %p111
      %p114 = scmp.ne.s32.totalorder %s99, %s113
      %p115 = scmp.eq.s32.totalorder %s26, 0
      %p116 = por %p114, %p115
      %s118 = sadd.s32 %s117, 1
      %p121 = scmp.eq.s32.totalorder %s20, 1
      %p122 = scmp.ne.s32.totalorder %s117, %s119
      %p123 = scmp.eq.s32.totalorder %s20, 0
      %p124 = por %p122, %p123
      %p125 = scmp.ne.s32.totalorder %s117, %s119
      %p126 = scmp.eq.s32.totalorder %s25, 1
      %p127 = por %p125, %p126
      %p128 = scmp.ne.s32.totalorder %s119, %s120
      %p129 = scmp.eq.s32.totalorder %s25, 0
      %p130 = por %p128, %p129
      %p131 = scmp.ne.s32.totalorder %s119, %s120
      %p132 = scmp.eq.s32.totalorder %s26, 1
      %p133 = por %p131, %p132
      %p135 = scmp.ne.s32.totalorder %s120, %s134
      %p136 = scmp.eq.s32.totalorder %s26, 0
      %p137 = por %p135, %p136
      %s139 = sadd.s32 %s138, 1
      %p142 = scmp.eq.s32.totalorder %s20, 1
      %p143 = scmp.ne.s32.totalorder %s138, %s140
      %p144 = scmp.eq.s32.totalorder %s20, 0
      %p145 = por %p143, %p144
      %p146 = scmp.ne.s32.totalorder %s138, %s140
      %p147 = scmp.eq.s32.totalorder %s25, 1
      %p148 = por %p146, %p147
      %p149 = scmp.ne.s32.totalorder %s140, %s141
      %p150 = scmp.eq.s32.totalorder %s25, 0
      %p151 = por %p149, %p150
      %p152 = scmp.ne.s32.totalorder %s140, %s141
      %p153 = scmp.eq.s32.totalorder %s26, 1
      %p154 = por %p152, %p153
      %p156 = scmp.ne.s32.totalorder %s141, %s155
      %p157 = scmp.eq.s32.totalorder %s26, 0
      %p158 = por %p156, %p157
      %s160 = sadd.s32 %s159, 1
      %p163 = scmp.eq.s32.totalorder %s20, 1
      %p164 = scmp.ne.s32.totalorder %s159, %s161
      %p165 = scmp.eq.s32.totalorder %s20, 0
      %p166 = por %p164, %p165
      %p167 = scmp.ne.s32.totalorder %s159, %s161
      %p168 = scmp.eq.s32.totalorder %s25, 1
      %p169 = por %p167, %p168
      %p170 = scmp.ne.s32.totalorder %s161, %s162
      %p171 = scmp.eq.s32.totalorder %s25, 0
      %p172 = por %p170, %p171
      %p173 = scmp.ne.s32.totalorder %s161, %s162
      %p174 = scmp.eq.s32.totalorder %s26, 1
      %p175 = por %p173, %p174
      %p177 = scmp.ne.s32.totalorder %s162, %s176
      %p178 = scmp.eq.s32.totalorder %s26, 0
      %p179 = por %p177, %p178
      %s181 = sadd.s32 %s180, 1
      %p184 = scmp.eq.s32.totalorder %s20, 1
      %p185 = scmp.ne.s32.totalorder %s180, %s182
      %p186 = scmp.eq.s32.totalorder %s20, 0
      %p187 = por %p185, %p186
      %p188 = scmp.ne.s32.totalorder %s180, %s182
      %p189 = scmp.eq.s32.totalorder %s25, 1
      %p190 = por %p188, %p189
      %p191 = scmp.ne.s32.totalorder %s182, %s183
      %p192 = scmp.eq.s32.totalorder %s25, 0
      %p193 = por %p191, %p192
      %p194 = scmp.ne.s32.totalorder %s182, %s183
      %p195 = scmp.eq.s32.totalorder %s26, 1
      %p196 = por %p194, %p195
      %p198 = scmp.ne.s32.totalorder %s183, %s197
      %p199 = scmp.eq.s32.totalorder %s26, 0
      %p200 = por %p198, %p199
      %s202 = sadd.s32 %s201, 1
      %p205 = scmp.eq.s32.totalorder %s20, 1
      %p206 = scmp.ne.s32.totalorder %s201, %s203
      %p207 = scmp.eq.s32.totalorder %s20, 0
      %p208 = por %p206, %p207
      %p209 = scmp.ne.s32.totalorder %s201, %s203
      %p210 = scmp.eq.s32.totalorder %s25, 1
      %p211 = por %p209, %p210
      %p212 = scmp.ne.s32.totalorder %s203, %s204
      %p213 = scmp.eq.s32.totalorder %s25, 0
      %p214 = por %p212, %p213
      %p215 = scmp.ne.s32.totalorder %s203, %s204
      %p216 = scmp.eq.s32.totalorder %s26, 1
      %p217 = por %p215, %p216
      %p219 = scmp.ne.s32.totalorder %s204, %s218
      %p220 = scmp.eq.s32.totalorder %s26, 0
      %p221 = por %p219, %p220
      %s222 = ssub.s32 %s20, %s27
      %p223 = scmp.eq.s32.totalorder %s222, 0
      %s225 = sadd.s32 %s224, 1
      %s226 = scalar_select %p223, %s224, %s225
      %p229 = pneg %p223
      %p230 = scmp.eq.s32.totalorder %s20, 1
      %p231 = por %p229, %p230
      %p232 = scmp.ne.s32.totalorder %s224, %s227
      %p233 = scmp.eq.s32.totalorder %s20, 0
      %p234 = por %p232, %p233
      %p235 = scmp.ne.s32.totalorder %s224, %s227
      %p236 = scmp.eq.s32.totalorder %s25, 1
      %p237 = por %p235, %p236
      %p238 = scmp.ne.s32.totalorder %s227, %s228
      %p239 = scmp.eq.s32.totalorder %s25, 0
      %p240 = por %p238, %p239
      %p241 = scmp.ne.s32.totalorder %s227, %s228
      %p242 = scmp.eq.s32.totalorder %s26, 1
      %p243 = por %p241, %p242
      %p245 = scmp.ne.s32.totalorder %s228, %s244
      %p246 = scmp.eq.s32.totalorder %s26, 0
      %p247 = por %p245, %p246
      %p248 = scmp.le.s32.totalorder 1, %s20
      %p249 = scmp.lt.s32.totalorder %s20, 3
      %p250 = pnand %p248, %p249
      %p251 = pneg %p250
      // Predicated region
      $region9: #{tpu_custom_call.1} parent=5 // pred_check
        _
      $region10: #{tpu_custom_call.1} parent=5 // pred_check_branch
        %253 = sbr.rel (%p250) target = $region12
      $region11: #{tpu_custom_call.1} parent=5 // pred_region
        %s254 = ssub.s32 %s20, 1
        // Predicated region
        $region13: #{tpu_custom_call.1} parent=11 // pred_check
          %p255 = pneg %p67
        $region14: #{tpu_custom_call.1} parent=11 // pred_check_branch
          %257 = sbr.rel (%p255) target = $region16
        $region15: #{tpu_custom_call.1} parent=11 // pred_region
          _
        $region16: #{tpu_custom_call.1} parent=11 // pred_fallthru
          _
        // Predicated region
        $region17: #{tpu_custom_call.1} parent=11 // pred_check
          %p258 = pneg %p88
        $region18: #{tpu_custom_call.1} parent=11 // pred_check_branch
          %260 = sbr.rel (%p258) target = $region20
        $region19: #{tpu_custom_call.1} parent=11 // pred_region
          _
        $region20: #{tpu_custom_call.1} parent=11 // pred_fallthru
          _
        // Predicated region
        $region21: #{tpu_custom_call.1} parent=11 // pred_check
          %p261 = pneg %p109
        $region22: #{tpu_custom_call.1} parent=11 // pred_check_branch
          %263 = sbr.rel (%p261) target = $region24
        $region23: #{tpu_custom_call.1} parent=11 // pred_region
          %s265 = ssub.s32 4096, 4096
          %266 = vsyncadd [#allocation5], %s265
          %s267 = sshll.u32 [#allocation4], 4
          %s268 = int_to_ptr.vmem [resolvable:$true] %s267
          %273 = dma.hbm_to_vmem [thread:$0]  %s3, 4096, %s268, [#allocation5], 64, 64, 4
        $region24: #{tpu_custom_call.1} parent=11 // pred_fallthru
          _
        // Predicated region
        $region25: #{tpu_custom_call.1} parent=11 // pred_check
          %p274 = pneg %p130
        $region26: #{tpu_custom_call.1} parent=11 // pred_check_branch
          %276 = sbr.rel (%p274) target = $region28
        $region27: #{tpu_custom_call.1} parent=11 // pred_region
          _
        $region28: #{tpu_custom_call.1} parent=11 // pred_fallthru
          _
        // Predicated region
        $region29: #{tpu_custom_call.1} parent=11 // pred_check
          %p277 = pneg %p151
        $region30: #{tpu_custom_call.1} parent=11 // pred_check_branch
          %279 = sbr.rel (%p277) target = $region32
        $region31: #{tpu_custom_call.1} parent=11 // pred_region
          %s281 = ssub.s32 16384, 16384
          %282 = vsyncadd [#allocation8], %s281
          %s283 = sshll.u32 [#allocation7], 4
          %s284 = int_to_ptr.vmem [resolvable:$true] %s283
          %289 = dma.hbm_to_vmem [thread:$0]  %s5, 16384, %s284, [#allocation8], 128, 128, 8
        $region32: #{tpu_custom_call.1} parent=11 // pred_fallthru
          _
        // Predicated region
        $region33: #{tpu_custom_call.1} parent=11 // pred_check
          %p290 = pneg %p172
        $region34: #{tpu_custom_call.1} parent=11 // pred_check_branch
          %292 = sbr.rel (%p290) target = $region36
        $region35: #{tpu_custom_call.1} parent=11 // pred_region
          _
        $region36: #{tpu_custom_call.1} parent=11 // pred_fallthru
          _
        // Predicated region
        $region37: #{tpu_custom_call.1} parent=11 // pred_check
          %p293 = pneg %p193
        $region38: #{tpu_custom_call.1} parent=11 // pred_check_branch
          %295 = sbr.rel (%p293) target = $region40
        $region39: #{tpu_custom_call.1} parent=11 // pred_region
          _
        $region40: #{tpu_custom_call.1} parent=11 // pred_fallthru
          _
        // Predicated region
        $region41: #{tpu_custom_call.1} parent=11 // pred_check
          %p296 = pneg %p214
        $region42: #{tpu_custom_call.1} parent=11 // pred_check_branch
          %298 = sbr.rel (%p296) target = $region44
        $region43: #{tpu_custom_call.1} parent=11 // pred_region
          _
        $region44: #{tpu_custom_call.1} parent=11 // pred_fallthru
          _
      $region12: #{tpu_custom_call.1} parent=5 // pred_fallthru
        _
      %p299 = scmp.lt.s32.totalorder %s20, 2
      // Predicated region
      $region45: #{tpu_custom_call.1} parent=5 // pred_check
        %p300 = pneg %p299
      $region46: #{tpu_custom_call.1} parent=5 // pred_check_branch
        %302 = sbr.rel (%p300) target = $region48
      $region47: #{tpu_custom_call.1} parent=5 // pred_region
        // Predicated region
        $region49: #{tpu_custom_call.1} parent=47 // pred_check
          %p303 = pneg %p40
        $region50: #{tpu_custom_call.1} parent=47 // pred_check_branch
          %305 = sbr.rel (%p303) target = $region52
        $region51: #{tpu_custom_call.1} parent=47 // pred_region
          %s306 = smul.u32 16, %s20
          %p307 = scmp.lt.s32.totalorder %s306, 31
          %s308 = scalar_select %p307, %s306, 31
          %s309 = smul.addr %s308, 4
          %s310 = scalar_lea.vmem %s0, %s309
          %s311 = smul.u32 16, %s20
        $region52: #{tpu_custom_call.1} parent=47 // pred_fallthru
          _
      $region48: #{tpu_custom_call.1} parent=5 // pred_fallthru
        _
      %p312 = scmp.le.s32.totalorder 1, %s20
      %p313 = scmp.lt.s32.totalorder %s20, 3
      %p314 = pnand %p312, %p313
      %p315 = pneg %p314
      // Predicated region
      $region53: #{tpu_custom_call.1} parent=5 // pred_check
        _
      $region54: #{tpu_custom_call.1} parent=5 // pred_check_branch
        %317 = sbr.rel (%p314) target = $region56
      $region55: #{tpu_custom_call.1} parent=5 // pred_region
        %s318 = ssub.s32 %s20, 1
        // Predicated region
        $region57: #{tpu_custom_call.1} parent=55 // pred_check
          %p319 = pneg %p109
        $region58: #{tpu_custom_call.1} parent=55 // pred_check_branch
          %321 = sbr.rel (%p319) target = $region60
        $region59: #{tpu_custom_call.1} parent=55 // pred_region
          %322 = dma.done [#allocation5], 4096
        $region60: #{tpu_custom_call.1} parent=55 // pred_fallthru
          _
        // Predicated region
        $region61: #{tpu_custom_call.1} parent=55 // pred_check
          %p323 = pneg %p151
        $region62: #{tpu_custom_call.1} parent=55 // pred_check_branch
          %325 = sbr.rel (%p323) target = $region64
        $region63: #{tpu_custom_call.1} parent=55 // pred_region
          %326 = dma.done [#allocation8], 16384
        $region64: #{tpu_custom_call.1} parent=55 // pred_fallthru
          _
        %s327 = smul.u32 16, %s25
        %p328 = scmp.lt.s32.totalorder %s327, 31
        %s329 = scalar_select %p328, %s327, 31
        %s330 = smul.addr %s329, 4
        %s331 = scalar_lea.vmem %s0, %s330
        %p332 = pneg %p46
        %p333 = pneg %p43
        %p334 = pneg %p67
        %p335 = pneg %p64
        %p336 = pneg %p88
        %p337 = pneg %p85
        %p338 = pneg %p109
        %p339 = pneg %p106
        %p340 = pneg %p130
        %p341 = pneg %p127
        %p342 = pneg %p151
        %p343 = pneg %p148
        %p344 = pneg %p172
        %p345 = pneg %p169
        %p346 = pneg %p193
        %p347 = pneg %p190
        %p348 = pneg %p214
        %p349 = pneg %p211
        %p350 = pneg %p240
        %p351 = pneg %p237
        %s352 = sand.u32 %s227, 1
        %s353 = scalar_lea.sflag [#allocation6], %s352
        %s354 = sand.u32 %s227, 1
        %s355 = smul.addr %s354, 8
        %s356 = scalar_lea.vmem [#allocation9], %s355
        %s357 = smul.u32 16, %s25
        %p358 = scmp.lt.s32.totalorder %s357, 31
        %s359 = scalar_select %p358, %s357, 31
        %s360 = smul.addr %s359, 4
        %s361 = scalar_lea.vmem %s0, %s360
        %s362 = smul.u32 16, %s25
        %v364 = vld [vmem:[%s361] sm:$0xf]
        %v365 = vld [vmem:[%s361 + $0x4] sm:$0xf]
        %v366 = vld [vmem:[%s361 + $0x8] sm:$0xf]
        %v367 = vld [vmem:[%s361 + $0xc] sm:$0xf]
        %v368 = vld [vmem:[%s361 + $0x10] sm:$0xf]
        %v369 = vld [vmem:[%s361 + $0x14] sm:$0xf]
        %v370 = vld [vmem:[%s361 + $0x18] sm:$0xf]
        %v371 = vld [vmem:[%s361 + $0x1c] sm:$0xf]
        %v372 = vld [vmem:[%s361 + $0x20] sm:$0xf]
        %v373 = vld [vmem:[%s361 + $0x24] sm:$0xf]
        %v374 = vld [vmem:[%s361 + $0x28] sm:$0xf]
        %v375 = vld [vmem:[%s361 + $0x2c] sm:$0xf]
        %v376 = vld [vmem:[%s361 + $0x30] sm:$0xf]
        %v377 = vld [vmem:[%s361 + $0x34] sm:$0xf]
        %v378 = vld [vmem:[%s361 + $0x38] sm:$0xf]
        %v379 = vld [vmem:[%s361 + $0x3c] sm:$0xf]
        %v380 = vld [vmem:[%s1] sm:$0x77]
        %v381 = vld [vmem:[%s1 + $0x8] sm:$0x77]
        %v398 = vunpack.c.l.b16 %v364
        %v399 = vunpack.c.l.b16 %v365
        %v400 = vunpack.c.l.b16 %v366
        %v401 = vunpack.c.l.b16 %v367
        %v402 = vunpack.c.l.b16 %v368
        %v403 = vunpack.c.l.b16 %v369
        %v404 = vunpack.c.l.b16 %v370
        %v405 = vunpack.c.l.b16 %v371
        %v406 = vunpack.c.l.b16 %v372
        %v407 = vunpack.c.l.b16 %v373
        %v408 = vunpack.c.l.b16 %v374
        %v409 = vunpack.c.l.b16 %v375
        %v410 = vunpack.c.l.b16 %v376
        %v411 = vunpack.c.l.b16 %v377
        %v412 = vunpack.c.l.b16 %v378
        %v413 = vunpack.c.l.b16 %v379
        %v414 = vpack.c.b16 %v399, %v398
        %v415 = vpack.c.b16 %v401, %v400
        %v416 = vpack.c.b16 %v403, %v402
        %v417 = vpack.c.b16 %v405, %v404
        %v418 = vpack.c.b16 %v407, %v406
        %v419 = vpack.c.b16 %v409, %v408
        %v420 = vpack.c.b16 %v411, %v410
        %v421 = vpack.c.b16 %v413, %v412
        %v424 = vunpack.c.l.b16 %v380
        %v425 = vunpack.c.h.b16 %v380
        %v426 = vunpack.c.l.b16 %v381
        %v427 = vunpack.c.h.b16 %v381
        %v428 = vpack.c.b16 %v424, %v424
        %v429 = vpack.c.b16 %v425, %v425
        %v430 = vpack.c.b16 %v426, %v426
        %v431 = vpack.c.b16 %v427, %v427
        %vm432 = vcmask 48128
        %v434 = vsel %vm432, %v414, 0
        %v437 = vsel %vm432, %v415, 0
        %v440 = vsel %vm432, %v416, 0
        %v443 = vsel %vm432, %v417, 0
        %v446 = vsel %vm432, %v418, 0
        %v449 = vsel %vm432, %v419, 0
        %v452 = vsel %vm432, %v420, 0
        %v455 = vsel %vm432, %v421, 0
        %vm457 = vcmask 1042432
        %v459 = vsel %vm457, %v428, 0
        %v462 = vsel %vm457, %v429, 0
        %v465 = vsel %vm457, %v430, 0
        %v468 = vsel %vm457, %v431, 0
        %470 = vmatprep.subr.bf16.mxu0 %v462
        %471 = vmatpush1.bf16.msra.mxu0 %v459
        %472 = vmatprep.subr.bf16.mxu0 0
        %473 = vmatpush1.bf16.msra.mxu0 0
        %474 = vmatprep.subr.bf16.mxu0 0
        %475 = vmatpush1.bf16.msra.mxu0 0
        %476 = vmatprep.subr.bf16.mxu0 0
        %477 = vmatpush1.bf16.msra.mxu0 0
        %478 = vmatprep.subr.bf16.mxu0 0
        %479 = vmatpush1.bf16.msra.mxu0 0
        %480 = vmatprep.subr.bf16.mxu0 0
        %481 = vmatpush1.bf16.msra.mxu0 0
        %482 = vmatprep.subr.bf16.mxu0 0
        %483 = vmatpush1.bf16.msra.mxu0 0
        %484 = vmatprep.subr.bf16.mxu0 0
        %485 = vmatpush1.bf16.msra.mxu0 0
        %486 = vmatprep.subr.bf16.mxu0 0
        %487 = vmatpush1.bf16.msra.mxu0 0
        %488 = vmatprep.subr.bf16.mxu0 0
        %489 = vmatpush1.bf16.msra.mxu0 0
        %490 = vmatprep.subr.bf16.mxu0 0
        %491 = vmatpush1.bf16.msra.mxu0 0
        %492 = vmatprep.subr.bf16.mxu0 0
        %493 = vmatpush1.bf16.msra.mxu0 0
        %494 = vmatprep.subr.bf16.mxu0 0
        %495 = vmatpush1.bf16.msra.mxu0 0
        %496 = vmatprep.subr.bf16.mxu0 0
        %497 = vmatpush1.bf16.msra.mxu0 0
        %498 = vmatprep.subr.bf16.mxu0 0
        %499 = vmatpush1.bf16.msra.mxu0 0
        %500 = vmatprep.subr.bf16.mxu0 0
        %501 = vmatpush1.bf16.msra.mxu0 0
        %502 = vmatprep.mubr.bf16.mxu0 0
        %503 = vmatmul.mubr.bf16.gmra.mrb[0].mxu0 %v434
        %v504 = vpop.f32.mrb[0].mxu0
        %v505 = vadd.f32 0.0, %v504
        %v506 = vpop.f32.mrb[0].mxu0
        %v507 = vadd.f32 0.0, %v506
        %v508 = vpop.f32.mrb[0].mxu0
        %v509 = vadd.f32 0.0, %v508
        %v510 = vpop.f32.mrb[0].mxu0
        %v511 = vadd.f32 0.0, %v510
        %512 = vmatprep.mubr.bf16.mxu0 0
        %513 = vmatmul.mubr.bf16.gmra.mrb[0].mxu0 %v437
        %v514 = vpop.f32.mrb[0].mxu0
        %v515 = vadd.f32 0.0, %v514
        %v516 = vpop.f32.mrb[0].mxu0
        %v517 = vadd.f32 0.0, %v516
        %v518 = vpop.f32.mrb[0].mxu0
        %v519 = vadd.f32 0.0, %v518
        %v520 = vpop.f32.mrb[0].mxu0
        %v521 = vadd.f32 0.0, %v520
        %522 = vmatprep.mubr.bf16.mxu0 0
        %523 = vmatmul.mubr.bf16.gmra.mrb[0].mxu0 %v440
        %v524 = vpop.f32.mrb[0].mxu0
        %v525 = vadd.f32 0.0, %v524
        %v526 = vpop.f32.mrb[0].mxu0
        %v527 = vadd.f32 0.0, %v526
        %v528 = vpop.f32.mrb[0].mxu0
        %v529 = vadd.f32 0.0, %v528
        %v530 = vpop.f32.mrb[0].mxu0
        %v531 = vadd.f32 0.0, %v530
        %532 = vmatprep.mubr.bf16.mxu0 0
        %533 = vmatmul.mubr.bf16.gmra.mrb[0].mxu0 %v443
        %v534 = vpop.f32.mrb[0].mxu0
        %v535 = vadd.f32 0.0, %v534
        %v536 = vpop.f32.mrb[0].mxu0
        %v537 = vadd.f32 0.0, %v536
        %v538 = vpop.f32.mrb[0].mxu0
        %v539 = vadd.f32 0.0, %v538
        %v540 = vpop.f32.mrb[0].mxu0
        %v541 = vadd.f32 0.0, %v540
        %542 = vmatprep.mubr.bf16.mxu0 0
        %543 = vmatmul.mubr.bf16.gmra.mrb[0].mxu0 %v446
        %v544 = vpop.f32.mrb[0].mxu0
        %v545 = vadd.f32 0.0, %v544
        %v546 = vpop.f32.mrb[0].mxu0
        %v547 = vadd.f32 0.0, %v546
        %v548 = vpop.f32.mrb[0].mxu0
        %v549 = vadd.f32 0.0, %v548
        %v550 = vpop.f32.mrb[0].mxu0
        %v551 = vadd.f32 0.0, %v550
        %552 = vmatprep.mubr.bf16.mxu0 0
        %553 = vmatmul.mubr.bf16.gmra.mrb[0].mxu0 %v449
        %v554 = vpop.f32.mrb[0].mxu0
        %v555 = vadd.f32 0.0, %v554
        %v556 = vpop.f32.mrb[0].mxu0
        %v557 = vadd.f32 0.0, %v556
        %v558 = vpop.f32.mrb[0].mxu0
        %v559 = vadd.f32 0.0, %v558
        %v560 = vpop.f32.mrb[0].mxu0
        %v561 = vadd.f32 0.0, %v560
        %562 = vmatprep.mubr.bf16.mxu0 0
        %563 = vmatmul.mubr.bf16.gmra.mrb[0].mxu0 %v452
        %v564 = vpop.f32.mrb[0].mxu0
        %v565 = vadd.f32 0.0, %v564
        %v566 = vpop.f32.mrb[0].mxu0
        %v567 = vadd.f32 0.0, %v566
        %v568 = vpop.f32.mrb[0].mxu0
        %v569 = vadd.f32 0.0, %v568
        %v570 = vpop.f32.mrb[0].mxu0
        %v571 = vadd.f32 0.0, %v570
        %572 = vmatprep.mubr.bf16.mxu0 0
        %573 = vmatmul.mubr.bf16.gmra.mrb[0].mxu0 %v455
        %v574 = vpop.f32.mrb[0].mxu0
        %v575 = vadd.f32 0.0, %v574
        %v576 = vpop.f32.mrb[0].mxu0
        %v577 = vadd.f32 0.0, %v576
        %v578 = vpop.f32.mrb[0].mxu0
        %v579 = vadd.f32 0.0, %v578
        %v580 = vpop.f32.mrb[0].mxu0
        %v581 = vadd.f32 0.0, %v580
        %582 = vdwg.mxu0
        %583 = vmatprep.subr.bf16.mxu0 %v468
        %584 = vmatpush1.bf16.msra.mxu0 %v465
        %585 = vmatprep.subr.bf16.mxu0 0
        %586 = vmatpush1.bf16.msra.mxu0 0
        %587 = vmatprep.subr.bf16.mxu0 0
        %588 = vmatpush1.bf16.msra.mxu0 0
        %589 = vmatprep.subr.bf16.mxu0 0
        %590 = vmatpush1.bf16.msra.mxu0 0
        %591 = vmatprep.subr.bf16.mxu0 0
        %592 = vmatpush1.bf16.msra.mxu0 0
        %593 = vmatprep.subr.bf16.mxu0 0
        %594 = vmatpush1.bf16.msra.mxu0 0
        %595 = vmatprep.subr.bf16.mxu0 0
        %596 = vmatpush1.bf16.msra.mxu0 0
        %597 = vmatprep.subr.bf16.mxu0 0
        %598 = vmatpush1.bf16.msra.mxu0 0
        %599 = vmatprep.subr.bf16.mxu0 0
        %600 = vmatpush1.bf16.msra.mxu0 0
        %601 = vmatprep.subr.bf16.mxu0 0
        %602 = vmatpush1.bf16.msra.mxu0 0
        %603 = vmatprep.subr.bf16.mxu0 0
        %604 = vmatpush1.bf16.msra.mxu0 0
        %605 = vmatprep.subr.bf16.mxu0 0
        %606 = vmatpush1.bf16.msra.mxu0 0
        %607 = vmatprep.subr.bf16.mxu0 0
        %608 = vmatpush1.bf16.msra.mxu0 0
        %609 = vmatprep.subr.bf16.mxu0 0
        %610 = vmatpush1.bf16.msra.mxu0 0
        %611 = vmatprep.subr.bf16.mxu0 0
        %612 = vmatpush1.bf16.msra.mxu0 0
        %613 = vmatprep.subr.bf16.mxu0 0
        %614 = vmatpush1.bf16.msra.mxu0 0
        %615 = vmatprep.mubr.bf16.mxu0 0
        %616 = vmatmul.mubr.bf16.gmra.mrb[0].mxu0 %v434
        %v617 = vpop.f32.mrb[0].mxu0
        %v618 = vadd.f32 0.0, %v617
        %v619 = vpop.f32.mrb[0].mxu0
        %v620 = vadd.f32 0.0, %v619
        %v621 = vpop.f32.mrb[0].mxu0
        %v622 = vadd.f32 0.0, %v621
        %v623 = vpop.f32.mrb[0].mxu0
        %v624 = vadd.f32 0.0, %v623
        %625 = vmatprep.mubr.bf16.mxu0 0
        %626 = vmatmul.mubr.bf16.gmra.mrb[0].mxu0 %v437
        %v627 = vpop.f32.mrb[0].mxu0
        %v628 = vadd.f32 0.0, %v627
        %v629 = vpop.f32.mrb[0].mxu0
        %v630 = vadd.f32 0.0, %v629
        %v631 = vpop.f32.mrb[0].mxu0
        %v632 = vadd.f32 0.0, %v631
        %v633 = vpop.f32.mrb[0].mxu0
        %v634 = vadd.f32 0.0, %v633
        %635 = vmatprep.mubr.bf16.mxu0 0
        %636 = vmatmul.mubr.bf16.gmra.mrb[0].mxu0 %v440
        %v637 = vpop.f32.mrb[0].mxu0
        %v638 = vadd.f32 0.0, %v637
        %v639 = vpop.f32.mrb[0].mxu0
        %v640 = vadd.f32 0.0, %v639
        %v641 = vpop.f32.mrb[0].mxu0
        %v642 = vadd.f32 0.0, %v641
        %v643 = vpop.f32.mrb[0].mxu0
        %v644 = vadd.f32 0.0, %v643
        %645 = vmatprep.mubr.bf16.mxu0 0
        %646 = vmatmul.mubr.bf16.gmra.mrb[0].mxu0 %v443
        %v647 = vpop.f32.mrb[0].mxu0
        %v648 = vadd.f32 0.0, %v647
        %v649 = vpop.f32.mrb[0].mxu0
        %v650 = vadd.f32 0.0, %v649
        %v651 = vpop.f32.mrb[0].mxu0
        %v652 = vadd.f32 0.0, %v651
        %v653 = vpop.f32.mrb[0].mxu0
        %v654 = vadd.f32 0.0, %v653
        %655 = vmatprep.mubr.bf16.mxu0 0
        %656 = vmatmul.mubr.bf16.gmra.mrb[0].mxu0 %v446
        %v657 = vpop.f32.mrb[0].mxu0
        %v658 = vadd.f32 0.0, %v657
        %v659 = vpop.f32.mrb[0].mxu0
        %v660 = vadd.f32 0.0, %v659
        %v661 = vpop.f32.mrb[0].mxu0
        %v662 = vadd.f32 0.0, %v661
        %v663 = vpop.f32.mrb[0].mxu0
        %v664 = vadd.f32 0.0, %v663
        %665 = vmatprep.mubr.bf16.mxu0 0
        %666 = vmatmul.mubr.bf16.gmra.mrb[0].mxu0 %v449
        %v667 = vpop.f32.mrb[0].mxu0
        %v668 = vadd.f32 0.0, %v667
        %v669 = vpop.f32.mrb[0].mxu0
        %v670 = vadd.f32 0.0, %v669
        %v671 = vpop.f32.mrb[0].mxu0
        %v672 = vadd.f32 0.0, %v671
        %v673 = vpop.f32.mrb[0].mxu0
        %v674 = vadd.f32 0.0, %v673
        %675 = vmatprep.mubr.bf16.mxu0 0
        %676 = vmatmul.mubr.bf16.gmra.mrb[0].mxu0 %v452
        %v677 = vpop.f32.mrb[0].mxu0
        %v678 = vadd.f32 0.0, %v677
        %v679 = vpop.f32.mrb[0].mxu0
        %v680 = vadd.f32 0.0, %v679
        %v681 = vpop.f32.mrb[0].mxu0
        %v682 = vadd.f32 0.0, %v681
        %v683 = vpop.f32.mrb[0].mxu0
        %v684 = vadd.f32 0.0, %v683
        %685 = vmatprep.mubr.bf16.mxu0 0
        %686 = vmatmul.mubr.bf16.gmra.mrb[0].mxu0 %v455
        %v687 = vpop.f32.mrb[0].mxu0
        %v688 = vadd.f32 0.0, %v687
        %v689 = vpop.f32.mrb[0].mxu0
        %v690 = vadd.f32 0.0, %v689
        %v691 = vpop.f32.mrb[0].mxu0
        %v692 = vadd.f32 0.0, %v691
        %v693 = vpop.f32.mrb[0].mxu0
        %v694 = vadd.f32 0.0, %v693
        %695 = vdwg.mxu0
        %v696 = vld [vmem:[%s2] sm:$0x1]
        %v697 = vmax.f32 %v505, %v507
        %v698 = vmax.f32 %v509, %v511
        %v699 = vmax.f32 %v515, %v517
        %v700 = vmax.f32 %v519, %v521
        %v701 = vmax.f32 %v525, %v527
        %v702 = vmax.f32 %v529, %v531
        %v703 = vmax.f32 %v535, %v537
        %v704 = vmax.f32 %v539, %v541
        %v705 = vmax.f32 %v545, %v547
        %v706 = vmax.f32 %v549, %v551
        %v707 = vmax.f32 %v555, %v557
        %v708 = vmax.f32 %v559, %v561
        %v709 = vmax.f32 %v565, %v567
        %v710 = vmax.f32 %v569, %v571
        %v711 = vmax.f32 %v575, %v577
        %v712 = vmax.f32 %v579, %v581
        %v714 = vlaneseq
        %v715 = vshrl.u32 %v714, 7
        %v716 = vsub.s32 0, %v715
        %v717 = vrot.slane %v696, %v716
        %v719 = vadd.f32 %v697, %v717
        %v720 = vadd.f32 %v698, %v717
        %v721 = vadd.f32 %v699, %v717
        %v722 = vadd.f32 %v700, %v717
        %v723 = vadd.f32 %v701, %v717
        %v724 = vadd.f32 %v702, %v717
        %v725 = vadd.f32 %v703, %v717
        %v726 = vadd.f32 %v704, %v717
        %v727 = vadd.f32 %v705, %v717
        %v728 = vadd.f32 %v706, %v717
        %v729 = vadd.f32 %v707, %v717
        %v730 = vadd.f32 %v708, %v717
        %v731 = vadd.f32 %v709, %v717
        %v732 = vadd.f32 %v710, %v717
        %v733 = vadd.f32 %v711, %v717
        %v734 = vadd.f32 %v712, %v717
        %v735 = vmax.f32 %v719, 0.0
        %v736 = vmax.f32 %v720, 0.0
        %v737 = vmax.f32 %v721, 0.0
        %v738 = vmax.f32 %v722, 0.0
        %v739 = vmax.f32 %v723, 0.0
        %v740 = vmax.f32 %v724, 0.0
        %v741 = vmax.f32 %v725, 0.0
        %v742 = vmax.f32 %v726, 0.0
        %v743 = vmax.f32 %v727, 0.0
        %v744 = vmax.f32 %v728, 0.0
        %v745 = vmax.f32 %v729, 0.0
        %v746 = vmax.f32 %v730, 0.0
        %v747 = vmax.f32 %v731, 0.0
        %v748 = vmax.f32 %v732, 0.0
        %v749 = vmax.f32 %v733, 0.0
        %v750 = vmax.f32 %v734, 0.0
        %v751 = vmax.f32 %v618, %v620
        %v752 = vmax.f32 %v622, %v624
        %v753 = vmax.f32 %v628, %v630
        %v754 = vmax.f32 %v632, %v634
        %v755 = vmax.f32 %v638, %v640
        %v756 = vmax.f32 %v642, %v644
        %v757 = vmax.f32 %v648, %v650
        %v758 = vmax.f32 %v652, %v654
        %v759 = vmax.f32 %v658, %v660
        %v760 = vmax.f32 %v662, %v664
        %v761 = vmax.f32 %v668, %v670
        %v762 = vmax.f32 %v672, %v674
        %v763 = vmax.f32 %v678, %v680
        %v764 = vmax.f32 %v682, %v684
        %v765 = vmax.f32 %v688, %v690
        %v766 = vmax.f32 %v692, %v694
        %v767 = vadd.f32 %v751, %v717
        %v768 = vadd.f32 %v752, %v717
        %v769 = vadd.f32 %v753, %v717
        %v770 = vadd.f32 %v754, %v717
        %v771 = vadd.f32 %v755, %v717
        %v772 = vadd.f32 %v756, %v717
        %v773 = vadd.f32 %v757, %v717
        %v774 = vadd.f32 %v758, %v717
        %v775 = vadd.f32 %v759, %v717
        %v776 = vadd.f32 %v760, %v717
        %v777 = vadd.f32 %v761, %v717
        %v778 = vadd.f32 %v762, %v717
        %v779 = vadd.f32 %v763, %v717
        %v780 = vadd.f32 %v764, %v717
        %v781 = vadd.f32 %v765, %v717
        %v782 = vadd.f32 %v766, %v717
        %v783 = vmax.f32 %v767, 0.0
        %v784 = vmax.f32 %v768, 0.0
        %v785 = vmax.f32 %v769, 0.0
        %v786 = vmax.f32 %v770, 0.0
        %v787 = vmax.f32 %v771, 0.0
        %v788 = vmax.f32 %v772, 0.0
        %v789 = vmax.f32 %v773, 0.0
        %v790 = vmax.f32 %v774, 0.0
        %v791 = vmax.f32 %v775, 0.0
        %v792 = vmax.f32 %v776, 0.0
        %v793 = vmax.f32 %v777, 0.0
        %v794 = vmax.f32 %v778, 0.0
        %v795 = vmax.f32 %v779, 0.0
        %v796 = vmax.f32 %v780, 0.0
        %v797 = vmax.f32 %v781, 0.0
        %v798 = vmax.f32 %v782, 0.0
        %v799 = vpack.c.bf16 %v736, %v735
        %v800 = vpack.c.bf16 %v738, %v737
        %v801 = vpack.c.bf16 %v740, %v739
        %v802 = vpack.c.bf16 %v742, %v741
        %v803 = vpack.c.bf16 %v744, %v743
        %v804 = vpack.c.bf16 %v746, %v745
        %v805 = vpack.c.bf16 %v748, %v747
        %v806 = vpack.c.bf16 %v750, %v749
        %v807 = vpack.c.bf16 %v784, %v783
        %v808 = vpack.c.bf16 %v786, %v785
        %v809 = vpack.c.bf16 %v788, %v787
        %v810 = vpack.c.bf16 %v790, %v789
        %v811 = vpack.c.bf16 %v792, %v791
        %v812 = vpack.c.bf16 %v794, %v793
        %v813 = vpack.c.bf16 %v796, %v795
        %v814 = vpack.c.bf16 %v798, %v797
        %vm815 = vcmask 1040384
        %vm816 = vsmask.f32 256
        %vm817 = vmand %vm815, %vm816
        %vm818 = vcmask 1044484
        %vm819 = vsmask.f32 4352
        %vm820 = vmand %vm818, %vm819
        %vm821 = vmor %vm820, %vm817
        %v822 = vld [vmem:[#allocation2] sm:$0x11]
        %v823 = vsel %vm821, 0, %v822
        %824 = vst [vmem:[#allocation2] sm:$0x11] %v823
        %v825 = vld [vmem:[#allocation2 + $0x18] sm:$0x11]
        %v826 = vsel %vm821, 0, %v825
        %827 = vst [vmem:[#allocation2 + $0x18] sm:$0x11] %v826
        %v828 = vld [vmem:[#allocation2 + $0x30] sm:$0x11]
        %v829 = vsel %vm821, 0, %v828
        %830 = vst [vmem:[#allocation2 + $0x30] sm:$0x11] %v829
        %v831 = vld [vmem:[#allocation2 + $0x48] sm:$0x11]
        %v832 = vsel %vm821, 0, %v831
        %833 = vst [vmem:[#allocation2 + $0x48] sm:$0x11] %v832
        %v834 = vld [vmem:[#allocation2 + $0x60] sm:$0x11]
        %v835 = vsel %vm821, 0, %v834
        %836 = vst [vmem:[#allocation2 + $0x60] sm:$0x11] %v835
        %v837 = vld [vmem:[#allocation2 + $0x78] sm:$0x11]
        %v838 = vsel %vm821, 0, %v837
        %839 = vst [vmem:[#allocation2 + $0x78] sm:$0x11] %v838
        %v840 = vld [vmem:[#allocation2 + $0x90] sm:$0x11]
        %v841 = vsel %vm821, 0, %v840
        %842 = vst [vmem:[#allocation2 + $0x90] sm:$0x11] %v841
        %v843 = vld [vmem:[#allocation2 + $0xa8] sm:$0x11]
        %v844 = vsel %vm821, 0, %v843
        %845 = vst [vmem:[#allocation2 + $0xa8] sm:$0x11] %v844
        %vm846 = vsmask.f32 7938
        %vm847 = vmand %vm815, %vm846
        %vm848 = vsmask.f32 7954
        %vm849 = vmand %vm818, %vm848
        %vm850 = vmor %vm849, %vm847
        %v851 = vld [vmem:[#allocation2 + $0x10] sm:$0x11]
        %v852 = vsel %vm850, 0, %v851
        %853 = vst [vmem:[#allocation2 + $0x10] sm:$0x11] %v852
        %v854 = vld [vmem:[#allocation2 + $0x28] sm:$0x11]
        %v855 = vsel %vm850, 0, %v854
        %856 = vst [vmem:[#allocation2 + $0x28] sm:$0x11] %v855
        %v857 = vld [vmem:[#allocation2 + $0x40] sm:$0x11]
        %v858 = vsel %vm850, 0, %v857
        %859 = vst [vmem:[#allocation2 + $0x40] sm:$0x11] %v858
        %v860 = vld [vmem:[#allocation2 + $0x58] sm:$0x11]
        %v861 = vsel %vm850, 0, %v860
        %862 = vst [vmem:[#allocation2 + $0x58] sm:$0x11] %v861
        %v863 = vld [vmem:[#allocation2 + $0x70] sm:$0x11]
        %v864 = vsel %vm850, 0, %v863
        %865 = vst [vmem:[#allocation2 + $0x70] sm:$0x11] %v864
        %v866 = vld [vmem:[#allocation2 + $0x88] sm:$0x11]
        %v867 = vsel %vm850, 0, %v866
        %868 = vst [vmem:[#allocation2 + $0x88] sm:$0x11] %v867
        %v869 = vld [vmem:[#allocation2 + $0xa0] sm:$0x11]
        %v870 = vsel %vm850, 0, %v869
        %871 = vst [vmem:[#allocation2 + $0xa0] sm:$0x11] %v870
        %v872 = vld [vmem:[#allocation2 + $0xb8] sm:$0x11]
        %v873 = vsel %vm850, 0, %v872
        %874 = vst [vmem:[#allocation2 + $0xb8] sm:$0x11] %v873
        %v883 = vunpack.c.l.b16 %v799
        %v884 = vunpack.c.h.b16 %v799
        %v885 = vunpack.c.l.b16 %v800
        %v886 = vunpack.c.h.b16 %v800
        %v887 = vunpack.c.l.b16 %v801
        %v888 = vunpack.c.h.b16 %v801
        %v889 = vunpack.c.l.b16 %v802
        %v890 = vunpack.c.h.b16 %v802
        %v891 = vunpack.c.l.b16 %v803
        %v892 = vunpack.c.h.b16 %v803
        %v893 = vunpack.c.l.b16 %v804
        %v894 = vunpack.c.h.b16 %v804
        %v895 = vunpack.c.l.b16 %v805
        %v896 = vunpack.c.h.b16 %v805
        %v897 = vunpack.c.l.b16 %v806
        %v898 = vunpack.c.h.b16 %v806
        %v899 = vpack.c.b16 %v883, %v883
        %v900 = vpack.c.b16 %v884, %v884
        %v901 = vpack.c.b16 %v885, %v885
        %v902 = vpack.c.b16 %v886, %v886
        %v903 = vpack.c.b16 %v887, %v887
        %v904 = vpack.c.b16 %v888, %v888
        %v905 = vpack.c.b16 %v889, %v889
        %v906 = vpack.c.b16 %v890, %v890
        %v907 = vpack.c.b16 %v891, %v891
        %v908 = vpack.c.b16 %v892, %v892
        %v909 = vpack.c.b16 %v893, %v893
        %v910 = vpack.c.b16 %v894, %v894
        %v911 = vpack.c.b16 %v895, %v895
        %v912 = vpack.c.b16 %v896, %v896
        %v913 = vpack.c.b16 %v897, %v897
        %v914 = vpack.c.b16 %v898, %v898
        %vm915 = vsmask.f32 4368
        %vm916 = vmor %vm816, %vm915
        %v918 = vshrl.u32 %v899, 16
        %v920 = vrot.slane %v918, 7
        %v921 = vshll.u32 %v899, 16
        %v923 = vor.u32 %v920, %v921
        %v924 = vrot.slane %v920, 4
        %v926 = vshrl.u32 %v900, 16
        %v928 = vrot.slane %v926, 7
        %v929 = vshll.u32 %v900, 16
        %v931 = vor.u32 %v928, %v929
        %v932 = vsel %vm916, %v924, %v931
        %v933 = vrot.slane %v928, 4
        %v935 = vshrl.u32 %v901, 16
        %v937 = vrot.slane %v935, 7
        %v938 = vshll.u32 %v901, 16
        %v940 = vor.u32 %v937, %v938
        %v941 = vrot.slane %v937, 4
        %v943 = vshrl.u32 %v902, 16
        %v945 = vrot.slane %v943, 7
        %v946 = vshll.u32 %v902, 16
        %v948 = vor.u32 %v945, %v946
        %v949 = vsel %vm916, %v941, %v948
        %v950 = vrot.slane %v945, 4
        %v952 = vshrl.u32 %v903, 16
        %v954 = vrot.slane %v952, 7
        %v955 = vshll.u32 %v903, 16
        %v957 = vor.u32 %v954, %v955
        %v958 = vrot.slane %v954, 4
        %v960 = vshrl.u32 %v904, 16
        %v962 = vrot.slane %v960, 7
        %v963 = vshll.u32 %v904, 16
        %v965 = vor.u32 %v962, %v963
        %v966 = vsel %vm916, %v958, %v965
        %v967 = vrot.slane %v962, 4
        %v969 = vshrl.u32 %v905, 16
        %v971 = vrot.slane %v969, 7
        %v972 = vshll.u32 %v905, 16
        %v974 = vor.u32 %v971, %v972
        %v975 = vrot.slane %v971, 4
        %v977 = vshrl.u32 %v906, 16
        %v979 = vrot.slane %v977, 7
        %v980 = vshll.u32 %v906, 16
        %v982 = vor.u32 %v979, %v980
        %v983 = vsel %vm916, %v975, %v982
        %v984 = vrot.slane %v979, 4
        %v986 = vshrl.u32 %v907, 16
        %v988 = vrot.slane %v986, 7
        %v989 = vshll.u32 %v907, 16
        %v991 = vor.u32 %v988, %v989
        %v992 = vrot.slane %v988, 4
        %v994 = vshrl.u32 %v908, 16
        %v996 = vrot.slane %v994, 7
        %v997 = vshll.u32 %v908, 16
        %v999 = vor.u32 %v996, %v997
        %v1000 = vsel %vm916, %v992, %v999
        %v1001 = vrot.slane %v996, 4
        %v1003 = vshrl.u32 %v909, 16
        %v1005 = vrot.slane %v1003, 7
        %v1006 = vshll.u32 %v909, 16
        %v1008 = vor.u32 %v1005, %v1006
        %v1009 = vrot.slane %v1005, 4
        %v1011 = vshrl.u32 %v910, 16
        %v1013 = vrot.slane %v1011, 7
        %v1014 = vshll.u32 %v910, 16
        %v1016 = vor.u32 %v1013, %v1014
        %v1017 = vsel %vm916, %v1009, %v1016
        %v1018 = vrot.slane %v1013, 4
        %v1020 = vshrl.u32 %v911, 16
        %v1022 = vrot.slane %v1020, 7
        %v1023 = vshll.u32 %v911, 16
        %v1025 = vor.u32 %v1022, %v1023
        %v1026 = vrot.slane %v1022, 4
        %v1028 = vshrl.u32 %v912, 16
        %v1030 = vrot.slane %v1028, 7
        %v1031 = vshll.u32 %v912, 16
        %v1033 = vor.u32 %v1030, %v1031
        %v1034 = vsel %vm916, %v1026, %v1033
        %v1035 = vrot.slane %v1030, 4
        %v1037 = vshrl.u32 %v913, 16
        %v1039 = vrot.slane %v1037, 7
        %v1040 = vshll.u32 %v913, 16
        %v1042 = vor.u32 %v1039, %v1040
        %v1043 = vrot.slane %v1039, 4
        %v1045 = vshrl.u32 %v914, 16
        %v1047 = vrot.slane %v1045, 7
        %v1048 = vshll.u32 %v914, 16
        %v1050 = vor.u32 %v1047, %v1048
        %v1051 = vsel %vm916, %v1043, %v1050
        %v1052 = vrot.slane %v1047, 4
        %vm1077 = vcmask 1043456
        %vm1078 = vmand %vm1077, %vm846
        %v1079 = vld [vmem:[#allocation2] sm:$0xf]
        %v1080 = vsel %vm1078, %v923, %v1079
        %1081 = vst [vmem:[#allocation2] sm:$0xf] %v1080
        %1082 = vst [vmem:[#allocation2 + $0x8] sm:$0xf] %v932
        %v1083 = vld [vmem:[#allocation2 + $0x10] sm:$0x1]
        %v1084 = vsel %vm817, %v933, %v1083
        %1085 = vst [vmem:[#allocation2 + $0x10] sm:$0x1] %v1084
        %v1086 = vld [vmem:[#allocation2 + $0x18] sm:$0xf]
        %v1087 = vsel %vm1078, %v940, %v1086
        %1088 = vst [vmem:[#allocation2 + $0x18] sm:$0xf] %v1087
        %1089 = vst [vmem:[#allocation2 + $0x20] sm:$0xf] %v949
        %v1090 = vld [vmem:[#allocation2 + $0x28] sm:$0x1]
        %v1091 = vsel %vm817, %v950, %v1090
        %1092 = vst [vmem:[#allocation2 + $0x28] sm:$0x1] %v1091
        %v1093 = vld [vmem:[#allocation2 + $0x30] sm:$0xf]
        %v1094 = vsel %vm1078, %v957, %v1093
        %1095 = vst [vmem:[#allocation2 + $0x30] sm:$0xf] %v1094
        %1096 = vst [vmem:[#allocation2 + $0x38] sm:$0xf] %v966
        %v1097 = vld [vmem:[#allocation2 + $0x40] sm:$0x1]
        %v1098 = vsel %vm817, %v967, %v1097
        %1099 = vst [vmem:[#allocation2 + $0x40] sm:$0x1] %v1098
        %v1100 = vld [vmem:[#allocation2 + $0x48] sm:$0xf]
        %v1101 = vsel %vm1078, %v974, %v1100
        %1102 = vst [vmem:[#allocation2 + $0x48] sm:$0xf] %v1101
        %1103 = vst [vmem:[#allocation2 + $0x50] sm:$0xf] %v983
        %v1104 = vld [vmem:[#allocation2 + $0x58] sm:$0x1]
        %v1105 = vsel %vm817, %v984, %v1104
        %1106 = vst [vmem:[#allocation2 + $0x58] sm:$0x1] %v1105
        %v1107 = vld [vmem:[#allocation2 + $0x60] sm:$0xf]
        %v1108 = vsel %vm1078, %v991, %v1107
        %1109 = vst [vmem:[#allocation2 + $0x60] sm:$0xf] %v1108
        %1110 = vst [vmem:[#allocation2 + $0x68] sm:$0xf] %v1000
        %v1111 = vld [vmem:[#allocation2 + $0x70] sm:$0x1]
        %v1112 = vsel %vm817, %v1001, %v1111
        %1113 = vst [vmem:[#allocation2 + $0x70] sm:$0x1] %v1112
        %v1114 = vld [vmem:[#allocation2 + $0x78] sm:$0xf]
        %v1115 = vsel %vm1078, %v1008, %v1114
        %1116 = vst [vmem:[#allocation2 + $0x78] sm:$0xf] %v1115
        %1117 = vst [vmem:[#allocation2 + $0x80] sm:$0xf] %v1017
        %v1118 = vld [vmem:[#allocation2 + $0x88] sm:$0x1]
        %v1119 = vsel %vm817, %v1018, %v1118
        %1120 = vst [vmem:[#allocation2 + $0x88] sm:$0x1] %v1119
        %v1121 = vld [vmem:[#allocation2 + $0x90] sm:$0xf]
        %v1122 = vsel %vm1078, %v1025, %v1121
        %1123 = vst [vmem:[#allocation2 + $0x90] sm:$0xf] %v1122
        %1124 = vst [vmem:[#allocation2 + $0x98] sm:$0xf] %v1034
        %v1125 = vld [vmem:[#allocation2 + $0xa0] sm:$0x1]
        %v1126 = vsel %vm817, %v1035, %v1125
        %1127 = vst [vmem:[#allocation2 + $0xa0] sm:$0x1] %v1126
        %v1128 = vld [vmem:[#allocation2 + $0xa8] sm:$0xf]
        %v1129 = vsel %vm1078, %v1042, %v1128
        %1130 = vst [vmem:[#allocation2 + $0xa8] sm:$0xf] %v1129
        %1131 = vst [vmem:[#allocation2 + $0xb0] sm:$0xf] %v1051
        %v1132 = vld [vmem:[#allocation2 + $0xb8] sm:$0x1]
        %v1133 = vsel %vm817, %v1052, %v1132
        %1134 = vst [vmem:[#allocation2 + $0xb8] sm:$0x1] %v1133
        %v1143 = vunpack.c.l.b16 %v807
        %v1144 = vunpack.c.h.b16 %v807
        %v1145 = vunpack.c.l.b16 %v808
        %v1146 = vunpack.c.h.b16 %v808
        %v1147 = vunpack.c.l.b16 %v809
        %v1148 = vunpack.c.h.b16 %v809
        %v1149 = vunpack.c.l.b16 %v810
        %v1150 = vunpack.c.h.b16 %v810
        %v1151 = vunpack.c.l.b16 %v811
        %v1152 = vunpack.c.h.b16 %v811
        %v1153 = vunpack.c.l.b16 %v812
        %v1154 = vunpack.c.h.b16 %v812
        %v1155 = vunpack.c.l.b16 %v813
        %v1156 = vunpack.c.h.b16 %v813
        %v1157 = vunpack.c.l.b16 %v814
        %v1158 = vunpack.c.h.b16 %v814
        %v1159 = vpack.c.b16 %v1143, %v1143
        %v1160 = vpack.c.b16 %v1144, %v1144
        %v1161 = vpack.c.b16 %v1145, %v1145
        %v1162 = vpack.c.b16 %v1146, %v1146
        %v1163 = vpack.c.b16 %v1147, %v1147
        %v1164 = vpack.c.b16 %v1148, %v1148
        %v1165 = vpack.c.b16 %v1149, %v1149
        %v1166 = vpack.c.b16 %v1150, %v1150
        %v1167 = vpack.c.b16 %v1151, %v1151
        %v1168 = vpack.c.b16 %v1152, %v1152
        %v1169 = vpack.c.b16 %v1153, %v1153
        %v1170 = vpack.c.b16 %v1154, %v1154
        %v1171 = vpack.c.b16 %v1155, %v1155
        %v1172 = vpack.c.b16 %v1156, %v1156
        %v1173 = vpack.c.b16 %v1157, %v1157
        %v1174 = vpack.c.b16 %v1158, %v1158
        %v1176 = vshrl.u32 %v1159, 16
        %v1178 = vrot.slane %v1176, 7
        %v1179 = vshll.u32 %v1159, 16
        %v1181 = vor.u32 %v1178, %v1179
        %v1182 = vrot.slane %v1178, 4
        %v1184 = vshrl.u32 %v1160, 16
        %v1186 = vrot.slane %v1184, 7
        %v1187 = vshll.u32 %v1160, 16
        %v1189 = vor.u32 %v1186, %v1187
        %v1190 = vsel %vm916, %v1182, %v1189
        %v1191 = vrot.slane %v1186, 4
        %v1193 = vshrl.u32 %v1161, 16
        %v1195 = vrot.slane %v1193, 7
        %v1196 = vshll.u32 %v1161, 16
        %v1198 = vor.u32 %v1195, %v1196
        %v1199 = vrot.slane %v1195, 4
        %v1201 = vshrl.u32 %v1162, 16
        %v1203 = vrot.slane %v1201, 7
        %v1204 = vshll.u32 %v1162, 16
        %v1206 = vor.u32 %v1203, %v1204
        %v1207 = vsel %vm916, %v1199, %v1206
        %v1208 = vrot.slane %v1203, 4
        %v1210 = vshrl.u32 %v1163, 16
        %v1212 = vrot.slane %v1210, 7
        %v1213 = vshll.u32 %v1163, 16
        %v1215 = vor.u32 %v1212, %v1213
        %v1216 = vrot.slane %v1212, 4
        %v1218 = vshrl.u32 %v1164, 16
        %v1220 = vrot.slane %v1218, 7
        %v1221 = vshll.u32 %v1164, 16
        %v1223 = vor.u32 %v1220, %v1221
        %v1224 = vsel %vm916, %v1216, %v1223
        %v1225 = vrot.slane %v1220, 4
        %v1227 = vshrl.u32 %v1165, 16
        %v1229 = vrot.slane %v1227, 7
        %v1230 = vshll.u32 %v1165, 16
        %v1232 = vor.u32 %v1229, %v1230
        %v1233 = vrot.slane %v1229, 4
        %v1235 = vshrl.u32 %v1166, 16
        %v1237 = vrot.slane %v1235, 7
        %v1238 = vshll.u32 %v1166, 16
        %v1240 = vor.u32 %v1237, %v1238
        %v1241 = vsel %vm916, %v1233, %v1240
        %v1242 = vrot.slane %v1237, 4
        %v1244 = vshrl.u32 %v1167, 16
        %v1246 = vrot.slane %v1244, 7
        %v1247 = vshll.u32 %v1167, 16
        %v1249 = vor.u32 %v1246, %v1247
        %v1250 = vrot.slane %v1246, 4
        %v1252 = vshrl.u32 %v1168, 16
        %v1254 = vrot.slane %v1252, 7
        %v1255 = vshll.u32 %v1168, 16
        %v1257 = vor.u32 %v1254, %v1255
        %v1258 = vsel %vm916, %v1250, %v1257
        %v1259 = vrot.slane %v1254, 4
        %v1261 = vshrl.u32 %v1169, 16
        %v1263 = vrot.slane %v1261, 7
        %v1264 = vshll.u32 %v1169, 16
        %v1266 = vor.u32 %v1263, %v1264
        %v1267 = vrot.slane %v1263, 4
        %v1269 = vshrl.u32 %v1170, 16
        %v1271 = vrot.slane %v1269, 7
        %v1272 = vshll.u32 %v1170, 16
        %v1274 = vor.u32 %v1271, %v1272
        %v1275 = vsel %vm916, %v1267, %v1274
        %v1276 = vrot.slane %v1271, 4
        %v1278 = vshrl.u32 %v1171, 16
        %v1280 = vrot.slane %v1278, 7
        %v1281 = vshll.u32 %v1171, 16
        %v1283 = vor.u32 %v1280, %v1281
        %v1284 = vrot.slane %v1280, 4
        %v1286 = vshrl.u32 %v1172, 16
        %v1288 = vrot.slane %v1286, 7
        %v1289 = vshll.u32 %v1172, 16
        %v1291 = vor.u32 %v1288, %v1289
        %v1292 = vsel %vm916, %v1284, %v1291
        %v1293 = vrot.slane %v1288, 4
        %v1295 = vshrl.u32 %v1173, 16
        %v1297 = vrot.slane %v1295, 7
        %v1298 = vshll.u32 %v1173, 16
        %v1300 = vor.u32 %v1297, %v1298
        %v1301 = vrot.slane %v1297, 4
        %v1303 = vshrl.u32 %v1174, 16
        %v1305 = vrot.slane %v1303, 7
        %v1306 = vshll.u32 %v1174, 16
        %v1308 = vor.u32 %v1305, %v1306
        %v1309 = vsel %vm916, %v1301, %v1308
        %v1310 = vrot.slane %v1305, 4
        %v1335 = vld [vmem:[#allocation2 + $0x4] sm:$0xf]
        %v1336 = vsel %vm1078, %v1181, %v1335
        %1337 = vst [vmem:[#allocation2 + $0x4] sm:$0xf] %v1336
        %1338 = vst [vmem:[#allocation2 + $0xc] sm:$0xf] %v1190
        %v1339 = vld [vmem:[#allocation2 + $0x14] sm:$0x1]
        %v1340 = vsel %vm817, %v1191, %v1339
        %1341 = vst [vmem:[#allocation2 + $0x14] sm:$0x1] %v1340
        %v1342 = vld [vmem:[#allocation2 + $0x1c] sm:$0xf]
        %v1343 = vsel %vm1078, %v1198, %v1342
        %1344 = vst [vmem:[#allocation2 + $0x1c] sm:$0xf] %v1343
        %1345 = vst [vmem:[#allocation2 + $0x24] sm:$0xf] %v1207
        %v1346 = vld [vmem:[#allocation2 + $0x2c] sm:$0x1]
        %v1347 = vsel %vm817, %v1208, %v1346
        %1348 = vst [vmem:[#allocation2 + $0x2c] sm:$0x1] %v1347
        %v1349 = vld [vmem:[#allocation2 + $0x34] sm:$0xf]
        %v1350 = vsel %vm1078, %v1215, %v1349
        %1351 = vst [vmem:[#allocation2 + $0x34] sm:$0xf] %v1350
        %1352 = vst [vmem:[#allocation2 + $0x3c] sm:$0xf] %v1224
        %v1353 = vld [vmem:[#allocation2 + $0x44] sm:$0x1]
        %v1354 = vsel %vm817, %v1225, %v1353
        %1355 = vst [vmem:[#allocation2 + $0x44] sm:$0x1] %v1354
        %v1356 = vld [vmem:[#allocation2 + $0x4c] sm:$0xf]
        %v1357 = vsel %vm1078, %v1232, %v1356
        %1358 = vst [vmem:[#allocation2 + $0x4c] sm:$0xf] %v1357
        %1359 = vst [vmem:[#allocation2 + $0x54] sm:$0xf] %v1241
        %v1360 = vld [vmem:[#allocation2 + $0x5c] sm:$0x1]
        %v1361 = vsel %vm817, %v1242, %v1360
        %1362 = vst [vmem:[#allocation2 + $0x5c] sm:$0x1] %v1361
        %v1363 = vld [vmem:[#allocation2 + $0x64] sm:$0xf]
        %v1364 = vsel %vm1078, %v1249, %v1363
        %1365 = vst [vmem:[#allocation2 + $0x64] sm:$0xf] %v1364
        %1366 = vst [vmem:[#allocation2 + $0x6c] sm:$0xf] %v1258
        %v1367 = vld [vmem:[#allocation2 + $0x74] sm:$0x1]
        %v1368 = vsel %vm817, %v1259, %v1367
        %1369 = vst [vmem:[#allocation2 + $0x74] sm:$0x1] %v1368
        %v1370 = vld [vmem:[#allocation2 + $0x7c] sm:$0xf]
        %v1371 = vsel %vm1078, %v1266, %v1370
        %1372 = vst [vmem:[#allocation2 + $0x7c] sm:$0xf] %v1371
        %1373 = vst [vmem:[#allocation2 + $0x84] sm:$0xf] %v1275
        %v1374 = vld [vmem:[#allocation2 + $0x8c] sm:$0x1]
        %v1375 = vsel %vm817, %v1276, %v1374
        %1376 = vst [vmem:[#allocation2 + $0x8c] sm:$0x1] %v1375
        %v1377 = vld [vmem:[#allocation2 + $0x94] sm:$0xf]
        %v1378 = vsel %vm1078, %v1283, %v1377
        %1379 = vst [vmem:[#allocation2 + $0x94] sm:$0xf] %v1378
        %1380 = vst [vmem:[#allocation2 + $0x9c] sm:$0xf] %v1292
        %v1381 = vld [vmem:[#allocation2 + $0xa4] sm:$0x1]
        %v1382 = vsel %vm817, %v1293, %v1381
        %1383 = vst [vmem:[#allocation2 + $0xa4] sm:$0x1] %v1382
        %v1384 = vld [vmem:[#allocation2 + $0xac] sm:$0xf]
        %v1385 = vsel %vm1078, %v1300, %v1384
        %1386 = vst [vmem:[#allocation2 + $0xac] sm:$0xf] %v1385
        %1387 = vst [vmem:[#allocation2 + $0xb4] sm:$0xf] %v1309
        %v1388 = vld [vmem:[#allocation2 + $0xbc] sm:$0x1]
        %v1389 = vsel %vm817, %v1310, %v1388
        %1390 = vst [vmem:[#allocation2 + $0xbc] sm:$0x1] %v1389
        %v1391 = vld [vmem:[#allocation2 + $0x4] sm:$0xf]
        %v1392 = vld [vmem:[#allocation2 + $0xc] sm:$0xf]
        %v1393 = vld [vmem:[#allocation2 + $0x1c] sm:$0xf]
        %v1394 = vld [vmem:[#allocation2 + $0x24] sm:$0xf]
        %v1395 = vld [vmem:[#allocation2 + $0x34] sm:$0xf]
        %v1396 = vld [vmem:[#allocation2 + $0x3c] sm:$0xf]
        %v1397 = vld [vmem:[#allocation2 + $0x4c] sm:$0xf]
        %v1398 = vld [vmem:[#allocation2 + $0x54] sm:$0xf]
        %v1399 = vld [vmem:[#allocation2 + $0x64] sm:$0xf]
        %v1400 = vld [vmem:[#allocation2 + $0x6c] sm:$0xf]
        %v1401 = vld [vmem:[#allocation2 + $0x7c] sm:$0xf]
        %v1402 = vld [vmem:[#allocation2 + $0x84] sm:$0xf]
        %v1403 = vld [vmem:[#allocation2 + $0x94] sm:$0xf]
        %v1404 = vld [vmem:[#allocation2 + $0x9c] sm:$0xf]
        %v1405 = vld [vmem:[#allocation2 + $0xac] sm:$0xf]
        %v1406 = vld [vmem:[#allocation2 + $0xb4] sm:$0xf]
        %v1407 = vld [vmem:[#allocation2] sm:$0xe]
        %v1408 = vld [vmem:[#allocation2 + $0x8] sm:$0xf]
        %v1409 = vld [vmem:[#allocation2 + $0x10] sm:$0x1]
        %v1410 = vld [vmem:[#allocation2 + $0x18] sm:$0xe]
        %v1411 = vld [vmem:[#allocation2 + $0x20] sm:$0xf]
        %v1412 = vld [vmem:[#allocation2 + $0x28] sm:$0x1]
        %v1413 = vld [vmem:[#allocation2 + $0x30] sm:$0xe]
        %v1414 = vld [vmem:[#allocation2 + $0x38] sm:$0xf]
        %v1415 = vld [vmem:[#allocation2 + $0x40] sm:$0x1]
        %v1416 = vld [vmem:[#allocation2 + $0x48] sm:$0xe]
        %v1417 = vld [vmem:[#allocation2 + $0x50] sm:$0xf]
        %v1418 = vld [vmem:[#allocation2 + $0x58] sm:$0x1]
        %v1419 = vld [vmem:[#allocation2 + $0x60] sm:$0xe]
        %v1420 = vld [vmem:[#allocation2 + $0x68] sm:$0xf]
        %v1421 = vld [vmem:[#allocation2 + $0x70] sm:$0x1]
        %v1422 = vld [vmem:[#allocation2 + $0x78] sm:$0xe]
        %v1423 = vld [vmem:[#allocation2 + $0x80] sm:$0xf]
        %v1424 = vld [vmem:[#allocation2 + $0x88] sm:$0x1]
        %v1425 = vld [vmem:[#allocation2 + $0x90] sm:$0xe]
        %v1426 = vld [vmem:[#allocation2 + $0x98] sm:$0xf]
        %v1427 = vld [vmem:[#allocation2 + $0xa0] sm:$0x1]
        %v1428 = vld [vmem:[#allocation2 + $0xa8] sm:$0xe]
        %v1429 = vld [vmem:[#allocation2 + $0xb0] sm:$0xf]
        %v1430 = vld [vmem:[#allocation2 + $0xb8] sm:$0x1]
        %vm1455 = vcmask 1042432
        %vm1456 = vcmask 1046532
        %vm1457 = vmor %vm1455, %vm1456
        %v1458 = vrot.slane %v1407, 5
        %v1459 = vrot.slane %v1458, 4
        %v1460 = vrot.slane %v1408, 5
        %v1461 = vsel %vm1457, %v1459, %v1460
        %v1462 = vrot.slane %v1460, 4
        %v1463 = vrot.slane %v1409, 5
        %v1464 = vsel %vm1457, %v1462, %v1463
        %v1465 = vrot.slane %v1410, 5
        %v1466 = vrot.slane %v1465, 4
        %v1467 = vrot.slane %v1411, 5
        %v1468 = vsel %vm1457, %v1466, %v1467
        %v1469 = vrot.slane %v1467, 4
        %v1470 = vrot.slane %v1412, 5
        %v1471 = vsel %vm1457, %v1469, %v1470
        %v1472 = vrot.slane %v1413, 5
        %v1473 = vrot.slane %v1472, 4
        %v1474 = vrot.slane %v1414, 5
        %v1475 = vsel %vm1457, %v1473, %v1474
        %v1476 = vrot.slane %v1474, 4
        %v1477 = vrot.slane %v1415, 5
        %v1478 = vsel %vm1457, %v1476, %v1477
        %v1479 = vrot.slane %v1416, 5
        %v1480 = vrot.slane %v1479, 4
        %v1481 = vrot.slane %v1417, 5
        %v1482 = vsel %vm1457, %v1480, %v1481
        %v1483 = vrot.slane %v1481, 4
        %v1484 = vrot.slane %v1418, 5
        %v1485 = vsel %vm1457, %v1483, %v1484
        %v1486 = vrot.slane %v1419, 5
        %v1487 = vrot.slane %v1486, 4
        %v1488 = vrot.slane %v1420, 5
        %v1489 = vsel %vm1457, %v1487, %v1488
        %v1490 = vrot.slane %v1488, 4
        %v1491 = vrot.slane %v1421, 5
        %v1492 = vsel %vm1457, %v1490, %v1491
        %v1493 = vrot.slane %v1422, 5
        %v1494 = vrot.slane %v1493, 4
        %v1495 = vrot.slane %v1423, 5
        %v1496 = vsel %vm1457, %v1494, %v1495
        %v1497 = vrot.slane %v1495, 4
        %v1498 = vrot.slane %v1424, 5
        %v1499 = vsel %vm1457, %v1497, %v1498
        %v1500 = vrot.slane %v1425, 5
        %v1501 = vrot.slane %v1500, 4
        %v1502 = vrot.slane %v1426, 5
        %v1503 = vsel %vm1457, %v1501, %v1502
        %v1504 = vrot.slane %v1502, 4
        %v1505 = vrot.slane %v1427, 5
        %v1506 = vsel %vm1457, %v1504, %v1505
        %v1507 = vrot.slane %v1428, 5
        %v1508 = vrot.slane %v1507, 4
        %v1509 = vrot.slane %v1429, 5
        %v1510 = vsel %vm1457, %v1508, %v1509
        %v1511 = vrot.slane %v1509, 4
        %v1512 = vrot.slane %v1430, 5
        %v1513 = vsel %vm1457, %v1511, %v1512
        %v1514 = vld [vmem:[#allocation4] sm:$0xf]
        %v1515 = vld [vmem:[#allocation4 + $0x4] sm:$0xf]
        %v1516 = vld [vmem:[#allocation4 + $0x8] sm:$0xf]
        %v1517 = vld [vmem:[#allocation4 + $0xc] sm:$0xf]
        %v1518 = vld [vmem:[#allocation4 + $0x10] sm:$0xf]
        %v1519 = vld [vmem:[#allocation4 + $0x14] sm:$0xf]
        %v1520 = vld [vmem:[#allocation4 + $0x18] sm:$0xf]
        %v1521 = vld [vmem:[#allocation4 + $0x1c] sm:$0xf]
        %v1522 = vld [vmem:[#allocation4 + $0x20] sm:$0xf]
        %v1523 = vld [vmem:[#allocation4 + $0x24] sm:$0xf]
        %v1524 = vld [vmem:[#allocation4 + $0x28] sm:$0xf]
        %v1525 = vld [vmem:[#allocation4 + $0x2c] sm:$0xf]
        %v1526 = vld [vmem:[#allocation4 + $0x30] sm:$0xf]
        %v1527 = vld [vmem:[#allocation4 + $0x34] sm:$0xf]
        %v1528 = vld [vmem:[#allocation4 + $0x38] sm:$0xf]
        %v1529 = vld [vmem:[#allocation4 + $0x3c] sm:$0xf]
        %v1530 = vld [vmem:[#allocation4 + $0x40] sm:$0xf]
        %v1531 = vld [vmem:[#allocation4 + $0x44] sm:$0xf]
        %v1532 = vld [vmem:[#allocation4 + $0x48] sm:$0xf]
        %v1533 = vld [vmem:[#allocation4 + $0x4c] sm:$0xf]
        %v1534 = vld [vmem:[#allocation4 + $0x50] sm:$0xf]
        %v1535 = vld [vmem:[#allocation4 + $0x54] sm:$0xf]
        %v1536 = vld [vmem:[#allocation4 + $0x58] sm:$0xf]
        %v1537 = vld [vmem:[#allocation4 + $0x5c] sm:$0xf]
        %v1538 = vld [vmem:[#allocation4 + $0x60] sm:$0xf]
        %v1539 = vld [vmem:[#allocation4 + $0x64] sm:$0xf]
        %v1540 = vld [vmem:[#allocation4 + $0x68] sm:$0xf]
        %v1541 = vld [vmem:[#allocation4 + $0x6c] sm:$0xf]
        %v1542 = vld [vmem:[#allocation4 + $0x70] sm:$0xf]
        %v1543 = vld [vmem:[#allocation4 + $0x74] sm:$0xf]
        %v1544 = vld [vmem:[#allocation4 + $0x78] sm:$0xf]
        %v1545 = vld [vmem:[#allocation4 + $0x7c] sm:$0xf]
        %v1562 = vunpack.c.l.b16 %v1530
        %v1563 = vunpack.c.l.b16 %v1531
        %v1564 = vunpack.c.l.b16 %v1532
        %v1565 = vunpack.c.l.b16 %v1533
        %v1566 = vunpack.c.l.b16 %v1534
        %v1567 = vunpack.c.l.b16 %v1535
        %v1568 = vunpack.c.l.b16 %v1536
        %v1569 = vunpack.c.l.b16 %v1537
        %v1570 = vunpack.c.l.b16 %v1538
        %v1571 = vunpack.c.l.b16 %v1539
        %v1572 = vunpack.c.l.b16 %v1540
        %v1573 = vunpack.c.l.b16 %v1541
        %v1574 = vunpack.c.l.b16 %v1542
        %v1575 = vunpack.c.l.b16 %v1543
        %v1576 = vunpack.c.l.b16 %v1544
        %v1577 = vunpack.c.l.b16 %v1545
        %v1578 = vpack.c.b16 %v1563, %v1562
        %v1579 = vpack.c.b16 %v1565, %v1564
        %v1580 = vpack.c.b16 %v1567, %v1566
        %v1581 = vpack.c.b16 %v1569, %v1568
        %v1582 = vpack.c.b16 %v1571, %v1570
        %v1583 = vpack.c.b16 %v1573, %v1572
        %v1584 = vpack.c.b16 %v1575, %v1574
        %v1585 = vpack.c.b16 %v1577, %v1576
        %1594 = vmatprep.subr.bf16.mxu0 0
        %1595 = vmatpush1.bf16.msra.mxu0 %v1578
        %1596 = vmatprep.subr.bf16.mxu0 0
        %1597 = vmatpush1.bf16.msra.mxu0 %v1579
        %1598 = vmatprep.subr.bf16.mxu0 0
        %1599 = vmatpush1.bf16.msra.mxu0 %v1580
        %1600 = vmatprep.subr.bf16.mxu0 0
        %1601 = vmatpush1.bf16.msra.mxu0 %v1581
        %1602 = vmatprep.subr.bf16.mxu0 0
        %1603 = vmatpush1.bf16.msra.mxu0 %v1582
        %1604 = vmatprep.subr.bf16.mxu0 0
        %1605 = vmatpush1.bf16.msra.mxu0 %v1583
        %1606 = vmatprep.subr.bf16.mxu0 0
        %1607 = vmatpush1.bf16.msra.mxu0 %v1584
        %1608 = vmatprep.subr.bf16.mxu0 0
        %1609 = vmatpush1.bf16.msra.mxu0 %v1585
        %1610 = vmatprep.subr.bf16.mxu0 0
        %1611 = vmatpush1.bf16.msra.mxu0 0
        %1612 = vmatprep.subr.bf16.mxu0 0
        %1613 = vmatpush1.bf16.msra.mxu0 0
        %1614 = vmatprep.subr.bf16.mxu0 0
        %1615 = vmatpush1.bf16.msra.mxu0 0
        %1616 = vmatprep.subr.bf16.mxu0 0
        %1617 = vmatpush1.bf16.msra.mxu0 0
        %1618 = vmatprep.subr.bf16.mxu0 0
        %1619 = vmatpush1.bf16.msra.mxu0 0
        %1620 = vmatprep.subr.bf16.mxu0 0
        %1621 = vmatpush1.bf16.msra.mxu0 0
        %1622 = vmatprep.subr.bf16.mxu0 0
        %1623 = vmatpush1.bf16.msra.mxu0 0
        %1624 = vmatprep.subr.bf16.mxu0 0
        %1625 = vmatpush1.bf16.msra.mxu0 0
        %1626 = vmatprep.mubr.bf16.mxu0 0
        %1627 = vmatmul.mubr.bf16.gmra.mrb[0].mxu0 %v807
        %v1628 = vpop.f32.mrb[0].mxu0
        %v1629 = vadd.f32 0.0, %v1628
        %v1630 = vpop.f32.mrb[0].mxu0
        %v1631 = vpop.f32.mrb[0].mxu0
        %v1632 = vadd.f32 0.0, %v1631
        %v1633 = vpop.f32.mrb[0].mxu0
        %1634 = vmatprep.mubr.bf16.mxu0 0
        %1635 = vmatmul.mubr.bf16.gmra.mrb[0].mxu0 %v808
        %v1636 = vpop.f32.mrb[0].mxu0
        %v1637 = vadd.f32 0.0, %v1636
        %v1638 = vpop.f32.mrb[0].mxu0
        %v1639 = vpop.f32.mrb[0].mxu0
        %v1640 = vadd.f32 0.0, %v1639
        %v1641 = vpop.f32.mrb[0].mxu0
        %1642 = vmatprep.mubr.bf16.mxu0 0
        %1643 = vmatmul.mubr.bf16.gmra.mrb[0].mxu0 %v809
        %v1644 = vpop.f32.mrb[0].mxu0
        %v1645 = vadd.f32 0.0, %v1644
        %v1646 = vpop.f32.mrb[0].mxu0
        %v1647 = vpop.f32.mrb[0].mxu0
        %v1648 = vadd.f32 0.0, %v1647
        %v1649 = vpop.f32.mrb[0].mxu0
        %1650 = vmatprep.mubr.bf16.mxu0 0
        %1651 = vmatmul.mubr.bf16.gmra.mrb[0].mxu0 %v810
        %v1652 = vpop.f32.mrb[0].mxu0
        %v1653 = vadd.f32 0.0, %v1652
        %v1654 = vpop.f32.mrb[0].mxu0
        %v1655 = vpop.f32.mrb[0].mxu0
        %v1656 = vadd.f32 0.0, %v1655
        %v1657 = vpop.f32.mrb[0].mxu0
        %1658 = vmatprep.mubr.bf16.mxu0 0
        %1659 = vmatmul.mubr.bf16.gmra.mrb[0].mxu0 %v811
        %v1660 = vpop.f32.mrb[0].mxu0
        %v1661 = vadd.f32 0.0, %v1660
        %v1662 = vpop.f32.mrb[0].mxu0
        %v1663 = vpop.f32.mrb[0].mxu0
        %v1664 = vadd.f32 0.0, %v1663
        %v1665 = vpop.f32.mrb[0].mxu0
        %1666 = vmatprep.mubr.bf16.mxu0 0
        %1667 = vmatmul.mubr.bf16.gmra.mrb[0].mxu0 %v812
        %v1668 = vpop.f32.mrb[0].mxu0
        %v1669 = vadd.f32 0.0, %v1668
        %v1670 = vpop.f32.mrb[0].mxu0
        %v1671 = vpop.f32.mrb[0].mxu0
        %v1672 = vadd.f32 0.0, %v1671
        %v1673 = vpop.f32.mrb[0].mxu0
        %1674 = vmatprep.mubr.bf16.mxu0 0
        %1675 = vmatmul.mubr.bf16.gmra.mrb[0].mxu0 %v813
        %v1676 = vpop.f32.mrb[0].mxu0
        %v1677 = vadd.f32 0.0, %v1676
        %v1678 = vpop.f32.mrb[0].mxu0
        %v1679 = vpop.f32.mrb[0].mxu0
        %v1680 = vadd.f32 0.0, %v1679
        %v1681 = vpop.f32.mrb[0].mxu0
        %1682 = vmatprep.mubr.bf16.mxu0 0
        %1683 = vmatmul.mubr.bf16.gmra.mrb[0].mxu0 %v814
        %v1684 = vpop.f32.mrb[0].mxu0
        %v1685 = vadd.f32 0.0, %v1684
        %v1686 = vpop.f32.mrb[0].mxu0
        %v1687 = vpop.f32.mrb[0].mxu0
        %v1688 = vadd.f32 0.0, %v1687
        %v1689 = vpop.f32.mrb[0].mxu0
        %1690 = vdwg.mxu0
        %v1707 = vunpack.c.l.b16 %v1514
        %v1708 = vunpack.c.l.b16 %v1515
        %v1709 = vunpack.c.l.b16 %v1516
        %v1710 = vunpack.c.l.b16 %v1517
        %v1711 = vunpack.c.l.b16 %v1518
        %v1712 = vunpack.c.l.b16 %v1519
        %v1713 = vunpack.c.l.b16 %v1520
        %v1714 = vunpack.c.l.b16 %v1521
        %v1715 = vunpack.c.l.b16 %v1522
        %v1716 = vunpack.c.l.b16 %v1523
        %v1717 = vunpack.c.l.b16 %v1524
        %v1718 = vunpack.c.l.b16 %v1525
        %v1719 = vunpack.c.l.b16 %v1526
        %v1720 = vunpack.c.l.b16 %v1527
        %v1721 = vunpack.c.l.b16 %v1528
        %v1722 = vunpack.c.l.b16 %v1529
        %v1723 = vpack.c.b16 %v1708, %v1707
        %v1724 = vpack.c.b16 %v1710, %v1709
        %v1725 = vpack.c.b16 %v1712, %v1711
        %v1726 = vpack.c.b16 %v1714, %v1713
        %v1727 = vpack.c.b16 %v1716, %v1715
        %v1728 = vpack.c.b16 %v1718, %v1717
        %v1729 = vpack.c.b16 %v1720, %v1719
        %v1730 = vpack.c.b16 %v1722, %v1721
        %1739 = vmatprep.subr.bf16.mxu0 0
        %1740 = vmatpush1.bf16.msra.mxu0 %v1723
        %1741 = vmatprep.subr.bf16.mxu0 0
        %1742 = vmatpush1.bf16.msra.mxu0 %v1724
        %1743 = vmatprep.subr.bf16.mxu0 0
        %1744 = vmatpush1.bf16.msra.mxu0 %v1725
        %1745 = vmatprep.subr.bf16.mxu0 0
        %1746 = vmatpush1.bf16.msra.mxu0 %v1726
        %1747 = vmatprep.subr.bf16.mxu0 0
        %1748 = vmatpush1.bf16.msra.mxu0 %v1727
        %1749 = vmatprep.subr.bf16.mxu0 0
        %1750 = vmatpush1.bf16.msra.mxu0 %v1728
        %1751 = vmatprep.subr.bf16.mxu0 0
        %1752 = vmatpush1.bf16.msra.mxu0 %v1729
        %1753 = vmatprep.subr.bf16.mxu0 0
        %1754 = vmatpush1.bf16.msra.mxu0 %v1730
        %1755 = vmatprep.subr.bf16.mxu0 0
        %1756 = vmatpush1.bf16.msra.mxu0 0
        %1757 = vmatprep.subr.bf16.mxu0 0
        %1758 = vmatpush1.bf16.msra.mxu0 0
        %1759 = vmatprep.subr.bf16.mxu0 0
        %1760 = vmatpush1.bf16.msra.mxu0 0
        %1761 = vmatprep.subr.bf16.mxu0 0
        %1762 = vmatpush1.bf16.msra.mxu0 0
        %1763 = vmatprep.subr.bf16.mxu0 0
        %1764 = vmatpush1.bf16.msra.mxu0 0
        %1765 = vmatprep.subr.bf16.mxu0 0
        %1766 = vmatpush1.bf16.msra.mxu0 0
        %1767 = vmatprep.subr.bf16.mxu0 0
        %1768 = vmatpush1.bf16.msra.mxu0 0
        %1769 = vmatprep.subr.bf16.mxu0 0
        %1770 = vmatpush1.bf16.msra.mxu0 0
        %1771 = vmatprep.mubr.bf16.mxu0 0
        %1772 = vmatmul.mubr.bf16.gmra.mrb[0].mxu0 %v799
        %v1773 = vpop.f32.mrb[0].mxu0
        %v1774 = vadd.f32 %v1629, %v1773
        %v1775 = vpop.f32.mrb[0].mxu0
        %v1776 = vpop.f32.mrb[0].mxu0
        %v1777 = vadd.f32 %v1632, %v1776
        %v1778 = vpop.f32.mrb[0].mxu0
        %1779 = vmatprep.mubr.bf16.mxu0 0
        %1780 = vmatmul.mubr.bf16.gmra.mrb[0].mxu0 %v800
        %v1781 = vpop.f32.mrb[0].mxu0
        %v1782 = vadd.f32 %v1637, %v1781
        %v1783 = vpop.f32.mrb[0].mxu0
        %v1784 = vpop.f32.mrb[0].mxu0
        %v1785 = vadd.f32 %v1640, %v1784
        %v1786 = vpop.f32.mrb[0].mxu0
        %1787 = vmatprep.mubr.bf16.mxu0 0
        %1788 = vmatmul.mubr.bf16.gmra.mrb[0].mxu0 %v801
        %v1789 = vpop.f32.mrb[0].mxu0
        %v1790 = vadd.f32 %v1645, %v1789
        %v1791 = vpop.f32.mrb[0].mxu0
        %v1792 = vpop.f32.mrb[0].mxu0
        %v1793 = vadd.f32 %v1648, %v1792
        %v1794 = vpop.f32.mrb[0].mxu0
        %1795 = vmatprep.mubr.bf16.mxu0 0
        %1796 = vmatmul.mubr.bf16.gmra.mrb[0].mxu0 %v802
        %v1797 = vpop.f32.mrb[0].mxu0
        %v1798 = vadd.f32 %v1653, %v1797
        %v1799 = vpop.f32.mrb[0].mxu0
        %v1800 = vpop.f32.mrb[0].mxu0
        %v1801 = vadd.f32 %v1656, %v1800
        %v1802 = vpop.f32.mrb[0].mxu0
        %1803 = vmatprep.mubr.bf16.mxu0 0
        %1804 = vmatmul.mubr.bf16.gmra.mrb[0].mxu0 %v803
        %v1805 = vpop.f32.mrb[0].mxu0
        %v1806 = vadd.f32 %v1661, %v1805
        %v1807 = vpop.f32.mrb[0].mxu0
        %v1808 = vpop.f32.mrb[0].mxu0
        %v1809 = vadd.f32 %v1664, %v1808
        %v1810 = vpop.f32.mrb[0].mxu0
        %1811 = vmatprep.mubr.bf16.mxu0 0
        %1812 = vmatmul.mubr.bf16.gmra.mrb[0].mxu0 %v804
        %v1813 = vpop.f32.mrb[0].mxu0
        %v1814 = vadd.f32 %v1669, %v1813
        %v1815 = vpop.f32.mrb[0].mxu0
        %v1816 = vpop.f32.mrb[0].mxu0
        %v1817 = vadd.f32 %v1672, %v1816
        %v1818 = vpop.f32.mrb[0].mxu0
        %1819 = vmatprep.mubr.bf16.mxu0 0
        %1820 = vmatmul.mubr.bf16.gmra.mrb[0].mxu0 %v805
        %v1821 = vpop.f32.mrb[0].mxu0
        %v1822 = vadd.f32 %v1677, %v1821
        %v1823 = vpop.f32.mrb[0].mxu0
        %v1824 = vpop.f32.mrb[0].mxu0
        %v1825 = vadd.f32 %v1680, %v1824
        %v1826 = vpop.f32.mrb[0].mxu0
        %1827 = vmatprep.mubr.bf16.mxu0 0
        %1828 = vmatmul.mubr.bf16.gmra.mrb[0].mxu0 %v806
        %v1829 = vpop.f32.mrb[0].mxu0
        %v1830 = vadd.f32 %v1685, %v1829
        %v1831 = vpop.f32.mrb[0].mxu0
        %v1832 = vpop.f32.mrb[0].mxu0
        %v1833 = vadd.f32 %v1688, %v1832
        %v1834 = vpop.f32.mrb[0].mxu0
        %1835 = vdwg.mxu0
        %v1836 = vld [vmem:[#allocation4 + $0x80] sm:$0xf]
        %v1837 = vld [vmem:[#allocation4 + $0x84] sm:$0xf]
        %v1838 = vld [vmem:[#allocation4 + $0x88] sm:$0xf]
        %v1839 = vld [vmem:[#allocation4 + $0x8c] sm:$0xf]
        %v1840 = vld [vmem:[#allocation4 + $0x90] sm:$0xf]
        %v1841 = vld [vmem:[#allocation4 + $0x94] sm:$0xf]
        %v1842 = vld [vmem:[#allocation4 + $0x98] sm:$0xf]
        %v1843 = vld [vmem:[#allocation4 + $0x9c] sm:$0xf]
        %v1844 = vld [vmem:[#allocation4 + $0xa0] sm:$0xf]
        %v1845 = vld [vmem:[#allocation4 + $0xa4] sm:$0xf]
        %v1846 = vld [vmem:[#allocation4 + $0xa8] sm:$0xf]
        %v1847 = vld [vmem:[#allocation4 + $0xac] sm:$0xf]
        %v1848 = vld [vmem:[#allocation4 + $0xb0] sm:$0xf]
        %v1849 = vld [vmem:[#allocation4 + $0xb4] sm:$0xf]
        %v1850 = vld [vmem:[#allocation4 + $0xb8] sm:$0xf]
        %v1851 = vld [vmem:[#allocation4 + $0xbc] sm:$0xf]
        %v1868 = vunpack.c.l.b16 %v1391
        %v1869 = vunpack.c.l.b16 %v1392
        %v1870 = vunpack.c.l.b16 %v1393
        %v1871 = vunpack.c.l.b16 %v1394
        %v1872 = vunpack.c.l.b16 %v1395
        %v1873 = vunpack.c.l.b16 %v1396
        %v1874 = vunpack.c.l.b16 %v1397
        %v1875 = vunpack.c.l.b16 %v1398
        %v1876 = vunpack.c.l.b16 %v1399
        %v1877 = vunpack.c.l.b16 %v1400
        %v1878 = vunpack.c.l.b16 %v1401
        %v1879 = vunpack.c.l.b16 %v1402
        %v1880 = vunpack.c.l.b16 %v1403
        %v1881 = vunpack.c.l.b16 %v1404
        %v1882 = vunpack.c.l.b16 %v1405
        %v1883 = vunpack.c.l.b16 %v1406
        %v1884 = vpack.c.b16 %v1869, %v1868
        %v1885 = vpack.c.b16 %v1871, %v1870
        %v1886 = vpack.c.b16 %v1873, %v1872
        %v1887 = vpack.c.b16 %v1875, %v1874
        %v1888 = vpack.c.b16 %v1877, %v1876
        %v1889 = vpack.c.b16 %v1879, %v1878
        %v1890 = vpack.c.b16 %v1881, %v1880
        %v1891 = vpack.c.b16 %v1883, %v1882
        %v1916 = vunpack.c.l.b16 %v1836
        %v1917 = vunpack.c.l.b16 %v1837
        %v1918 = vunpack.c.l.b16 %v1838
        %v1919 = vunpack.c.l.b16 %v1839
        %v1920 = vunpack.c.l.b16 %v1840
        %v1921 = vunpack.c.l.b16 %v1841
        %v1922 = vunpack.c.l.b16 %v1842
        %v1923 = vunpack.c.l.b16 %v1843
        %v1924 = vunpack.c.l.b16 %v1844
        %v1925 = vunpack.c.l.b16 %v1845
        %v1926 = vunpack.c.l.b16 %v1846
        %v1927 = vunpack.c.l.b16 %v1847
        %v1928 = vunpack.c.l.b16 %v1848
        %v1929 = vunpack.c.l.b16 %v1849
        %v1930 = vunpack.c.l.b16 %v1850
        %v1931 = vunpack.c.l.b16 %v1851
        %v1932 = vpack.c.b16 %v1917, %v1916
        %v1933 = vpack.c.b16 %v1919, %v1918
        %v1934 = vpack.c.b16 %v1921, %v1920
        %v1935 = vpack.c.b16 %v1923, %v1922
        %v1936 = vpack.c.b16 %v1925, %v1924
        %v1937 = vpack.c.b16 %v1927, %v1926
        %v1938 = vpack.c.b16 %v1929, %v1928
        %v1939 = vpack.c.b16 %v1931, %v1930
        %1948 = vmatprep.subr.bf16.mxu0 0
        %1949 = vmatpush1.bf16.msra.mxu0 %v1932
        %1950 = vmatprep.subr.bf16.mxu0 0
        %1951 = vmatpush1.bf16.msra.mxu0 %v1933
        %1952 = vmatprep.subr.bf16.mxu0 0
        %1953 = vmatpush1.bf16.msra.mxu0 %v1934
        %1954 = vmatprep.subr.bf16.mxu0 0
        %1955 = vmatpush1.bf16.msra.mxu0 %v1935
        %1956 = vmatprep.subr.bf16.mxu0 0
        %1957 = vmatpush1.bf16.msra.mxu0 %v1936
        %1958 = vmatprep.subr.bf16.mxu0 0
        %1959 = vmatpush1.bf16.msra.mxu0 %v1937
        %1960 = vmatprep.subr.bf16.mxu0 0
        %1961 = vmatpush1.bf16.msra.mxu0 %v1938
        %1962 = vmatprep.subr.bf16.mxu0 0
        %1963 = vmatpush1.bf16.msra.mxu0 %v1939
        %1964 = vmatprep.subr.bf16.mxu0 0
        %1965 = vmatpush1.bf16.msra.mxu0 0
        %1966 = vmatprep.subr.bf16.mxu0 0
        %1967 = vmatpush1.bf16.msra.mxu0 0
        %1968 = vmatprep.subr.bf16.mxu0 0
        %1969 = vmatpush1.bf16.msra.mxu0 0
        %1970 = vmatprep.subr.bf16.mxu0 0
        %1971 = vmatpush1.bf16.msra.mxu0 0
        %1972 = vmatprep.subr.bf16.mxu0 0
        %1973 = vmatpush1.bf16.msra.mxu0 0
        %1974 = vmatprep.subr.bf16.mxu0 0
        %1975 = vmatpush1.bf16.msra.mxu0 0
        %1976 = vmatprep.subr.bf16.mxu0 0
        %1977 = vmatpush1.bf16.msra.mxu0 0
        %1978 = vmatprep.subr.bf16.mxu0 0
        %1979 = vmatpush1.bf16.msra.mxu0 0
        %1980 = vmatprep.mubr.bf16.mxu0 0
        %1981 = vmatmul.mubr.bf16.gmra.mrb[0].mxu0 %v1884
        %v1982 = vpop.f32.mrb[0].mxu0
        %v1983 = vadd.f32 0.0, %v1982
        %v1984 = vpop.f32.mrb[0].mxu0
        %v1985 = vpop.f32.mrb[0].mxu0
        %v1986 = vadd.f32 0.0, %v1985
        %v1987 = vpop.f32.mrb[0].mxu0
        %1988 = vmatprep.mubr.bf16.mxu0 0
        %1989 = vmatmul.mubr.bf16.gmra.mrb[0].mxu0 %v1885
        %v1990 = vpop.f32.mrb[0].mxu0
        %v1991 = vadd.f32 0.0, %v1990
        %v1992 = vpop.f32.mrb[0].mxu0
        %v1993 = vpop.f32.mrb[0].mxu0
        %v1994 = vadd.f32 0.0, %v1993
        %v1995 = vpop.f32.mrb[0].mxu0
        %1996 = vmatprep.mubr.bf16.mxu0 0
        %1997 = vmatmul.mubr.bf16.gmra.mrb[0].mxu0 %v1886
        %v1998 = vpop.f32.mrb[0].mxu0
        %v1999 = vadd.f32 0.0, %v1998
        %v2000 = vpop.f32.mrb[0].mxu0
        %v2001 = vpop.f32.mrb[0].mxu0
        %v2002 = vadd.f32 0.0, %v2001
        %v2003 = vpop.f32.mrb[0].mxu0
        %2004 = vmatprep.mubr.bf16.mxu0 0
        %2005 = vmatmul.mubr.bf16.gmra.mrb[0].mxu0 %v1887
        %v2006 = vpop.f32.mrb[0].mxu0
        %v2007 = vadd.f32 0.0, %v2006
        %v2008 = vpop.f32.mrb[0].mxu0
        %v2009 = vpop.f32.mrb[0].mxu0
        %v2010 = vadd.f32 0.0, %v2009
        %v2011 = vpop.f32.mrb[0].mxu0
        %2012 = vmatprep.mubr.bf16.mxu0 0
        %2013 = vmatmul.mubr.bf16.gmra.mrb[0].mxu0 %v1888
        %v2014 = vpop.f32.mrb[0].mxu0
        %v2015 = vadd.f32 0.0, %v2014
        %v2016 = vpop.f32.mrb[0].mxu0
        %v2017 = vpop.f32.mrb[0].mxu0
        %v2018 = vadd.f32 0.0, %v2017
        %v2019 = vpop.f32.mrb[0].mxu0
        %2020 = vmatprep.mubr.bf16.mxu0 0
        %2021 = vmatmul.mubr.bf16.gmra.mrb[0].mxu0 %v1889
        %v2022 = vpop.f32.mrb[0].mxu0
        %v2023 = vadd.f32 0.0, %v2022
        %v2024 = vpop.f32.mrb[0].mxu0
        %v2025 = vpop.f32.mrb[0].mxu0
        %v2026 = vadd.f32 0.0, %v2025
        %v2027 = vpop.f32.mrb[0].mxu0
        %2028 = vmatprep.mubr.bf16.mxu0 0
        %2029 = vmatmul.mubr.bf16.gmra.mrb[0].mxu0 %v1890
        %v2030 = vpop.f32.mrb[0].mxu0
        %v2031 = vadd.f32 0.0, %v2030
        %v2032 = vpop.f32.mrb[0].mxu0
        %v2033 = vpop.f32.mrb[0].mxu0
        %v2034 = vadd.f32 0.0, %v2033
        %v2035 = vpop.f32.mrb[0].mxu0
        %2036 = vmatprep.mubr.bf16.mxu0 0
        %2037 = vmatmul.mubr.bf16.gmra.mrb[0].mxu0 %v1891
        %v2038 = vpop.f32.mrb[0].mxu0
        %v2039 = vadd.f32 0.0, %v2038
        %v2040 = vpop.f32.mrb[0].mxu0
        %v2041 = vpop.f32.mrb[0].mxu0
        %v2042 = vadd.f32 0.0, %v2041
        %v2043 = vpop.f32.mrb[0].mxu0
        %2044 = vdwg.mxu0
        %v2045 = vadd.f32 %v1774, %v1983
        %v2046 = vadd.f32 %v1777, %v1986
        %v2047 = vadd.f32 %v1782, %v1991
        %v2048 = vadd.f32 %v1785, %v1994
        %v2049 = vadd.f32 %v1790, %v1999
        %v2050 = vadd.f32 %v1793, %v2002
        %v2051 = vadd.f32 %v1798, %v2007
        %v2052 = vadd.f32 %v1801, %v2010
        %v2053 = vadd.f32 %v1806, %v2015
        %v2054 = vadd.f32 %v1809, %v2018
        %v2055 = vadd.f32 %v1814, %v2023
        %v2056 = vadd.f32 %v1817, %v2026
        %v2057 = vadd.f32 %v1822, %v2031
        %v2058 = vadd.f32 %v1825, %v2034
        %v2059 = vadd.f32 %v1830, %v2039
        %v2060 = vadd.f32 %v1833, %v2042
        %v2061 = vld [vmem:[#allocation4 + $0xc0] sm:$0xf]
        %v2062 = vld [vmem:[#allocation4 + $0xc4] sm:$0xf]
        %v2063 = vld [vmem:[#allocation4 + $0xc8] sm:$0xf]
        %v2064 = vld [vmem:[#allocation4 + $0xcc] sm:$0xf]
        %v2065 = vld [vmem:[#allocation4 + $0xd0] sm:$0xf]
        %v2066 = vld [vmem:[#allocation4 + $0xd4] sm:$0xf]
        %v2067 = vld [vmem:[#allocation4 + $0xd8] sm:$0xf]
        %v2068 = vld [vmem:[#allocation4 + $0xdc] sm:$0xf]
        %v2069 = vld [vmem:[#allocation4 + $0xe0] sm:$0xf]
        %v2070 = vld [vmem:[#allocation4 + $0xe4] sm:$0xf]
        %v2071 = vld [vmem:[#allocation4 + $0xe8] sm:$0xf]
        %v2072 = vld [vmem:[#allocation4 + $0xec] sm:$0xf]
        %v2073 = vld [vmem:[#allocation4 + $0xf0] sm:$0xf]
        %v2074 = vld [vmem:[#allocation4 + $0xf4] sm:$0xf]
        %v2075 = vld [vmem:[#allocation4 + $0xf8] sm:$0xf]
        %v2076 = vld [vmem:[#allocation4 + $0xfc] sm:$0xf]
        %v2077 = vunpack.c.l.b16 %v1461
        %v2078 = vunpack.c.l.b16 %v1464
        %v2079 = vunpack.c.l.b16 %v1468
        %v2080 = vunpack.c.l.b16 %v1471
        %v2081 = vunpack.c.l.b16 %v1475
        %v2082 = vunpack.c.l.b16 %v1478
        %v2083 = vunpack.c.l.b16 %v1482
        %v2084 = vunpack.c.l.b16 %v1485
        %v2085 = vunpack.c.l.b16 %v1489
        %v2086 = vunpack.c.l.b16 %v1492
        %v2087 = vunpack.c.l.b16 %v1496
        %v2088 = vunpack.c.l.b16 %v1499
        %v2089 = vunpack.c.l.b16 %v1503
        %v2090 = vunpack.c.l.b16 %v1506
        %v2091 = vunpack.c.l.b16 %v1510
        %v2092 = vunpack.c.l.b16 %v1513
        %v2093 = vpack.c.b16 %v2078, %v2077
        %v2094 = vpack.c.b16 %v2080, %v2079
        %v2095 = vpack.c.b16 %v2082, %v2081
        %v2096 = vpack.c.b16 %v2084, %v2083
        %v2097 = vpack.c.b16 %v2086, %v2085
        %v2098 = vpack.c.b16 %v2088, %v2087
        %v2099 = vpack.c.b16 %v2090, %v2089
        %v2100 = vpack.c.b16 %v2092, %v2091
        %v2125 = vunpack.c.l.b16 %v2061
        %v2126 = vunpack.c.l.b16 %v2062
        %v2127 = vunpack.c.l.b16 %v2063
        %v2128 = vunpack.c.l.b16 %v2064
        %v2129 = vunpack.c.l.b16 %v2065
        %v2130 = vunpack.c.l.b16 %v2066
        %v2131 = vunpack.c.l.b16 %v2067
        %v2132 = vunpack.c.l.b16 %v2068
        %v2133 = vunpack.c.l.b16 %v2069
        %v2134 = vunpack.c.l.b16 %v2070
        %v2135 = vunpack.c.l.b16 %v2071
        %v2136 = vunpack.c.l.b16 %v2072
        %v2137 = vunpack.c.l.b16 %v2073
        %v2138 = vunpack.c.l.b16 %v2074
        %v2139 = vunpack.c.l.b16 %v2075
        %v2140 = vunpack.c.l.b16 %v2076
        %v2141 = vpack.c.b16 %v2126, %v2125
        %v2142 = vpack.c.b16 %v2128, %v2127
        %v2143 = vpack.c.b16 %v2130, %v2129
        %v2144 = vpack.c.b16 %v2132, %v2131
        %v2145 = vpack.c.b16 %v2134, %v2133
        %v2146 = vpack.c.b16 %v2136, %v2135
        %v2147 = vpack.c.b16 %v2138, %v2137
        %v2148 = vpack.c.b16 %v2140, %v2139
        %2157 = vmatprep.subr.bf16.mxu0 0
        %2158 = vmatpush1.bf16.msra.mxu0 %v2141
        %2159 = vmatprep.subr.bf16.mxu0 0
        %2160 = vmatpush1.bf16.msra.mxu0 %v2142
        %2161 = vmatprep.subr.bf16.mxu0 0
        %2162 = vmatpush1.bf16.msra.mxu0 %v2143
        %2163 = vmatprep.subr.bf16.mxu0 0
        %2164 = vmatpush1.bf16.msra.mxu0 %v2144
        %2165 = vmatprep.subr.bf16.mxu0 0
        %2166 = vmatpush1.bf16.msra.mxu0 %v2145
        %2167 = vmatprep.subr.bf16.mxu0 0
        %2168 = vmatpush1.bf16.msra.mxu0 %v2146
        %2169 = vmatprep.subr.bf16.mxu0 0
        %2170 = vmatpush1.bf16.msra.mxu0 %v2147
        %2171 = vmatprep.subr.bf16.mxu0 0
        %2172 = vmatpush1.bf16.msra.mxu0 %v2148
        %2173 = vmatprep.subr.bf16.mxu0 0
        %2174 = vmatpush1.bf16.msra.mxu0 0
        %2175 = vmatprep.subr.bf16.mxu0 0
        %2176 = vmatpush1.bf16.msra.mxu0 0
        %2177 = vmatprep.subr.bf16.mxu0 0
        %2178 = vmatpush1.bf16.msra.mxu0 0
        %2179 = vmatprep.subr.bf16.mxu0 0
        %2180 = vmatpush1.bf16.msra.mxu0 0
        %2181 = vmatprep.subr.bf16.mxu0 0
        %2182 = vmatpush1.bf16.msra.mxu0 0
        %2183 = vmatprep.subr.bf16.mxu0 0
        %2184 = vmatpush1.bf16.msra.mxu0 0
        %2185 = vmatprep.subr.bf16.mxu0 0
        %2186 = vmatpush1.bf16.msra.mxu0 0
        %2187 = vmatprep.subr.bf16.mxu0 0
        %2188 = vmatpush1.bf16.msra.mxu0 0
        %2189 = vmatprep.mubr.bf16.mxu0 0
        %2190 = vmatmul.mubr.bf16.gmra.mrb[0].mxu0 %v2093
        %v2191 = vpop.f32.mrb[0].mxu0
        %v2192 = vadd.f32 0.0, %v2191
        %v2193 = vpop.f32.mrb[0].mxu0
        %v2194 = vpop.f32.mrb[0].mxu0
        %v2195 = vadd.f32 0.0, %v2194
        %v2196 = vpop.f32.mrb[0].mxu0
        %2197 = vmatprep.mubr.bf16.mxu0 0
        %2198 = vmatmul.mubr.bf16.gmra.mrb[0].mxu0 %v2094
        %v2199 = vpop.f32.mrb[0].mxu0
        %v2200 = vadd.f32 0.0, %v2199
        %v2201 = vpop.f32.mrb[0].mxu0
        %v2202 = vpop.f32.mrb[0].mxu0
        %v2203 = vadd.f32 0.0, %v2202
        %v2204 = vpop.f32.mrb[0].mxu0
        %2205 = vmatprep.mubr.bf16.mxu0 0
        %2206 = vmatmul.mubr.bf16.gmra.mrb[0].mxu0 %v2095
        %v2207 = vpop.f32.mrb[0].mxu0
        %v2208 = vadd.f32 0.0, %v2207
        %v2209 = vpop.f32.mrb[0].mxu0
        %v2210 = vpop.f32.mrb[0].mxu0
        %v2211 = vadd.f32 0.0, %v2210
        %v2212 = vpop.f32.mrb[0].mxu0
        %2213 = vmatprep.mubr.bf16.mxu0 0
        %2214 = vmatmul.mubr.bf16.gmra.mrb[0].mxu0 %v2096
        %v2215 = vpop.f32.mrb[0].mxu0
        %v2216 = vadd.f32 0.0, %v2215
        %v2217 = vpop.f32.mrb[0].mxu0
        %v2218 = vpop.f32.mrb[0].mxu0
        %v2219 = vadd.f32 0.0, %v2218
        %v2220 = vpop.f32.mrb[0].mxu0
        %2221 = vmatprep.mubr.bf16.mxu0 0
        %2222 = vmatmul.mubr.bf16.gmra.mrb[0].mxu0 %v2097
        %v2223 = vpop.f32.mrb[0].mxu0
        %v2224 = vadd.f32 0.0, %v2223
        %v2225 = vpop.f32.mrb[0].mxu0
        %v2226 = vpop.f32.mrb[0].mxu0
        %v2227 = vadd.f32 0.0, %v2226
        %v2228 = vpop.f32.mrb[0].mxu0
        %2229 = vmatprep.mubr.bf16.mxu0 0
        %2230 = vmatmul.mubr.bf16.gmra.mrb[0].mxu0 %v2098
        %v2231 = vpop.f32.mrb[0].mxu0
        %v2232 = vadd.f32 0.0, %v2231
        %v2233 = vpop.f32.mrb[0].mxu0
        %v2234 = vpop.f32.mrb[0].mxu0
        %v2235 = vadd.f32 0.0, %v2234
        %v2236 = vpop.f32.mrb[0].mxu0
        %2237 = vmatprep.mubr.bf16.mxu0 0
        %2238 = vmatmul.mubr.bf16.gmra.mrb[0].mxu0 %v2099
        %v2239 = vpop.f32.mrb[0].mxu0
        %v2240 = vadd.f32 0.0, %v2239
        %v2241 = vpop.f32.mrb[0].mxu0
        %v2242 = vpop.f32.mrb[0].mxu0
        %v2243 = vadd.f32 0.0, %v2242
        %v2244 = vpop.f32.mrb[0].mxu0
        %2245 = vmatprep.mubr.bf16.mxu0 0
        %2246 = vmatmul.mubr.bf16.gmra.mrb[0].mxu0 %v2100
        %v2247 = vpop.f32.mrb[0].mxu0
        %v2248 = vadd.f32 0.0, %v2247
        %v2249 = vpop.f32.mrb[0].mxu0
        %v2250 = vpop.f32.mrb[0].mxu0
        %v2251 = vadd.f32 0.0, %v2250
        %v2252 = vpop.f32.mrb[0].mxu0
        %2253 = vdwg.mxu0
        %v2254 = vadd.f32 %v2045, %v2192
        %v2255 = vadd.f32 %v2046, %v2195
        %v2256 = vadd.f32 %v2047, %v2200
        %v2257 = vadd.f32 %v2048, %v2203
        %v2258 = vadd.f32 %v2049, %v2208
        %v2259 = vadd.f32 %v2050, %v2211
        %v2260 = vadd.f32 %v2051, %v2216
        %v2261 = vadd.f32 %v2052, %v2219
        %v2262 = vadd.f32 %v2053, %v2224
        %v2263 = vadd.f32 %v2054, %v2227
        %v2264 = vadd.f32 %v2055, %v2232
        %v2265 = vadd.f32 %v2056, %v2235
        %v2266 = vadd.f32 %v2057, %v2240
        %v2267 = vadd.f32 %v2058, %v2243
        %v2268 = vadd.f32 %v2059, %v2248
        %v2269 = vadd.f32 %v2060, %v2251
        %2286 = vrot.lane.b32.xlu0 %v2254, 64
        %v2287 = vpop.permute.xlu0 %2286
        %2288 = vrot.lane.b32.xlu0 %v2255, 64
        %v2289 = vpop.permute.xlu0 %2288
        %2290 = vrot.lane.b32.xlu0 %v2256, 64
        %v2291 = vpop.permute.xlu0 %2290
        %2292 = vrot.lane.b32.xlu0 %v2257, 64
        %v2293 = vpop.permute.xlu0 %2292
        %2294 = vrot.lane.b32.xlu0 %v2258, 64
        %v2295 = vpop.permute.xlu0 %2294
        %2296 = vrot.lane.b32.xlu0 %v2259, 64
        %v2297 = vpop.permute.xlu0 %2296
        %2298 = vrot.lane.b32.xlu0 %v2260, 64
        %v2299 = vpop.permute.xlu0 %2298
        %2300 = vrot.lane.b32.xlu0 %v2261, 64
        %v2301 = vpop.permute.xlu0 %2300
        %2302 = vrot.lane.b32.xlu0 %v2262, 64
        %v2303 = vpop.permute.xlu0 %2302
        %2304 = vrot.lane.b32.xlu0 %v2263, 64
        %v2305 = vpop.permute.xlu0 %2304
        %2306 = vrot.lane.b32.xlu0 %v2264, 64
        %v2307 = vpop.permute.xlu0 %2306
        %2308 = vrot.lane.b32.xlu0 %v2265, 64
        %v2309 = vpop.permute.xlu0 %2308
        %2310 = vrot.lane.b32.xlu0 %v2266, 64
        %v2311 = vpop.permute.xlu0 %2310
        %2312 = vrot.lane.b32.xlu0 %v2267, 64
        %v2313 = vpop.permute.xlu0 %2312
        %2314 = vrot.lane.b32.xlu0 %v2268, 64
        %v2315 = vpop.permute.xlu0 %2314
        %2316 = vrot.lane.b32.xlu0 %v2269, 64
        %v2317 = vpop.permute.xlu0 %2316
        %v2334 = vmax.f32 %v2254, %v2287
        %v2335 = vmax.f32 %v2255, %v2289
        %v2336 = vmax.f32 %v2256, %v2291
        %v2337 = vmax.f32 %v2257, %v2293
        %v2338 = vmax.f32 %v2258, %v2295
        %v2339 = vmax.f32 %v2259, %v2297
        %v2340 = vmax.f32 %v2260, %v2299
        %v2341 = vmax.f32 %v2261, %v2301
        %v2342 = vmax.f32 %v2262, %v2303
        %v2343 = vmax.f32 %v2263, %v2305
        %v2344 = vmax.f32 %v2264, %v2307
        %v2345 = vmax.f32 %v2265, %v2309
        %v2346 = vmax.f32 %v2266, %v2311
        %v2347 = vmax.f32 %v2267, %v2313
        %v2348 = vmax.f32 %v2268, %v2315
        %v2349 = vmax.f32 %v2269, %v2317
        %v2350 = vld [vmem:[%s4] sm:$0x1]
        %v2352 = vlaneseq
        %v2353 = vshrl.u32 %v2352, 7
        %v2354 = vsub.s32 0, %v2353
        %v2355 = vrot.slane %v2350, %v2354
        %v2357 = vadd.f32 %v2334, %v2355
        %v2358 = vadd.f32 %v2335, %v2355
        %v2359 = vadd.f32 %v2336, %v2355
        %v2360 = vadd.f32 %v2337, %v2355
        %v2361 = vadd.f32 %v2338, %v2355
        %v2362 = vadd.f32 %v2339, %v2355
        %v2363 = vadd.f32 %v2340, %v2355
        %v2364 = vadd.f32 %v2341, %v2355
        %v2365 = vadd.f32 %v2342, %v2355
        %v2366 = vadd.f32 %v2343, %v2355
        %v2367 = vadd.f32 %v2344, %v2355
        %v2368 = vadd.f32 %v2345, %v2355
        %v2369 = vadd.f32 %v2346, %v2355
        %v2370 = vadd.f32 %v2347, %v2355
        %v2371 = vadd.f32 %v2348, %v2355
        %v2372 = vadd.f32 %v2349, %v2355
        %v2373 = vmax.f32 %v2357, 0.0
        %v2374 = vmax.f32 %v2358, 0.0
        %v2375 = vmax.f32 %v2359, 0.0
        %v2376 = vmax.f32 %v2360, 0.0
        %v2377 = vmax.f32 %v2361, 0.0
        %v2378 = vmax.f32 %v2362, 0.0
        %v2379 = vmax.f32 %v2363, 0.0
        %v2380 = vmax.f32 %v2364, 0.0
        %v2381 = vmax.f32 %v2365, 0.0
        %v2382 = vmax.f32 %v2366, 0.0
        %v2383 = vmax.f32 %v2367, 0.0
        %v2384 = vmax.f32 %v2368, 0.0
        %v2385 = vmax.f32 %v2369, 0.0
        %v2386 = vmax.f32 %v2370, 0.0
        %v2387 = vmax.f32 %v2371, 0.0
        %v2388 = vmax.f32 %v2372, 0.0
        %v2397 = vrot.slane %v2375, 7
        %vm2398 = vcmask 1041409
        %v2399 = vsel %vm2398, %v2397, %v2373
        %v2400 = vrot.slane %v2377, 6
        %vm2401 = vcmask 1042434
        %v2402 = vsel %vm2401, %v2400, %v2399
        %v2403 = vrot.slane %v2379, 5
        %vm2404 = vcmask 1043459
        %v2405 = vsel %vm2404, %v2403, %v2402
        %v2406 = vrot.slane %v2381, 4
        %vm2407 = vcmask 1044484
        %v2408 = vsel %vm2407, %v2406, %v2405
        %v2409 = vrot.slane %v2383, 3
        %vm2410 = vcmask 1045509
        %v2411 = vsel %vm2410, %v2409, %v2408
        %v2412 = vrot.slane %v2385, 2
        %vm2413 = vcmask 1046534
        %v2414 = vsel %vm2413, %v2412, %v2411
        %v2415 = vrot.slane %v2387, 1
        %vm2416 = vcmask 1047559
        %v2417 = vsel %vm2416, %v2415, %v2414
        %v2419 = vrot.slane %v2373, 1
        %v2420 = vsel %vm2398, %v2375, %v2419
        %v2421 = vrot.slane %v2377, 7
        %v2422 = vsel %vm2401, %v2421, %v2420
        %v2423 = vrot.slane %v2379, 6
        %v2424 = vsel %vm2404, %v2423, %v2422
        %v2425 = vrot.slane %v2381, 5
        %v2426 = vsel %vm2407, %v2425, %v2424
        %v2427 = vrot.slane %v2383, 4
        %v2428 = vsel %vm2410, %v2427, %v2426
        %v2429 = vrot.slane %v2385, 3
        %v2430 = vsel %vm2413, %v2429, %v2428
        %v2431 = vrot.slane %v2387, 2
        %v2432 = vsel %vm2416, %v2431, %v2430
        %2433 = vrot.lane.b32.xlu0 %v2432, 64
        %v2434 = vpop.permute.xlu0 %2433
        %vm2436 = vcmask 523264
        %v2437 = vsel %vm2436, %v2417, %v2434
        %v2438 = vpack.c.bf16 %v2437, %v2437
        %2439 = vst [vmem:[#allocation3] sm:$0xf] %v2438
        %v2440 = vsel %vm2404, %v2397, %v2373
        %v2441 = vsel %vm2407, %v2400, %v2440
        %v2442 = vsel %vm2410, %v2403, %v2441
        %v2443 = vsel %vm2413, %v2406, %v2442
        %v2444 = vsel %vm2416, %v2409, %v2443
        %v2445 = vsel %vm2398, %v2415, %v2412
        %v2448 = vsel %vm2404, %v2375, %v2419
        %v2449 = vsel %vm2407, %v2421, %v2448
        %v2450 = vsel %vm2410, %v2423, %v2449
        %v2451 = vsel %vm2413, %v2425, %v2450
        %v2452 = vsel %vm2416, %v2427, %v2451
        %v2453 = vsel %vm2398, %v2431, %v2429
        %2454 = vrot.lane.b32.xlu0 %v2452, 64
        %v2455 = vpop.permute.xlu0 %2454
        %2456 = vrot.lane.b32.xlu0 %v2453, 64
        %v2457 = vpop.permute.xlu0 %2456
        %v2460 = vsel %vm2436, %v2444, %v2455
        %v2461 = vsel %vm2436, %v2445, %v2457
        %v2462 = vpack.c.bf16 %v2461, %v2460
        %v2464 = vunpack.c.l.b16 %v2462
        %v2465 = vunpack.c.h.b16 %v2462
        %v2466 = vpack.c.b16 %v2464, %v2464
        %v2467 = vpack.c.b16 %v2465, %v2465
        %v2468 = vrot.slane %v2466, 5
        %v2469 = vrot.slane %v2468, 4
        %v2470 = vrot.slane %v2467, 5
        %v2471 = vsel %vm1457, %v2469, %v2470
        %2473 = vst [vmem:[#allocation3 + $0x4] sm:$0xf] %v2471
        %v2474 = vsel %vm2410, %v2397, %v2373
        %v2475 = vsel %vm2413, %v2400, %v2474
        %v2476 = vsel %vm2416, %v2403, %v2475
        %v2477 = vsel %vm2398, %v2409, %v2406
        %v2478 = vsel %vm2401, %v2412, %v2477
        %v2479 = vsel %vm2404, %v2415, %v2478
        %v2482 = vsel %vm2410, %v2375, %v2419
        %v2483 = vsel %vm2413, %v2421, %v2482
        %v2484 = vsel %vm2416, %v2423, %v2483
        %v2485 = vsel %vm2398, %v2427, %v2425
        %v2486 = vsel %vm2401, %v2429, %v2485
        %v2487 = vsel %vm2404, %v2431, %v2486
        %2488 = vrot.lane.b32.xlu0 %v2484, 64
        %v2489 = vpop.permute.xlu0 %2488
        %2490 = vrot.lane.b32.xlu0 %v2487, 64
        %v2491 = vpop.permute.xlu0 %2490
        %v2494 = vsel %vm2436, %v2476, %v2489
        %v2495 = vsel %vm2436, %v2479, %v2491
        %v2496 = vpack.c.bf16 %v2495, %v2494
        %v2498 = vunpack.c.l.b16 %v2496
        %v2499 = vunpack.c.h.b16 %v2496
        %v2500 = vpack.c.b16 %v2498, %v2498
        %v2501 = vpack.c.b16 %v2499, %v2499
        %vm2502 = vcmask 1041408
        %vm2503 = vcmask 1045508
        %vm2504 = vmor %vm2502, %vm2503
        %v2505 = vrot.slane %v2500, 6
        %v2506 = vrot.slane %v2505, 4
        %v2507 = vrot.slane %v2501, 6
        %v2508 = vsel %vm2504, %v2506, %v2507
        %2510 = vst [vmem:[#allocation3 + $0x8] sm:$0xf] %v2508
        %v2511 = vsel %vm2416, %v2397, %v2373
        %v2512 = vsel %vm2398, %v2403, %v2400
        %v2513 = vsel %vm2401, %v2406, %v2512
        %v2514 = vsel %vm2404, %v2409, %v2513
        %v2515 = vsel %vm2407, %v2412, %v2514
        %v2516 = vsel %vm2410, %v2415, %v2515
        %v2519 = vsel %vm2416, %v2375, %v2419
        %v2520 = vsel %vm2398, %v2423, %v2421
        %v2521 = vsel %vm2401, %v2425, %v2520
        %v2522 = vsel %vm2404, %v2427, %v2521
        %v2523 = vsel %vm2407, %v2429, %v2522
        %v2524 = vsel %vm2410, %v2431, %v2523
        %2525 = vrot.lane.b32.xlu0 %v2519, 64
        %v2526 = vpop.permute.xlu0 %2525
        %2527 = vrot.lane.b32.xlu0 %v2524, 64
        %v2528 = vpop.permute.xlu0 %2527
        %v2531 = vsel %vm2436, %v2511, %v2526
        %v2532 = vsel %vm2436, %v2516, %v2528
        %v2533 = vpack.c.bf16 %v2532, %v2531
        %v2535 = vunpack.c.l.b16 %v2533
        %v2536 = vunpack.c.h.b16 %v2533
        %v2537 = vpack.c.b16 %v2535, %v2535
        %v2538 = vpack.c.b16 %v2536, %v2536
        %vm2539 = vmor %vm815, %vm818
        %v2540 = vrot.slane %v2537, 7
        %v2541 = vrot.slane %v2540, 4
        %v2542 = vrot.slane %v2538, 7
        %v2543 = vsel %vm2539, %v2541, %v2542
        %2545 = vst [vmem:[#allocation3 + $0xc] sm:$0xf] %v2543
        %v2554 = vrot.slane %v2376, 7
        %v2555 = vsel %vm2398, %v2554, %v2374
        %v2556 = vrot.slane %v2378, 6
        %v2557 = vsel %vm2401, %v2556, %v2555
        %v2558 = vrot.slane %v2380, 5
        %v2559 = vsel %vm2404, %v2558, %v2557
        %v2560 = vrot.slane %v2382, 4
        %v2561 = vsel %vm2407, %v2560, %v2559
        %v2562 = vrot.slane %v2384, 3
        %v2563 = vsel %vm2410, %v2562, %v2561
        %v2564 = vrot.slane %v2386, 2
        %v2565 = vsel %vm2413, %v2564, %v2563
        %v2566 = vrot.slane %v2388, 1
        %v2567 = vsel %vm2416, %v2566, %v2565
        %v2569 = vrot.slane %v2374, 1
        %v2570 = vsel %vm2398, %v2376, %v2569
        %v2571 = vrot.slane %v2378, 7
        %v2572 = vsel %vm2401, %v2571, %v2570
        %v2573 = vrot.slane %v2380, 6
        %v2574 = vsel %vm2404, %v2573, %v2572
        %v2575 = vrot.slane %v2382, 5
        %v2576 = vsel %vm2407, %v2575, %v2574
        %v2577 = vrot.slane %v2384, 4
        %v2578 = vsel %vm2410, %v2577, %v2576
        %v2579 = vrot.slane %v2386, 3
        %v2580 = vsel %vm2413, %v2579, %v2578
        %v2581 = vrot.slane %v2388, 2
        %v2582 = vsel %vm2416, %v2581, %v2580
        %2583 = vrot.lane.b32.xlu0 %v2582, 64
        %v2584 = vpop.permute.xlu0 %2583
        %v2586 = vsel %vm2436, %v2567, %v2584
        %v2587 = vpack.c.bf16 %v2586, %v2586
        %2588 = vst [vmem:[#allocation3 + $0x10] sm:$0xf] %v2587
        %v2589 = vsel %vm2404, %v2554, %v2374
        %v2590 = vsel %vm2407, %v2556, %v2589
        %v2591 = vsel %vm2410, %v2558, %v2590
        %v2592 = vsel %vm2413, %v2560, %v2591
        %v2593 = vsel %vm2416, %v2562, %v2592
        %v2594 = vsel %vm2398, %v2566, %v2564
        %v2597 = vsel %vm2404, %v2376, %v2569
        %v2598 = vsel %vm2407, %v2571, %v2597
        %v2599 = vsel %vm2410, %v2573, %v2598
        %v2600 = vsel %vm2413, %v2575, %v2599
        %v2601 = vsel %vm2416, %v2577, %v2600
        %v2602 = vsel %vm2398, %v2581, %v2579
        %2603 = vrot.lane.b32.xlu0 %v2601, 64
        %v2604 = vpop.permute.xlu0 %2603
        %2605 = vrot.lane.b32.xlu0 %v2602, 64
        %v2606 = vpop.permute.xlu0 %2605
        %v2609 = vsel %vm2436, %v2593, %v2604
        %v2610 = vsel %vm2436, %v2594, %v2606
        %v2611 = vpack.c.bf16 %v2610, %v2609
        %v2613 = vunpack.c.l.b16 %v2611
        %v2614 = vunpack.c.h.b16 %v2611
        %v2615 = vpack.c.b16 %v2613, %v2613
        %v2616 = vpack.c.b16 %v2614, %v2614
        %v2617 = vrot.slane %v2615, 5
        %v2618 = vrot.slane %v2617, 4
        %v2619 = vrot.slane %v2616, 5
        %v2620 = vsel %vm1457, %v2618, %v2619
        %2622 = vst [vmem:[#allocation3 + $0x14] sm:$0xf] %v2620
        %v2623 = vsel %vm2410, %v2554, %v2374
        %v2624 = vsel %vm2413, %v2556, %v2623
        %v2625 = vsel %vm2416, %v2558, %v2624
        %v2626 = vsel %vm2398, %v2562, %v2560
        %v2627 = vsel %vm2401, %v2564, %v2626
        %v2628 = vsel %vm2404, %v2566, %v2627
        %v2631 = vsel %vm2410, %v2376, %v2569
        %v2632 = vsel %vm2413, %v2571, %v2631
        %v2633 = vsel %vm2416, %v2573, %v2632
        %v2634 = vsel %vm2398, %v2577, %v2575
        %v2635 = vsel %vm2401, %v2579, %v2634
        %v2636 = vsel %vm2404, %v2581, %v2635
        %2637 = vrot.lane.b32.xlu0 %v2633, 64
        %v2638 = vpop.permute.xlu0 %2637
        %2639 = vrot.lane.b32.xlu0 %v2636, 64
        %v2640 = vpop.permute.xlu0 %2639
        %v2643 = vsel %vm2436, %v2625, %v2638
        %v2644 = vsel %vm2436, %v2628, %v2640
        %v2645 = vpack.c.bf16 %v2644, %v2643
        %v2647 = vunpack.c.l.b16 %v2645
        %v2648 = vunpack.c.h.b16 %v2645
        %v2649 = vpack.c.b16 %v2647, %v2647
        %v2650 = vpack.c.b16 %v2648, %v2648
        %v2651 = vrot.slane %v2649, 6
        %v2652 = vrot.slane %v2651, 4
        %v2653 = vrot.slane %v2650, 6
        %v2654 = vsel %vm2504, %v2652, %v2653
        %2656 = vst [vmem:[#allocation3 + $0x18] sm:$0xf] %v2654
        %v2657 = vsel %vm2416, %v2554, %v2374
        %v2658 = vsel %vm2398, %v2558, %v2556
        %v2659 = vsel %vm2401, %v2560, %v2658
        %v2660 = vsel %vm2404, %v2562, %v2659
        %v2661 = vsel %vm2407, %v2564, %v2660
        %v2662 = vsel %vm2410, %v2566, %v2661
        %v2665 = vsel %vm2416, %v2376, %v2569
        %v2666 = vsel %vm2398, %v2573, %v2571
        %v2667 = vsel %vm2401, %v2575, %v2666
        %v2668 = vsel %vm2404, %v2577, %v2667
        %v2669 = vsel %vm2407, %v2579, %v2668
        %v2670 = vsel %vm2410, %v2581, %v2669
        %2671 = vrot.lane.b32.xlu0 %v2665, 64
        %v2672 = vpop.permute.xlu0 %2671
        %2673 = vrot.lane.b32.xlu0 %v2670, 64
        %v2674 = vpop.permute.xlu0 %2673
        %v2677 = vsel %vm2436, %v2657, %v2672
        %v2678 = vsel %vm2436, %v2662, %v2674
        %v2679 = vpack.c.bf16 %v2678, %v2677
        %v2681 = vunpack.c.l.b16 %v2679
        %v2682 = vunpack.c.h.b16 %v2679
        %v2683 = vpack.c.b16 %v2681, %v2681
        %v2684 = vpack.c.b16 %v2682, %v2682
        %v2685 = vrot.slane %v2683, 7
        %v2686 = vrot.slane %v2685, 4
        %v2687 = vrot.slane %v2684, 7
        %v2688 = vsel %vm2539, %v2686, %v2687
        %2690 = vst [vmem:[#allocation3 + $0x1c] sm:$0xf] %v2688
        %v2691 = vld [vmem:[#allocation3] sm:$0xff]
        %v2692 = vld [vmem:[#allocation3 + $0x8] sm:$0xff]
        %v2693 = vld [vmem:[#allocation3 + $0x10] sm:$0xff]
        %v2694 = vld [vmem:[#allocation3 + $0x18] sm:$0xff]
        %v2695 = vld [vmem:[#allocation7] sm:$0xff]
        %v2696 = vld [vmem:[#allocation7 + $0x8] sm:$0xff]
        %v2697 = vld [vmem:[#allocation7 + $0x10] sm:$0xff]
        %v2698 = vld [vmem:[#allocation7 + $0x18] sm:$0xff]
        %v2699 = vld [vmem:[#allocation7 + $0x20] sm:$0xff]
        %v2700 = vld [vmem:[#allocation7 + $0x28] sm:$0xff]
        %v2701 = vld [vmem:[#allocation7 + $0x30] sm:$0xff]
        %v2702 = vld [vmem:[#allocation7 + $0x38] sm:$0xff]
        %v2703 = vld [vmem:[#allocation7 + $0x40] sm:$0xff]
        %v2704 = vld [vmem:[#allocation7 + $0x48] sm:$0xff]
        %v2705 = vld [vmem:[#allocation7 + $0x50] sm:$0xff]
        %v2706 = vld [vmem:[#allocation7 + $0x58] sm:$0xff]
        %v2707 = vld [vmem:[#allocation7 + $0x60] sm:$0xff]
        %v2708 = vld [vmem:[#allocation7 + $0x68] sm:$0xff]
        %v2709 = vld [vmem:[#allocation7 + $0x70] sm:$0xff]
        %v2710 = vld [vmem:[#allocation7 + $0x78] sm:$0xff]
        %v2711 = vld [vmem:[#allocation7 + $0x80] sm:$0xff]
        %v2712 = vld [vmem:[#allocation7 + $0x88] sm:$0xff]
        %v2713 = vld [vmem:[#allocation7 + $0x90] sm:$0xff]
        %v2714 = vld [vmem:[#allocation7 + $0x98] sm:$0xff]
        %v2715 = vld [vmem:[#allocation7 + $0xa0] sm:$0xff]
        %v2716 = vld [vmem:[#allocation7 + $0xa8] sm:$0xff]
        %v2717 = vld [vmem:[#allocation7 + $0xb0] sm:$0xff]
        %v2718 = vld [vmem:[#allocation7 + $0xb8] sm:$0xff]
        %v2719 = vld [vmem:[#allocation7 + $0xc0] sm:$0xff]
        %v2720 = vld [vmem:[#allocation7 + $0xc8] sm:$0xff]
        %v2721 = vld [vmem:[#allocation7 + $0xd0] sm:$0xff]
        %v2722 = vld [vmem:[#allocation7 + $0xd8] sm:$0xff]
        %v2723 = vld [vmem:[#allocation7 + $0xe0] sm:$0xff]
        %v2724 = vld [vmem:[#allocation7 + $0xe8] sm:$0xff]
        %v2725 = vld [vmem:[#allocation7 + $0xf0] sm:$0xff]
        %v2726 = vld [vmem:[#allocation7 + $0xf8] sm:$0xff]
        %v2727 = vld [vmem:[#allocation7 + $0x100] sm:$0xff]
        %v2728 = vld [vmem:[#allocation7 + $0x108] sm:$0xff]
        %v2729 = vld [vmem:[#allocation7 + $0x110] sm:$0xff]
        %v2730 = vld [vmem:[#allocation7 + $0x118] sm:$0xff]
        %v2731 = vld [vmem:[#allocation7 + $0x120] sm:$0xff]
        %v2732 = vld [vmem:[#allocation7 + $0x128] sm:$0xff]
        %v2733 = vld [vmem:[#allocation7 + $0x130] sm:$0xff]
        %v2734 = vld [vmem:[#allocation7 + $0x138] sm:$0xff]
        %v2735 = vld [vmem:[#allocation7 + $0x140] sm:$0xff]
        %v2736 = vld [vmem:[#allocation7 + $0x148] sm:$0xff]
        %v2737 = vld [vmem:[#allocation7 + $0x150] sm:$0xff]
        %v2738 = vld [vmem:[#allocation7 + $0x158] sm:$0xff]
        %v2739 = vld [vmem:[#allocation7 + $0x160] sm:$0xff]
        %v2740 = vld [vmem:[#allocation7 + $0x168] sm:$0xff]
        %v2741 = vld [vmem:[#allocation7 + $0x170] sm:$0xff]
        %v2742 = vld [vmem:[#allocation7 + $0x178] sm:$0xff]
        %v2743 = vld [vmem:[#allocation7 + $0x180] sm:$0xff]
        %v2744 = vld [vmem:[#allocation7 + $0x188] sm:$0xff]
        %v2745 = vld [vmem:[#allocation7 + $0x190] sm:$0xff]
        %v2746 = vld [vmem:[#allocation7 + $0x198] sm:$0xff]
        %v2747 = vld [vmem:[#allocation7 + $0x1a0] sm:$0xff]
        %v2748 = vld [vmem:[#allocation7 + $0x1a8] sm:$0xff]
        %v2749 = vld [vmem:[#allocation7 + $0x1b0] sm:$0xff]
        %v2750 = vld [vmem:[#allocation7 + $0x1b8] sm:$0xff]
        %v2751 = vld [vmem:[#allocation7 + $0x1c0] sm:$0xff]
        %v2752 = vld [vmem:[#allocation7 + $0x1c8] sm:$0xff]
        %v2753 = vld [vmem:[#allocation7 + $0x1d0] sm:$0xff]
        %v2754 = vld [vmem:[#allocation7 + $0x1d8] sm:$0xff]
        %v2755 = vld [vmem:[#allocation7 + $0x1e0] sm:$0xff]
        %v2756 = vld [vmem:[#allocation7 + $0x1e8] sm:$0xff]
        %v2757 = vld [vmem:[#allocation7 + $0x1f0] sm:$0xff]
        %v2758 = vld [vmem:[#allocation7 + $0x1f8] sm:$0xff]
        %v2759 = vld [vmem:[#allocation7 + $0x200] sm:$0xff]
        %v2760 = vld [vmem:[#allocation7 + $0x208] sm:$0xff]
        %v2761 = vld [vmem:[#allocation7 + $0x210] sm:$0xff]
        %v2762 = vld [vmem:[#allocation7 + $0x218] sm:$0xff]
        %v2763 = vld [vmem:[#allocation7 + $0x220] sm:$0xff]
        %v2764 = vld [vmem:[#allocation7 + $0x228] sm:$0xff]
        %v2765 = vld [vmem:[#allocation7 + $0x230] sm:$0xff]
        %v2766 = vld [vmem:[#allocation7 + $0x238] sm:$0xff]
        %v2767 = vld [vmem:[#allocation7 + $0x240] sm:$0xff]
        %v2768 = vld [vmem:[#allocation7 + $0x248] sm:$0xff]
        %v2769 = vld [vmem:[#allocation7 + $0x250] sm:$0xff]
        %v2770 = vld [vmem:[#allocation7 + $0x258] sm:$0xff]
        %v2771 = vld [vmem:[#allocation7 + $0x260] sm:$0xff]
        %v2772 = vld [vmem:[#allocation7 + $0x268] sm:$0xff]
        %v2773 = vld [vmem:[#allocation7 + $0x270] sm:$0xff]
        %v2774 = vld [vmem:[#allocation7 + $0x278] sm:$0xff]
        %v2775 = vld [vmem:[#allocation7 + $0x280] sm:$0xff]
        %v2776 = vld [vmem:[#allocation7 + $0x288] sm:$0xff]
        %v2777 = vld [vmem:[#allocation7 + $0x290] sm:$0xff]
        %v2778 = vld [vmem:[#allocation7 + $0x298] sm:$0xff]
        %v2779 = vld [vmem:[#allocation7 + $0x2a0] sm:$0xff]
        %v2780 = vld [vmem:[#allocation7 + $0x2a8] sm:$0xff]
        %v2781 = vld [vmem:[#allocation7 + $0x2b0] sm:$0xff]
        %v2782 = vld [vmem:[#allocation7 + $0x2b8] sm:$0xff]
        %v2783 = vld [vmem:[#allocation7 + $0x2c0] sm:$0xff]
        %v2784 = vld [vmem:[#allocation7 + $0x2c8] sm:$0xff]
        %v2785 = vld [vmem:[#allocation7 + $0x2d0] sm:$0xff]
        %v2786 = vld [vmem:[#allocation7 + $0x2d8] sm:$0xff]
        %v2787 = vld [vmem:[#allocation7 + $0x2e0] sm:$0xff]
        %v2788 = vld [vmem:[#allocation7 + $0x2e8] sm:$0xff]
        %v2789 = vld [vmem:[#allocation7 + $0x2f0] sm:$0xff]
        %v2790 = vld [vmem:[#allocation7 + $0x2f8] sm:$0xff]
        %v2791 = vld [vmem:[#allocation7 + $0x300] sm:$0xff]
        %v2792 = vld [vmem:[#allocation7 + $0x308] sm:$0xff]
        %v2793 = vld [vmem:[#allocation7 + $0x310] sm:$0xff]
        %v2794 = vld [vmem:[#allocation7 + $0x318] sm:$0xff]
        %v2795 = vld [vmem:[#allocation7 + $0x320] sm:$0xff]
        %v2796 = vld [vmem:[#allocation7 + $0x328] sm:$0xff]
        %v2797 = vld [vmem:[#allocation7 + $0x330] sm:$0xff]
        %v2798 = vld [vmem:[#allocation7 + $0x338] sm:$0xff]
        %v2799 = vld [vmem:[#allocation7 + $0x340] sm:$0xff]
        %v2800 = vld [vmem:[#allocation7 + $0x348] sm:$0xff]
        %v2801 = vld [vmem:[#allocation7 + $0x350] sm:$0xff]
        %v2802 = vld [vmem:[#allocation7 + $0x358] sm:$0xff]
        %v2803 = vld [vmem:[#allocation7 + $0x360] sm:$0xff]
        %v2804 = vld [vmem:[#allocation7 + $0x368] sm:$0xff]
        %v2805 = vld [vmem:[#allocation7 + $0x370] sm:$0xff]
        %v2806 = vld [vmem:[#allocation7 + $0x378] sm:$0xff]
        %v2807 = vld [vmem:[#allocation7 + $0x380] sm:$0xff]
        %v2808 = vld [vmem:[#allocation7 + $0x388] sm:$0xff]
        %v2809 = vld [vmem:[#allocation7 + $0x390] sm:$0xff]
        %v2810 = vld [vmem:[#allocation7 + $0x398] sm:$0xff]
        %v2811 = vld [vmem:[#allocation7 + $0x3a0] sm:$0xff]
        %v2812 = vld [vmem:[#allocation7 + $0x3a8] sm:$0xff]
        %v2813 = vld [vmem:[#allocation7 + $0x3b0] sm:$0xff]
        %v2814 = vld [vmem:[#allocation7 + $0x3b8] sm:$0xff]
        %v2815 = vld [vmem:[#allocation7 + $0x3c0] sm:$0xff]
        %v2816 = vld [vmem:[#allocation7 + $0x3c8] sm:$0xff]
        %v2817 = vld [vmem:[#allocation7 + $0x3d0] sm:$0xff]
        %v2818 = vld [vmem:[#allocation7 + $0x3d8] sm:$0xff]
        %v2819 = vld [vmem:[#allocation7 + $0x3e0] sm:$0xff]
        %v2820 = vld [vmem:[#allocation7 + $0x3e8] sm:$0xff]
        %v2821 = vld [vmem:[#allocation7 + $0x3f0] sm:$0xff]
        %v2822 = vld [vmem:[#allocation7 + $0x3f8] sm:$0xff]
        %v2823 = vld [vmem:[%s6] sm:$0x3]
        %v2825 = vlaneseq
        %v2826 = vshrl.u32 %v2825, 7
        %v2827 = vsub.s32 0, %v2826
        %v2828 = vrot.slane %v2823, %v2827
        %v2829 = vlaneseq
        %v2830 = vshrl.u32 %v2829, 7
        %v2831 = vsub.s32 1, %v2830
        %v2832 = vrot.slane %v2823, %v2831
        %v2839 = vunpack.c.l.b16 %v2691
        %v2840 = vunpack.c.h.b16 %v2691
        %v2841 = vunpack.c.l.b16 %v2692
        %v2842 = vunpack.c.h.b16 %v2692
        %v2843 = vunpack.c.l.b16 %v2693
        %v2844 = vunpack.c.h.b16 %v2693
        %v2845 = vunpack.c.l.b16 %v2694
        %v2846 = vunpack.c.h.b16 %v2694
        %v2847 = vpack.c.b16 %v2839, %v2839
        %v2848 = vpack.c.b16 %v2840, %v2840
        %v2849 = vpack.c.b16 %v2841, %v2841
        %v2850 = vpack.c.b16 %v2842, %v2842
        %v2851 = vpack.c.b16 %v2843, %v2843
        %v2852 = vpack.c.b16 %v2844, %v2844
        %v2853 = vpack.c.b16 %v2845, %v2845
        %v2854 = vpack.c.b16 %v2846, %v2846
        %v2991 = vunpack.c.l.b16 %v2695
        %v2992 = vunpack.c.h.b16 %v2695
        %v2993 = vunpack.c.l.b16 %v2696
        %v2994 = vunpack.c.h.b16 %v2696
        %v2995 = vunpack.c.l.b16 %v2697
        %v2996 = vunpack.c.h.b16 %v2697
        %v2997 = vunpack.c.l.b16 %v2698
        %v2998 = vunpack.c.h.b16 %v2698
        %v2999 = vunpack.c.l.b16 %v2699
        %v3000 = vunpack.c.h.b16 %v2699
        %v3001 = vunpack.c.l.b16 %v2700
        %v3002 = vunpack.c.h.b16 %v2700
        %v3003 = vunpack.c.l.b16 %v2701
        %v3004 = vunpack.c.h.b16 %v2701
        %v3005 = vunpack.c.l.b16 %v2702
        %v3006 = vunpack.c.h.b16 %v2702
        %v3007 = vunpack.c.l.b16 %v2703
        %v3008 = vunpack.c.h.b16 %v2703
        %v3009 = vunpack.c.l.b16 %v2704
        %v3010 = vunpack.c.h.b16 %v2704
        %v3011 = vunpack.c.l.b16 %v2705
        %v3012 = vunpack.c.h.b16 %v2705
        %v3013 = vunpack.c.l.b16 %v2706
        %v3014 = vunpack.c.h.b16 %v2706
        %v3015 = vunpack.c.l.b16 %v2707
        %v3016 = vunpack.c.h.b16 %v2707
        %v3017 = vunpack.c.l.b16 %v2708
        %v3018 = vunpack.c.h.b16 %v2708
        %v3019 = vunpack.c.l.b16 %v2709
        %v3020 = vunpack.c.h.b16 %v2709
        %v3021 = vunpack.c.l.b16 %v2710
        %v3022 = vunpack.c.h.b16 %v2710
        %v3023 = vunpack.c.l.b16 %v2711
        %v3024 = vunpack.c.h.b16 %v2711
        %v3025 = vunpack.c.l.b16 %v2712
        %v3026 = vunpack.c.h.b16 %v2712
        %v3027 = vunpack.c.l.b16 %v2713
        %v3028 = vunpack.c.h.b16 %v2713
        %v3029 = vunpack.c.l.b16 %v2714
        %v3030 = vunpack.c.h.b16 %v2714
        %v3031 = vunpack.c.l.b16 %v2715
        %v3032 = vunpack.c.h.b16 %v2715
        %v3033 = vunpack.c.l.b16 %v2716
        %v3034 = vunpack.c.h.b16 %v2716
        %v3035 = vunpack.c.l.b16 %v2717
        %v3036 = vunpack.c.h.b16 %v2717
        %v3037 = vunpack.c.l.b16 %v2718
        %v3038 = vunpack.c.h.b16 %v2718
        %v3039 = vunpack.c.l.b16 %v2719
        %v3040 = vunpack.c.h.b16 %v2719
        %v3041 = vunpack.c.l.b16 %v2720
        %v3042 = vunpack.c.h.b16 %v2720
        %v3043 = vunpack.c.l.b16 %v2721
        %v3044 = vunpack.c.h.b16 %v2721
        %v3045 = vunpack.c.l.b16 %v2722
        %v3046 = vunpack.c.h.b16 %v2722
        %v3047 = vunpack.c.l.b16 %v2723
        %v3048 = vunpack.c.h.b16 %v2723
        %v3049 = vunpack.c.l.b16 %v2724
        %v3050 = vunpack.c.h.b16 %v2724
        %v3051 = vunpack.c.l.b16 %v2725
        %v3052 = vunpack.c.h.b16 %v2725
        %v3053 = vunpack.c.l.b16 %v2726
        %v3054 = vunpack.c.h.b16 %v2726
        %v3055 = vunpack.c.l.b16 %v2727
        %v3056 = vunpack.c.h.b16 %v2727
        %v3057 = vunpack.c.l.b16 %v2728
        %v3058 = vunpack.c.h.b16 %v2728
        %v3059 = vunpack.c.l.b16 %v2729
        %v3060 = vunpack.c.h.b16 %v2729
        %v3061 = vunpack.c.l.b16 %v2730
        %v3062 = vunpack.c.h.b16 %v2730
        %v3063 = vunpack.c.l.b16 %v2731
        %v3064 = vunpack.c.h.b16 %v2731
        %v3065 = vunpack.c.l.b16 %v2732
        %v3066 = vunpack.c.h.b16 %v2732
        %v3067 = vunpack.c.l.b16 %v2733
        %v3068 = vunpack.c.h.b16 %v2733
        %v3069 = vunpack.c.l.b16 %v2734
        %v3070 = vunpack.c.h.b16 %v2734
        %v3071 = vunpack.c.l.b16 %v2735
        %v3072 = vunpack.c.h.b16 %v2735
        %v3073 = vunpack.c.l.b16 %v2736
        %v3074 = vunpack.c.h.b16 %v2736
        %v3075 = vunpack.c.l.b16 %v2737
        %v3076 = vunpack.c.h.b16 %v2737
        %v3077 = vunpack.c.l.b16 %v2738
        %v3078 = vunpack.c.h.b16 %v2738
        %v3079 = vunpack.c.l.b16 %v2739
        %v3080 = vunpack.c.h.b16 %v2739
        %v3081 = vunpack.c.l.b16 %v2740
        %v3082 = vunpack.c.h.b16 %v2740
        %v3083 = vunpack.c.l.b16 %v2741
        %v3084 = vunpack.c.h.b16 %v2741
        %v3085 = vunpack.c.l.b16 %v2742
        %v3086 = vunpack.c.h.b16 %v2742
        %v3087 = vunpack.c.l.b16 %v2743
        %v3088 = vunpack.c.h.b16 %v2743
        %v3089 = vunpack.c.l.b16 %v2744
        %v3090 = vunpack.c.h.b16 %v2744
        %v3091 = vunpack.c.l.b16 %v2745
        %v3092 = vunpack.c.h.b16 %v2745
        %v3093 = vunpack.c.l.b16 %v2746
        %v3094 = vunpack.c.h.b16 %v2746
        %v3095 = vunpack.c.l.b16 %v2747
        %v3096 = vunpack.c.h.b16 %v2747
        %v3097 = vunpack.c.l.b16 %v2748
        %v3098 = vunpack.c.h.b16 %v2748
        %v3099 = vunpack.c.l.b16 %v2749
        %v3100 = vunpack.c.h.b16 %v2749
        %v3101 = vunpack.c.l.b16 %v2750
        %v3102 = vunpack.c.h.b16 %v2750
        %v3103 = vunpack.c.l.b16 %v2751
        %v3104 = vunpack.c.h.b16 %v2751
        %v3105 = vunpack.c.l.b16 %v2752
        %v3106 = vunpack.c.h.b16 %v2752
        %v3107 = vunpack.c.l.b16 %v2753
        %v3108 = vunpack.c.h.b16 %v2753
        %v3109 = vunpack.c.l.b16 %v2754
        %v3110 = vunpack.c.h.b16 %v2754
        %v3111 = vunpack.c.l.b16 %v2755
        %v3112 = vunpack.c.h.b16 %v2755
        %v3113 = vunpack.c.l.b16 %v2756
        %v3114 = vunpack.c.h.b16 %v2756
        %v3115 = vunpack.c.l.b16 %v2757
        %v3116 = vunpack.c.h.b16 %v2757
        %v3117 = vunpack.c.l.b16 %v2758
        %v3118 = vunpack.c.h.b16 %v2758
        %v3119 = vunpack.c.l.b16 %v2759
        %v3120 = vunpack.c.h.b16 %v2759
        %v3121 = vunpack.c.l.b16 %v2760
        %v3122 = vunpack.c.h.b16 %v2760
        %v3123 = vunpack.c.l.b16 %v2761
        %v3124 = vunpack.c.h.b16 %v2761
        %v3125 = vunpack.c.l.b16 %v2762
        %v3126 = vunpack.c.h.b16 %v2762
        %v3127 = vunpack.c.l.b16 %v2763
        %v3128 = vunpack.c.h.b16 %v2763
        %v3129 = vunpack.c.l.b16 %v2764
        %v3130 = vunpack.c.h.b16 %v2764
        %v3131 = vunpack.c.l.b16 %v2765
        %v3132 = vunpack.c.h.b16 %v2765
        %v3133 = vunpack.c.l.b16 %v2766
        %v3134 = vunpack.c.h.b16 %v2766
        %v3135 = vunpack.c.l.b16 %v2767
        %v3136 = vunpack.c.h.b16 %v2767
        %v3137 = vunpack.c.l.b16 %v2768
        %v3138 = vunpack.c.h.b16 %v2768
        %v3139 = vunpack.c.l.b16 %v2769
        %v3140 = vunpack.c.h.b16 %v2769
        %v3141 = vunpack.c.l.b16 %v2770
        %v3142 = vunpack.c.h.b16 %v2770
        %v3143 = vunpack.c.l.b16 %v2771
        %v3144 = vunpack.c.h.b16 %v2771
        %v3145 = vunpack.c.l.b16 %v2772
        %v3146 = vunpack.c.h.b16 %v2772
        %v3147 = vunpack.c.l.b16 %v2773
        %v3148 = vunpack.c.h.b16 %v2773
        %v3149 = vunpack.c.l.b16 %v2774
        %v3150 = vunpack.c.h.b16 %v2774
        %v3151 = vunpack.c.l.b16 %v2775
        %v3152 = vunpack.c.h.b16 %v2775
        %v3153 = vunpack.c.l.b16 %v2776
        %v3154 = vunpack.c.h.b16 %v2776
        %v3155 = vunpack.c.l.b16 %v2777
        %v3156 = vunpack.c.h.b16 %v2777
        %v3157 = vunpack.c.l.b16 %v2778
        %v3158 = vunpack.c.h.b16 %v2778
        %v3159 = vunpack.c.l.b16 %v2779
        %v3160 = vunpack.c.h.b16 %v2779
        %v3161 = vunpack.c.l.b16 %v2780
        %v3162 = vunpack.c.h.b16 %v2780
        %v3163 = vunpack.c.l.b16 %v2781
        %v3164 = vunpack.c.h.b16 %v2781
        %v3165 = vunpack.c.l.b16 %v2782
        %v3166 = vunpack.c.h.b16 %v2782
        %v3167 = vunpack.c.l.b16 %v2783
        %v3168 = vunpack.c.h.b16 %v2783
        %v3169 = vunpack.c.l.b16 %v2784
        %v3170 = vunpack.c.h.b16 %v2784
        %v3171 = vunpack.c.l.b16 %v2785
        %v3172 = vunpack.c.h.b16 %v2785
        %v3173 = vunpack.c.l.b16 %v2786
        %v3174 = vunpack.c.h.b16 %v2786
        %v3175 = vunpack.c.l.b16 %v2787
        %v3176 = vunpack.c.h.b16 %v2787
        %v3177 = vunpack.c.l.b16 %v2788
        %v3178 = vunpack.c.h.b16 %v2788
        %v3179 = vunpack.c.l.b16 %v2789
        %v3180 = vunpack.c.h.b16 %v2789
        %v3181 = vunpack.c.l.b16 %v2790
        %v3182 = vunpack.c.h.b16 %v2790
        %v3183 = vunpack.c.l.b16 %v2791
        %v3184 = vunpack.c.h.b16 %v2791
        %v3185 = vunpack.c.l.b16 %v2792
        %v3186 = vunpack.c.h.b16 %v2792
        %v3187 = vunpack.c.l.b16 %v2793
        %v3188 = vunpack.c.h.b16 %v2793
        %v3189 = vunpack.c.l.b16 %v2794
        %v3190 = vunpack.c.h.b16 %v2794
        %v3191 = vunpack.c.l.b16 %v2795
        %v3192 = vunpack.c.h.b16 %v2795
        %v3193 = vunpack.c.l.b16 %v2796
        %v3194 = vunpack.c.h.b16 %v2796
        %v3195 = vunpack.c.l.b16 %v2797
        %v3196 = vunpack.c.h.b16 %v2797
        %v3197 = vunpack.c.l.b16 %v2798
        %v3198 = vunpack.c.h.b16 %v2798
        %v3199 = vunpack.c.l.b16 %v2799
        %v3200 = vunpack.c.h.b16 %v2799
        %v3201 = vunpack.c.l.b16 %v2800
        %v3202 = vunpack.c.h.b16 %v2800
        %v3203 = vunpack.c.l.b16 %v2801
        %v3204 = vunpack.c.h.b16 %v2801
        %v3205 = vunpack.c.l.b16 %v2802
        %v3206 = vunpack.c.h.b16 %v2802
        %v3207 = vunpack.c.l.b16 %v2803
        %v3208 = vunpack.c.h.b16 %v2803
        %v3209 = vunpack.c.l.b16 %v2804
        %v3210 = vunpack.c.h.b16 %v2804
        %v3211 = vunpack.c.l.b16 %v2805
        %v3212 = vunpack.c.h.b16 %v2805
        %v3213 = vunpack.c.l.b16 %v2806
        %v3214 = vunpack.c.h.b16 %v2806
        %v3215 = vunpack.c.l.b16 %v2807
        %v3216 = vunpack.c.h.b16 %v2807
        %v3217 = vunpack.c.l.b16 %v2808
        %v3218 = vunpack.c.h.b16 %v2808
        %v3219 = vunpack.c.l.b16 %v2809
        %v3220 = vunpack.c.h.b16 %v2809
        %v3221 = vunpack.c.l.b16 %v2810
        %v3222 = vunpack.c.h.b16 %v2810
        %v3223 = vunpack.c.l.b16 %v2811
        %v3224 = vunpack.c.h.b16 %v2811
        %v3225 = vunpack.c.l.b16 %v2812
        %v3226 = vunpack.c.h.b16 %v2812
        %v3227 = vunpack.c.l.b16 %v2813
        %v3228 = vunpack.c.h.b16 %v2813
        %v3229 = vunpack.c.l.b16 %v2814
        %v3230 = vunpack.c.h.b16 %v2814
        %v3231 = vunpack.c.l.b16 %v2815
        %v3232 = vunpack.c.h.b16 %v2815
        %v3233 = vunpack.c.l.b16 %v2816
        %v3234 = vunpack.c.h.b16 %v2816
        %v3235 = vunpack.c.l.b16 %v2817
        %v3236 = vunpack.c.h.b16 %v2817
        %v3237 = vunpack.c.l.b16 %v2818
        %v3238 = vunpack.c.h.b16 %v2818
        %v3239 = vunpack.c.l.b16 %v2819
        %v3240 = vunpack.c.h.b16 %v2819
        %v3241 = vunpack.c.l.b16 %v2820
        %v3242 = vunpack.c.h.b16 %v2820
        %v3243 = vunpack.c.l.b16 %v2821
        %v3244 = vunpack.c.h.b16 %v2821
        %v3245 = vunpack.c.l.b16 %v2822
        %v3246 = vunpack.c.h.b16 %v2822
        %v3247 = vpack.c.b16 %v2993, %v2991
        %v3248 = vpack.c.b16 %v2994, %v2992
        %v3249 = vpack.c.b16 %v2997, %v2995
        %v3250 = vpack.c.b16 %v2998, %v2996
        %v3251 = vpack.c.b16 %v3001, %v2999
        %v3252 = vpack.c.b16 %v3002, %v3000
        %v3253 = vpack.c.b16 %v3005, %v3003
        %v3254 = vpack.c.b16 %v3006, %v3004
        %v3255 = vpack.c.b16 %v3009, %v3007
        %v3256 = vpack.c.b16 %v3010, %v3008
        %v3257 = vpack.c.b16 %v3013, %v3011
        %v3258 = vpack.c.b16 %v3014, %v3012
        %v3259 = vpack.c.b16 %v3017, %v3015
        %v3260 = vpack.c.b16 %v3018, %v3016
        %v3261 = vpack.c.b16 %v3021, %v3019
        %v3262 = vpack.c.b16 %v3022, %v3020
        %v3263 = vpack.c.b16 %v3025, %v3023
        %v3264 = vpack.c.b16 %v3026, %v3024
        %v3265 = vpack.c.b16 %v3029, %v3027
        %v3266 = vpack.c.b16 %v3030, %v3028
        %v3267 = vpack.c.b16 %v3033, %v3031
        %v3268 = vpack.c.b16 %v3034, %v3032
        %v3269 = vpack.c.b16 %v3037, %v3035
        %v3270 = vpack.c.b16 %v3038, %v3036
        %v3271 = vpack.c.b16 %v3041, %v3039
        %v3272 = vpack.c.b16 %v3042, %v3040
        %v3273 = vpack.c.b16 %v3045, %v3043
        %v3274 = vpack.c.b16 %v3046, %v3044
        %v3275 = vpack.c.b16 %v3049, %v3047
        %v3276 = vpack.c.b16 %v3050, %v3048
        %v3277 = vpack.c.b16 %v3053, %v3051
        %v3278 = vpack.c.b16 %v3054, %v3052
        %v3279 = vpack.c.b16 %v3057, %v3055
        %v3280 = vpack.c.b16 %v3058, %v3056
        %v3281 = vpack.c.b16 %v3061, %v3059
        %v3282 = vpack.c.b16 %v3062, %v3060
        %v3283 = vpack.c.b16 %v3065, %v3063
        %v3284 = vpack.c.b16 %v3066, %v3064
        %v3285 = vpack.c.b16 %v3069, %v3067
        %v3286 = vpack.c.b16 %v3070, %v3068
        %v3287 = vpack.c.b16 %v3073, %v3071
        %v3288 = vpack.c.b16 %v3074, %v3072
        %v3289 = vpack.c.b16 %v3077, %v3075
        %v3290 = vpack.c.b16 %v3078, %v3076
        %v3291 = vpack.c.b16 %v3081, %v3079
        %v3292 = vpack.c.b16 %v3082, %v3080
        %v3293 = vpack.c.b16 %v3085, %v3083
        %v3294 = vpack.c.b16 %v3086, %v3084
        %v3295 = vpack.c.b16 %v3089, %v3087
        %v3296 = vpack.c.b16 %v3090, %v3088
        %v3297 = vpack.c.b16 %v3093, %v3091
        %v3298 = vpack.c.b16 %v3094, %v3092
        %v3299 = vpack.c.b16 %v3097, %v3095
        %v3300 = vpack.c.b16 %v3098, %v3096
        %v3301 = vpack.c.b16 %v3101, %v3099
        %v3302 = vpack.c.b16 %v3102, %v3100
        %v3303 = vpack.c.b16 %v3105, %v3103
        %v3304 = vpack.c.b16 %v3106, %v3104
        %v3305 = vpack.c.b16 %v3109, %v3107
        %v3306 = vpack.c.b16 %v3110, %v3108
        %v3307 = vpack.c.b16 %v3113, %v3111
        %v3308 = vpack.c.b16 %v3114, %v3112
        %v3309 = vpack.c.b16 %v3117, %v3115
        %v3310 = vpack.c.b16 %v3118, %v3116
        %v3311 = vpack.c.b16 %v3121, %v3119
        %v3312 = vpack.c.b16 %v3122, %v3120
        %v3313 = vpack.c.b16 %v3125, %v3123
        %v3314 = vpack.c.b16 %v3126, %v3124
        %v3315 = vpack.c.b16 %v3129, %v3127
        %v3316 = vpack.c.b16 %v3130, %v3128
        %v3317 = vpack.c.b16 %v3133, %v3131
        %v3318 = vpack.c.b16 %v3134, %v3132
        %v3319 = vpack.c.b16 %v3137, %v3135
        %v3320 = vpack.c.b16 %v3138, %v3136
        %v3321 = vpack.c.b16 %v3141, %v3139
        %v3322 = vpack.c.b16 %v3142, %v3140
        %v3323 = vpack.c.b16 %v3145, %v3143
        %v3324 = vpack.c.b16 %v3146, %v3144
        %v3325 = vpack.c.b16 %v3149, %v3147
        %v3326 = vpack.c.b16 %v3150, %v3148
        %v3327 = vpack.c.b16 %v3153, %v3151
        %v3328 = vpack.c.b16 %v3154, %v3152
        %v3329 = vpack.c.b16 %v3157, %v3155
        %v3330 = vpack.c.b16 %v3158, %v3156
        %v3331 = vpack.c.b16 %v3161, %v3159
        %v3332 = vpack.c.b16 %v3162, %v3160
        %v3333 = vpack.c.b16 %v3165, %v3163
        %v3334 = vpack.c.b16 %v3166, %v3164
        %v3335 = vpack.c.b16 %v3169, %v3167
        %v3336 = vpack.c.b16 %v3170, %v3168
        %v3337 = vpack.c.b16 %v3173, %v3171
        %v3338 = vpack.c.b16 %v3174, %v3172
        %v3339 = vpack.c.b16 %v3177, %v3175
        %v3340 = vpack.c.b16 %v3178, %v3176
        %v3341 = vpack.c.b16 %v3181, %v3179
        %v3342 = vpack.c.b16 %v3182, %v3180
        %v3343 = vpack.c.b16 %v3185, %v3183
        %v3344 = vpack.c.b16 %v3186, %v3184
        %v3345 = vpack.c.b16 %v3189, %v3187
        %v3346 = vpack.c.b16 %v3190, %v3188
        %v3347 = vpack.c.b16 %v3193, %v3191
        %v3348 = vpack.c.b16 %v3194, %v3192
        %v3349 = vpack.c.b16 %v3197, %v3195
        %v3350 = vpack.c.b16 %v3198, %v3196
        %v3351 = vpack.c.b16 %v3201, %v3199
        %v3352 = vpack.c.b16 %v3202, %v3200
        %v3353 = vpack.c.b16 %v3205, %v3203
        %v3354 = vpack.c.b16 %v3206, %v3204
        %v3355 = vpack.c.b16 %v3209, %v3207
        %v3356 = vpack.c.b16 %v3210, %v3208
        %v3357 = vpack.c.b16 %v3213, %v3211
        %v3358 = vpack.c.b16 %v3214, %v3212
        %v3359 = vpack.c.b16 %v3217, %v3215
        %v3360 = vpack.c.b16 %v3218, %v3216
        %v3361 = vpack.c.b16 %v3221, %v3219
        %v3362 = vpack.c.b16 %v3222, %v3220
        %v3363 = vpack.c.b16 %v3225, %v3223
        %v3364 = vpack.c.b16 %v3226, %v3224
        %v3365 = vpack.c.b16 %v3229, %v3227
        %v3366 = vpack.c.b16 %v3230, %v3228
        %v3367 = vpack.c.b16 %v3233, %v3231
        %v3368 = vpack.c.b16 %v3234, %v3232
        %v3369 = vpack.c.b16 %v3237, %v3235
        %v3370 = vpack.c.b16 %v3238, %v3236
        %v3371 = vpack.c.b16 %v3241, %v3239
        %v3372 = vpack.c.b16 %v3242, %v3240
        %v3373 = vpack.c.b16 %v3245, %v3243
        %v3374 = vpack.c.b16 %v3246, %v3244
        %3503 = vmatprep.subr.bf16.mxu0 %v3248
        %3504 = vmatpush1.bf16.msra.mxu0 %v3247
        %3505 = vmatprep.subr.bf16.mxu0 %v3250
        %3506 = vmatpush1.bf16.msra.mxu0 %v3249
        %3507 = vmatprep.subr.bf16.mxu0 %v3252
        %3508 = vmatpush1.bf16.msra.mxu0 %v3251
        %3509 = vmatprep.subr.bf16.mxu0 %v3254
        %3510 = vmatpush1.bf16.msra.mxu0 %v3253
        %3511 = vmatprep.subr.bf16.mxu0 %v3256
        %3512 = vmatpush1.bf16.msra.mxu0 %v3255
        %3513 = vmatprep.subr.bf16.mxu0 %v3258
        %3514 = vmatpush1.bf16.msra.mxu0 %v3257
        %3515 = vmatprep.subr.bf16.mxu0 %v3260
        %3516 = vmatpush1.bf16.msra.mxu0 %v3259
        %3517 = vmatprep.subr.bf16.mxu0 %v3262
        %3518 = vmatpush1.bf16.msra.mxu0 %v3261
        %3519 = vmatprep.subr.bf16.mxu0 %v3264
        %3520 = vmatpush1.bf16.msra.mxu0 %v3263
        %3521 = vmatprep.subr.bf16.mxu0 %v3266
        %3522 = vmatpush1.bf16.msra.mxu0 %v3265
        %3523 = vmatprep.subr.bf16.mxu0 %v3268
        %3524 = vmatpush1.bf16.msra.mxu0 %v3267
        %3525 = vmatprep.subr.bf16.mxu0 %v3270
        %3526 = vmatpush1.bf16.msra.mxu0 %v3269
        %3527 = vmatprep.subr.bf16.mxu0 %v3272
        %3528 = vmatpush1.bf16.msra.mxu0 %v3271
        %3529 = vmatprep.subr.bf16.mxu0 %v3274
        %3530 = vmatpush1.bf16.msra.mxu0 %v3273
        %3531 = vmatprep.subr.bf16.mxu0 %v3276
        %3532 = vmatpush1.bf16.msra.mxu0 %v3275
        %3533 = vmatprep.subr.bf16.mxu0 %v3278
        %3534 = vmatpush1.bf16.msra.mxu0 %v3277
        %3535 = vmatprep.mubr.bf16.mxu0 %v2848
        %3536 = vmatmul.mubr.bf16.gmra.mrb[0].mxu0 %v2847
        %v3537 = vpop.f32.mrb[0].mxu0
        %v3538 = vadd.f32 %v2828, %v3537
        %v3539 = vpop.f32.mrb[0].mxu0
        %v3540 = vadd.f32 %v2832, %v3539
        %v3541 = vpop.f32.mrb[0].mxu0
        %v3542 = vpop.f32.mrb[0].mxu0
        %3543 = vdwg.mxu0
        %3544 = vmatprep.subr.bf16.mxu0 %v3280
        %3545 = vmatpush1.bf16.msra.mxu0 %v3279
        %3546 = vmatprep.subr.bf16.mxu0 %v3282
        %3547 = vmatpush1.bf16.msra.mxu0 %v3281
        %3548 = vmatprep.subr.bf16.mxu0 %v3284
        %3549 = vmatpush1.bf16.msra.mxu0 %v3283
        %3550 = vmatprep.subr.bf16.mxu0 %v3286
        %3551 = vmatpush1.bf16.msra.mxu0 %v3285
        %3552 = vmatprep.subr.bf16.mxu0 %v3288
        %3553 = vmatpush1.bf16.msra.mxu0 %v3287
        %3554 = vmatprep.subr.bf16.mxu0 %v3290
        %3555 = vmatpush1.bf16.msra.mxu0 %v3289
        %3556 = vmatprep.subr.bf16.mxu0 %v3292
        %3557 = vmatpush1.bf16.msra.mxu0 %v3291
        %3558 = vmatprep.subr.bf16.mxu0 %v3294
        %3559 = vmatpush1.bf16.msra.mxu0 %v3293
        %3560 = vmatprep.subr.bf16.mxu0 %v3296
        %3561 = vmatpush1.bf16.msra.mxu0 %v3295
        %3562 = vmatprep.subr.bf16.mxu0 %v3298
        %3563 = vmatpush1.bf16.msra.mxu0 %v3297
        %3564 = vmatprep.subr.bf16.mxu0 %v3300
        %3565 = vmatpush1.bf16.msra.mxu0 %v3299
        %3566 = vmatprep.subr.bf16.mxu0 %v3302
        %3567 = vmatpush1.bf16.msra.mxu0 %v3301
        %3568 = vmatprep.subr.bf16.mxu0 %v3304
        %3569 = vmatpush1.bf16.msra.mxu0 %v3303
        %3570 = vmatprep.subr.bf16.mxu0 %v3306
        %3571 = vmatpush1.bf16.msra.mxu0 %v3305
        %3572 = vmatprep.subr.bf16.mxu0 %v3308
        %3573 = vmatpush1.bf16.msra.mxu0 %v3307
        %3574 = vmatprep.subr.bf16.mxu0 %v3310
        %3575 = vmatpush1.bf16.msra.mxu0 %v3309
        %3576 = vmatprep.mubr.bf16.mxu0 %v2850
        %3577 = vmatmul.mubr.bf16.gmra.mrb[0].mxu0 %v2849
        %v3578 = vpop.f32.mrb[0].mxu0
        %v3579 = vadd.f32 %v3538, %v3578
        %v3580 = vpop.f32.mrb[0].mxu0
        %v3581 = vadd.f32 %v3540, %v3580
        %v3582 = vpop.f32.mrb[0].mxu0
        %v3583 = vpop.f32.mrb[0].mxu0
        %3584 = vdwg.mxu0
        %3585 = vmatprep.subr.bf16.mxu0 %v3312
        %3586 = vmatpush1.bf16.msra.mxu0 %v3311
        %3587 = vmatprep.subr.bf16.mxu0 %v3314
        %3588 = vmatpush1.bf16.msra.mxu0 %v3313
        %3589 = vmatprep.subr.bf16.mxu0 %v3316
        %3590 = vmatpush1.bf16.msra.mxu0 %v3315
        %3591 = vmatprep.subr.bf16.mxu0 %v3318
        %3592 = vmatpush1.bf16.msra.mxu0 %v3317
        %3593 = vmatprep.subr.bf16.mxu0 %v3320
        %3594 = vmatpush1.bf16.msra.mxu0 %v3319
        %3595 = vmatprep.subr.bf16.mxu0 %v3322
        %3596 = vmatpush1.bf16.msra.mxu0 %v3321
        %3597 = vmatprep.subr.bf16.mxu0 %v3324
        %3598 = vmatpush1.bf16.msra.mxu0 %v3323
        %3599 = vmatprep.subr.bf16.mxu0 %v3326
        %3600 = vmatpush1.bf16.msra.mxu0 %v3325
        %3601 = vmatprep.subr.bf16.mxu0 %v3328
        %3602 = vmatpush1.bf16.msra.mxu0 %v3327
        %3603 = vmatprep.subr.bf16.mxu0 %v3330
        %3604 = vmatpush1.bf16.msra.mxu0 %v3329
        %3605 = vmatprep.subr.bf16.mxu0 %v3332
        %3606 = vmatpush1.bf16.msra.mxu0 %v3331
        %3607 = vmatprep.subr.bf16.mxu0 %v3334
        %3608 = vmatpush1.bf16.msra.mxu0 %v3333
        %3609 = vmatprep.subr.bf16.mxu0 %v3336
        %3610 = vmatpush1.bf16.msra.mxu0 %v3335
        %3611 = vmatprep.subr.bf16.mxu0 %v3338
        %3612 = vmatpush1.bf16.msra.mxu0 %v3337
        %3613 = vmatprep.subr.bf16.mxu0 %v3340
        %3614 = vmatpush1.bf16.msra.mxu0 %v3339
        %3615 = vmatprep.subr.bf16.mxu0 %v3342
        %3616 = vmatpush1.bf16.msra.mxu0 %v3341
        %3617 = vmatprep.mubr.bf16.mxu0 %v2852
        %3618 = vmatmul.mubr.bf16.gmra.mrb[0].mxu0 %v2851
        %v3619 = vpop.f32.mrb[0].mxu0
        %v3620 = vadd.f32 %v3579, %v3619
        %v3621 = vpop.f32.mrb[0].mxu0
        %v3622 = vadd.f32 %v3581, %v3621
        %v3623 = vpop.f32.mrb[0].mxu0
        %v3624 = vpop.f32.mrb[0].mxu0
        %3625 = vdwg.mxu0
        %3626 = vmatprep.subr.bf16.mxu0 %v3344
        %3627 = vmatpush1.bf16.msra.mxu0 %v3343
        %3628 = vmatprep.subr.bf16.mxu0 %v3346
        %3629 = vmatpush1.bf16.msra.mxu0 %v3345
        %3630 = vmatprep.subr.bf16.mxu0 %v3348
        %3631 = vmatpush1.bf16.msra.mxu0 %v3347
        %3632 = vmatprep.subr.bf16.mxu0 %v3350
        %3633 = vmatpush1.bf16.msra.mxu0 %v3349
        %3634 = vmatprep.subr.bf16.mxu0 %v3352
        %3635 = vmatpush1.bf16.msra.mxu0 %v3351
        %3636 = vmatprep.subr.bf16.mxu0 %v3354
        %3637 = vmatpush1.bf16.msra.mxu0 %v3353
        %3638 = vmatprep.subr.bf16.mxu0 %v3356
        %3639 = vmatpush1.bf16.msra.mxu0 %v3355
        %3640 = vmatprep.subr.bf16.mxu0 %v3358
        %3641 = vmatpush1.bf16.msra.mxu0 %v3357
        %3642 = vmatprep.subr.bf16.mxu0 %v3360
        %3643 = vmatpush1.bf16.msra.mxu0 %v3359
        %3644 = vmatprep.subr.bf16.mxu0 %v3362
        %3645 = vmatpush1.bf16.msra.mxu0 %v3361
        %3646 = vmatprep.subr.bf16.mxu0 %v3364
        %3647 = vmatpush1.bf16.msra.mxu0 %v3363
        %3648 = vmatprep.subr.bf16.mxu0 %v3366
        %3649 = vmatpush1.bf16.msra.mxu0 %v3365
        %3650 = vmatprep.subr.bf16.mxu0 %v3368
        %3651 = vmatpush1.bf16.msra.mxu0 %v3367
        %3652 = vmatprep.subr.bf16.mxu0 %v3370
        %3653 = vmatpush1.bf16.msra.mxu0 %v3369
        %3654 = vmatprep.subr.bf16.mxu0 %v3372
        %3655 = vmatpush1.bf16.msra.mxu0 %v3371
        %3656 = vmatprep.subr.bf16.mxu0 %v3374
        %3657 = vmatpush1.bf16.msra.mxu0 %v3373
        %3658 = vmatprep.mubr.bf16.mxu0 %v2854
        %3659 = vmatmul.mubr.bf16.gmra.mrb[0].mxu0 %v2853
        %v3660 = vpop.f32.mrb[0].mxu0
        %v3661 = vadd.f32 %v3620, %v3660
        %v3662 = vpop.f32.mrb[0].mxu0
        %v3663 = vadd.f32 %v3622, %v3662
        %v3664 = vpop.f32.mrb[0].mxu0
        %v3665 = vpop.f32.mrb[0].mxu0
        %3666 = vdwg.mxu0
        %v3667 = vmax.f32 %v3661, 0.0
        %v3668 = vmax.f32 %v3663, 0.0
        %v3669 = vpack.c.bf16 %v3667, %v3667
        %v3670 = vpack.c.bf16 %v3668, %v3668
        %v3671 = vld [vmem:[%s7] sm:$0xf]
        %v3672 = vld [vmem:[%s7 + $0x4] sm:$0xf]
        %v3673 = vld [vmem:[%s7 + $0x8] sm:$0xf]
        %v3674 = vld [vmem:[%s7 + $0xc] sm:$0xf]
        %v3675 = vld [vmem:[%s7 + $0x10] sm:$0xf]
        %v3676 = vld [vmem:[%s7 + $0x14] sm:$0xf]
        %v3677 = vld [vmem:[%s7 + $0x18] sm:$0xf]
        %v3678 = vld [vmem:[%s7 + $0x1c] sm:$0xf]
        %v3679 = vld [vmem:[%s7 + $0x20] sm:$0xf]
        %v3680 = vld [vmem:[%s7 + $0x24] sm:$0xf]
        %v3681 = vld [vmem:[%s7 + $0x28] sm:$0xf]
        %v3682 = vld [vmem:[%s7 + $0x2c] sm:$0xf]
        %v3683 = vld [vmem:[%s7 + $0x30] sm:$0xf]
        %v3684 = vld [vmem:[%s7 + $0x34] sm:$0xf]
        %v3685 = vld [vmem:[%s7 + $0x38] sm:$0xf]
        %v3686 = vld [vmem:[%s7 + $0x3c] sm:$0xf]
        %v3687 = vld [vmem:[%s7 + $0x40] sm:$0xf]
        %v3688 = vld [vmem:[%s7 + $0x44] sm:$0xf]
        %v3689 = vld [vmem:[%s7 + $0x48] sm:$0xf]
        %v3690 = vld [vmem:[%s7 + $0x4c] sm:$0xf]
        %v3691 = vld [vmem:[%s7 + $0x50] sm:$0xf]
        %v3692 = vld [vmem:[%s7 + $0x54] sm:$0xf]
        %v3693 = vld [vmem:[%s7 + $0x58] sm:$0xf]
        %v3694 = vld [vmem:[%s7 + $0x5c] sm:$0xf]
        %v3695 = vld [vmem:[%s7 + $0x60] sm:$0xf]
        %v3696 = vld [vmem:[%s7 + $0x64] sm:$0xf]
        %v3697 = vld [vmem:[%s7 + $0x68] sm:$0xf]
        %v3698 = vld [vmem:[%s7 + $0x6c] sm:$0xf]
        %v3699 = vld [vmem:[%s7 + $0x70] sm:$0xf]
        %v3700 = vld [vmem:[%s7 + $0x74] sm:$0xf]
        %v3701 = vld [vmem:[%s7 + $0x78] sm:$0xf]
        %v3702 = vld [vmem:[%s7 + $0x7c] sm:$0xf]
        %v3703 = vld [vmem:[%s8] sm:$0x1]
        %v3705 = vlaneseq
        %v3706 = vshrl.u32 %v3705, 7
        %v3707 = vsub.s32 0, %v3706
        %v3708 = vrot.slane %v3703, %v3707
        %v3742 = vunpack.c.l.b16 %v3671
        %v3743 = vunpack.c.l.b16 %v3672
        %v3744 = vunpack.c.l.b16 %v3673
        %v3745 = vunpack.c.l.b16 %v3674
        %v3746 = vunpack.c.l.b16 %v3675
        %v3747 = vunpack.c.l.b16 %v3676
        %v3748 = vunpack.c.l.b16 %v3677
        %v3749 = vunpack.c.l.b16 %v3678
        %v3750 = vunpack.c.l.b16 %v3679
        %v3751 = vunpack.c.l.b16 %v3680
        %v3752 = vunpack.c.l.b16 %v3681
        %v3753 = vunpack.c.l.b16 %v3682
        %v3754 = vunpack.c.l.b16 %v3683
        %v3755 = vunpack.c.l.b16 %v3684
        %v3756 = vunpack.c.l.b16 %v3685
        %v3757 = vunpack.c.l.b16 %v3686
        %v3758 = vunpack.c.l.b16 %v3687
        %v3759 = vunpack.c.l.b16 %v3688
        %v3760 = vunpack.c.l.b16 %v3689
        %v3761 = vunpack.c.l.b16 %v3690
        %v3762 = vunpack.c.l.b16 %v3691
        %v3763 = vunpack.c.l.b16 %v3692
        %v3764 = vunpack.c.l.b16 %v3693
        %v3765 = vunpack.c.l.b16 %v3694
        %v3766 = vunpack.c.l.b16 %v3695
        %v3767 = vunpack.c.l.b16 %v3696
        %v3768 = vunpack.c.l.b16 %v3697
        %v3769 = vunpack.c.l.b16 %v3698
        %v3770 = vunpack.c.l.b16 %v3699
        %v3771 = vunpack.c.l.b16 %v3700
        %v3772 = vunpack.c.l.b16 %v3701
        %v3773 = vunpack.c.l.b16 %v3702
        %v3774 = vpack.c.b16 %v3743, %v3742
        %v3775 = vpack.c.b16 %v3745, %v3744
        %v3776 = vpack.c.b16 %v3747, %v3746
        %v3777 = vpack.c.b16 %v3749, %v3748
        %v3778 = vpack.c.b16 %v3751, %v3750
        %v3779 = vpack.c.b16 %v3753, %v3752
        %v3780 = vpack.c.b16 %v3755, %v3754
        %v3781 = vpack.c.b16 %v3757, %v3756
        %v3782 = vpack.c.b16 %v3759, %v3758
        %v3783 = vpack.c.b16 %v3761, %v3760
        %v3784 = vpack.c.b16 %v3763, %v3762
        %v3785 = vpack.c.b16 %v3765, %v3764
        %v3786 = vpack.c.b16 %v3767, %v3766
        %v3787 = vpack.c.b16 %v3769, %v3768
        %v3788 = vpack.c.b16 %v3771, %v3770
        %v3789 = vpack.c.b16 %v3773, %v3772
        %3806 = vmatprep.subr.bf16.mxu0 0
        %3807 = vmatpush1.bf16.msra.mxu0 %v3774
        %3808 = vmatprep.subr.bf16.mxu0 0
        %3809 = vmatpush1.bf16.msra.mxu0 %v3775
        %3810 = vmatprep.subr.bf16.mxu0 0
        %3811 = vmatpush1.bf16.msra.mxu0 %v3776
        %3812 = vmatprep.subr.bf16.mxu0 0
        %3813 = vmatpush1.bf16.msra.mxu0 %v3777
        %3814 = vmatprep.subr.bf16.mxu0 0
        %3815 = vmatpush1.bf16.msra.mxu0 %v3778
        %3816 = vmatprep.subr.bf16.mxu0 0
        %3817 = vmatpush1.bf16.msra.mxu0 %v3779
        %3818 = vmatprep.subr.bf16.mxu0 0
        %3819 = vmatpush1.bf16.msra.mxu0 %v3780
        %3820 = vmatprep.subr.bf16.mxu0 0
        %3821 = vmatpush1.bf16.msra.mxu0 %v3781
        %3822 = vmatprep.subr.bf16.mxu0 0
        %3823 = vmatpush1.bf16.msra.mxu0 %v3782
        %3824 = vmatprep.subr.bf16.mxu0 0
        %3825 = vmatpush1.bf16.msra.mxu0 %v3783
        %3826 = vmatprep.subr.bf16.mxu0 0
        %3827 = vmatpush1.bf16.msra.mxu0 %v3784
        %3828 = vmatprep.subr.bf16.mxu0 0
        %3829 = vmatpush1.bf16.msra.mxu0 %v3785
        %3830 = vmatprep.subr.bf16.mxu0 0
        %3831 = vmatpush1.bf16.msra.mxu0 %v3786
        %3832 = vmatprep.subr.bf16.mxu0 0
        %3833 = vmatpush1.bf16.msra.mxu0 %v3787
        %3834 = vmatprep.subr.bf16.mxu0 0
        %3835 = vmatpush1.bf16.msra.mxu0 %v3788
        %3836 = vmatprep.subr.bf16.mxu0 0
        %3837 = vmatpush1.bf16.msra.mxu0 %v3789
        %3838 = vmatprep.mubr.bf16.mxu0 %v3670
        %3839 = vmatmul.mubr.bf16.gmra.mrb[0].mxu0 %v3669
        %v3840 = vpop.f32.mrb[0].mxu0
        %v3841 = vadd.f32 %v3708, %v3840
        %v3842 = vpop.f32.mrb[0].mxu0
        %v3843 = vpop.f32.mrb[0].mxu0
        %v3844 = vpop.f32.mrb[0].mxu0
        %3845 = vdwg.mxu0
        %3846 = vst [vmem:[%s356] sm:$0xff] %v3841
        %s3847 = sand.u32 %s227, 1
        %s3848 = scalar_lea.sflag [#allocation6], %s3847
        %s3849 = sand.u32 %s227, 1
        %s3850 = smul.addr %s3849, 8
        %s3851 = scalar_lea.vmem [#allocation9], %s3850
        // Predicated region
        $region65: #{tpu_custom_call.1} parent=55 // pred_check
          %p3852 = pneg %p237
        $region66: #{tpu_custom_call.1} parent=55 // pred_check_branch
          %3854 = sbr.rel (%p3852) target = $region68
        $region67: #{tpu_custom_call.1} parent=55 // pred_region
          %s3856 = ssub.s32 128, 128
          %3857 = vsyncadd %s3848, %s3856
          %s3858 = smul.addr %s25, 128
          %s3859 = scalar_lea.hbm %s9, %s3858
          %s3861 = sshll.u32 %s3851, 4
          %s3862 = int_to_ptr.vmem [resolvable:$true] %s3861
          %3864 = dma.vmem_to_hbm [thread:$0]  %s3862, 128, %s3859, %s3848
        $region68: #{tpu_custom_call.1} parent=55 // pred_fallthru
          _
      $region56: #{tpu_custom_call.1} parent=5 // pred_fallthru
        _
      %p3865 = scmp.le.s32.totalorder 2, %s20
      // Predicated region
      $region69: #{tpu_custom_call.1} parent=5 // pred_check
        %p3866 = pneg %p3865
      $region70: #{tpu_custom_call.1} parent=5 // pred_check_branch
        %3868 = sbr.rel (%p3866) target = $region72
      $region71: #{tpu_custom_call.1} parent=5 // pred_region
        %s3869 = ssub.s32 %s20, 2
        // Predicated region
        $region73: #{tpu_custom_call.1} parent=71 // pred_check
          %p3870 = pneg %p243
        $region74: #{tpu_custom_call.1} parent=71 // pred_check_branch
          %3872 = sbr.rel (%p3870) target = $region76
        $region75: #{tpu_custom_call.1} parent=71 // pred_region
          %s3873 = sand.u32 %s228, 1
          %s3874 = scalar_lea.sflag [#allocation6], %s3873
          %s3875 = sand.u32 %s228, 1
          %s3876 = smul.addr %s3875, 8
          %s3877 = scalar_lea.vmem [#allocation9], %s3876
          %3878 = dma.done %s3874, 128
        $region76: #{tpu_custom_call.1} parent=71 // pred_fallthru
          _
      $region72: #{tpu_custom_call.1} parent=5 // pred_fallthru
        _
    $region6: #{tpu_custom_call.1} parent=1 // loop_footer
      %s24 = sadd.s32 1, %s20
    $region7: #{tpu_custom_call.1} parent=1 // loop_footer_branch
      %19 = sbr.rel target = $region3
    $region8: #{tpu_custom_call.1} parent=1 // loop_exit
      _
    %3879 = vsyncpa [#allocation5], 1
    %s3880 = scalar_lea.sflag [#allocation5], 1
    %3881 = vsyncpa %s3880, 1
    %3882 = vsyncpa [#allocation8], 1
    %3883 = vsyncpa [#allocation6], 1
    %s3884 = scalar_lea.sflag [#allocation6], 1
    %3885 = vsyncpa %s3884, 1

// kernel: tpu_custom_call.1
$region0: #{tpu_custom_call.1}
  #allocation0 [shape = 'u32[]', space=smem, size = 0x4, offset = 0x4, fixed_abs, tag = 'smem constant byte address 0x4 - core index']
  #allocation1 [shape = 'u32[144,128]{1,0:T(1,128)}', space=vmem, size = 0x12000, scoped, tag = 'internal scratch']
  #allocation2 [shape = 'bf16[8,18,256]{2,1,0:T(8,128)(2,1)}', space=vmem, size = 0x18000, scoped, tag = 'scratch operand']
  #allocation3 [shape = 'bf16[8,1024]{1,0:T(8,128)(2,1)}', space=vmem, size = 0x4000, scoped, tag = 'scratch operand']
  %s0 = inlined_call_operand.vmem [shape: bf16[256,6], index: 0, kind: input, shape index: {}]
  %s1 = inlined_call_operand.vmem [shape: bf16[6,512], index: 1, kind: input, shape index: {}]
  %s2 = inlined_call_operand.vmem [shape: f32[1,128], index: 2, kind: input, shape index: {}]
  %s3 = inlined_call_operand.hbm [shape: bf16[512,128], index: 3, kind: input, shape index: {}]
  %s4 = inlined_call_operand.vmem [shape: f32[1,64], index: 4, kind: input, shape index: {}]
  %s5 = inlined_call_operand.hbm [shape: bf16[1024,256], index: 5, kind: input, shape index: {}]
  %s6 = inlined_call_operand.vmem [shape: f32[1,256], index: 6, kind: input, shape index: {}]
  %s7 = inlined_call_operand.vmem [shape: bf16[256,128], index: 7, kind: input, shape index: {}]
  %s8 = inlined_call_operand.vmem [shape: f32[1,128], index: 8, kind: input, shape index: {}]
  %s9 = inlined_call_operand.hbm [shape: f32[16,128], index: 9, kind: output, shape index: {}]
  %s10 = sld [smem:[#allocation0]]
  $region77: #{tpu_custom_call.1} parent=0
    _
  %s12 = ssub.s32 1, %s10
  %s13 = scalar_select 0, %s12, %s10
  $region1: #{tpu_custom_call.1} parent=0
    #allocation4 [shape = 'u8[131072]{0}', space=vmem, size = 0x20000, scoped, tag = 'input window, operand 3, single buffered']
    #allocation5 [shape = 's32[2]{0}', space=sflag, size = 0x8, scoped, tag = 'scoped memory for tpu_custom_call.1']
    #allocation6 [shape = 's32[2]{0}', space=sflag, size = 0x8, scoped, tag = 'scoped memory for tpu_custom_call.1']
    #allocation7 [shape = 'u8[524288]{0}', space=vmem, size = 0x80000, scoped, tag = 'input window, operand 5, single buffered']
    #allocation8 [shape = 's32[1]{0}', space=sflag, size = 0x4, scoped, tag = 'scoped memory for tpu_custom_call.1']
    #allocation9 [shape = 'u8[8192]{0}', space=vmem, size = 0x2000, scoped, tag = 'output window, operand 0']
    %14 = vsyncpa [#allocation5], 0
    %15 = vsyncpa [#allocation8], 0
    %16 = vsyncpa [#allocation6], 0
    %s17 = scalar_lea.sflag [#allocation6], 1
    %18 = vsyncpa %s17, 0
    loop: start=0, step=1, limit=4
    $region2: #{tpu_custom_call.1} parent=1 // loop_pre_header
      _
    $region3: #{tpu_custom_call.1} parent=1 // loop_header
      %s20 = sphi 0, %s24
      %p21 = scmp.ge.s32.totalorder %s20, 4
      %s30 = sphi 0, %s32
      %s33 = sphi 0, %s30
      %s34 = sphi 0, %s33
      %s50 = sphi 0, %s34
      %s54 = sphi 0, %s54
      %s56 = sphi 0, %s54
      %s57 = sphi 0, %s56
      %s71 = sphi 0, %s57
      %s75 = sphi 0, %s75
      %s77 = sphi 0, %s75
      %s78 = sphi 0, %s77
      %s92 = sphi 0, %s78
      %s96 = sphi 0, %s96
      %s98 = sphi 0, %s96
      %s99 = sphi 0, %s98
      %s113 = sphi 0, %s99
      %s117 = sphi 0, %s117
      %s119 = sphi 0, %s117
      %s120 = sphi 0, %s119
      %s134 = sphi 0, %s120
      %s138 = sphi 0, %s138
      %s140 = sphi 0, %s138
      %s141 = sphi 0, %s140
      %s155 = sphi 0, %s141
      %s159 = sphi 0, %s159
      %s161 = sphi 0, %s159
      %s162 = sphi 0, %s161
      %s176 = sphi 0, %s162
      %s180 = sphi 0, %s180
      %s182 = sphi 0, %s180
      %s183 = sphi 0, %s182
      %s197 = sphi 0, %s183
      %s201 = sphi 0, %s201
      %s203 = sphi 0, %s201
      %s204 = sphi 0, %s203
      %s218 = sphi 0, %s204
      %s224 = sphi 0, %s226
      %s227 = sphi 0, %s224
      %s228 = sphi 0, %s227
      %s244 = sphi 0, %s228
    $region4: #{tpu_custom_call.1} parent=1 // loop_header_branch
      %23 = sbr.rel (%p21) target = $region8
    $region5: #{tpu_custom_call.1} parent=1 // loop_body
      %s25 = ssub.s32 %s20, 1
      %s26 = ssub.s32 %s20, 2
      %s27 = sadd.s32 %s20, 1
      %s28 = ssub.s32 %s20, %s27
      %p29 = scmp.eq.s32.totalorder %s28, 0
      %s31 = sadd.s32 %s30, 1
      %s32 = scalar_select %p29, %s30, %s31
      %p35 = pneg %p29
      %p36 = scmp.eq.s32.totalorder %s20, 1
      %p37 = por %p35, %p36
      %p38 = scmp.ne.s32.totalorder %s30, %s33
      %p39 = scmp.eq.s32.totalorder %s20, 0
      %p40 = por %p38, %p39
      %p41 = scmp.ne.s32.totalorder %s30, %s33
      %p42 = scmp.eq.s32.totalorder %s25, 1
      %p43 = por %p41, %p42
      %p44 = scmp.ne.s32.totalorder %s33, %s34
      %p45 = scmp.eq.s32.totalorder %s25, 0
      %p46 = por %p44, %p45
      %p47 = scmp.ne.s32.totalorder %s33, %s34
      %p48 = scmp.eq.s32.totalorder %s26, 1
      %p49 = por %p47, %p48
      %p51 = scmp.ne.s32.totalorder %s34, %s50
      %p52 = scmp.eq.s32.totalorder %s26, 0
      %p53 = por %p51, %p52
      %s55 = sadd.s32 %s54, 1
      %p58 = scmp.eq.s32.totalorder %s20, 1
      %p59 = scmp.ne.s32.totalorder %s54, %s56
      %p60 = scmp.eq.s32.totalorder %s20, 0
      %p61 = por %p59, %p60
      %p62 = scmp.ne.s32.totalorder %s54, %s56
      %p63 = scmp.eq.s32.totalorder %s25, 1
      %p64 = por %p62, %p63
      %p65 = scmp.ne.s32.totalorder %s56, %s57
      %p66 = scmp.eq.s32.totalorder %s25, 0
      %p67 = por %p65, %p66
      %p68 = scmp.ne.s32.totalorder %s56, %s57
      %p69 = scmp.eq.s32.totalorder %s26, 1
      %p70 = por %p68, %p69
      %p72 = scmp.ne.s32.totalorder %s57, %s71
      %p73 = scmp.eq.s32.totalorder %s26, 0
      %p74 = por %p72, %p73
      %s76 = sadd.s32 %s75, 1
      %p79 = scmp.eq.s32.totalorder %s20, 1
      %p80 = scmp.ne.s32.totalorder %s75, %s77
      %p81 = scmp.eq.s32.totalorder %s20, 0
      %p82 = por %p80, %p81
      %p83 = scmp.ne.s32.totalorder %s75, %s77
      %p84 = scmp.eq.s32.totalorder %s25, 1
      %p85 = por %p83, %p84
      %p86 = scmp.ne.s32.totalorder %s77, %s78
      %p87 = scmp.eq.s32.totalorder %s25, 0
      %p88 = por %p86, %p87
      %p89 = scmp.ne.s32.totalorder %s77, %s78
      %p90 = scmp.eq.s32.totalorder %s26, 1
      %p91 = por %p89, %p90
      %p93 = scmp.ne.s32.totalorder %s78, %s92
      %p94 = scmp.eq.s32.totalorder %s26, 0
      %p95 = por %p93, %p94
      %s97 = sadd.s32 %s96, 1
      %p100 = scmp.eq.s32.totalorder %s20, 1
      %p101 = scmp.ne.s32.totalorder %s96, %s98
      %p102 = scmp.eq.s32.totalorder %s20, 0
      %p103 = por %p101, %p102
      %p104 = scmp.ne.s32.totalorder %s96, %s98
      %p105 = scmp.eq.s32.totalorder %s25, 1
      %p106 = por %p104, %p105
      %p107 = scmp.ne.s32.totalorder %s98, %s99
      %p108 = scmp.eq.s32.totalorder %s25, 0
      %p109 = por %p107, %p108
      %p110 = scmp.ne.s32.totalorder %s98, %s99
      %p111 = scmp.eq.s32.totalorder %s26, 1
      %p112 = por %p110, %p111
      %p114 = scmp.ne.s32.totalorder %s99, %s113
      %p115 = scmp.eq.s32.totalorder %s26, 0
      %p116 = por %p114, %p115
      %s118 = sadd.s32 %s117, 1
      %p121 = scmp.eq.s32.totalorder %s20, 1
      %p122 = scmp.ne.s32.totalorder %s117, %s119
      %p123 = scmp.eq.s32.totalorder %s20, 0
      %p124 = por %p122, %p123
      %p125 = scmp.ne.s32.totalorder %s117, %s119
      %p126 = scmp.eq.s32.totalorder %s25, 1
      %p127 = por %p125, %p126
      %p128 = scmp.ne.s32.totalorder %s119, %s120
      %p129 = scmp.eq.s32.totalorder %s25, 0
      %p130 = por %p128, %p129
      %p131 = scmp.ne.s32.totalorder %s119, %s120
      %p132 = scmp.eq.s32.totalorder %s26, 1
      %p133 = por %p131, %p132
      %p135 = scmp.ne.s32.totalorder %s120, %s134
      %p136 = scmp.eq.s32.totalorder %s26, 0
      %p137 = por %p135, %p136
      %s139 = sadd.s32 %s138, 1
      %p142 = scmp.eq.s32.totalorder %s20, 1
      %p143 = scmp.ne.s32.totalorder %s138, %s140
      %p144 = scmp.eq.s32.totalorder %s20, 0
      %p145 = por %p143, %p144
      %p146 = scmp.ne.s32.totalorder %s138, %s140
      %p147 = scmp.eq.s32.totalorder %s25, 1
      %p148 = por %p146, %p147
      %p149 = scmp.ne.s32.totalorder %s140, %s141
      %p150 = scmp.eq.s32.totalorder %s25, 0
      %p151 = por %p149, %p150
      %p152 = scmp.ne.s32.totalorder %s140, %s141
      %p153 = scmp.eq.s32.totalorder %s26, 1
      %p154 = por %p152, %p153
      %p156 = scmp.ne.s32.totalorder %s141, %s155
      %p157 = scmp.eq.s32.totalorder %s26, 0
      %p158 = por %p156, %p157
      %s160 = sadd.s32 %s159, 1
      %p163 = scmp.eq.s32.totalorder %s20, 1
      %p164 = scmp.ne.s32.totalorder %s159, %s161
      %p165 = scmp.eq.s32.totalorder %s20, 0
      %p166 = por %p164, %p165
      %p167 = scmp.ne.s32.totalorder %s159, %s161
      %p168 = scmp.eq.s32.totalorder %s25, 1
      %p169 = por %p167, %p168
      %p170 = scmp.ne.s32.totalorder %s161, %s162
      %p171 = scmp.eq.s32.totalorder %s25, 0
      %p172 = por %p170, %p171
      %p173 = scmp.ne.s32.totalorder %s161, %s162
      %p174 = scmp.eq.s32.totalorder %s26, 1
      %p175 = por %p173, %p174
      %p177 = scmp.ne.s32.totalorder %s162, %s176
      %p178 = scmp.eq.s32.totalorder %s26, 0
      %p179 = por %p177, %p178
      %s181 = sadd.s32 %s180, 1
      %p184 = scmp.eq.s32.totalorder %s20, 1
      %p185 = scmp.ne.s32.totalorder %s180, %s182
      %p186 = scmp.eq.s32.totalorder %s20, 0
      %p187 = por %p185, %p186
      %p188 = scmp.ne.s32.totalorder %s180, %s182
      %p189 = scmp.eq.s32.totalorder %s25, 1
      %p190 = por %p188, %p189
      %p191 = scmp.ne.s32.totalorder %s182, %s183
      %p192 = scmp.eq.s32.totalorder %s25, 0
      %p193 = por %p191, %p192
      %p194 = scmp.ne.s32.totalorder %s182, %s183
      %p195 = scmp.eq.s32.totalorder %s26, 1
      %p196 = por %p194, %p195
      %p198 = scmp.ne.s32.totalorder %s183, %s197
      %p199 = scmp.eq.s32.totalorder %s26, 0
      %p200 = por %p198, %p199
      %s202 = sadd.s32 %s201, 1
      %p205 = scmp.eq.s32.totalorder %s20, 1
      %p206 = scmp.ne.s32.totalorder %s201, %s203
      %p207 = scmp.eq.s32.totalorder %s20, 0
      %p208 = por %p206, %p207
      %p209 = scmp.ne.s32.totalorder %s201, %s203
      %p210 = scmp.eq.s32.totalorder %s25, 1
      %p211 = por %p209, %p210
      %p212 = scmp.ne.s32.totalorder %s203, %s204
      %p213 = scmp.eq.s32.totalorder %s25, 0
      %p214 = por %p212, %p213
      %p215 = scmp.ne.s32.totalorder %s203, %s204
      %p216 = scmp.eq.s32.totalorder %s26, 1
      %p217 = por %p215, %p216
      %p219 = scmp.ne.s32.totalorder %s204, %s218
      %p220 = scmp.eq.s32.totalorder %s26, 0
      %p221 = por %p219, %p220
      %s222 = ssub.s32 %s20, %s27
      %p223 = scmp.eq.s32.totalorder %s222, 0
      %s225 = sadd.s32 %s224, 1
      %s226 = scalar_select %p223, %s224, %s225
      %p229 = pneg %p223
      %p230 = scmp.eq.s32.totalorder %s20, 1
      %p231 = por %p229, %p230
      %p232 = scmp.ne.s32.totalorder %s224, %s227
      %p233 = scmp.eq.s32.totalorder %s20, 0
      %p234 = por %p232, %p233
      %p235 = scmp.ne.s32.totalorder %s224, %s227
      %p236 = scmp.eq.s32.totalorder %s25, 1
      %p237 = por %p235, %p236
      %p238 = scmp.ne.s32.totalorder %s227, %s228
      %p239 = scmp.eq.s32.totalorder %s25, 0
      %p240 = por %p238, %p239
      %p241 = scmp.ne.s32.totalorder %s227, %s228
      %p242 = scmp.eq.s32.totalorder %s26, 1
      %p243 = por %p241, %p242
      %p245 = scmp.ne.s32.totalorder %s228, %s244
      %p246 = scmp.eq.s32.totalorder %s26, 0
      %p247 = por %p245, %p246
      %p248 = scmp.le.s32.totalorder 1, %s20
      %p249 = scmp.lt.s32.totalorder %s20, 3
      %p250 = pnand %p248, %p249
      %p251 = pneg %p250
      // Predicated region
      $region9: #{tpu_custom_call.1} parent=5 // pred_check
        _
      $region10: #{tpu_custom_call.1} parent=5 // pred_check_branch
        %253 = sbr.rel (%p250) target = $region12
      $region11: #{tpu_custom_call.1} parent=5 // pred_region
        %s254 = ssub.s32 %s20, 1
        // Predicated region
        $region13: #{tpu_custom_call.1} parent=11 // pred_check
          %p255 = pneg %p67
        $region14: #{tpu_custom_call.1} parent=11 // pred_check_branch
          %257 = sbr.rel (%p255) target = $region16
        $region15: #{tpu_custom_call.1} parent=11 // pred_region
          _
        $region16: #{tpu_custom_call.1} parent=11 // pred_fallthru
          _
        // Predicated region
        $region17: #{tpu_custom_call.1} parent=11 // pred_check
          %p258 = pneg %p88
        $region18: #{tpu_custom_call.1} parent=11 // pred_check_branch
          %260 = sbr.rel (%p258) target = $region20
        $region19: #{tpu_custom_call.1} parent=11 // pred_region
          _
        $region20: #{tpu_custom_call.1} parent=11 // pred_fallthru
          _
        // Predicated region
        $region21: #{tpu_custom_call.1} parent=11 // pred_check
          %p261 = pneg %p109
        $region22: #{tpu_custom_call.1} parent=11 // pred_check_branch
          %263 = sbr.rel (%p261) target = $region24
        $region23: #{tpu_custom_call.1} parent=11 // pred_region
          %s265 = ssub.s32 4096, 4096
          %266 = vsyncadd [#allocation5], %s265
          %s267 = sshll.u32 [#allocation4], 4
          %s268 = int_to_ptr.vmem [resolvable:$true] %s267
          %273 = dma.hbm_to_vmem [thread:$0]  %s3, 4096, %s268, [#allocation5], 64, 64, 4
        $region24: #{tpu_custom_call.1} parent=11 // pred_fallthru
          _
        // Predicated region
        $region25: #{tpu_custom_call.1} parent=11 // pred_check
          %p274 = pneg %p130
        $region26: #{tpu_custom_call.1} parent=11 // pred_check_branch
          %276 = sbr.rel (%p274) target = $region28
        $region27: #{tpu_custom_call.1} parent=11 // pred_region
          _
        $region28: #{tpu_custom_call.1} parent=11 // pred_fallthru
          _
        // Predicated region
        $region29: #{tpu_custom_call.1} parent=11 // pred_check
          %p277 = pneg %p151
        $region30: #{tpu_custom_call.1} parent=11 // pred_check_branch
          %279 = sbr.rel (%p277) target = $region32
        $region31: #{tpu_custom_call.1} parent=11 // pred_region
          %s281 = ssub.s32 16384, 16384
          %282 = vsyncadd [#allocation8], %s281
          %s283 = sshll.u32 [#allocation7], 4
          %s284 = int_to_ptr.vmem [resolvable:$true] %s283
          %289 = dma.hbm_to_vmem [thread:$0]  %s5, 16384, %s284, [#allocation8], 128, 128, 8
        $region32: #{tpu_custom_call.1} parent=11 // pred_fallthru
          _
        // Predicated region
        $region33: #{tpu_custom_call.1} parent=11 // pred_check
          %p290 = pneg %p172
        $region34: #{tpu_custom_call.1} parent=11 // pred_check_branch
          %292 = sbr.rel (%p290) target = $region36
        $region35: #{tpu_custom_call.1} parent=11 // pred_region
          _
        $region36: #{tpu_custom_call.1} parent=11 // pred_fallthru
          _
        // Predicated region
        $region37: #{tpu_custom_call.1} parent=11 // pred_check
          %p293 = pneg %p193
        $region38: #{tpu_custom_call.1} parent=11 // pred_check_branch
          %295 = sbr.rel (%p293) target = $region40
        $region39: #{tpu_custom_call.1} parent=11 // pred_region
          _
        $region40: #{tpu_custom_call.1} parent=11 // pred_fallthru
          _
        // Predicated region
        $region41: #{tpu_custom_call.1} parent=11 // pred_check
          %p296 = pneg %p214
        $region42: #{tpu_custom_call.1} parent=11 // pred_check_branch
          %298 = sbr.rel (%p296) target = $region44
        $region43: #{tpu_custom_call.1} parent=11 // pred_region
          _
        $region44: #{tpu_custom_call.1} parent=11 // pred_fallthru
          _
      $region12: #{tpu_custom_call.1} parent=5 // pred_fallthru
        _
      %p299 = scmp.lt.s32.totalorder %s20, 2
      // Predicated region
      $region45: #{tpu_custom_call.1} parent=5 // pred_check
        %p300 = pneg %p299
      $region46: #{tpu_custom_call.1} parent=5 // pred_check_branch
        %302 = sbr.rel (%p300) target = $region48
      $region47: #{tpu_custom_call.1} parent=5 // pred_region
        // Predicated region
        $region49: #{tpu_custom_call.1} parent=47 // pred_check
          %p303 = pneg %p40
        $region50: #{tpu_custom_call.1} parent=47 // pred_check_branch
          %305 = sbr.rel (%p303) target = $region52
        $region51: #{tpu_custom_call.1} parent=47 // pred_region
          %s306 = smul.u32 16, %s20
          %p307 = scmp.lt.s32.totalorder %s306, 31
          %s308 = scalar_select %p307, %s306, 31
          %s309 = smul.addr %s308, 4
          %s310 = scalar_lea.vmem %s0, %s309
          %s311 = smul.u32 16, %s20
        $region52: #{tpu_custom_call.1} parent=47 // pred_fallthru
          _
      $region48: #{tpu_custom_call.1} parent=5 // pred_fallthru
        _
      %p312 = scmp.le.s32.totalorder 1, %s20
      %p313 = scmp.lt.s32.totalorder %s20, 3
      %p314 = pnand %p312, %p313
      %p315 = pneg %p314
      // Predicated region
      $region53: #{tpu_custom_call.1} parent=5 // pred_check
        _
      $region54: #{tpu_custom_call.1} parent=5 // pred_check_branch
        %317 = sbr.rel (%p314) target = $region56
      $region55: #{tpu_custom_call.1} parent=5 // pred_region
        %s318 = ssub.s32 %s20, 1
        // Predicated region
        $region57: #{tpu_custom_call.1} parent=55 // pred_check
          %p319 = pneg %p109
        $region58: #{tpu_custom_call.1} parent=55 // pred_check_branch
          %321 = sbr.rel (%p319) target = $region60
        $region59: #{tpu_custom_call.1} parent=55 // pred_region
          %322 = dma.done [#allocation5], 4096
        $region60: #{tpu_custom_call.1} parent=55 // pred_fallthru
          _
        // Predicated region
        $region61: #{tpu_custom_call.1} parent=55 // pred_check
          %p323 = pneg %p151
        $region62: #{tpu_custom_call.1} parent=55 // pred_check_branch
          %325 = sbr.rel (%p323) target = $region64
        $region63: #{tpu_custom_call.1} parent=55 // pred_region
          %326 = dma.done [#allocation8], 16384
        $region64: #{tpu_custom_call.1} parent=55 // pred_fallthru
          _
        %s327 = smul.u32 16, %s25
        %p328 = scmp.lt.s32.totalorder %s327, 31
        %s329 = scalar_select %p328, %s327, 31
        %s330 = smul.addr %s329, 4
        %s331 = scalar_lea.vmem %s0, %s330
        %p332 = pneg %p46
        %p333 = pneg %p43
        %p334 = pneg %p67
        %p335 = pneg %p64
        %p336 = pneg %p88
        %p337 = pneg %p85
        %p338 = pneg %p109
        %p339 = pneg %p106
        %p340 = pneg %p130
        %p341 = pneg %p127
        %p342 = pneg %p151
        %p343 = pneg %p148
        %p344 = pneg %p172
        %p345 = pneg %p169
        %p346 = pneg %p193
        %p347 = pneg %p190
        %p348 = pneg %p214
        %p349 = pneg %p211
        %p350 = pneg %p240
        %p351 = pneg %p237
        %s352 = sand.u32 %s227, 1
        %s353 = scalar_lea.sflag [#allocation6], %s352
        %s354 = sand.u32 %s227, 1
        %s355 = smul.addr %s354, 8
        %s356 = scalar_lea.vmem [#allocation9], %s355
        %s357 = smul.u32 16, %s25
        %p358 = scmp.lt.s32.totalorder %s357, 31
        %s359 = scalar_select %p358, %s357, 31
        %s360 = smul.addr %s359, 4
        %s361 = scalar_lea.vmem %s0, %s360
        %s362 = smul.u32 16, %s25
        %v364 = vld [vmem:[%s361] sm:$0xf]
        %v365 = vld [vmem:[%s361 + $0x4] sm:$0xf]
        %v366 = vld [vmem:[%s361 + $0x8] sm:$0xf]
        %v367 = vld [vmem:[%s361 + $0xc] sm:$0xf]
        %v368 = vld [vmem:[%s361 + $0x10] sm:$0xf]
        %v369 = vld [vmem:[%s361 + $0x14] sm:$0xf]
        %v370 = vld [vmem:[%s361 + $0x18] sm:$0xf]
        %v371 = vld [vmem:[%s361 + $0x1c] sm:$0xf]
        %v372 = vld [vmem:[%s361 + $0x20] sm:$0xf]
        %v373 = vld [vmem:[%s361 + $0x24] sm:$0xf]
        %v374 = vld [vmem:[%s361 + $0x28] sm:$0xf]
        %v375 = vld [vmem:[%s361 + $0x2c] sm:$0xf]
        %v376 = vld [vmem:[%s361 + $0x30] sm:$0xf]
        %v377 = vld [vmem:[%s361 + $0x34] sm:$0xf]
        %v378 = vld [vmem:[%s361 + $0x38] sm:$0xf]
        %v379 = vld [vmem:[%s361 + $0x3c] sm:$0xf]
        %v380 = vld [vmem:[%s1] sm:$0x77]
        %v381 = vld [vmem:[%s1 + $0x8] sm:$0x77]
        %v398 = vunpack.c.l.b16 %v364
        %v399 = vunpack.c.l.b16 %v365
        %v400 = vunpack.c.l.b16 %v366
        %v401 = vunpack.c.l.b16 %v367
        %v402 = vunpack.c.l.b16 %v368
        %v403 = vunpack.c.l.b16 %v369
        %v404 = vunpack.c.l.b16 %v370
        %v405 = vunpack.c.l.b16 %v371
        %v406 = vunpack.c.l.b16 %v372
        %v407 = vunpack.c.l.b16 %v373
        %v408 = vunpack.c.l.b16 %v374
        %v409 = vunpack.c.l.b16 %v375
        %v410 = vunpack.c.l.b16 %v376
        %v411 = vunpack.c.l.b16 %v377
        %v412 = vunpack.c.l.b16 %v378
        %v413 = vunpack.c.l.b16 %v379
        %v414 = vpack.c.b16 %v399, %v398
        %v415 = vpack.c.b16 %v401, %v400
        %v416 = vpack.c.b16 %v403, %v402
        %v417 = vpack.c.b16 %v405, %v404
        %v418 = vpack.c.b16 %v407, %v406
        %v419 = vpack.c.b16 %v409, %v408
        %v420 = vpack.c.b16 %v411, %v410
        %v421 = vpack.c.b16 %v413, %v412
        %v424 = vunpack.c.l.b16 %v380
        %v425 = vunpack.c.h.b16 %v380
        %v426 = vunpack.c.l.b16 %v381
        %v427 = vunpack.c.h.b16 %v381
        %v428 = vpack.c.b16 %v424, %v424
        %v429 = vpack.c.b16 %v425, %v425
        %v430 = vpack.c.b16 %v426, %v426
        %v431 = vpack.c.b16 %v427, %v427
        %vm432 = vcmask 48128
        %v434 = vsel %vm432, %v414, 0
        %v437 = vsel %vm432, %v415, 0
        %v440 = vsel %vm432, %v416, 0
        %v443 = vsel %vm432, %v417, 0
        %v446 = vsel %vm432, %v418, 0
        %v449 = vsel %vm432, %v419, 0
        %v452 = vsel %vm432, %v420, 0
        %v455 = vsel %vm432, %v421, 0
        %vm457 = vcmask 1042432
        %v459 = vsel %vm457, %v428, 0
        %v462 = vsel %vm457, %v429, 0
        %v465 = vsel %vm457, %v430, 0
        %v468 = vsel %vm457, %v431, 0
        %470 = vmatprep.subr.bf16.mxu0 %v462
        %471 = vmatpush1.bf16.msra.mxu0 %v459
        %472 = vmatprep.subr.bf16.mxu0 0
        %473 = vmatpush1.bf16.msra.mxu0 0
        %474 = vmatprep.subr.bf16.mxu0 0
        %475 = vmatpush1.bf16.msra.mxu0 0
        %476 = vmatprep.subr.bf16.mxu0 0
        %477 = vmatpush1.bf16.msra.mxu0 0
        %478 = vmatprep.subr.bf16.mxu0 0
        %479 = vmatpush1.bf16.msra.mxu0 0
        %480 = vmatprep.subr.bf16.mxu0 0
        %481 = vmatpush1.bf16.msra.mxu0 0
        %482 = vmatprep.subr.bf16.mxu0 0
        %483 = vmatpush1.bf16.msra.mxu0 0
        %484 = vmatprep.subr.bf16.mxu0 0
        %485 = vmatpush1.bf16.msra.mxu0 0
        %486 = vmatprep.subr.bf16.mxu0 0
        %487 = vmatpush1.bf16.msra.mxu0 0
        %488 = vmatprep.subr.bf16.mxu0 0
        %489 = vmatpush1.bf16.msra.mxu0 0
        %490 = vmatprep.subr.bf16.mxu0 0
        %491 = vmatpush1.bf16.msra.mxu0 0
        %492 = vmatprep.subr.bf16.mxu0 0
        %493 = vmatpush1.bf16.msra.mxu0 0
        %494 = vmatprep.subr.bf16.mxu0 0
        %495 = vmatpush1.bf16.msra.mxu0 0
        %496 = vmatprep.subr.bf16.mxu0 0
        %497 = vmatpush1.bf16.msra.mxu0 0
        %498 = vmatprep.subr.bf16.mxu0 0
        %499 = vmatpush1.bf16.msra.mxu0 0
        %500 = vmatprep.subr.bf16.mxu0 0
        %501 = vmatpush1.bf16.msra.mxu0 0
        %502 = vmatprep.mubr.bf16.mxu0 0
        %503 = vmatmul.mubr.bf16.gmra.mrb[0].mxu0 %v434
        %v504 = vpop.f32.mrb[0].mxu0
        %v505 = vadd.f32 0.0, %v504
        %v506 = vpop.f32.mrb[0].mxu0
        %v507 = vadd.f32 0.0, %v506
        %v508 = vpop.f32.mrb[0].mxu0
        %v509 = vadd.f32 0.0, %v508
        %v510 = vpop.f32.mrb[0].mxu0
        %v511 = vadd.f32 0.0, %v510
        %512 = vmatprep.mubr.bf16.mxu0 0
        %513 = vmatmul.mubr.bf16.gmra.mrb[0].mxu0 %v437
        %v514 = vpop.f32.mrb[0].mxu0
        %v515 = vadd.f32 0.0, %v514
        %v516 = vpop.f32.mrb[0].mxu0
        %v517 = vadd.f32 0.0, %v516
        %v518 = vpop.f32.mrb[0].mxu0
        %v519 = vadd.f32 0.0, %v518
        %v520 = vpop.f32.mrb[0].mxu0
        %v521 = vadd.f32 0.0, %v520
        %522 = vmatprep.mubr.bf16.mxu0 0
        %523 = vmatmul.mubr.bf16.gmra.mrb[0].mxu0 %v440
        %v524 = vpop.f32.mrb[0].mxu0
        %v525 = vadd.f32 0.0, %v524
        %v526 = vpop.f32.mrb[0].mxu0
        %v527 = vadd.f32 0.0, %v526
        %v528 = vpop.f32.mrb[0].mxu0
        %v529 = vadd.f32 0.0, %v528
        %v530 = vpop.f32.mrb[0].mxu0
        %v531 = vadd.f32 0.0, %v530
        %532 = vmatprep.mubr.bf16.mxu0 0
        %533 = vmatmul.mubr.bf16.gmra.mrb[0].mxu0 %v443
        %v534 = vpop.f32.mrb[0].mxu0
        %v535 = vadd.f32 0.0, %v534
        %v536 = vpop.f32.mrb[0].mxu0
        %v537 = vadd.f32 0.0, %v536
        %v538 = vpop.f32.mrb[0].mxu0
        %v539 = vadd.f32 0.0, %v538
        %v540 = vpop.f32.mrb[0].mxu0
        %v541 = vadd.f32 0.0, %v540
        %542 = vmatprep.mubr.bf16.mxu0 0
        %543 = vmatmul.mubr.bf16.gmra.mrb[0].mxu0 %v446
        %v544 = vpop.f32.mrb[0].mxu0
        %v545 = vadd.f32 0.0, %v544
        %v546 = vpop.f32.mrb[0].mxu0
        %v547 = vadd.f32 0.0, %v546
        %v548 = vpop.f32.mrb[0].mxu0
        %v549 = vadd.f32 0.0, %v548
        %v550 = vpop.f32.mrb[0].mxu0
        %v551 = vadd.f32 0.0, %v550
        %552 = vmatprep.mubr.bf16.mxu0 0
        %553 = vmatmul.mubr.bf16.gmra.mrb[0].mxu0 %v449
        %v554 = vpop.f32.mrb[0].mxu0
        %v555 = vadd.f32 0.0, %v554
        %v556 = vpop.f32.mrb[0].mxu0
        %v557 = vadd.f32 0.0, %v556
        %v558 = vpop.f32.mrb[0].mxu0
        %v559 = vadd.f32 0.0, %v558
        %v560 = vpop.f32.mrb[0].mxu0
        %v561 = vadd.f32 0.0, %v560
        %562 = vmatprep.mubr.bf16.mxu0 0
        %563 = vmatmul.mubr.bf16.gmra.mrb[0].mxu0 %v452
        %v564 = vpop.f32.mrb[0].mxu0
        %v565 = vadd.f32 0.0, %v564
        %v566 = vpop.f32.mrb[0].mxu0
        %v567 = vadd.f32 0.0, %v566
        %v568 = vpop.f32.mrb[0].mxu0
        %v569 = vadd.f32 0.0, %v568
        %v570 = vpop.f32.mrb[0].mxu0
        %v571 = vadd.f32 0.0, %v570
        %572 = vmatprep.mubr.bf16.mxu0 0
        %573 = vmatmul.mubr.bf16.gmra.mrb[0].mxu0 %v455
        %v574 = vpop.f32.mrb[0].mxu0
        %v575 = vadd.f32 0.0, %v574
        %v576 = vpop.f32.mrb[0].mxu0
        %v577 = vadd.f32 0.0, %v576
        %v578 = vpop.f32.mrb[0].mxu0
        %v579 = vadd.f32 0.0, %v578
        %v580 = vpop.f32.mrb[0].mxu0
        %v581 = vadd.f32 0.0, %v580
        %582 = vdwg.mxu0
        %583 = vmatprep.subr.bf16.mxu0 %v468
        %584 = vmatpush1.bf16.msra.mxu0 %v465
        %585 = vmatprep.subr.bf16.mxu0 0
        %586 = vmatpush1.bf16.msra.mxu0 0
        %587 = vmatprep.subr.bf16.mxu0 0
        %588 = vmatpush1.bf16.msra.mxu0 0
        %589 = vmatprep.subr.bf16.mxu0 0
        %590 = vmatpush1.bf16.msra.mxu0 0
        %591 = vmatprep.subr.bf16.mxu0 0
        %592 = vmatpush1.bf16.msra.mxu0 0
        %593 = vmatprep.subr.bf16.mxu0 0
        %594 = vmatpush1.bf16.msra.mxu0 0
        %595 = vmatprep.subr.bf16.mxu0 0
        %596 = vmatpush1.bf16.msra.mxu0 0
        %597 = vmatprep.subr.bf16.mxu0 0
        %598 = vmatpush1.bf16.msra.mxu0 0
        %599 = vmatprep.subr.bf16.mxu0 0
        %600 = vmatpush1.bf16.msra.mxu0 0
        %601 = vmatprep.subr.bf16.mxu0 0
        %602 = vmatpush1.bf16.msra.mxu0 0
        %603 = vmatprep.subr.bf16.mxu0 0
        %604 = vmatpush1.bf16.msra.mxu0 0
        %605 = vmatprep.subr.bf16.mxu0 0
        %606 = vmatpush1.bf16.msra.mxu0 0
        %607 = vmatprep.subr.bf16.mxu0 0
        %608 = vmatpush1.bf16.msra.mxu0 0
        %609 = vmatprep.subr.bf16.mxu0 0
        %610 = vmatpush1.bf16.msra.mxu0 0
        %611 = vmatprep.subr.bf16.mxu0 0
        %612 = vmatpush1.bf16.msra.mxu0 0
        %613 = vmatprep.subr.bf16.mxu0 0
        %614 = vmatpush1.bf16.msra.mxu0 0
        %615 = vmatprep.mubr.bf16.mxu0 0
        %616 = vmatmul.mubr.bf16.gmra.mrb[0].mxu0 %v434
        %v617 = vpop.f32.mrb[0].mxu0
        %v618 = vadd.f32 0.0, %v617
        %v619 = vpop.f32.mrb[0].mxu0
        %v620 = vadd.f32 0.0, %v619
        %v621 = vpop.f32.mrb[0].mxu0
        %v622 = vadd.f32 0.0, %v621
        %v623 = vpop.f32.mrb[0].mxu0
        %v624 = vadd.f32 0.0, %v623
        %625 = vmatprep.mubr.bf16.mxu0 0
        %626 = vmatmul.mubr.bf16.gmra.mrb[0].mxu0 %v437
        %v627 = vpop.f32.mrb[0].mxu0
        %v628 = vadd.f32 0.0, %v627
        %v629 = vpop.f32.mrb[0].mxu0
        %v630 = vadd.f32 0.0, %v629
        %v631 = vpop.f32.mrb[0].mxu0
        %v632 = vadd.f32 0.0, %v631
        %v633 = vpop.f32.mrb[0].mxu0
        %v634 = vadd.f32 0.0, %v633
        %635 = vmatprep.mubr.bf16.mxu0 0
        %636 = vmatmul.mubr.bf16.gmra.mrb[0].mxu0 %v440
        %v637 = vpop.f32.mrb[0].mxu0
        %v638 = vadd.f32 0.0, %v637
        %v639 = vpop.f32.mrb[0].mxu0
        %v640 = vadd.f32 0.0, %v639
        %v641 = vpop.f32.mrb[0].mxu0
        %v642 = vadd.f32 0.0, %v641
        %v643 = vpop.f32.mrb[0].mxu0
        %v644 = vadd.f32 0.0, %v643
        %645 = vmatprep.mubr.bf16.mxu0 0
        %646 = vmatmul.mubr.bf16.gmra.mrb[0].mxu0 %v443
        %v647 = vpop.f32.mrb[0].mxu0
        %v648 = vadd.f32 0.0, %v647
        %v649 = vpop.f32.mrb[0].mxu0
        %v650 = vadd.f32 0.0, %v649
        %v651 = vpop.f32.mrb[0].mxu0
        %v652 = vadd.f32 0.0, %v651
        %v653 = vpop.f32.mrb[0].mxu0
        %v654 = vadd.f32 0.0, %v653
        %655 = vmatprep.mubr.bf16.mxu0 0
        %656 = vmatmul.mubr.bf16.gmra.mrb[0].mxu0 %v446
        %v657 = vpop.f32.mrb[0].mxu0
        %v658 = vadd.f32 0.0, %v657
        %v659 = vpop.f32.mrb[0].mxu0
        %v660 = vadd.f32 0.0, %v659
        %v661 = vpop.f32.mrb[0].mxu0
        %v662 = vadd.f32 0.0, %v661
        %v663 = vpop.f32.mrb[0].mxu0
        %v664 = vadd.f32 0.0, %v663
        %665 = vmatprep.mubr.bf16.mxu0 0
        %666 = vmatmul.mubr.bf16.gmra.mrb[0].mxu0 %v449
        %v667 = vpop.f32.mrb[0].mxu0
        %v668 = vadd.f32 0.0, %v667
        %v669 = vpop.f32.mrb[0].mxu0
        %v670 = vadd.f32 0.0, %v669
        %v671 = vpop.f32.mrb[0].mxu0
        %v672 = vadd.f32 0.0, %v671
        %v673 = vpop.f32.mrb[0].mxu0
        %v674 = vadd.f32 0.0, %v673
        %675 = vmatprep.mubr.bf16.mxu0 0
        %676 = vmatmul.mubr.bf16.gmra.mrb[0].mxu0 %v452
        %v677 = vpop.f32.mrb[0].mxu0
        %v678 = vadd.f32 0.0, %v677
        %v679 = vpop.f32.mrb[0].mxu0
        %v680 = vadd.f32 0.0, %v679
        %v681 = vpop.f32.mrb[0].mxu0
        %v682 = vadd.f32 0.0, %v681
        %v683 = vpop.f32.mrb[0].mxu0
        %v684 = vadd.f32 0.0, %v683
        %685 = vmatprep.mubr.bf16.mxu0 0
        %686 = vmatmul.mubr.bf16.gmra.mrb[0].mxu0 %v455
        %v687 = vpop.f32.mrb[0].mxu0
        %v688 = vadd.f32 0.0, %v687
        %v689 = vpop.f32.mrb[0].mxu0
        %v690 = vadd.f32 0.0, %v689
        %v691 = vpop.f32.mrb[0].mxu0
        %v692 = vadd.f32 0.0, %v691
        %v693 = vpop.f32.mrb[0].mxu0
        %v694 = vadd.f32 0.0, %v693
        %695 = vdwg.mxu0
        %v696 = vld [vmem:[%s2] sm:$0x1]
        %v697 = vmax.f32 %v505, %v507
        %v698 = vmax.f32 %v509, %v511
        %v699 = vmax.f32 %v515, %v517
        %v700 = vmax.f32 %v519, %v521
        %v701 = vmax.f32 %v525, %v527
        %v702 = vmax.f32 %v529, %v531
        %v703 = vmax.f32 %v535, %v537
        %v704 = vmax.f32 %v539, %v541
        %v705 = vmax.f32 %v545, %v547
        %v706 = vmax.f32 %v549, %v551
        %v707 = vmax.f32 %v555, %v557
        %v708 = vmax.f32 %v559, %v561
        %v709 = vmax.f32 %v565, %v567
        %v710 = vmax.f32 %v569, %v571
        %v711 = vmax.f32 %v575, %v577
        %v712 = vmax.f32 %v579, %v581
        %v714 = vlaneseq
        %v715 = vshrl.u32 %v714, 7
        %v716 = vsub.s32 0, %v715
        %v717 = vrot.slane %v696, %v716
        %v719 = vadd.f32 %v697, %v717
        %v720 = vadd.f32 %v698, %v717
        %v721 = vadd.f32 %v699, %v717
        %v722 = vadd.f32 %v700, %v717
        %v723 = vadd.f32 %v701, %v717
        %v724 = vadd.f32 %v702, %v717
        %v725 = vadd.f32 %v703, %v717
        %v726 = vadd.f32 %v704, %v717
        %v727 = vadd.f32 %v705, %v717
        %v728 = vadd.f32 %v706, %v717
        %v729 = vadd.f32 %v707, %v717
        %v730 = vadd.f32 %v708, %v717
        %v731 = vadd.f32 %v709, %v717
        %v732 = vadd.f32 %v710, %v717
        %v733 = vadd.f32 %v711, %v717
        %v734 = vadd.f32 %v712, %v717
        %v735 = vmax.f32 %v719, 0.0
        %v736 = vmax.f32 %v720, 0.0
        %v737 = vmax.f32 %v721, 0.0
        %v738 = vmax.f32 %v722, 0.0
        %v739 = vmax.f32 %v723, 0.0
        %v740 = vmax.f32 %v724, 0.0
        %v741 = vmax.f32 %v725, 0.0
        %v742 = vmax.f32 %v726, 0.0
        %v743 = vmax.f32 %v727, 0.0
        %v744 = vmax.f32 %v728, 0.0
        %v745 = vmax.f32 %v729, 0.0
        %v746 = vmax.f32 %v730, 0.0
        %v747 = vmax.f32 %v731, 0.0
        %v748 = vmax.f32 %v732, 0.0
        %v749 = vmax.f32 %v733, 0.0
        %v750 = vmax.f32 %v734, 0.0
        %v751 = vmax.f32 %v618, %v620
        %v752 = vmax.f32 %v622, %v624
        %v753 = vmax.f32 %v628, %v630
        %v754 = vmax.f32 %v632, %v634
        %v755 = vmax.f32 %v638, %v640
        %v756 = vmax.f32 %v642, %v644
        %v757 = vmax.f32 %v648, %v650
        %v758 = vmax.f32 %v652, %v654
        %v759 = vmax.f32 %v658, %v660
        %v760 = vmax.f32 %v662, %v664
        %v761 = vmax.f32 %v668, %v670
        %v762 = vmax.f32 %v672, %v674
        %v763 = vmax.f32 %v678, %v680
        %v764 = vmax.f32 %v682, %v684
        %v765 = vmax.f32 %v688, %v690
        %v766 = vmax.f32 %v692, %v694
        %v767 = vadd.f32 %v751, %v717
        %v768 = vadd.f32 %v752, %v717
        %v769 = vadd.f32 %v753, %v717
        %v770 = vadd.f32 %v754, %v717
        %v771 = vadd.f32 %v755, %v717
        %v772 = vadd.f32 %v756, %v717
        %v773 = vadd.f32 %v757, %v717
        %v774 = vadd.f32 %v758, %v717
        %v775 = vadd.f32 %v759, %v717
        %v776 = vadd.f32 %v760, %v717
        %v777 = vadd.f32 %v761, %v717
        %v778 = vadd.f32 %v762, %v717
        %v779 = vadd.f32 %v763, %v717
        %v780 = vadd.f32 %v764, %v717
        %v781 = vadd.f32 %v765, %v717
        %v782 = vadd.f32 %v766, %v717
        %v783 = vmax.f32 %v767, 0.0
        %v784 = vmax.f32 %v768, 0.0
        %v785 = vmax.f32 %v769, 0.0
        %v786 = vmax.f32 %v770, 0.0
        %v787 = vmax.f32 %v771, 0.0
        %v788 = vmax.f32 %v772, 0.0
        %v789 = vmax.f32 %v773, 0.0
        %v790 = vmax.f32 %v774, 0.0
        %v791 = vmax.f32 %v775, 0.0
        %v792 = vmax.f32 %v776, 0.0
        %v793 = vmax.f32 %v777, 0.0
        %v794 = vmax.f32 %v778, 0.0
        %v795 = vmax.f32 %v779, 0.0
        %v796 = vmax.f32 %v780, 0.0
        %v797 = vmax.f32 %v781, 0.0
        %v798 = vmax.f32 %v782, 0.0
        %v799 = vpack.c.bf16 %v736, %v735
        %v800 = vpack.c.bf16 %v738, %v737
        %v801 = vpack.c.bf16 %v740, %v739
        %v802 = vpack.c.bf16 %v742, %v741
        %v803 = vpack.c.bf16 %v744, %v743
        %v804 = vpack.c.bf16 %v746, %v745
        %v805 = vpack.c.bf16 %v748, %v747
        %v806 = vpack.c.bf16 %v750, %v749
        %v807 = vpack.c.bf16 %v784, %v783
        %v808 = vpack.c.bf16 %v786, %v785
        %v809 = vpack.c.bf16 %v788, %v787
        %v810 = vpack.c.bf16 %v790, %v789
        %v811 = vpack.c.bf16 %v792, %v791
        %v812 = vpack.c.bf16 %v794, %v793
        %v813 = vpack.c.bf16 %v796, %v795
        %v814 = vpack.c.bf16 %v798, %v797
        %vm815 = vcmask 1040384
        %vm816 = vsmask.f32 256
        %vm817 = vmand %vm815, %vm816
        %vm818 = vcmask 1044484
        %vm819 = vsmask.f32 4352
        %vm820 = vmand %vm818, %vm819
        %vm821 = vmor %vm820, %vm817
        %v822 = vld [vmem:[#allocation2] sm:$0x11]
        %v823 = vsel %vm821, 0, %v822
        %824 = vst [vmem:[#allocation2] sm:$0x11] %v823
        %v825 = vld [vmem:[#allocation2 + $0x18] sm:$0x11]
        %v826 = vsel %vm821, 0, %v825
        %827 = vst [vmem:[#allocation2 + $0x18] sm:$0x11] %v826
        %v828 = vld [vmem:[#allocation2 + $0x30] sm:$0x11]
        %v829 = vsel %vm821, 0, %v828
        %830 = vst [vmem:[#allocation2 + $0x30] sm:$0x11] %v829
        %v831 = vld [vmem:[#allocation2 + $0x48] sm:$0x11]
        %v832 = vsel %vm821, 0, %v831
        %833 = vst [vmem:[#allocation2 + $0x48] sm:$0x11] %v832
        %v834 = vld [vmem:[#allocation2 + $0x60] sm:$0x11]
        %v835 = vsel %vm821, 0, %v834
        %836 = vst [vmem:[#allocation2 + $0x60] sm:$0x11] %v835
        %v837 = vld [vmem:[#allocation2 + $0x78] sm:$0x11]
        %v838 = vsel %vm821, 0, %v837
        %839 = vst [vmem:[#allocation2 + $0x78] sm:$0x11] %v838
        %v840 = vld [vmem:[#allocation2 + $0x90] sm:$0x11]
        %v841 = vsel %vm821, 0, %v840
        %842 = vst [vmem:[#allocation2 + $0x90] sm:$0x11] %v841
        %v843 = vld [vmem:[#allocation2 + $0xa8] sm:$0x11]
        %v844 = vsel %vm821, 0, %v843
        %845 = vst [vmem:[#allocation2 + $0xa8] sm:$0x11] %v844
        %vm846 = vsmask.f32 7938
        %vm847 = vmand %vm815, %vm846
        %vm848 = vsmask.f32 7954
        %vm849 = vmand %vm818, %vm848
        %vm850 = vmor %vm849, %vm847
        %v851 = vld [vmem:[#allocation2 + $0x10] sm:$0x11]
        %v852 = vsel %vm850, 0, %v851
        %853 = vst [vmem:[#allocation2 + $0x10] sm:$0x11] %v852
        %v854 = vld [vmem:[#allocation2 + $0x28] sm:$0x11]
        %v855 = vsel %vm850, 0, %v854
        %856 = vst [vmem:[#allocation2 + $0x28] sm:$0x11] %v855
        %v857 = vld [vmem:[#allocation2 + $0x40] sm:$0x11]
        %v858 = vsel %vm850, 0, %v857
        %859 = vst [vmem:[#allocation2 + $0x40] sm:$0x11] %v858
        %v860 = vld [vmem:[#allocation2 + $0x58] sm:$0x11]
        %v861 = vsel %vm850, 0, %v860
        %862 = vst [vmem:[#allocation2 + $0x58] sm:$0x11] %v861
        %v863 = vld [vmem:[#allocation2 + $0x70] sm:$0x11]
        %v864 = vsel %vm850, 0, %v863
        %865 = vst [vmem:[#allocation2 + $0x70] sm:$0x11] %v864
        %v866 = vld [vmem:[#allocation2 + $0x88] sm:$0x11]
        %v867 = vsel %vm850, 0, %v866
        %868 = vst [vmem:[#allocation2 + $0x88] sm:$0x11] %v867
        %v869 = vld [vmem:[#allocation2 + $0xa0] sm:$0x11]
        %v870 = vsel %vm850, 0, %v869
        %871 = vst [vmem:[#allocation2 + $0xa0] sm:$0x11] %v870
        %v872 = vld [vmem:[#allocation2 + $0xb8] sm:$0x11]
        %v873 = vsel %vm850, 0, %v872
        %874 = vst [vmem:[#allocation2 + $0xb8] sm:$0x11] %v873
        %v883 = vunpack.c.l.b16 %v799
        %v884 = vunpack.c.h.b16 %v799
        %v885 = vunpack.c.l.b16 %v800
        %v886 = vunpack.c.h.b16 %v800
        %v887 = vunpack.c.l.b16 %v801
        %v888 = vunpack.c.h.b16 %v801
        %v889 = vunpack.c.l.b16 %v802
        %v890 = vunpack.c.h.b16 %v802
        %v891 = vunpack.c.l.b16 %v803
        %v892 = vunpack.c.h.b16 %v803
        %v893 = vunpack.c.l.b16 %v804
        %v894 = vunpack.c.h.b16 %v804
        %v895 = vunpack.c.l.b16 %v805
        %v896 = vunpack.c.h.b16 %v805
        %v897 = vunpack.c.l.b16 %v806
        %v898 = vunpack.c.h.b16 %v806
        %v899 = vpack.c.b16 %v883, %v883
        %v900 = vpack.c.b16 %v884, %v884
        %v901 = vpack.c.b16 %v885, %v885
        %v902 = vpack.c.b16 %v886, %v886
        %v903 = vpack.c.b16 %v887, %v887
        %v904 = vpack.c.b16 %v888, %v888
        %v905 = vpack.c.b16 %v889, %v889
        %v906 = vpack.c.b16 %v890, %v890
        %v907 = vpack.c.b16 %v891, %v891
        %v908 = vpack.c.b16 %v892, %v892
        %v909 = vpack.c.b16 %v893, %v893
        %v910 = vpack.c.b16 %v894, %v894
        %v911 = vpack.c.b16 %v895, %v895
        %v912 = vpack.c.b16 %v896, %v896
        %v913 = vpack.c.b16 %v897, %v897
        %v914 = vpack.c.b16 %v898, %v898
        %vm915 = vsmask.f32 4368
        %vm916 = vmor %vm816, %vm915
        %v918 = vshrl.u32 %v899, 16
        %v920 = vrot.slane %v918, 7
        %v921 = vshll.u32 %v899, 16
        %v923 = vor.u32 %v920, %v921
        %v924 = vrot.slane %v920, 4
        %v926 = vshrl.u32 %v900, 16
        %v928 = vrot.slane %v926, 7
        %v929 = vshll.u32 %v900, 16
        %v931 = vor.u32 %v928, %v929
        %v932 = vsel %vm916, %v924, %v931
        %v933 = vrot.slane %v928, 4
        %v935 = vshrl.u32 %v901, 16
        %v937 = vrot.slane %v935, 7
        %v938 = vshll.u32 %v901, 16
        %v940 = vor.u32 %v937, %v938
        %v941 = vrot.slane %v937, 4
        %v943 = vshrl.u32 %v902, 16
        %v945 = vrot.slane %v943, 7
        %v946 = vshll.u32 %v902, 16
        %v948 = vor.u32 %v945, %v946
        %v949 = vsel %vm916, %v941, %v948
        %v950 = vrot.slane %v945, 4
        %v952 = vshrl.u32 %v903, 16
        %v954 = vrot.slane %v952, 7
        %v955 = vshll.u32 %v903, 16
        %v957 = vor.u32 %v954, %v955
        %v958 = vrot.slane %v954, 4
        %v960 = vshrl.u32 %v904, 16
        %v962 = vrot.slane %v960, 7
        %v963 = vshll.u32 %v904, 16
        %v965 = vor.u32 %v962, %v963
        %v966 = vsel %vm916, %v958, %v965
        %v967 = vrot.slane %v962, 4
        %v969 = vshrl.u32 %v905, 16
        %v971 = vrot.slane %v969, 7
        %v972 = vshll.u32 %v905, 16
        %v974 = vor.u32 %v971, %v972
        %v975 = vrot.slane %v971, 4
        %v977 = vshrl.u32 %v906, 16
        %v979 = vrot.slane %v977, 7
        %v980 = vshll.u32 %v906, 16
        %v982 = vor.u32 %v979, %v980
        %v983 = vsel %vm916, %v975, %v982
        %v984 = vrot.slane %v979, 4
        %v986 = vshrl.u32 %v907, 16
        %v988 = vrot.slane %v986, 7
        %v989 = vshll.u32 %v907, 16
        %v991 = vor.u32 %v988, %v989
        %v992 = vrot.slane %v988, 4
        %v994 = vshrl.u32 %v908, 16
        %v996 = vrot.slane %v994, 7
        %v997 = vshll.u32 %v908, 16
        %v999 = vor.u32 %v996, %v997
        %v1000 = vsel %vm916, %v992, %v999
        %v1001 = vrot.slane %v996, 4
        %v1003 = vshrl.u32 %v909, 16
        %v1005 = vrot.slane %v1003, 7
        %v1006 = vshll.u32 %v909, 16
        %v1008 = vor.u32 %v1005, %v1006
        %v1009 = vrot.slane %v1005, 4
        %v1011 = vshrl.u32 %v910, 16
        %v1013 = vrot.slane %v1011, 7
        %v1014 = vshll.u32 %v910, 16
        %v1016 = vor.u32 %v1013, %v1014
        %v1017 = vsel %vm916, %v1009, %v1016
        %v1018 = vrot.slane %v1013, 4
        %v1020 = vshrl.u32 %v911, 16
        %v1022 = vrot.slane %v1020, 7
        %v1023 = vshll.u32 %v911, 16
        %v1025 = vor.u32 %v1022, %v1023
        %v1026 = vrot.slane %v1022, 4
        %v1028 = vshrl.u32 %v912, 16
        %v1030 = vrot.slane %v1028, 7
        %v1031 = vshll.u32 %v912, 16
        %v1033 = vor.u32 %v1030, %v1031
        %v1034 = vsel %vm916, %v1026, %v1033
        %v1035 = vrot.slane %v1030, 4
        %v1037 = vshrl.u32 %v913, 16
        %v1039 = vrot.slane %v1037, 7
        %v1040 = vshll.u32 %v913, 16
        %v1042 = vor.u32 %v1039, %v1040
        %v1043 = vrot.slane %v1039, 4
        %v1045 = vshrl.u32 %v914, 16
        %v1047 = vrot.slane %v1045, 7
        %v1048 = vshll.u32 %v914, 16
        %v1050 = vor.u32 %v1047, %v1048
        %v1051 = vsel %vm916, %v1043, %v1050
        %v1052 = vrot.slane %v1047, 4
        %vm1077 = vcmask 1043456
        %vm1078 = vmand %vm1077, %vm846
        %v1079 = vld [vmem:[#allocation2] sm:$0xf]
        %v1080 = vsel %vm1078, %v923, %v1079
        %1081 = vst [vmem:[#allocation2] sm:$0xf] %v1080
        %1082 = vst [vmem:[#allocation2 + $0x8] sm:$0xf] %v932
        %v1083 = vld [vmem:[#allocation2 + $0x10] sm:$0x1]
        %v1084 = vsel %vm817, %v933, %v1083
        %1085 = vst [vmem:[#allocation2 + $0x10] sm:$0x1] %v1084
        %v1086 = vld [vmem:[#allocation2 + $0x18] sm:$0xf]
        %v1087 = vsel %vm1078, %v940, %v1086
        %1088 = vst [vmem:[#allocation2 + $0x18] sm:$0xf] %v1087
        %1089 = vst [vmem:[#allocation2 + $0x20] sm:$0xf] %v949
        %v1090 = vld [vmem:[#allocation2 + $0x28] sm:$0x1]
        %v1091 = vsel %vm817, %v950, %v1090
        %1092 = vst [vmem:[#allocation2 + $0x28] sm:$0x1] %v1091
        %v1093 = vld [vmem:[#allocation2 + $0x30] sm:$0xf]
        %v1094 = vsel %vm1078, %v957, %v1093
        %1095 = vst [vmem:[#allocation2 + $0x30] sm:$0xf] %v1094
        %1096 = vst [vmem:[#allocation2 + $0x38] sm:$0xf] %v966
        %v1097 = vld [vmem:[#allocation2 + $0x40] sm:$0x1]
        %v1098 = vsel %vm817, %v967, %v1097
        %1099 = vst [vmem:[#allocation2 + $0x40] sm:$0x1] %v1098
        %v1100 = vld [vmem:[#allocation2 + $0x48] sm:$0xf]
        %v1101 = vsel %vm1078, %v974, %v1100
        %1102 = vst [vmem:[#allocation2 + $0x48] sm:$0xf] %v1101
        %1103 = vst [vmem:[#allocation2 + $0x50] sm:$0xf] %v983
        %v1104 = vld [vmem:[#allocation2 + $0x58] sm:$0x1]
        %v1105 = vsel %vm817, %v984, %v1104
        %1106 = vst [vmem:[#allocation2 + $0x58] sm:$0x1] %v1105
        %v1107 = vld [vmem:[#allocation2 + $0x60] sm:$0xf]
        %v1108 = vsel %vm1078, %v991, %v1107
        %1109 = vst [vmem:[#allocation2 + $0x60] sm:$0xf] %v1108
        %1110 = vst [vmem:[#allocation2 + $0x68] sm:$0xf] %v1000
        %v1111 = vld [vmem:[#allocation2 + $0x70] sm:$0x1]
        %v1112 = vsel %vm817, %v1001, %v1111
        %1113 = vst [vmem:[#allocation2 + $0x70] sm:$0x1] %v1112
        %v1114 = vld [vmem:[#allocation2 + $0x78] sm:$0xf]
        %v1115 = vsel %vm1078, %v1008, %v1114
        %1116 = vst [vmem:[#allocation2 + $0x78] sm:$0xf] %v1115
        %1117 = vst [vmem:[#allocation2 + $0x80] sm:$0xf] %v1017
        %v1118 = vld [vmem:[#allocation2 + $0x88] sm:$0x1]
        %v1119 = vsel %vm817, %v1018, %v1118
        %1120 = vst [vmem:[#allocation2 + $0x88] sm:$0x1] %v1119
        %v1121 = vld [vmem:[#allocation2 + $0x90] sm:$0xf]
        %v1122 = vsel %vm1078, %v1025, %v1121
        %1123 = vst [vmem:[#allocation2 + $0x90] sm:$0xf] %v1122
        %1124 = vst [vmem:[#allocation2 + $0x98] sm:$0xf] %v1034
        %v1125 = vld [vmem:[#allocation2 + $0xa0] sm:$0x1]
        %v1126 = vsel %vm817, %v1035, %v1125
        %1127 = vst [vmem:[#allocation2 + $0xa0] sm:$0x1] %v1126
        %v1128 = vld [vmem:[#allocation2 + $0xa8] sm:$0xf]
        %v1129 = vsel %vm1078, %v1042, %v1128
        %1130 = vst [vmem:[#allocation2 + $0xa8] sm:$0xf] %v1129
        %1131 = vst [vmem:[#allocation2 + $0xb0] sm:$0xf] %v1051
        %v1132 = vld [vmem:[#allocation2 + $0xb8] sm:$0x1]
        %v1133 = vsel %vm817, %v1052, %v1132
        %1134 = vst [vmem:[#allocation2 + $0xb8] sm:$0x1] %v1133
        %v1143 = vunpack.c.l.b16 %v807
        %v1144 = vunpack.c.h.b16 %v807
        %v1145 = vunpack.c.l.b16 %v808
        %v1146 = vunpack.c.h.b16 %v808
        %v1147 = vunpack.c.l.b16 %v809
        %v1148 = vunpack.c.h.b16 %v809
        %v1149 = vunpack.c.l.b16 %v810
        %v1150 = vunpack.c.h.b16 %v810
        %v1151 = vunpack.c.l.b16 %v811
        %v1152 = vunpack.c.h.b16 %v811
        %v1153 = vunpack.c.l.b16 %v812
        %v1154 = vunpack.c.h.b16 %v812
        %v1155 = vunpack.c.l.b16 %v813
        %v1156 = vunpack.c.h.b16 %v813
        %v1157 = vunpack.c.l.b16 %v814
        %v1158 = vunpack.c.h.b16 %v814
        %v1159 = vpack.c.b16 %v1143, %v1143
        %v1160 = vpack.c.b16 %v1144, %v1144
        %v1161 = vpack.c.b16 %v1145, %v1145
        %v1162 = vpack.c.b16 %v1146, %v1146
        %v1163 = vpack.c.b16 %v1147, %v1147
        %v1164 = vpack.c.b16 %v1148, %v1148
        %v1165 = vpack.c.b16 %v1149, %v1149
        %v1166 = vpack.c.b16 %v1150, %v1150
        %v1167 = vpack.c.b16 %v1151, %v1151
        %v1168 = vpack.c.b16 %v1152, %v1152
        %v1169 = vpack.c.b16 %v1153, %v1153
        %v1170 = vpack.c.b16 %v1154, %v1154
        %v1171 = vpack.c.b16 %v1155, %v1155
        %v1172 = vpack.c.b16 %v1156, %v1156
        %v1173 = vpack.c.b16 %v1157, %v1157
        %v1174 = vpack.c.b16 %v1158, %v1158
        %v1176 = vshrl.u32 %v1159, 16
        %v1178 = vrot.slane %v1176, 7
        %v1179 = vshll.u32 %v1159, 16
        %v1181 = vor.u32 %v1178, %v1179
        %v1182 = vrot.slane %v1178, 4
        %v1184 = vshrl.u32 %v1160, 16
        %v1186 = vrot.slane %v1184, 7
        %v1187 = vshll.u32 %v1160, 16
        %v1189 = vor.u32 %v1186, %v1187
        %v1190 = vsel %vm916, %v1182, %v1189
        %v1191 = vrot.slane %v1186, 4
        %v1193 = vshrl.u32 %v1161, 16
        %v1195 = vrot.slane %v1193, 7
        %v1196 = vshll.u32 %v1161, 16
        %v1198 = vor.u32 %v1195, %v1196
        %v1199 = vrot.slane %v1195, 4
        %v1201 = vshrl.u32 %v1162, 16
        %v1203 = vrot.slane %v1201, 7
        %v1204 = vshll.u32 %v1162, 16
        %v1206 = vor.u32 %v1203, %v1204
        %v1207 = vsel %vm916, %v1199, %v1206
        %v1208 = vrot.slane %v1203, 4
        %v1210 = vshrl.u32 %v1163, 16
        %v1212 = vrot.slane %v1210, 7
        %v1213 = vshll.u32 %v1163, 16
        %v1215 = vor.u32 %v1212, %v1213
        %v1216 = vrot.slane %v1212, 4
        %v1218 = vshrl.u32 %v1164, 16
        %v1220 = vrot.slane %v1218, 7
        %v1221 = vshll.u32 %v1164, 16
        %v1223 = vor.u32 %v1220, %v1221
        %v1224 = vsel %vm916, %v1216, %v1223
        %v1225 = vrot.slane %v1220, 4
        %v1227 = vshrl.u32 %v1165, 16
        %v1229 = vrot.slane %v1227, 7
        %v1230 = vshll.u32 %v1165, 16
        %v1232 = vor.u32 %v1229, %v1230
        %v1233 = vrot.slane %v1229, 4
        %v1235 = vshrl.u32 %v1166, 16
        %v1237 = vrot.slane %v1235, 7
        %v1238 = vshll.u32 %v1166, 16
        %v1240 = vor.u32 %v1237, %v1238
        %v1241 = vsel %vm916, %v1233, %v1240
        %v1242 = vrot.slane %v1237, 4
        %v1244 = vshrl.u32 %v1167, 16
        %v1246 = vrot.slane %v1244, 7
        %v1247 = vshll.u32 %v1167, 16
        %v1249 = vor.u32 %v1246, %v1247
        %v1250 = vrot.slane %v1246, 4
        %v1252 = vshrl.u32 %v1168, 16
        %v1254 = vrot.slane %v1252, 7
        %v1255 = vshll.u32 %v1168, 16
        %v1257 = vor.u32 %v1254, %v1255
        %v1258 = vsel %vm916, %v1250, %v1257
        %v1259 = vrot.slane %v1254, 4
        %v1261 = vshrl.u32 %v1169, 16
        %v1263 = vrot.slane %v1261, 7
        %v1264 = vshll.u32 %v1169, 16
        %v1266 = vor.u32 %v1263, %v1264
        %v1267 = vrot.slane %v1263, 4
        %v1269 = vshrl.u32 %v1170, 16
        %v1271 = vrot.slane %v1269, 7
        %v1272 = vshll.u32 %v1170, 16
        %v1274 = vor.u32 %v1271, %v1272
        %v1275 = vsel %vm916, %v1267, %v1274
        %v1276 = vrot.slane %v1271, 4
        %v1278 = vshrl.u32 %v1171, 16
        %v1280 = vrot.slane %v1278, 7
        %v1281 = vshll.u32 %v1171, 16
        %v1283 = vor.u32 %v1280, %v1281
        %v1284 = vrot.slane %v1280, 4
        %v1286 = vshrl.u32 %v1172, 16
        %v1288 = vrot.slane %v1286, 7
        %v1289 = vshll.u32 %v1172, 16
        %v1291 = vor.u32 %v1288, %v1289
        %v1292 = vsel %vm916, %v1284, %v1291
        %v1293 = vrot.slane %v1288, 4
        %v1295 = vshrl.u32 %v1173, 16
        %v1297 = vrot.slane %v1295, 7
        %v1298 = vshll.u32 %v1173, 16
        %v1300 = vor.u32 %v1297, %v1298
        %v1301 = vrot.slane %v1297, 4
        %v1303 = vshrl.u32 %v1174, 16
        %v1305 = vrot.slane %v1303, 7
        %v1306 = vshll.u32 %v1174, 16
        %v1308 = vor.u32 %v1305, %v1306
        %v1309 = vsel %vm916, %v1301, %v1308
        %v1310 = vrot.slane %v1305, 4
        %v1335 = vld [vmem:[#allocation2 + $0x4] sm:$0xf]
        %v1336 = vsel %vm1078, %v1181, %v1335
        %1337 = vst [vmem:[#allocation2 + $0x4] sm:$0xf] %v1336
        %1338 = vst [vmem:[#allocation2 + $0xc] sm:$0xf] %v1190
        %v1339 = vld [vmem:[#allocation2 + $0x14] sm:$0x1]
        %v1340 = vsel %vm817, %v1191, %v1339
        %1341 = vst [vmem:[#allocation2 + $0x14] sm:$0x1] %v1340
        %v1342 = vld [vmem:[#allocation2 + $0x1c] sm:$0xf]
        %v1343 = vsel %vm1078, %v1198, %v1342
        %1344 = vst [vmem:[#allocation2 + $0x1c] sm:$0xf] %v1343
        %1345 = vst [vmem:[#allocation2 + $0x24] sm:$0xf] %v1207
        %v1346 = vld [vmem:[#allocation2 + $0x2c] sm:$0x1]
        %v1347 = vsel %vm817, %v1208, %v1346
        %1348 = vst [vmem:[#allocation2 + $0x2c] sm:$0x1] %v1347
        %v1349 = vld [vmem:[#allocation2 + $0x34] sm:$0xf]
        %v1350 = vsel %vm1078, %v1215, %v1349
        %1351 = vst [vmem:[#allocation2 + $0x34] sm:$0xf] %v1350
        %1352 = vst [vmem:[#allocation2 + $0x3c] sm:$0xf] %v1224
        %v1353 = vld [vmem:[#allocation2 + $0x44] sm:$0x1]
        %v1354 = vsel %vm817, %v1225, %v1353
        %1355 = vst [vmem:[#allocation2 + $0x44] sm:$0x1] %v1354
        %v1356 = vld [vmem:[#allocation2 + $0x4c] sm:$0xf]
        %v1357 = vsel %vm1078, %v1232, %v1356
        %1358 = vst [vmem:[#allocation2 + $0x4c] sm:$0xf] %v1357
        %1359 = vst [vmem:[#allocation2 + $0x54] sm:$0xf] %v1241
        %v1360 = vld [vmem:[#allocation2 + $0x5c] sm:$0x1]
        %v1361 = vsel %vm817, %v1242, %v1360
        %1362 = vst [vmem:[#allocation2 + $0x5c] sm:$0x1] %v1361
        %v1363 = vld [vmem:[#allocation2 + $0x64] sm:$0xf]
        %v1364 = vsel %vm1078, %v1249, %v1363
        %1365 = vst [vmem:[#allocation2 + $0x64] sm:$0xf] %v1364
        %1366 = vst [vmem:[#allocation2 + $0x6c] sm:$0xf] %v1258
        %v1367 = vld [vmem:[#allocation2 + $0x74] sm:$0x1]
        %v1368 = vsel %vm817, %v1259, %v1367
        %1369 = vst [vmem:[#allocation2 + $0x74] sm:$0x1] %v1368
        %v1370 = vld [vmem:[#allocation2 + $0x7c] sm:$0xf]
        %v1371 = vsel %vm1078, %v1266, %v1370
        %1372 = vst [vmem:[#allocation2 + $0x7c] sm:$0xf] %v1371
        %1373 = vst [vmem:[#allocation2 + $0x84] sm:$0xf] %v1275
        %v1374 = vld [vmem:[#allocation2 + $0x8c] sm:$0x1]
        %v1375 = vsel %vm817, %v1276, %v1374
        %1376 = vst [vmem:[#allocation2 + $0x8c] sm:$0x1] %v1375
        %v1377 = vld [vmem:[#allocation2 + $0x94] sm:$0xf]
        %v1378 = vsel %vm1078, %v1283, %v1377
        %1379 = vst [vmem:[#allocation2 + $0x94] sm:$0xf] %v1378
        %1380 = vst [vmem:[#allocation2 + $0x9c] sm:$0xf] %v1292
        %v1381 = vld [vmem:[#allocation2 + $0xa4] sm:$0x1]
        %v1382 = vsel %vm817, %v1293, %v1381
        %1383 = vst [vmem:[#allocation2 + $0xa4] sm:$0x1] %v1382
        %v1384 = vld [vmem:[#allocation2 + $0xac] sm:$0xf]
        %v1385 = vsel %vm1078, %v1300, %v1384
        %1386 = vst [vmem:[#allocation2 + $0xac] sm:$0xf] %v1385
        %1387 = vst [vmem:[#allocation2 + $0xb4] sm:$0xf] %v1309
        %v1388 = vld [vmem:[#allocation2 + $0xbc] sm:$0x1]
        %v1389 = vsel %vm817, %v1310, %v1388
        %1390 = vst [vmem:[#allocation2 + $0xbc] sm:$0x1] %v1389
        %v1391 = vld [vmem:[#allocation2 + $0x4] sm:$0xf]
        %v1392 = vld [vmem:[#allocation2 + $0xc] sm:$0xf]
        %v1393 = vld [vmem:[#allocation2 + $0x1c] sm:$0xf]
        %v1394 = vld [vmem:[#allocation2 + $0x24] sm:$0xf]
        %v1395 = vld [vmem:[#allocation2 + $0x34] sm:$0xf]
        %v1396 = vld [vmem:[#allocation2 + $0x3c] sm:$0xf]
        %v1397 = vld [vmem:[#allocation2 + $0x4c] sm:$0xf]
        %v1398 = vld [vmem:[#allocation2 + $0x54] sm:$0xf]
        %v1399 = vld [vmem:[#allocation2 + $0x64] sm:$0xf]
        %v1400 = vld [vmem:[#allocation2 + $0x6c] sm:$0xf]
        %v1401 = vld [vmem:[#allocation2 + $0x7c] sm:$0xf]
        %v1402 = vld [vmem:[#allocation2 + $0x84] sm:$0xf]
        %v1403 = vld [vmem:[#allocation2 + $0x94] sm:$0xf]
        %v1404 = vld [vmem:[#allocation2 + $0x9c] sm:$0xf]
        %v1405 = vld [vmem:[#allocation2 + $0xac] sm:$0xf]
        %v1406 = vld [vmem:[#allocation2 + $0xb4] sm:$0xf]
        %v1407 = vld [vmem:[#allocation2] sm:$0xe]
        %v1408 = vld [vmem:[#allocation2 + $0x8] sm:$0xf]
        %v1409 = vld [vmem:[#allocation2 + $0x10] sm:$0x1]
        %v1410 = vld [vmem:[#allocation2 + $0x18] sm:$0xe]
        %v1411 = vld [vmem:[#allocation2 + $0x20] sm:$0xf]
        %v1412 = vld [vmem:[#allocation2 + $0x28] sm:$0x1]
        %v1413 = vld [vmem:[#allocation2 + $0x30] sm:$0xe]
        %v1414 = vld [vmem:[#allocation2 + $0x38] sm:$0xf]
        %v1415 = vld [vmem:[#allocation2 + $0x40] sm:$0x1]
        %v1416 = vld [vmem:[#allocation2 + $0x48] sm:$0xe]
        %v1417 = vld [vmem:[#allocation2 + $0x50] sm:$0xf]
        %v1418 = vld [vmem:[#allocation2 + $0x58] sm:$0x1]
        %v1419 = vld [vmem:[#allocation2 + $0x60] sm:$0xe]
        %v1420 = vld [vmem:[#allocation2 + $0x68] sm:$0xf]
        %v1421 = vld [vmem:[#allocation2 + $0x70] sm:$0x1]
        %v1422 = vld [vmem:[#allocation2 + $0x78] sm:$0xe]
        %v1423 = vld [vmem:[#allocation2 + $0x80] sm:$0xf]
        %v1424 = vld [vmem:[#allocation2 + $0x88] sm:$0x1]
        %v1425 = vld [vmem:[#allocation2 + $0x90] sm:$0xe]
        %v1426 = vld [vmem:[#allocation2 + $0x98] sm:$0xf]
        %v1427 = vld [vmem:[#allocation2 + $0xa0] sm:$0x1]
        %v1428 = vld [vmem:[#allocation2 + $0xa8] sm:$0xe]
        %v1429 = vld [vmem:[#allocation2 + $0xb0] sm:$0xf]
        %v1430 = vld [vmem:[#allocation2 + $0xb8] sm:$0x1]
        %vm1455 = vcmask 1042432
        %vm1456 = vcmask 1046532
        %vm1457 = vmor %vm1455, %vm1456
        %v1458 = vrot.slane %v1407, 5
        %v1459 = vrot.slane %v1458, 4
        %v1460 = vrot.slane %v1408, 5
        %v1461 = vsel %vm1457, %v1459, %v1460
        %v1462 = vrot.slane %v1460, 4
        %v1463 = vrot.slane %v1409, 5
        %v1464 = vsel %vm1457, %v1462, %v1463
        %v1465 = vrot.slane %v1410, 5
        %v1466 = vrot.slane %v1465, 4
        %v1467 = vrot.slane %v1411, 5
        %v1468 = vsel %vm1457, %v1466, %v1467
        %v1469 = vrot.slane %v1467, 4
        %v1470 = vrot.slane %v1412, 5
        %v1471 = vsel %vm1457, %v1469, %v1470
        %v1472 = vrot.slane %v1413, 5
        %v1473 = vrot.slane %v1472, 4
        %v1474 = vrot.slane %v1414, 5
        %v1475 = vsel %vm1457, %v1473, %v1474
        %v1476 = vrot.slane %v1474, 4
        %v1477 = vrot.slane %v1415, 5
        %v1478 = vsel %vm1457, %v1476, %v1477
        %v1479 = vrot.slane %v1416, 5
        %v1480 = vrot.slane %v1479, 4
        %v1481 = vrot.slane %v1417, 5
        %v1482 = vsel %vm1457, %v1480, %v1481
        %v1483 = vrot.slane %v1481, 4
        %v1484 = vrot.slane %v1418, 5
        %v1485 = vsel %vm1457, %v1483, %v1484
        %v1486 = vrot.slane %v1419, 5
        %v1487 = vrot.slane %v1486, 4
        %v1488 = vrot.slane %v1420, 5
        %v1489 = vsel %vm1457, %v1487, %v1488
        %v1490 = vrot.slane %v1488, 4
        %v1491 = vrot.slane %v1421, 5
        %v1492 = vsel %vm1457, %v1490, %v1491
        %v1493 = vrot.slane %v1422, 5
        %v1494 = vrot.slane %v1493, 4
        %v1495 = vrot.slane %v1423, 5
        %v1496 = vsel %vm1457, %v1494, %v1495
        %v1497 = vrot.slane %v1495, 4
        %v1498 = vrot.slane %v1424, 5
        %v1499 = vsel %vm1457, %v1497, %v1498
        %v1500 = vrot.slane %v1425, 5
        %v1501 = vrot.slane %v1500, 4
        %v1502 = vrot.slane %v1426, 5
        %v1503 = vsel %vm1457, %v1501, %v1502
        %v1504 = vrot.slane %v1502, 4
        %v1505 = vrot.slane %v1427, 5
        %v1506 = vsel %vm1457, %v1504, %v1505
        %v1507 = vrot.slane %v1428, 5
        %v1508 = vrot.slane %v1507, 4
        %v1509 = vrot.slane %v1429, 5
        %v1510 = vsel %vm1457, %v1508, %v1509
        %v1511 = vrot.slane %v1509, 4
        %v1512 = vrot.slane %v1430, 5
        %v1513 = vsel %vm1457, %v1511, %v1512
        %v1514 = vld [vmem:[#allocation4] sm:$0xf]
        %v1515 = vld [vmem:[#allocation4 + $0x4] sm:$0xf]
        %v1516 = vld [vmem:[#allocation4 + $0x8] sm:$0xf]
        %v1517 = vld [vmem:[#allocation4 + $0xc] sm:$0xf]
        %v1518 = vld [vmem:[#allocation4 + $0x10] sm:$0xf]
        %v1519 = vld [vmem:[#allocation4 + $0x14] sm:$0xf]
        %v1520 = vld [vmem:[#allocation4 + $0x18] sm:$0xf]
        %v1521 = vld [vmem:[#allocation4 + $0x1c] sm:$0xf]
        %v1522 = vld [vmem:[#allocation4 + $0x20] sm:$0xf]
        %v1523 = vld [vmem:[#allocation4 + $0x24] sm:$0xf]
        %v1524 = vld [vmem:[#allocation4 + $0x28] sm:$0xf]
        %v1525 = vld [vmem:[#allocation4 + $0x2c] sm:$0xf]
        %v1526 = vld [vmem:[#allocation4 + $0x30] sm:$0xf]
        %v1527 = vld [vmem:[#allocation4 + $0x34] sm:$0xf]
        %v1528 = vld [vmem:[#allocation4 + $0x38] sm:$0xf]
        %v1529 = vld [vmem:[#allocation4 + $0x3c] sm:$0xf]
        %v1530 = vld [vmem:[#allocation4 + $0x40] sm:$0xf]
        %v1531 = vld [vmem:[#allocation4 + $0x44] sm:$0xf]
        %v1532 = vld [vmem:[#allocation4 + $0x48] sm:$0xf]
        %v1533 = vld [vmem:[#allocation4 + $0x4c] sm:$0xf]
        %v1534 = vld [vmem:[#allocation4 + $0x50] sm:$0xf]
        %v1535 = vld [vmem:[#allocation4 + $0x54] sm:$0xf]
        %v1536 = vld [vmem:[#allocation4 + $0x58] sm:$0xf]
        %v1537 = vld [vmem:[#allocation4 + $0x5c] sm:$0xf]
        %v1538 = vld [vmem:[#allocation4 + $0x60] sm:$0xf]
        %v1539 = vld [vmem:[#allocation4 + $0x64] sm:$0xf]
        %v1540 = vld [vmem:[#allocation4 + $0x68] sm:$0xf]
        %v1541 = vld [vmem:[#allocation4 + $0x6c] sm:$0xf]
        %v1542 = vld [vmem:[#allocation4 + $0x70] sm:$0xf]
        %v1543 = vld [vmem:[#allocation4 + $0x74] sm:$0xf]
        %v1544 = vld [vmem:[#allocation4 + $0x78] sm:$0xf]
        %v1545 = vld [vmem:[#allocation4 + $0x7c] sm:$0xf]
        %v1562 = vunpack.c.l.b16 %v1530
        %v1563 = vunpack.c.l.b16 %v1531
        %v1564 = vunpack.c.l.b16 %v1532
        %v1565 = vunpack.c.l.b16 %v1533
        %v1566 = vunpack.c.l.b16 %v1534
        %v1567 = vunpack.c.l.b16 %v1535
        %v1568 = vunpack.c.l.b16 %v1536
        %v1569 = vunpack.c.l.b16 %v1537
        %v1570 = vunpack.c.l.b16 %v1538
        %v1571 = vunpack.c.l.b16 %v1539
        %v1572 = vunpack.c.l.b16 %v1540
        %v1573 = vunpack.c.l.b16 %v1541
        %v1574 = vunpack.c.l.b16 %v1542
        %v1575 = vunpack.c.l.b16 %v1543
        %v1576 = vunpack.c.l.b16 %v1544
        %v1577 = vunpack.c.l.b16 %v1545
        %v1578 = vpack.c.b16 %v1563, %v1562
        %v1579 = vpack.c.b16 %v1565, %v1564
        %v1580 = vpack.c.b16 %v1567, %v1566
        %v1581 = vpack.c.b16 %v1569, %v1568
        %v1582 = vpack.c.b16 %v1571, %v1570
        %v1583 = vpack.c.b16 %v1573, %v1572
        %v1584 = vpack.c.b16 %v1575, %v1574
        %v1585 = vpack.c.b16 %v1577, %v1576
        %1594 = vmatprep.subr.bf16.mxu0 0
        %1595 = vmatpush1.bf16.msra.mxu0 %v1578
        %1596 = vmatprep.subr.bf16.mxu0 0
        %1597 = vmatpush1.bf16.msra.mxu0 %v1579
        %1598 = vmatprep.subr.bf16.mxu0 0
        %1599 = vmatpush1.bf16.msra.mxu0 %v1580
        %1600 = vmatprep.subr.bf16.mxu0 0
        %1601 = vmatpush1.bf16.msra.mxu0 %v1581
        %1602 = vmatprep.subr.bf16.mxu0 0
        %1603 = vmatpush1.bf16.msra.mxu0 %v1582
        %1604 = vmatprep.subr.bf16.mxu0 0
        %1605 = vmatpush1.bf16.msra.mxu0 %v1583
        %1606 = vmatprep.subr.bf16.mxu0 0
        %1607 = vmatpush1.bf16.msra.mxu0 %v1584
        %1608 = vmatprep.subr.bf16.mxu0 0
        %1609 = vmatpush1.bf16.msra.mxu0 %v1585
        %1610 = vmatprep.subr.bf16.mxu0 0
        %1611 = vmatpush1.bf16.msra.mxu0 0
        %1612 = vmatprep.subr.bf16.mxu0 0
        %1613 = vmatpush1.bf16.msra.mxu0 0
        %1614 = vmatprep.subr.bf16.mxu0 0
        %1615 = vmatpush1.bf16.msra.mxu0 0
        %1616 = vmatprep.subr.bf16.mxu0 0
        %1617 = vmatpush1.bf16.msra.mxu0 0
        %1618 = vmatprep.subr.bf16.mxu0 0
        %1619 = vmatpush1.bf16.msra.mxu0 0
        %1620 = vmatprep.subr.bf16.mxu0 0
        %1621 = vmatpush1.bf16.msra.mxu0 0
        %1622 = vmatprep.subr.bf16.mxu0 0
        %1623 = vmatpush1.bf16.msra.mxu0 0
        %1624 = vmatprep.subr.bf16.mxu0 0
        %1625 = vmatpush1.bf16.msra.mxu0 0
        %1626 = vmatprep.mubr.bf16.mxu0 0
        %1627 = vmatmul.mubr.bf16.gmra.mrb[0].mxu0 %v807
        %v1628 = vpop.f32.mrb[0].mxu0
        %v1629 = vadd.f32 0.0, %v1628
        %v1630 = vpop.f32.mrb[0].mxu0
        %v1631 = vpop.f32.mrb[0].mxu0
        %v1632 = vadd.f32 0.0, %v1631
        %v1633 = vpop.f32.mrb[0].mxu0
        %1634 = vmatprep.mubr.bf16.mxu0 0
        %1635 = vmatmul.mubr.bf16.gmra.mrb[0].mxu0 %v808
        %v1636 = vpop.f32.mrb[0].mxu0
        %v1637 = vadd.f32 0.0, %v1636
        %v1638 = vpop.f32.mrb[0].mxu0
        %v1639 = vpop.f32.mrb[0].mxu0
        %v1640 = vadd.f32 0.0, %v1639
        %v1641 = vpop.f32.mrb[0].mxu0
        %1642 = vmatprep.mubr.bf16.mxu0 0
        %1643 = vmatmul.mubr.bf16.gmra.mrb[0].mxu0 %v809
        %v1644 = vpop.f32.mrb[0].mxu0
        %v1645 = vadd.f32 0.0, %v1644
        %v1646 = vpop.f32.mrb[0].mxu0
        %v1647 = vpop.f32.mrb[0].mxu0
        %v1648 = vadd.f32 0.0, %v1647
        %v1649 = vpop.f32.mrb[0].mxu0
        %1650 = vmatprep.mubr.bf16.mxu0 0
        %1651 = vmatmul.mubr.bf16.gmra.mrb[0].mxu0 %v810
        %v1652 = vpop.f32.mrb[0].mxu0
        %v1653 = vadd.f32 0.0, %v1652
        %v1654 = vpop.f32.mrb[0].mxu0
        %v1655 = vpop.f32.mrb[0].mxu0
        %v1656 = vadd.f32 0.0, %v1655
        %v1657 = vpop.f32.mrb[0].mxu0
        %1658 = vmatprep.mubr.bf16.mxu0 0
        %1659 = vmatmul.mubr.bf16.gmra.mrb[0].mxu0 %v811
        %v1660 = vpop.f32.mrb[0].mxu0
        %v1661 = vadd.f32 0.0, %v1660
        %v1662 = vpop.f32.mrb[0].mxu0
        %v1663 = vpop.f32.mrb[0].mxu0
        %v1664 = vadd.f32 0.0, %v1663
        %v1665 = vpop.f32.mrb[0].mxu0
        %1666 = vmatprep.mubr.bf16.mxu0 0
        %1667 = vmatmul.mubr.bf16.gmra.mrb[0].mxu0 %v812
        %v1668 = vpop.f32.mrb[0].mxu0
        %v1669 = vadd.f32 0.0, %v1668
        %v1670 = vpop.f32.mrb[0].mxu0
        %v1671 = vpop.f32.mrb[0].mxu0
        %v1672 = vadd.f32 0.0, %v1671
        %v1673 = vpop.f32.mrb[0].mxu0
        %1674 = vmatprep.mubr.bf16.mxu0 0
        %1675 = vmatmul.mubr.bf16.gmra.mrb[0].mxu0 %v813
        %v1676 = vpop.f32.mrb[0].mxu0
        %v1677 = vadd.f32 0.0, %v1676
        %v1678 = vpop.f32.mrb[0].mxu0
        %v1679 = vpop.f32.mrb[0].mxu0
        %v1680 = vadd.f32 0.0, %v1679
        %v1681 = vpop.f32.mrb[0].mxu0
        %1682 = vmatprep.mubr.bf16.mxu0 0
        %1683 = vmatmul.mubr.bf16.gmra.mrb[0].mxu0 %v814
        %v1684 = vpop.f32.mrb[0].mxu0
        %v1685 = vadd.f32 0.0, %v1684
        %v1686 = vpop.f32.mrb[0].mxu0
        %v1687 = vpop.f32.mrb[0].mxu0
        %v1688 = vadd.f32 0.0, %v1687
        %v1689 = vpop.f32.mrb[0].mxu0
        %1690 = vdwg.mxu0
        %v1707 = vunpack.c.l.b16 %v1514
        %v1708 = vunpack.c.l.b16 %v1515
        %v1709 = vunpack.c.l.b16 %v1516
        %v1710 = vunpack.c.l.b16 %v1517
        %v1711 = vunpack.c.l.b16 %v1518
        %v1712 = vunpack.c.l.b16 %v1519
        %v1713 = vunpack.c.l.b16 %v1520
        %v1714 = vunpack.c.l.b16 %v1521
        %v1715 = vunpack.c.l.b16 %v1522
        %v1716 = vunpack.c.l.b16 %v1523
        %v1717 = vunpack.c.l.b16 %v1524
        %v1718 = vunpack.c.l.b16 %v1525
        %v1719 = vunpack.c.l.b16 %v1526
        %v1720 = vunpack.c.l.b16 %v1527
        %v1721 = vunpack.c.l.b16 %v1528
        %v1722 = vunpack.c.l.b16 %v1529
        %v1723 = vpack.c.b16 %v1708, %v1707
        %v1724 = vpack.c.b16 %v1710, %v1709
        %v1725 = vpack.c.b16 %v1712, %v1711
        %v1726 = vpack.c.b16 %v1714, %v1713
        %v1727 = vpack.c.b16 %v1716, %v1715
        %v1728 = vpack.c.b16 %v1718, %v1717
        %v1729 = vpack.c.b16 %v1720, %v1719
        %v1730 = vpack.c.b16 %v1722, %v1721
        %1739 = vmatprep.subr.bf16.mxu0 0
        %1740 = vmatpush1.bf16.msra.mxu0 %v1723
        %1741 = vmatprep.subr.bf16.mxu0 0
        %1742 = vmatpush1.bf16.msra.mxu0 %v1724
        %1743 = vmatprep.subr.bf16.mxu0 0
        %1744 = vmatpush1.bf16.msra.mxu0 %v1725
        %1745 = vmatprep.subr.bf16.mxu0 0
        %1746 = vmatpush1.bf16.msra.mxu0 %v1726
        %1747 = vmatprep.subr.bf16.mxu0 0
        %1748 = vmatpush1.bf16.msra.mxu0 %v1727
        %1749 = vmatprep.subr.bf16.mxu0 0
        %1750 = vmatpush1.bf16.msra.mxu0 %v1728
        %1751 = vmatprep.subr.bf16.mxu0 0
        %1752 = vmatpush1.bf16.msra.mxu0 %v1729
        %1753 = vmatprep.subr.bf16.mxu0 0
        %1754 = vmatpush1.bf16.msra.mxu0 %v1730
        %1755 = vmatprep.subr.bf16.mxu0 0
        %1756 = vmatpush1.bf16.msra.mxu0 0
        %1757 = vmatprep.subr.bf16.mxu0 0
        %1758 = vmatpush1.bf16.msra.mxu0 0
        %1759 = vmatprep.subr.bf16.mxu0 0
        %1760 = vmatpush1.bf16.msra.mxu0 0
        %1761 = vmatprep.subr.bf16.mxu0 0
        %1762 = vmatpush1.bf16.msra.mxu0 0
        %1763 = vmatprep.subr.bf16.mxu0 0
        %1764 = vmatpush1.bf16.msra.mxu0 0
        %1765 = vmatprep.subr.bf16.mxu0 0
        %1766 = vmatpush1.bf16.msra.mxu0 0
        %1767 = vmatprep.subr.bf16.mxu0 0
        %1768 = vmatpush1.bf16.msra.mxu0 0
        %1769 = vmatprep.subr.bf16.mxu0 0
        %1770 = vmatpush1.bf16.msra.mxu0 0
        %1771 = vmatprep.mubr.bf16.mxu0 0
        %1772 = vmatmul.mubr.bf16.gmra.mrb[0].mxu0 %v799
        %v1773 = vpop.f32.mrb[0].mxu0
        %v1774 = vadd.f32 %v1629, %v1773
        %v1775 = vpop.f32.mrb[0].mxu0
        %v1776 = vpop.f32.mrb[0].mxu0
        %v1777 = vadd.f32 %v1632, %v1776
        %v1778 = vpop.f32.mrb[0].mxu0
        %1779 = vmatprep.mubr.bf16.mxu0 0
        %1780 = vmatmul.mubr.bf16.gmra.mrb[0].mxu0 %v800
        %v1781 = vpop.f32.mrb[0].mxu0
        %v1782 = vadd.f32 %v1637, %v1781
        %v1783 = vpop.f32.mrb[0].mxu0
        %v1784 = vpop.f32.mrb[0].mxu0
        %v1785 = vadd.f32 %v1640, %v1784
        %v1786 = vpop.f32.mrb[0].mxu0
        %1787 = vmatprep.mubr.bf16.mxu0 0
        %1788 = vmatmul.mubr.bf16.gmra.mrb[0].mxu0 %v801
        %v1789 = vpop.f32.mrb[0].mxu0
        %v1790 = vadd.f32 %v1645, %v1789
        %v1791 = vpop.f32.mrb[0].mxu0
        %v1792 = vpop.f32.mrb[0].mxu0
        %v1793 = vadd.f32 %v1648, %v1792
        %v1794 = vpop.f32.mrb[0].mxu0
        %1795 = vmatprep.mubr.bf16.mxu0 0
        %1796 = vmatmul.mubr.bf16.gmra.mrb[0].mxu0 %v802
        %v1797 = vpop.f32.mrb[0].mxu0
        %v1798 = vadd.f32 %v1653, %v1797
        %v1799 = vpop.f32.mrb[0].mxu0
        %v1800 = vpop.f32.mrb[0].mxu0
        %v1801 = vadd.f32 %v1656, %v1800
        %v1802 = vpop.f32.mrb[0].mxu0
        %1803 = vmatprep.mubr.bf16.mxu0 0
        %1804 = vmatmul.mubr.bf16.gmra.mrb[0].mxu0 %v803
        %v1805 = vpop.f32.mrb[0].mxu0
        %v1806 = vadd.f32 %v1661, %v1805
        %v1807 = vpop.f32.mrb[0].mxu0
        %v1808 = vpop.f32.mrb[0].mxu0
        %v1809 = vadd.f32 %v1664, %v1808
        %v1810 = vpop.f32.mrb[0].mxu0
        %1811 = vmatprep.mubr.bf16.mxu0 0
        %1812 = vmatmul.mubr.bf16.gmra.mrb[0].mxu0 %v804
        %v1813 = vpop.f32.mrb[0].mxu0
        %v1814 = vadd.f32 %v1669, %v1813
        %v1815 = vpop.f32.mrb[0].mxu0
        %v1816 = vpop.f32.mrb[0].mxu0
        %v1817 = vadd.f32 %v1672, %v1816
        %v1818 = vpop.f32.mrb[0].mxu0
        %1819 = vmatprep.mubr.bf16.mxu0 0
        %1820 = vmatmul.mubr.bf16.gmra.mrb[0].mxu0 %v805
        %v1821 = vpop.f32.mrb[0].mxu0
        %v1822 = vadd.f32 %v1677, %v1821
        %v1823 = vpop.f32.mrb[0].mxu0
        %v1824 = vpop.f32.mrb[0].mxu0
        %v1825 = vadd.f32 %v1680, %v1824
        %v1826 = vpop.f32.mrb[0].mxu0
        %1827 = vmatprep.mubr.bf16.mxu0 0
        %1828 = vmatmul.mubr.bf16.gmra.mrb[0].mxu0 %v806
        %v1829 = vpop.f32.mrb[0].mxu0
        %v1830 = vadd.f32 %v1685, %v1829
        %v1831 = vpop.f32.mrb[0].mxu0
        %v1832 = vpop.f32.mrb[0].mxu0
        %v1833 = vadd.f32 %v1688, %v1832
        %v1834 = vpop.f32.mrb[0].mxu0
        %1835 = vdwg.mxu0
        %v1836 = vld [vmem:[#allocation4 + $0x80] sm:$0xf]
        %v1837 = vld [vmem:[#allocation4 + $0x84] sm:$0xf]
        %v1838 = vld [vmem:[#allocation4 + $0x88] sm:$0xf]
        %v1839 = vld [vmem:[#allocation4 + $0x8c] sm:$0xf]
        %v1840 = vld [vmem:[#allocation4 + $0x90] sm:$0xf]
        %v1841 = vld [vmem:[#allocation4 + $0x94] sm:$0xf]
        %v1842 = vld [vmem:[#allocation4 + $0x98] sm:$0xf]
        %v1843 = vld [vmem:[#allocation4 + $0x9c] sm:$0xf]
        %v1844 = vld [vmem:[#allocation4 + $0xa0] sm:$0xf]
        %v1845 = vld [vmem:[#allocation4 + $0xa4] sm:$0xf]
        %v1846 = vld [vmem:[#allocation4 + $0xa8] sm:$0xf]
        %v1847 = vld [vmem:[#allocation4 + $0xac] sm:$0xf]
        %v1848 = vld [vmem:[#allocation4 + $0xb0] sm:$0xf]
        %v1849 = vld [vmem:[#allocation4 + $0xb4] sm:$0xf]
        %v1850 = vld [vmem:[#allocation4 + $0xb8] sm:$0xf]
        %v1851 = vld [vmem:[#allocation4 + $0xbc] sm:$0xf]
        %v1868 = vunpack.c.l.b16 %v1391
        %v1869 = vunpack.c.l.b16 %v1392
        %v1870 = vunpack.c.l.b16 %v1393
        %v1871 = vunpack.c.l.b16 %v1394
        %v1872 = vunpack.c.l.b16 %v1395
        %v1873 = vunpack.c.l.b16 %v1396
        %v1874 = vunpack.c.l.b16 %v1397
        %v1875 = vunpack.c.l.b16 %v1398
        %v1876 = vunpack.c.l.b16 %v1399
        %v1877 = vunpack.c.l.b16 %v1400
        %v1878 = vunpack.c.l.b16 %v1401
        %v1879 = vunpack.c.l.b16 %v1402
        %v1880 = vunpack.c.l.b16 %v1403
        %v1881 = vunpack.c.l.b16 %v1404
        %v1882 = vunpack.c.l.b16 %v1405
        %v1883 = vunpack.c.l.b16 %v1406
        %v1884 = vpack.c.b16 %v1869, %v1868
        %v1885 = vpack.c.b16 %v1871, %v1870
        %v1886 = vpack.c.b16 %v1873, %v1872
        %v1887 = vpack.c.b16 %v1875, %v1874
        %v1888 = vpack.c.b16 %v1877, %v1876
        %v1889 = vpack.c.b16 %v1879, %v1878
        %v1890 = vpack.c.b16 %v1881, %v1880
        %v1891 = vpack.c.b16 %v1883, %v1882
        %v1916 = vunpack.c.l.b16 %v1836
        %v1917 = vunpack.c.l.b16 %v1837
        %v1918 = vunpack.c.l.b16 %v1838
        %v1919 = vunpack.c.l.b16 %v1839
        %v1920 = vunpack.c.l.b16 %v1840
        %v1921 = vunpack.c.l.b16 %v1841
        %v1922 = vunpack.c.l.b16 %v1842
        %v1923 = vunpack.c.l.b16 %v1843
        %v1924 = vunpack.c.l.b16 %v1844
        %v1925 = vunpack.c.l.b16 %v1845
        %v1926 = vunpack.c.l.b16 %v1846
        %v1927 = vunpack.c.l.b16 %v1847
        %v1928 = vunpack.c.l.b16 %v1848
        %v1929 = vunpack.c.l.b16 %v1849
        %v1930 = vunpack.c.l.b16 %v1850
        %v1931 = vunpack.c.l.b16 %v1851
        %v1932 = vpack.c.b16 %v1917, %v1916
        %v1933 = vpack.c.b16 %v1919, %v1918
        %v1934 = vpack.c.b16 %v1921, %v1920
        %v1935 = vpack.c.b16 %v1923, %v1922
        %v1936 = vpack.c.b16 %v1925, %v1924
        %v1937 = vpack.c.b16 %v1927, %v1926
        %v1938 = vpack.c.b16 %v1929, %v1928
        %v1939 = vpack.c.b16 %v1931, %v1930
        %1948 = vmatprep.subr.bf16.mxu0 0
        %1949 = vmatpush1.bf16.msra.mxu0 %v1932
        %1950 = vmatprep.subr.bf16.mxu0 0
        %1951 = vmatpush1.bf16.msra.mxu0 %v1933
        %1952 = vmatprep.subr.bf16.mxu0 0
        %1953 = vmatpush1.bf16.msra.mxu0 %v1934
        %1954 = vmatprep.subr.bf16.mxu0 0
        %1955 = vmatpush1.bf16.msra.mxu0 %v1935
        %1956 = vmatprep.subr.bf16.mxu0 0
        %1957 = vmatpush1.bf16.msra.mxu0 %v1936
        %1958 = vmatprep.subr.bf16.mxu0 0
        %1959 = vmatpush1.bf16.msra.mxu0 %v1937
        %1960 = vmatprep.subr.bf16.mxu0 0
        %1961 = vmatpush1.bf16.msra.mxu0 %v1938
        %1962 = vmatprep.subr.bf16.mxu0 0
        %1963 = vmatpush1.bf16.msra.mxu0 %v1939
        %1964 = vmatprep.subr.bf16.mxu0 0
        %1965 = vmatpush1.bf16.msra.mxu0 0
        %1966 = vmatprep.subr.bf16.mxu0 0
        %1967 = vmatpush1.bf16.msra.mxu0 0
        %1968 = vmatprep.subr.bf16.mxu0 0
        %1969 = vmatpush1.bf16.msra.mxu0 0
        %1970 = vmatprep.subr.bf16.mxu0 0
        %1971 = vmatpush1.bf16.msra.mxu0 0
        %1972 = vmatprep.subr.bf16.mxu0 0
        %1973 = vmatpush1.bf16.msra.mxu0 0
        %1974 = vmatprep.subr.bf16.mxu0 0
        %1975 = vmatpush1.bf16.msra.mxu0 0
        %1976 = vmatprep.subr.bf16.mxu0 0
        %1977 = vmatpush1.bf16.msra.mxu0 0
        %1978 = vmatprep.subr.bf16.mxu0 0
        %1979 = vmatpush1.bf16.msra.mxu0 0
        %1980 = vmatprep.mubr.bf16.mxu0 0
        %1981 = vmatmul.mubr.bf16.gmra.mrb[0].mxu0 %v1884
        %v1982 = vpop.f32.mrb[0].mxu0
        %v1983 = vadd.f32 0.0, %v1982
        %v1984 = vpop.f32.mrb[0].mxu0
        %v1985 = vpop.f32.mrb[0].mxu0
        %v1986 = vadd.f32 0.0, %v1985
        %v1987 = vpop.f32.mrb[0].mxu0
        %1988 = vmatprep.mubr.bf16.mxu0 0
        %1989 = vmatmul.mubr.bf16.gmra.mrb[0].mxu0 %v1885
        %v1990 = vpop.f32.mrb[0].mxu0
        %v1991 = vadd.f32 0.0, %v1990
        %v1992 = vpop.f32.mrb[0].mxu0
        %v1993 = vpop.f32.mrb[0].mxu0
        %v1994 = vadd.f32 0.0, %v1993
        %v1995 = vpop.f32.mrb[0].mxu0
        %1996 = vmatprep.mubr.bf16.mxu0 0
        %1997 = vmatmul.mubr.bf16.gmra.mrb[0].mxu0 %v1886
        %v1998 = vpop.f32.mrb[0].mxu0
        %v1999 = vadd.f32 0.0, %v1998
        %v2000 = vpop.f32.mrb[0].mxu0
        %v2001 = vpop.f32.mrb[0].mxu0
        %v2002 = vadd.f32 0.0, %v2001
        %v2003 = vpop.f32.mrb[0].mxu0
        %2004 = vmatprep.mubr.bf16.mxu0 0
        %2005 = vmatmul.mubr.bf16.gmra.mrb[0].mxu0 %v1887
        %v2006 = vpop.f32.mrb[0].mxu0
        %v2007 = vadd.f32 0.0, %v2006
        %v2008 = vpop.f32.mrb[0].mxu0
        %v2009 = vpop.f32.mrb[0].mxu0
        %v2010 = vadd.f32 0.0, %v2009
        %v2011 = vpop.f32.mrb[0].mxu0
        %2012 = vmatprep.mubr.bf16.mxu0 0
        %2013 = vmatmul.mubr.bf16.gmra.mrb[0].mxu0 %v1888
        %v2014 = vpop.f32.mrb[0].mxu0
        %v2015 = vadd.f32 0.0, %v2014
        %v2016 = vpop.f32.mrb[0].mxu0
        %v2017 = vpop.f32.mrb[0].mxu0
        %v2018 = vadd.f32 0.0, %v2017
        %v2019 = vpop.f32.mrb[0].mxu0
        %2020 = vmatprep.mubr.bf16.mxu0 0
        %2021 = vmatmul.mubr.bf16.gmra.mrb[0].mxu0 %v1889
        %v2022 = vpop.f32.mrb[0].mxu0
        %v2023 = vadd.f32 0.0, %v2022
        %v2024 = vpop.f32.mrb[0].mxu0
        %v2025 = vpop.f32.mrb[0].mxu0
        %v2026 = vadd.f32 0.0, %v2025
        %v2027 = vpop.f32.mrb[0].mxu0
        %2028 = vmatprep.mubr.bf16.mxu0 0
        %2029 = vmatmul.mubr.bf16.gmra.mrb[0].mxu0 %v1890
        %v2030 = vpop.f32.mrb[0].mxu0
        %v2031 = vadd.f32 0.0, %v2030
        %v2032 = vpop.f32.mrb[0].mxu0
        %v2033 = vpop.f32.mrb[0].mxu0
        %v2034 = vadd.f32 0.0, %v2033
        %v2035 = vpop.f32.mrb[0].mxu0
        %2036 = vmatprep.mubr.bf16.mxu0 0
        %2037 = vmatmul.mubr.bf16.gmra.mrb[0].mxu0 %v1891
        %v2038 = vpop.f32.mrb[0].mxu0
        %v2039 = vadd.f32 0.0, %v2038
        %v2040 = vpop.f32.mrb[0].mxu0
        %v2041 = vpop.f32.mrb[0].mxu0
        %v2042 = vadd.f32 0.0, %v2041
        %v2043 = vpop.f32.mrb[0].mxu0
        %2044 = vdwg.mxu0
        %v2045 = vadd.f32 %v1774, %v1983
        %v2046 = vadd.f32 %v1777, %v1986
        %v2047 = vadd.f32 %v1782, %v1991
        %v2048 = vadd.f32 %v1785, %v1994
        %v2049 = vadd.f32 %v1790, %v1999
        %v2050 = vadd.f32 %v1793, %v2002
        %v2051 = vadd.f32 %v1798, %v2007
        %v2052 = vadd.f32 %v1801, %v2010
        %v2053 = vadd.f32 %v1806, %v2015
        %v2054 = vadd.f32 %v1809, %v2018
        %v2055 = vadd.f32 %v1814, %v2023
        %v2056 = vadd.f32 %v1817, %v2026
        %v2057 = vadd.f32 %v1822, %v2031
        %v2058 = vadd.f32 %v1825, %v2034
        %v2059 = vadd.f32 %v1830, %v2039
        %v2060 = vadd.f32 %v1833, %v2042
        %v2061 = vld [vmem:[#allocation4 + $0xc0] sm:$0xf]
        %v2062 = vld [vmem:[#allocation4 + $0xc4] sm:$0xf]
        %v2063 = vld [vmem:[#allocation4 + $0xc8] sm:$0xf]
        %v2064 = vld [vmem:[#allocation4 + $0xcc] sm:$0xf]
        %v2065 = vld [vmem:[#allocation4 + $0xd0] sm:$0xf]
        %v2066 = vld [vmem:[#allocation4 + $0xd4] sm:$0xf]
        %v2067 = vld [vmem:[#allocation4 + $0xd8] sm:$0xf]
        %v2068 = vld [vmem:[#allocation4 + $0xdc] sm:$0xf]
        %v2069 = vld [vmem:[#allocation4 + $0xe0] sm:$0xf]
        %v2070 = vld [vmem:[#allocation4 + $0xe4] sm:$0xf]
        %v2071 = vld [vmem:[#allocation4 + $0xe8] sm:$0xf]
        %v2072 = vld [vmem:[#allocation4 + $0xec] sm:$0xf]
        %v2073 = vld [vmem:[#allocation4 + $0xf0] sm:$0xf]
        %v2074 = vld [vmem:[#allocation4 + $0xf4] sm:$0xf]
        %v2075 = vld [vmem:[#allocation4 + $0xf8] sm:$0xf]
        %v2076 = vld [vmem:[#allocation4 + $0xfc] sm:$0xf]
        %v2077 = vunpack.c.l.b16 %v1461
        %v2078 = vunpack.c.l.b16 %v1464
        %v2079 = vunpack.c.l.b16 %v1468
        %v2080 = vunpack.c.l.b16 %v1471
        %v2081 = vunpack.c.l.b16 %v1475
        %v2082 = vunpack.c.l.b16 %v1478
        %v2083 = vunpack.c.l.b16 %v1482
        %v2084 = vunpack.c.l.b16 %v1485
        %v2085 = vunpack.c.l.b16 %v1489
        %v2086 = vunpack.c.l.b16 %v1492
        %v2087 = vunpack.c.l.b16 %v1496
        %v2088 = vunpack.c.l.b16 %v1499
        %v2089 = vunpack.c.l.b16 %v1503
        %v2090 = vunpack.c.l.b16 %v1506
        %v2091 = vunpack.c.l.b16 %v1510
        %v2092 = vunpack.c.l.b16 %v1513
        %v2093 = vpack.c.b16 %v2078, %v2077
        %v2094 = vpack.c.b16 %v2080, %v2079
        %v2095 = vpack.c.b16 %v2082, %v2081
        %v2096 = vpack.c.b16 %v2084, %v2083
        %v2097 = vpack.c.b16 %v2086, %v2085
        %v2098 = vpack.c.b16 %v2088, %v2087
        %v2099 = vpack.c.b16 %v2090, %v2089
        %v2100 = vpack.c.b16 %v2092, %v2091
        %v2125 = vunpack.c.l.b16 %v2061
        %v2126 = vunpack.c.l.b16 %v2062
        %v2127 = vunpack.c.l.b16 %v2063
        %v2128 = vunpack.c.l.b16 %v2064
        %v2129 = vunpack.c.l.b16 %v2065
        %v2130 = vunpack.c.l.b16 %v2066
        %v2131 = vunpack.c.l.b16 %v2067
        %v2132 = vunpack.c.l.b16 %v2068
        %v2133 = vunpack.c.l.b16 %v2069
        %v2134 = vunpack.c.l.b16 %v2070
        %v2135 = vunpack.c.l.b16 %v2071
        %v2136 = vunpack.c.l.b16 %v2072
        %v2137 = vunpack.c.l.b16 %v2073
        %v2138 = vunpack.c.l.b16 %v2074
        %v2139 = vunpack.c.l.b16 %v2075
        %v2140 = vunpack.c.l.b16 %v2076
        %v2141 = vpack.c.b16 %v2126, %v2125
        %v2142 = vpack.c.b16 %v2128, %v2127
        %v2143 = vpack.c.b16 %v2130, %v2129
        %v2144 = vpack.c.b16 %v2132, %v2131
        %v2145 = vpack.c.b16 %v2134, %v2133
        %v2146 = vpack.c.b16 %v2136, %v2135
        %v2147 = vpack.c.b16 %v2138, %v2137
        %v2148 = vpack.c.b16 %v2140, %v2139
        %2157 = vmatprep.subr.bf16.mxu0 0
        %2158 = vmatpush1.bf16.msra.mxu0 %v2141
        %2159 = vmatprep.subr.bf16.mxu0 0
        %2160 = vmatpush1.bf16.msra.mxu0 %v2142
        %2161 = vmatprep.subr.bf16.mxu0 0
        %2162 = vmatpush1.bf16.msra.mxu0 %v2143
        %2163 = vmatprep.subr.bf16.mxu0 0
        %2164 = vmatpush1.bf16.msra.mxu0 %v2144
        %2165 = vmatprep.subr.bf16.mxu0 0
        %2166 = vmatpush1.bf16.msra.mxu0 %v2145
        %2167 = vmatprep.subr.bf16.mxu0 0
        %2168 = vmatpush1.bf16.msra.mxu0 %v2146
        %2169 = vmatprep.subr.bf16.mxu0 0
        %2170 = vmatpush1.bf16.msra.mxu0 %v2147
        %2171 = vmatprep.subr.bf16.mxu0 0
        %2172 = vmatpush1.bf16.msra.mxu0 %v2148
        %2173 = vmatprep.subr.bf16.mxu0 0
        %2174 = vmatpush1.bf16.msra.mxu0 0
        %2175 = vmatprep.subr.bf16.mxu0 0
        %2176 = vmatpush1.bf16.msra.mxu0 0
        %2177 = vmatprep.subr.bf16.mxu0 0
        %2178 = vmatpush1.bf16.msra.mxu0 0
        %2179 = vmatprep.subr.bf16.mxu0 0
        %2180 = vmatpush1.bf16.msra.mxu0 0
        %2181 = vmatprep.subr.bf16.mxu0 0
        %2182 = vmatpush1.bf16.msra.mxu0 0
        %2183 = vmatprep.subr.bf16.mxu0 0
        %2184 = vmatpush1.bf16.msra.mxu0 0
        %2185 = vmatprep.subr.bf16.mxu0 0
        %2186 = vmatpush1.bf16.msra.mxu0 0
        %2187 = vmatprep.subr.bf16.mxu0 0
        %2188 = vmatpush1.bf16.msra.mxu0 0
        %2189 = vmatprep.mubr.bf16.mxu0 0
        %2190 = vmatmul.mubr.bf16.gmra.mrb[0].mxu0 %v2093
        %v2191 = vpop.f32.mrb[0].mxu0
        %v2192 = vadd.f32 0.0, %v2191
        %v2193 = vpop.f32.mrb[0].mxu0
        %v2194 = vpop.f32.mrb[0].mxu0
        %v2195 = vadd.f32 0.0, %v2194
        %v2196 = vpop.f32.mrb[0].mxu0
        %2197 = vmatprep.mubr.bf16.mxu0 0
        %2198 = vmatmul.mubr.bf16.gmra.mrb[0].mxu0 %v2094
        %v2199 = vpop.f32.mrb[0].mxu0
        %v2200 = vadd.f32 0.0, %v2199
        %v2201 = vpop.f32.mrb[0].mxu0
        %v2202 = vpop.f32.mrb[0].mxu0
        %v2203 = vadd.f32 0.0, %v2202
        %v2204 = vpop.f32.mrb[0].mxu0
        %2205 = vmatprep.mubr.bf16.mxu0 0
        %2206 = vmatmul.mubr.bf16.gmra.mrb[0].mxu0 %v2095
        %v2207 = vpop.f32.mrb[0].mxu0
        %v2208 = vadd.f32 0.0, %v2207
        %v2209 = vpop.f32.mrb[0].mxu0
        %v2210 = vpop.f32.mrb[0].mxu0
        %v2211 = vadd.f32 0.0, %v2210
        %v2212 = vpop.f32.mrb[0].mxu0
        %2213 = vmatprep.mubr.bf16.mxu0 0
        %2214 = vmatmul.mubr.bf16.gmra.mrb[0].mxu0 %v2096
        %v2215 = vpop.f32.mrb[0].mxu0
        %v2216 = vadd.f32 0.0, %v2215
        %v2217 = vpop.f32.mrb[0].mxu0
        %v2218 = vpop.f32.mrb[0].mxu0
        %v2219 = vadd.f32 0.0, %v2218
        %v2220 = vpop.f32.mrb[0].mxu0
        %2221 = vmatprep.mubr.bf16.mxu0 0
        %2222 = vmatmul.mubr.bf16.gmra.mrb[0].mxu0 %v2097
        %v2223 = vpop.f32.mrb[0].mxu0
        %v2224 = vadd.f32 0.0, %v2223
        %v2225 = vpop.f32.mrb[0].mxu0
        %v2226 = vpop.f32.mrb[0].mxu0
        %v2227 = vadd.f32 0.0, %v2226
        %v2228 = vpop.f32.mrb[0].mxu0
        %2229 = vmatprep.mubr.bf16.mxu0 0
        %2230 = vmatmul.mubr.bf16.gmra.mrb[0].mxu0 %v2098
        %v2231 = vpop.f32.mrb[0].mxu0
        %v2232 = vadd.f32 0.0, %v2231
        %v2233 = vpop.f32.mrb[0].mxu0
        %v2234 = vpop.f32.mrb[0].mxu0
        %v2235 = vadd.f32 0.0, %v2234
        %v2236 = vpop.f32.mrb[0].mxu0
        %2237 = vmatprep.mubr.bf16.mxu0 0
        %2238 = vmatmul.mubr.bf16.gmra.mrb[0].mxu0 %v2099
        %v2239 = vpop.f32.mrb[0].mxu0
        %v2240 = vadd.f32 0.0, %v2239
        %v2241 = vpop.f32.mrb[0].mxu0
        %v2242 = vpop.f32.mrb[0].mxu0
        %v2243 = vadd.f32 0.0, %v2242
        %v2244 = vpop.f32.mrb[0].mxu0
        %2245 = vmatprep.mubr.bf16.mxu0 0
        %2246 = vmatmul.mubr.bf16.gmra.mrb[0].mxu0 %v2100
        %v2247 = vpop.f32.mrb[0].mxu0
        %v2248 = vadd.f32 0.0, %v2247
        %v2249 = vpop.f32.mrb[0].mxu0
        %v2250 = vpop.f32.mrb[0].mxu0
        %v2251 = vadd.f32 0.0, %v2250
        %v2252 = vpop.f32.mrb[0].mxu0
        %2253 = vdwg.mxu0
        %v2254 = vadd.f32 %v2045, %v2192
        %v2255 = vadd.f32 %v2046, %v2195
        %v2256 = vadd.f32 %v2047, %v2200
        %v2257 = vadd.f32 %v2048, %v2203
        %v2258 = vadd.f32 %v2049, %v2208
        %v2259 = vadd.f32 %v2050, %v2211
        %v2260 = vadd.f32 %v2051, %v2216
        %v2261 = vadd.f32 %v2052, %v2219
        %v2262 = vadd.f32 %v2053, %v2224
        %v2263 = vadd.f32 %v2054, %v2227
        %v2264 = vadd.f32 %v2055, %v2232
        %v2265 = vadd.f32 %v2056, %v2235
        %v2266 = vadd.f32 %v2057, %v2240
        %v2267 = vadd.f32 %v2058, %v2243
        %v2268 = vadd.f32 %v2059, %v2248
        %v2269 = vadd.f32 %v2060, %v2251
        %2286 = vrot.lane.b32.xlu0 %v2254, 64
        %v2287 = vpop.permute.xlu0 %2286
        %2288 = vrot.lane.b32.xlu0 %v2255, 64
        %v2289 = vpop.permute.xlu0 %2288
        %2290 = vrot.lane.b32.xlu0 %v2256, 64
        %v2291 = vpop.permute.xlu0 %2290
        %2292 = vrot.lane.b32.xlu0 %v2257, 64
        %v2293 = vpop.permute.xlu0 %2292
        %2294 = vrot.lane.b32.xlu0 %v2258, 64
        %v2295 = vpop.permute.xlu0 %2294
        %2296 = vrot.lane.b32.xlu0 %v2259, 64
        %v2297 = vpop.permute.xlu0 %2296
        %2298 = vrot.lane.b32.xlu0 %v2260, 64
        %v2299 = vpop.permute.xlu0 %2298
        %2300 = vrot.lane.b32.xlu0 %v2261, 64
        %v2301 = vpop.permute.xlu0 %2300
        %2302 = vrot.lane.b32.xlu0 %v2262, 64
        %v2303 = vpop.permute.xlu0 %2302
        %2304 = vrot.lane.b32.xlu0 %v2263, 64
        %v2305 = vpop.permute.xlu0 %2304
        %2306 = vrot.lane.b32.xlu0 %v2264, 64
        %v2307 = vpop.permute.xlu0 %2306
        %2308 = vrot.lane.b32.xlu0 %v2265, 64
        %v2309 = vpop.permute.xlu0 %2308
        %2310 = vrot.lane.b32.xlu0 %v2266, 64
        %v2311 = vpop.permute.xlu0 %2310
        %2312 = vrot.lane.b32.xlu0 %v2267, 64
        %v2313 = vpop.permute.xlu0 %2312
        %2314 = vrot.lane.b32.xlu0 %v2268, 64
        %v2315 = vpop.permute.xlu0 %2314
        %2316 = vrot.lane.b32.xlu0 %v2269, 64
        %v2317 = vpop.permute.xlu0 %2316
        %v2334 = vmax.f32 %v2254, %v2287
        %v2335 = vmax.f32 %v2255, %v2289
        %v2336 = vmax.f32 %v2256, %v2291
        %v2337 = vmax.f32 %v2257, %v2293
        %v2338 = vmax.f32 %v2258, %v2295
        %v2339 = vmax.f32 %v2259, %v2297
        %v2340 = vmax.f32 %v2260, %v2299
        %v2341 = vmax.f32 %v2261, %v2301
        %v2342 = vmax.f32 %v2262, %v2303
        %v2343 = vmax.f32 %v2263, %v2305
        %v2344 = vmax.f32 %v2264, %v2307
        %v2345 = vmax.f32 %v2265, %v2309
        %v2346 = vmax.f32 %v2266, %v2311
        %v2347 = vmax.f32 %v2267, %v2313
        %v2348 = vmax.f32 %v2268, %v2315
        %v2349 = vmax.f32 %v2269, %v2317
        %v2350 = vld [vmem:[%s4] sm:$0x1]
        %v2352 = vlaneseq
        %v2353 = vshrl.u32 %v2352, 7
        %v2354 = vsub.s32 0, %v2353
        %v2355 = vrot.slane %v2350, %v2354
        %v2357 = vadd.f32 %v2334, %v2355
        %v2358 = vadd.f32 %v2335, %v2355
        %v2359 = vadd.f32 %v2336, %v2355
        %v2360 = vadd.f32 %v2337, %v2355
        %v2361 = vadd.f32 %v2338, %v2355
        %v2362 = vadd.f32 %v2339, %v2355
        %v2363 = vadd.f32 %v2340, %v2355
        %v2364 = vadd.f32 %v2341, %v2355
        %v2365 = vadd.f32 %v2342, %v2355
        %v2366 = vadd.f32 %v2343, %v2355
        %v2367 = vadd.f32 %v2344, %v2355
        %v2368 = vadd.f32 %v2345, %v2355
        %v2369 = vadd.f32 %v2346, %v2355
        %v2370 = vadd.f32 %v2347, %v2355
        %v2371 = vadd.f32 %v2348, %v2355
        %v2372 = vadd.f32 %v2349, %v2355
        %v2373 = vmax.f32 %v2357, 0.0
        %v2374 = vmax.f32 %v2358, 0.0
        %v2375 = vmax.f32 %v2359, 0.0
        %v2376 = vmax.f32 %v2360, 0.0
        %v2377 = vmax.f32 %v2361, 0.0
        %v2378 = vmax.f32 %v2362, 0.0
        %v2379 = vmax.f32 %v2363, 0.0
        %v2380 = vmax.f32 %v2364, 0.0
        %v2381 = vmax.f32 %v2365, 0.0
        %v2382 = vmax.f32 %v2366, 0.0
        %v2383 = vmax.f32 %v2367, 0.0
        %v2384 = vmax.f32 %v2368, 0.0
        %v2385 = vmax.f32 %v2369, 0.0
        %v2386 = vmax.f32 %v2370, 0.0
        %v2387 = vmax.f32 %v2371, 0.0
        %v2388 = vmax.f32 %v2372, 0.0
        %v2397 = vrot.slane %v2375, 7
        %vm2398 = vcmask 1041409
        %v2399 = vsel %vm2398, %v2397, %v2373
        %v2400 = vrot.slane %v2377, 6
        %vm2401 = vcmask 1042434
        %v2402 = vsel %vm2401, %v2400, %v2399
        %v2403 = vrot.slane %v2379, 5
        %vm2404 = vcmask 1043459
        %v2405 = vsel %vm2404, %v2403, %v2402
        %v2406 = vrot.slane %v2381, 4
        %vm2407 = vcmask 1044484
        %v2408 = vsel %vm2407, %v2406, %v2405
        %v2409 = vrot.slane %v2383, 3
        %vm2410 = vcmask 1045509
        %v2411 = vsel %vm2410, %v2409, %v2408
        %v2412 = vrot.slane %v2385, 2
        %vm2413 = vcmask 1046534
        %v2414 = vsel %vm2413, %v2412, %v2411
        %v2415 = vrot.slane %v2387, 1
        %vm2416 = vcmask 1047559
        %v2417 = vsel %vm2416, %v2415, %v2414
        %v2419 = vrot.slane %v2373, 1
        %v2420 = vsel %vm2398, %v2375, %v2419
        %v2421 = vrot.slane %v2377, 7
        %v2422 = vsel %vm2401, %v2421, %v2420
        %v2423 = vrot.slane %v2379, 6
        %v2424 = vsel %vm2404, %v2423, %v2422
        %v2425 = vrot.slane %v2381, 5
        %v2426 = vsel %vm2407, %v2425, %v2424
        %v2427 = vrot.slane %v2383, 4
        %v2428 = vsel %vm2410, %v2427, %v2426
        %v2429 = vrot.slane %v2385, 3
        %v2430 = vsel %vm2413, %v2429, %v2428
        %v2431 = vrot.slane %v2387, 2
        %v2432 = vsel %vm2416, %v2431, %v2430
        %2433 = vrot.lane.b32.xlu0 %v2432, 64
        %v2434 = vpop.permute.xlu0 %2433
        %vm2436 = vcmask 523264
        %v2437 = vsel %vm2436, %v2417, %v2434
        %v2438 = vpack.c.bf16 %v2437, %v2437
        %2439 = vst [vmem:[#allocation3] sm:$0xf] %v2438
        %v2440 = vsel %vm2404, %v2397, %v2373
        %v2441 = vsel %vm2407, %v2400, %v2440
        %v2442 = vsel %vm2410, %v2403, %v2441
        %v2443 = vsel %vm2413, %v2406, %v2442
        %v2444 = vsel %vm2416, %v2409, %v2443
        %v2445 = vsel %vm2398, %v2415, %v2412
        %v2448 = vsel %vm2404, %v2375, %v2419
        %v2449 = vsel %vm2407, %v2421, %v2448
        %v2450 = vsel %vm2410, %v2423, %v2449
        %v2451 = vsel %vm2413, %v2425, %v2450
        %v2452 = vsel %vm2416, %v2427, %v2451
        %v2453 = vsel %vm2398, %v2431, %v2429
        %2454 = vrot.lane.b32.xlu0 %v2452, 64
        %v2455 = vpop.permute.xlu0 %2454
        %2456 = vrot.lane.b32.xlu0 %v2453, 64
        %v2457 = vpop.permute.xlu0 %2456
        %v2460 = vsel %vm2436, %v2444, %v2455
        %v2461 = vsel %vm2436, %v2445, %v2457
        %v2462 = vpack.c.bf16 %v2461, %v2460
        %v2464 = vunpack.c.l.b16 %v2462
        %v2465 = vunpack.c.h.b16 %v2462
        %v2466 = vpack.c.b16 %v2464, %v2464
        %v2467 = vpack.c.b16 %v2465, %v2465
        %v2468 = vrot.slane %v2466, 5
        %v2469 = vrot.slane %v2468, 4
        %v2470 = vrot.slane %v2467, 5
        %v2471 = vsel %vm1457, %v2469, %v2470
        %2473 = vst [vmem:[#allocation3 + $0x4] sm:$0xf] %v2471
        %v2474 = vsel %vm2410, %v2397, %v2373
        %v2475 = vsel %vm2413, %v2400, %v2474
        %v2476 = vsel %vm2416, %v2403, %v2475
        %v2477 = vsel %vm2398, %v2409, %v2406
        %v2478 = vsel %vm2401, %v2412, %v2477
        %v2479 = vsel %vm2404, %v2415, %v2478
        %v2482 = vsel %vm2410, %v2375, %v2419
        %v2483 = vsel %vm2413, %v2421, %v2482
        %v2484 = vsel %vm2416, %v2423, %v2483
        %v2485 = vsel %vm2398, %v2427, %v2425
        %v2486 = vsel %vm2401, %v2429, %v2485
        %v2487 = vsel %vm2404, %v2431, %v2486
        %2488 = vrot.lane.b32.xlu0 %v2484, 64
        %v2489 = vpop.permute.xlu0 %2488
        %2490 = vrot.lane.b32.xlu0 %v2487, 64
        %v2491 = vpop.permute.xlu0 %2490
        %v2494 = vsel %vm2436, %v2476, %v2489
        %v2495 = vsel %vm2436, %v2479, %v2491
        %v2496 = vpack.c.bf16 %v2495, %v2494
        %v2498 = vunpack.c.l.b16 %v2496
        %v2499 = vunpack.c.h.b16 %v2496
        %v2500 = vpack.c.b16 %v2498, %v2498
        %v2501 = vpack.c.b16 %v2499, %v2499
        %vm2502 = vcmask 1041408
        %vm2503 = vcmask 1045508
        %vm2504 = vmor %vm2502, %vm2503
        %v2505 = vrot.slane %v2500, 6
        %v2506 = vrot.slane %v2505, 4
        %v2507 = vrot.slane %v2501, 6
        %v2508 = vsel %vm2504, %v2506, %v2507
        %2510 = vst [vmem:[#allocation3 + $0x8] sm:$0xf] %v2508
        %v2511 = vsel %vm2416, %v2397, %v2373
        %v2512 = vsel %vm2398, %v2403, %v2400
        %v2513 = vsel %vm2401, %v2406, %v2512
        %v2514 = vsel %vm2404, %v2409, %v2513
        %v2515 = vsel %vm2407, %v2412, %v2514
        %v2516 = vsel %vm2410, %v2415, %v2515
        %v2519 = vsel %vm2416, %v2375, %v2419
        %v2520 = vsel %vm2398, %v2423, %v2421
        %v2521 = vsel %vm2401, %v2425, %v2520
        %v2522 = vsel %vm2404, %v2427, %v2521
        %v2523 = vsel %vm2407, %v2429, %v2522
        %v2524 = vsel %vm2410, %v2431, %v2523
        %2525 = vrot.lane.b32.xlu0 %v2519, 64
        %v2526 = vpop.permute.xlu0 %2525
        %2527 = vrot.lane.b32.xlu0 %v2524, 64
        %v2528 = vpop.permute.xlu0 %2527
        %v2531 = vsel %vm2436, %v2511, %v2526
        %v2532 = vsel %vm2436, %v2516, %v2528
        %v2533 = vpack.c.bf16 %v2532, %v2531
        %v2535 = vunpack.c.l.b16 %v2533
        %v2536 = vunpack.c.h.b16 %v2533
        %v2537 = vpack.c.b16 %v2535, %v2535
        %v2538 = vpack.c.b16 %v2536, %v2536
        %vm2539 = vmor %vm815, %vm818
        %v2540 = vrot.slane %v2537, 7
        %v2541 = vrot.slane %v2540, 4
        %v2542 = vrot.slane %v2538, 7
        %v2543 = vsel %vm2539, %v2541, %v2542
        %2545 = vst [vmem:[#allocation3 + $0xc] sm:$0xf] %v2543
        %v2554 = vrot.slane %v2376, 7
        %v2555 = vsel %vm2398, %v2554, %v2374
        %v2556 = vrot.slane %v2378, 6
        %v2557 = vsel %vm2401, %v2556, %v2555
        %v2558 = vrot.slane %v2380, 5
        %v2559 = vsel %vm2404, %v2558, %v2557
        %v2560 = vrot.slane %v2382, 4
        %v2561 = vsel %vm2407, %v2560, %v2559
        %v2562 = vrot.slane %v2384, 3
        %v2563 = vsel %vm2410, %v2562, %v2561
        %v2564 = vrot.slane %v2386, 2
        %v2565 = vsel %vm2413, %v2564, %v2563
        %v2566 = vrot.slane %v2388, 1
        %v2567 = vsel %vm2416, %v2566, %v2565
        %v2569 = vrot.slane %v2374, 1
        %v2570 = vsel %vm2398, %v2376, %v2569
        %v2571 = vrot.slane %v2378, 7
        %v2572 = vsel %vm2401, %v2571, %v2570
        %v2573 = vrot.slane %v2380, 6
        %v2574 = vsel %vm2404, %v2573, %v2572
        %v2575 = vrot.slane %v2382, 5
        %v2576 = vsel %vm2407, %v2575, %v2574
        %v2577 = vrot.slane %v2384, 4
        %v2578 = vsel %vm2410, %v2577, %v2576
        %v2579 = vrot.slane %v2386, 3
        %v2580 = vsel %vm2413, %v2579, %v2578
        %v2581 = vrot.slane %v2388, 2
        %v2582 = vsel %vm2416, %v2581, %v2580
        %2583 = vrot.lane.b32.xlu0 %v2582, 64
        %v2584 = vpop.permute.xlu0 %2583
        %v2586 = vsel %vm2436, %v2567, %v2584
        %v2587 = vpack.c.bf16 %v2586, %v2586
        %2588 = vst [vmem:[#allocation3 + $0x10] sm:$0xf] %v2587
        %v2589 = vsel %vm2404, %v2554, %v2374
        %v2590 = vsel %vm2407, %v2556, %v2589
        %v2591 = vsel %vm2410, %v2558, %v2590
        %v2592 = vsel %vm2413, %v2560, %v2591
        %v2593 = vsel %vm2416, %v2562, %v2592
        %v2594 = vsel %vm2398, %v2566, %v2564
        %v2597 = vsel %vm2404, %v2376, %v2569
        %v2598 = vsel %vm2407, %v2571, %v2597
        %v2599 = vsel %vm2410, %v2573, %v2598
        %v2600 = vsel %vm2413, %v2575, %v2599
        %v2601 = vsel %vm2416, %v2577, %v2600
        %v2602 = vsel %vm2398, %v2581, %v2579
        %2603 = vrot.lane.b32.xlu0 %v2601, 64
        %v2604 = vpop.permute.xlu0 %2603
        %2605 = vrot.lane.b32.xlu0 %v2602, 64
        %v2606 = vpop.permute.xlu0 %2605
        %v2609 = vsel %vm2436, %v2593, %v2604
        %v2610 = vsel %vm2436, %v2594, %v2606
        %v2611 = vpack.c.bf16 %v2610, %v2609
        %v2613 = vunpack.c.l.b16 %v2611
        %v2614 = vunpack.c.h.b16 %v2611
        %v2615 = vpack.c.b16 %v2613, %v2613
        %v2616 = vpack.c.b16 %v2614, %v2614
        %v2617 = vrot.slane %v2615, 5
        %v2618 = vrot.slane %v2617, 4
        %v2619 = vrot.slane %v2616, 5
        %v2620 = vsel %vm1457, %v2618, %v2619
        %2622 = vst [vmem:[#allocation3 + $0x14] sm:$0xf] %v2620
        %v2623 = vsel %vm2410, %v2554, %v2374
        %v2624 = vsel %vm2413, %v2556, %v2623
        %v2625 = vsel %vm2416, %v2558, %v2624
        %v2626 = vsel %vm2398, %v2562, %v2560
        %v2627 = vsel %vm2401, %v2564, %v2626
        %v2628 = vsel %vm2404, %v2566, %v2627
        %v2631 = vsel %vm2410, %v2376, %v2569
        %v2632 = vsel %vm2413, %v2571, %v2631
        %v2633 = vsel %vm2416, %v2573, %v2632
        %v2634 = vsel %vm2398, %v2577, %v2575
        %v2635 = vsel %vm2401, %v2579, %v2634
        %v2636 = vsel %vm2404, %v2581, %v2635
        %2637 = vrot.lane.b32.xlu0 %v2633, 64
        %v2638 = vpop.permute.xlu0 %2637
        %2639 = vrot.lane.b32.xlu0 %v2636, 64
        %v2640 = vpop.permute.xlu0 %2639
        %v2643 = vsel %vm2436, %v2625, %v2638
        %v2644 = vsel %vm2436, %v2628, %v2640
        %v2645 = vpack.c.bf16 %v2644, %v2643
        %v2647 = vunpack.c.l.b16 %v2645
        %v2648 = vunpack.c.h.b16 %v2645
        %v2649 = vpack.c.b16 %v2647, %v2647
        %v2650 = vpack.c.b16 %v2648, %v2648
        %v2651 = vrot.slane %v2649, 6
        %v2652 = vrot.slane %v2651, 4
        %v2653 = vrot.slane %v2650, 6
        %v2654 = vsel %vm2504, %v2652, %v2653
        %2656 = vst [vmem:[#allocation3 + $0x18] sm:$0xf] %v2654
        %v2657 = vsel %vm2416, %v2554, %v2374
        %v2658 = vsel %vm2398, %v2558, %v2556
        %v2659 = vsel %vm2401, %v2560, %v2658
        %v2660 = vsel %vm2404, %v2562, %v2659
        %v2661 = vsel %vm2407, %v2564, %v2660
        %v2662 = vsel %vm2410, %v2566, %v2661
        %v2665 = vsel %vm2416, %v2376, %v2569
        %v2666 = vsel %vm2398, %v2573, %v2571
        %v2667 = vsel %vm2401, %v2575, %v2666
        %v2668 = vsel %vm2404, %v2577, %v2667
        %v2669 = vsel %vm2407, %v2579, %v2668
        %v2670 = vsel %vm2410, %v2581, %v2669
        %2671 = vrot.lane.b32.xlu0 %v2665, 64
        %v2672 = vpop.permute.xlu0 %2671
        %2673 = vrot.lane.b32.xlu0 %v2670, 64
        %v2674 = vpop.permute.xlu0 %2673
        %v2677 = vsel %vm2436, %v2657, %v2672
        %v2678 = vsel %vm2436, %v2662, %v2674
        %v2679 = vpack.c.bf16 %v2678, %v2677
        %v2681 = vunpack.c.l.b16 %v2679
        %v2682 = vunpack.c.h.b16 %v2679
        %v2683 = vpack.c.b16 %v2681, %v2681
        %v2684 = vpack.c.b16 %v2682, %v2682
        %v2685 = vrot.slane %v2683, 7
        %v2686 = vrot.slane %v2685, 4
        %v2687 = vrot.slane %v2684, 7
        %v2688 = vsel %vm2539, %v2686, %v2687
        %2690 = vst [vmem:[#allocation3 + $0x1c] sm:$0xf] %v2688
        %v2691 = vld [vmem:[#allocation3] sm:$0xff]
        %v2692 = vld [vmem:[#allocation3 + $0x8] sm:$0xff]
        %v2693 = vld [vmem:[#allocation3 + $0x10] sm:$0xff]
        %v2694 = vld [vmem:[#allocation3 + $0x18] sm:$0xff]
        %v2695 = vld [vmem:[#allocation7] sm:$0xff]
        %v2696 = vld [vmem:[#allocation7 + $0x8] sm:$0xff]
        %v2697 = vld [vmem:[#allocation7 + $0x10] sm:$0xff]
        %v2698 = vld [vmem:[#allocation7 + $0x18] sm:$0xff]
        %v2699 = vld [vmem:[#allocation7 + $0x20] sm:$0xff]
        %v2700 = vld [vmem:[#allocation7 + $0x28] sm:$0xff]
        %v2701 = vld [vmem:[#allocation7 + $0x30] sm:$0xff]
        %v2702 = vld [vmem:[#allocation7 + $0x38] sm:$0xff]
        %v2703 = vld [vmem:[#allocation7 + $0x40] sm:$0xff]
        %v2704 = vld [vmem:[#allocation7 + $0x48] sm:$0xff]
        %v2705 = vld [vmem:[#allocation7 + $0x50] sm:$0xff]
        %v2706 = vld [vmem:[#allocation7 + $0x58] sm:$0xff]
        %v2707 = vld [vmem:[#allocation7 + $0x60] sm:$0xff]
        %v2708 = vld [vmem:[#allocation7 + $0x68] sm:$0xff]
        %v2709 = vld [vmem:[#allocation7 + $0x70] sm:$0xff]
        %v2710 = vld [vmem:[#allocation7 + $0x78] sm:$0xff]
        %v2711 = vld [vmem:[#allocation7 + $0x80] sm:$0xff]
        %v2712 = vld [vmem:[#allocation7 + $0x88] sm:$0xff]
        %v2713 = vld [vmem:[#allocation7 + $0x90] sm:$0xff]
        %v2714 = vld [vmem:[#allocation7 + $0x98] sm:$0xff]
        %v2715 = vld [vmem:[#allocation7 + $0xa0] sm:$0xff]
        %v2716 = vld [vmem:[#allocation7 + $0xa8] sm:$0xff]
        %v2717 = vld [vmem:[#allocation7 + $0xb0] sm:$0xff]
        %v2718 = vld [vmem:[#allocation7 + $0xb8] sm:$0xff]
        %v2719 = vld [vmem:[#allocation7 + $0xc0] sm:$0xff]
        %v2720 = vld [vmem:[#allocation7 + $0xc8] sm:$0xff]
        %v2721 = vld [vmem:[#allocation7 + $0xd0] sm:$0xff]
        %v2722 = vld [vmem:[#allocation7 + $0xd8] sm:$0xff]
        %v2723 = vld [vmem:[#allocation7 + $0xe0] sm:$0xff]
        %v2724 = vld [vmem:[#allocation7 + $0xe8] sm:$0xff]
        %v2725 = vld [vmem:[#allocation7 + $0xf0] sm:$0xff]
        %v2726 = vld [vmem:[#allocation7 + $0xf8] sm:$0xff]
        %v2727 = vld [vmem:[#allocation7 + $0x100] sm:$0xff]
        %v2728 = vld [vmem:[#allocation7 + $0x108] sm:$0xff]
        %v2729 = vld [vmem:[#allocation7 + $0x110] sm:$0xff]
        %v2730 = vld [vmem:[#allocation7 + $0x118] sm:$0xff]
        %v2731 = vld [vmem:[#allocation7 + $0x120] sm:$0xff]
        %v2732 = vld [vmem:[#allocation7 + $0x128] sm:$0xff]
        %v2733 = vld [vmem:[#allocation7 + $0x130] sm:$0xff]
        %v2734 = vld [vmem:[#allocation7 + $0x138] sm:$0xff]
        %v2735 = vld [vmem:[#allocation7 + $0x140] sm:$0xff]
        %v2736 = vld [vmem:[#allocation7 + $0x148] sm:$0xff]
        %v2737 = vld [vmem:[#allocation7 + $0x150] sm:$0xff]
        %v2738 = vld [vmem:[#allocation7 + $0x158] sm:$0xff]
        %v2739 = vld [vmem:[#allocation7 + $0x160] sm:$0xff]
        %v2740 = vld [vmem:[#allocation7 + $0x168] sm:$0xff]
        %v2741 = vld [vmem:[#allocation7 + $0x170] sm:$0xff]
        %v2742 = vld [vmem:[#allocation7 + $0x178] sm:$0xff]
        %v2743 = vld [vmem:[#allocation7 + $0x180] sm:$0xff]
        %v2744 = vld [vmem:[#allocation7 + $0x188] sm:$0xff]
        %v2745 = vld [vmem:[#allocation7 + $0x190] sm:$0xff]
        %v2746 = vld [vmem:[#allocation7 + $0x198] sm:$0xff]
        %v2747 = vld [vmem:[#allocation7 + $0x1a0] sm:$0xff]
        %v2748 = vld [vmem:[#allocation7 + $0x1a8] sm:$0xff]
        %v2749 = vld [vmem:[#allocation7 + $0x1b0] sm:$0xff]
        %v2750 = vld [vmem:[#allocation7 + $0x1b8] sm:$0xff]
        %v2751 = vld [vmem:[#allocation7 + $0x1c0] sm:$0xff]
        %v2752 = vld [vmem:[#allocation7 + $0x1c8] sm:$0xff]
        %v2753 = vld [vmem:[#allocation7 + $0x1d0] sm:$0xff]
        %v2754 = vld [vmem:[#allocation7 + $0x1d8] sm:$0xff]
        %v2755 = vld [vmem:[#allocation7 + $0x1e0] sm:$0xff]
        %v2756 = vld [vmem:[#allocation7 + $0x1e8] sm:$0xff]
        %v2757 = vld [vmem:[#allocation7 + $0x1f0] sm:$0xff]
        %v2758 = vld [vmem:[#allocation7 + $0x1f8] sm:$0xff]
        %v2759 = vld [vmem:[#allocation7 + $0x200] sm:$0xff]
        %v2760 = vld [vmem:[#allocation7 + $0x208] sm:$0xff]
        %v2761 = vld [vmem:[#allocation7 + $0x210] sm:$0xff]
        %v2762 = vld [vmem:[#allocation7 + $0x218] sm:$0xff]
        %v2763 = vld [vmem:[#allocation7 + $0x220] sm:$0xff]
        %v2764 = vld [vmem:[#allocation7 + $0x228] sm:$0xff]
        %v2765 = vld [vmem:[#allocation7 + $0x230] sm:$0xff]
        %v2766 = vld [vmem:[#allocation7 + $0x238] sm:$0xff]
        %v2767 = vld [vmem:[#allocation7 + $0x240] sm:$0xff]
        %v2768 = vld [vmem:[#allocation7 + $0x248] sm:$0xff]
        %v2769 = vld [vmem:[#allocation7 + $0x250] sm:$0xff]
        %v2770 = vld [vmem:[#allocation7 + $0x258] sm:$0xff]
        %v2771 = vld [vmem:[#allocation7 + $0x260] sm:$0xff]
        %v2772 = vld [vmem:[#allocation7 + $0x268] sm:$0xff]
        %v2773 = vld [vmem:[#allocation7 + $0x270] sm:$0xff]
        %v2774 = vld [vmem:[#allocation7 + $0x278] sm:$0xff]
        %v2775 = vld [vmem:[#allocation7 + $0x280] sm:$0xff]
        %v2776 = vld [vmem:[#allocation7 + $0x288] sm:$0xff]
        %v2777 = vld [vmem:[#allocation7 + $0x290] sm:$0xff]
        %v2778 = vld [vmem:[#allocation7 + $0x298] sm:$0xff]
        %v2779 = vld [vmem:[#allocation7 + $0x2a0] sm:$0xff]
        %v2780 = vld [vmem:[#allocation7 + $0x2a8] sm:$0xff]
        %v2781 = vld [vmem:[#allocation7 + $0x2b0] sm:$0xff]
        %v2782 = vld [vmem:[#allocation7 + $0x2b8] sm:$0xff]
        %v2783 = vld [vmem:[#allocation7 + $0x2c0] sm:$0xff]
        %v2784 = vld [vmem:[#allocation7 + $0x2c8] sm:$0xff]
        %v2785 = vld [vmem:[#allocation7 + $0x2d0] sm:$0xff]
        %v2786 = vld [vmem:[#allocation7 + $0x2d8] sm:$0xff]
        %v2787 = vld [vmem:[#allocation7 + $0x2e0] sm:$0xff]
        %v2788 = vld [vmem:[#allocation7 + $0x2e8] sm:$0xff]
        %v2789 = vld [vmem:[#allocation7 + $0x2f0] sm:$0xff]
        %v2790 = vld [vmem:[#allocation7 + $0x2f8] sm:$0xff]
        %v2791 = vld [vmem:[#allocation7 + $0x300] sm:$0xff]
        %v2792 = vld [vmem:[#allocation7 + $0x308] sm:$0xff]
        %v2793 = vld [vmem:[#allocation7 + $0x310] sm:$0xff]
        %v2794 = vld [vmem:[#allocation7 + $0x318] sm:$0xff]
        %v2795 = vld [vmem:[#allocation7 + $0x320] sm:$0xff]
        %v2796 = vld [vmem:[#allocation7 + $0x328] sm:$0xff]
        %v2797 = vld [vmem:[#allocation7 + $0x330] sm:$0xff]
        %v2798 = vld [vmem:[#allocation7 + $0x338] sm:$0xff]
        %v2799 = vld [vmem:[#allocation7 + $0x340] sm:$0xff]
        %v2800 = vld [vmem:[#allocation7 + $0x348] sm:$0xff]
        %v2801 = vld [vmem:[#allocation7 + $0x350] sm:$0xff]
        %v2802 = vld [vmem:[#allocation7 + $0x358] sm:$0xff]
        %v2803 = vld [vmem:[#allocation7 + $0x360] sm:$0xff]
        %v2804 = vld [vmem:[#allocation7 + $0x368] sm:$0xff]
        %v2805 = vld [vmem:[#allocation7 + $0x370] sm:$0xff]
        %v2806 = vld [vmem:[#allocation7 + $0x378] sm:$0xff]
        %v2807 = vld [vmem:[#allocation7 + $0x380] sm:$0xff]
        %v2808 = vld [vmem:[#allocation7 + $0x388] sm:$0xff]
        %v2809 = vld [vmem:[#allocation7 + $0x390] sm:$0xff]
        %v2810 = vld [vmem:[#allocation7 + $0x398] sm:$0xff]
        %v2811 = vld [vmem:[#allocation7 + $0x3a0] sm:$0xff]
        %v2812 = vld [vmem:[#allocation7 + $0x3a8] sm:$0xff]
        %v2813 = vld [vmem:[#allocation7 + $0x3b0] sm:$0xff]
        %v2814 = vld [vmem:[#allocation7 + $0x3b8] sm:$0xff]
        %v2815 = vld [vmem:[#allocation7 + $0x3c0] sm:$0xff]
        %v2816 = vld [vmem:[#allocation7 + $0x3c8] sm:$0xff]
        %v2817 = vld [vmem:[#allocation7 + $0x3d0] sm:$0xff]
        %v2818 = vld [vmem:[#allocation7 + $0x3d8] sm:$0xff]
        %v2819 = vld [vmem:[#allocation7 + $0x3e0] sm:$0xff]
        %v2820 = vld [vmem:[#allocation7 + $0x3e8] sm:$0xff]
        %v2821 = vld [vmem:[#allocation7 + $0x3f0] sm:$0xff]
        %v2822 = vld [vmem:[#allocation7 + $0x3f8] sm:$0xff]
        %v2823 = vld [vmem:[%s6] sm:$0x3]
        %v2825 = vlaneseq
        %v2826 = vshrl.u32 %v2825, 7
        %v2827 = vsub.s32 0, %v2826
        %v2828 = vrot.slane %v2823, %v2827
        %v2829 = vlaneseq
        %v2830 = vshrl.u32 %v2829, 7
        %v2831 = vsub.s32 1, %v2830
        %v2832 = vrot.slane %v2823, %v2831
        %v2839 = vunpack.c.l.b16 %v2691
        %v2840 = vunpack.c.h.b16 %v2691
        %v2841 = vunpack.c.l.b16 %v2692
        %v2842 = vunpack.c.h.b16 %v2692
        %v2843 = vunpack.c.l.b16 %v2693
        %v2844 = vunpack.c.h.b16 %v2693
        %v2845 = vunpack.c.l.b16 %v2694
        %v2846 = vunpack.c.h.b16 %v2694
        %v2847 = vpack.c.b16 %v2839, %v2839
        %v2848 = vpack.c.b16 %v2840, %v2840
        %v2849 = vpack.c.b16 %v2841, %v2841
        %v2850 = vpack.c.b16 %v2842, %v2842
        %v2851 = vpack.c.b16 %v2843, %v2843
        %v2852 = vpack.c.b16 %v2844, %v2844
        %v2853 = vpack.c.b16 %v2845, %v2845
        %v2854 = vpack.c.b16 %v2846, %v2846
        %v2991 = vunpack.c.l.b16 %v2695
        %v2992 = vunpack.c.h.b16 %v2695
        %v2993 = vunpack.c.l.b16 %v2696
        %v2994 = vunpack.c.h.b16 %v2696
        %v2995 = vunpack.c.l.b16 %v2697
        %v2996 = vunpack.c.h.b16 %v2697
        %v2997 = vunpack.c.l.b16 %v2698
        %v2998 = vunpack.c.h.b16 %v2698
        %v2999 = vunpack.c.l.b16 %v2699
        %v3000 = vunpack.c.h.b16 %v2699
        %v3001 = vunpack.c.l.b16 %v2700
        %v3002 = vunpack.c.h.b16 %v2700
        %v3003 = vunpack.c.l.b16 %v2701
        %v3004 = vunpack.c.h.b16 %v2701
        %v3005 = vunpack.c.l.b16 %v2702
        %v3006 = vunpack.c.h.b16 %v2702
        %v3007 = vunpack.c.l.b16 %v2703
        %v3008 = vunpack.c.h.b16 %v2703
        %v3009 = vunpack.c.l.b16 %v2704
        %v3010 = vunpack.c.h.b16 %v2704
        %v3011 = vunpack.c.l.b16 %v2705
        %v3012 = vunpack.c.h.b16 %v2705
        %v3013 = vunpack.c.l.b16 %v2706
        %v3014 = vunpack.c.h.b16 %v2706
        %v3015 = vunpack.c.l.b16 %v2707
        %v3016 = vunpack.c.h.b16 %v2707
        %v3017 = vunpack.c.l.b16 %v2708
        %v3018 = vunpack.c.h.b16 %v2708
        %v3019 = vunpack.c.l.b16 %v2709
        %v3020 = vunpack.c.h.b16 %v2709
        %v3021 = vunpack.c.l.b16 %v2710
        %v3022 = vunpack.c.h.b16 %v2710
        %v3023 = vunpack.c.l.b16 %v2711
        %v3024 = vunpack.c.h.b16 %v2711
        %v3025 = vunpack.c.l.b16 %v2712
        %v3026 = vunpack.c.h.b16 %v2712
        %v3027 = vunpack.c.l.b16 %v2713
        %v3028 = vunpack.c.h.b16 %v2713
        %v3029 = vunpack.c.l.b16 %v2714
        %v3030 = vunpack.c.h.b16 %v2714
        %v3031 = vunpack.c.l.b16 %v2715
        %v3032 = vunpack.c.h.b16 %v2715
        %v3033 = vunpack.c.l.b16 %v2716
        %v3034 = vunpack.c.h.b16 %v2716
        %v3035 = vunpack.c.l.b16 %v2717
        %v3036 = vunpack.c.h.b16 %v2717
        %v3037 = vunpack.c.l.b16 %v2718
        %v3038 = vunpack.c.h.b16 %v2718
        %v3039 = vunpack.c.l.b16 %v2719
        %v3040 = vunpack.c.h.b16 %v2719
        %v3041 = vunpack.c.l.b16 %v2720
        %v3042 = vunpack.c.h.b16 %v2720
        %v3043 = vunpack.c.l.b16 %v2721
        %v3044 = vunpack.c.h.b16 %v2721
        %v3045 = vunpack.c.l.b16 %v2722
        %v3046 = vunpack.c.h.b16 %v2722
        %v3047 = vunpack.c.l.b16 %v2723
        %v3048 = vunpack.c.h.b16 %v2723
        %v3049 = vunpack.c.l.b16 %v2724
        %v3050 = vunpack.c.h.b16 %v2724
        %v3051 = vunpack.c.l.b16 %v2725
        %v3052 = vunpack.c.h.b16 %v2725
        %v3053 = vunpack.c.l.b16 %v2726
        %v3054 = vunpack.c.h.b16 %v2726
        %v3055 = vunpack.c.l.b16 %v2727
        %v3056 = vunpack.c.h.b16 %v2727
        %v3057 = vunpack.c.l.b16 %v2728
        %v3058 = vunpack.c.h.b16 %v2728
        %v3059 = vunpack.c.l.b16 %v2729
        %v3060 = vunpack.c.h.b16 %v2729
        %v3061 = vunpack.c.l.b16 %v2730
        %v3062 = vunpack.c.h.b16 %v2730
        %v3063 = vunpack.c.l.b16 %v2731
        %v3064 = vunpack.c.h.b16 %v2731
        %v3065 = vunpack.c.l.b16 %v2732
        %v3066 = vunpack.c.h.b16 %v2732
        %v3067 = vunpack.c.l.b16 %v2733
        %v3068 = vunpack.c.h.b16 %v2733
        %v3069 = vunpack.c.l.b16 %v2734
        %v3070 = vunpack.c.h.b16 %v2734
        %v3071 = vunpack.c.l.b16 %v2735
        %v3072 = vunpack.c.h.b16 %v2735
        %v3073 = vunpack.c.l.b16 %v2736
        %v3074 = vunpack.c.h.b16 %v2736
        %v3075 = vunpack.c.l.b16 %v2737
        %v3076 = vunpack.c.h.b16 %v2737
        %v3077 = vunpack.c.l.b16 %v2738
        %v3078 = vunpack.c.h.b16 %v2738
        %v3079 = vunpack.c.l.b16 %v2739
        %v3080 = vunpack.c.h.b16 %v2739
        %v3081 = vunpack.c.l.b16 %v2740
        %v3082 = vunpack.c.h.b16 %v2740
        %v3083 = vunpack.c.l.b16 %v2741
        %v3084 = vunpack.c.h.b16 %v2741
        %v3085 = vunpack.c.l.b16 %v2742
        %v3086 = vunpack.c.h.b16 %v2742
        %v3087 = vunpack.c.l.b16 %v2743
        %v3088 = vunpack.c.h.b16 %v2743
        %v3089 = vunpack.c.l.b16 %v2744
        %v3090 = vunpack.c.h.b16 %v2744
        %v3091 = vunpack.c.l.b16 %v2745
        %v3092 = vunpack.c.h.b16 %v2745
        %v3093 = vunpack.c.l.b16 %v2746
        %v3094 = vunpack.c.h.b16 %v2746
        %v3095 = vunpack.c.l.b16 %v2747
        %v3096 = vunpack.c.h.b16 %v2747
        %v3097 = vunpack.c.l.b16 %v2748
        %v3098 = vunpack.c.h.b16 %v2748
        %v3099 = vunpack.c.l.b16 %v2749
        %v3100 = vunpack.c.h.b16 %v2749
        %v3101 = vunpack.c.l.b16 %v2750
        %v3102 = vunpack.c.h.b16 %v2750
        %v3103 = vunpack.c.l.b16 %v2751
        %v3104 = vunpack.c.h.b16 %v2751
        %v3105 = vunpack.c.l.b16 %v2752
        %v3106 = vunpack.c.h.b16 %v2752
        %v3107 = vunpack.c.l.b16 %v2753
        %v3108 = vunpack.c.h.b16 %v2753
        %v3109 = vunpack.c.l.b16 %v2754
        %v3110 = vunpack.c.h.b16 %v2754
        %v3111 = vunpack.c.l.b16 %v2755
        %v3112 = vunpack.c.h.b16 %v2755
        %v3113 = vunpack.c.l.b16 %v2756
        %v3114 = vunpack.c.h.b16 %v2756
        %v3115 = vunpack.c.l.b16 %v2757
        %v3116 = vunpack.c.h.b16 %v2757
        %v3117 = vunpack.c.l.b16 %v2758
        %v3118 = vunpack.c.h.b16 %v2758
        %v3119 = vunpack.c.l.b16 %v2759
        %v3120 = vunpack.c.h.b16 %v2759
        %v3121 = vunpack.c.l.b16 %v2760
        %v3122 = vunpack.c.h.b16 %v2760
        %v3123 = vunpack.c.l.b16 %v2761
        %v3124 = vunpack.c.h.b16 %v2761
        %v3125 = vunpack.c.l.b16 %v2762
        %v3126 = vunpack.c.h.b16 %v2762
        %v3127 = vunpack.c.l.b16 %v2763
        %v3128 = vunpack.c.h.b16 %v2763
        %v3129 = vunpack.c.l.b16 %v2764
        %v3130 = vunpack.c.h.b16 %v2764
        %v3131 = vunpack.c.l.b16 %v2765
        %v3132 = vunpack.c.h.b16 %v2765
        %v3133 = vunpack.c.l.b16 %v2766
        %v3134 = vunpack.c.h.b16 %v2766
        %v3135 = vunpack.c.l.b16 %v2767
        %v3136 = vunpack.c.h.b16 %v2767
        %v3137 = vunpack.c.l.b16 %v2768
        %v3138 = vunpack.c.h.b16 %v2768
        %v3139 = vunpack.c.l.b16 %v2769
        %v3140 = vunpack.c.h.b16 %v2769
        %v3141 = vunpack.c.l.b16 %v2770
        %v3142 = vunpack.c.h.b16 %v2770
        %v3143 = vunpack.c.l.b16 %v2771
        %v3144 = vunpack.c.h.b16 %v2771
        %v3145 = vunpack.c.l.b16 %v2772
        %v3146 = vunpack.c.h.b16 %v2772
        %v3147 = vunpack.c.l.b16 %v2773
        %v3148 = vunpack.c.h.b16 %v2773
        %v3149 = vunpack.c.l.b16 %v2774
        %v3150 = vunpack.c.h.b16 %v2774
        %v3151 = vunpack.c.l.b16 %v2775
        %v3152 = vunpack.c.h.b16 %v2775
        %v3153 = vunpack.c.l.b16 %v2776
        %v3154 = vunpack.c.h.b16 %v2776
        %v3155 = vunpack.c.l.b16 %v2777
        %v3156 = vunpack.c.h.b16 %v2777
        %v3157 = vunpack.c.l.b16 %v2778
        %v3158 = vunpack.c.h.b16 %v2778
        %v3159 = vunpack.c.l.b16 %v2779
        %v3160 = vunpack.c.h.b16 %v2779
        %v3161 = vunpack.c.l.b16 %v2780
        %v3162 = vunpack.c.h.b16 %v2780
        %v3163 = vunpack.c.l.b16 %v2781
        %v3164 = vunpack.c.h.b16 %v2781
        %v3165 = vunpack.c.l.b16 %v2782
        %v3166 = vunpack.c.h.b16 %v2782
        %v3167 = vunpack.c.l.b16 %v2783
        %v3168 = vunpack.c.h.b16 %v2783
        %v3169 = vunpack.c.l.b16 %v2784
        %v3170 = vunpack.c.h.b16 %v2784
        %v3171 = vunpack.c.l.b16 %v2785
        %v3172 = vunpack.c.h.b16 %v2785
        %v3173 = vunpack.c.l.b16 %v2786
        %v3174 = vunpack.c.h.b16 %v2786
        %v3175 = vunpack.c.l.b16 %v2787
        %v3176 = vunpack.c.h.b16 %v2787
        %v3177 = vunpack.c.l.b16 %v2788
        %v3178 = vunpack.c.h.b16 %v2788
        %v3179 = vunpack.c.l.b16 %v2789
        %v3180 = vunpack.c.h.b16 %v2789
        %v3181 = vunpack.c.l.b16 %v2790
        %v3182 = vunpack.c.h.b16 %v2790
        %v3183 = vunpack.c.l.b16 %v2791
        %v3184 = vunpack.c.h.b16 %v2791
        %v3185 = vunpack.c.l.b16 %v2792
        %v3186 = vunpack.c.h.b16 %v2792
        %v3187 = vunpack.c.l.b16 %v2793
        %v3188 = vunpack.c.h.b16 %v2793
        %v3189 = vunpack.c.l.b16 %v2794
        %v3190 = vunpack.c.h.b16 %v2794
        %v3191 = vunpack.c.l.b16 %v2795
        %v3192 = vunpack.c.h.b16 %v2795
        %v3193 = vunpack.c.l.b16 %v2796
        %v3194 = vunpack.c.h.b16 %v2796
        %v3195 = vunpack.c.l.b16 %v2797
        %v3196 = vunpack.c.h.b16 %v2797
        %v3197 = vunpack.c.l.b16 %v2798
        %v3198 = vunpack.c.h.b16 %v2798
        %v3199 = vunpack.c.l.b16 %v2799
        %v3200 = vunpack.c.h.b16 %v2799
        %v3201 = vunpack.c.l.b16 %v2800
        %v3202 = vunpack.c.h.b16 %v2800
        %v3203 = vunpack.c.l.b16 %v2801
        %v3204 = vunpack.c.h.b16 %v2801
        %v3205 = vunpack.c.l.b16 %v2802
        %v3206 = vunpack.c.h.b16 %v2802
        %v3207 = vunpack.c.l.b16 %v2803
        %v3208 = vunpack.c.h.b16 %v2803
        %v3209 = vunpack.c.l.b16 %v2804
        %v3210 = vunpack.c.h.b16 %v2804
        %v3211 = vunpack.c.l.b16 %v2805
        %v3212 = vunpack.c.h.b16 %v2805
        %v3213 = vunpack.c.l.b16 %v2806
        %v3214 = vunpack.c.h.b16 %v2806
        %v3215 = vunpack.c.l.b16 %v2807
        %v3216 = vunpack.c.h.b16 %v2807
        %v3217 = vunpack.c.l.b16 %v2808
        %v3218 = vunpack.c.h.b16 %v2808
        %v3219 = vunpack.c.l.b16 %v2809
        %v3220 = vunpack.c.h.b16 %v2809
        %v3221 = vunpack.c.l.b16 %v2810
        %v3222 = vunpack.c.h.b16 %v2810
        %v3223 = vunpack.c.l.b16 %v2811
        %v3224 = vunpack.c.h.b16 %v2811
        %v3225 = vunpack.c.l.b16 %v2812
        %v3226 = vunpack.c.h.b16 %v2812
        %v3227 = vunpack.c.l.b16 %v2813
        %v3228 = vunpack.c.h.b16 %v2813
        %v3229 = vunpack.c.l.b16 %v2814
        %v3230 = vunpack.c.h.b16 %v2814
        %v3231 = vunpack.c.l.b16 %v2815
        %v3232 = vunpack.c.h.b16 %v2815
        %v3233 = vunpack.c.l.b16 %v2816
        %v3234 = vunpack.c.h.b16 %v2816
        %v3235 = vunpack.c.l.b16 %v2817
        %v3236 = vunpack.c.h.b16 %v2817
        %v3237 = vunpack.c.l.b16 %v2818
        %v3238 = vunpack.c.h.b16 %v2818
        %v3239 = vunpack.c.l.b16 %v2819
        %v3240 = vunpack.c.h.b16 %v2819
        %v3241 = vunpack.c.l.b16 %v2820
        %v3242 = vunpack.c.h.b16 %v2820
        %v3243 = vunpack.c.l.b16 %v2821
        %v3244 = vunpack.c.h.b16 %v2821
        %v3245 = vunpack.c.l.b16 %v2822
        %v3246 = vunpack.c.h.b16 %v2822
        %v3247 = vpack.c.b16 %v2993, %v2991
        %v3248 = vpack.c.b16 %v2994, %v2992
        %v3249 = vpack.c.b16 %v2997, %v2995
        %v3250 = vpack.c.b16 %v2998, %v2996
        %v3251 = vpack.c.b16 %v3001, %v2999
        %v3252 = vpack.c.b16 %v3002, %v3000
        %v3253 = vpack.c.b16 %v3005, %v3003
        %v3254 = vpack.c.b16 %v3006, %v3004
        %v3255 = vpack.c.b16 %v3009, %v3007
        %v3256 = vpack.c.b16 %v3010, %v3008
        %v3257 = vpack.c.b16 %v3013, %v3011
        %v3258 = vpack.c.b16 %v3014, %v3012
        %v3259 = vpack.c.b16 %v3017, %v3015
        %v3260 = vpack.c.b16 %v3018, %v3016
        %v3261 = vpack.c.b16 %v3021, %v3019
        %v3262 = vpack.c.b16 %v3022, %v3020
        %v3263 = vpack.c.b16 %v3025, %v3023
        %v3264 = vpack.c.b16 %v3026, %v3024
        %v3265 = vpack.c.b16 %v3029, %v3027
        %v3266 = vpack.c.b16 %v3030, %v3028
        %v3267 = vpack.c.b16 %v3033, %v3031
        %v3268 = vpack.c.b16 %v3034, %v3032
        %v3269 = vpack.c.b16 %v3037, %v3035
        %v3270 = vpack.c.b16 %v3038, %v3036
        %v3271 = vpack.c.b16 %v3041, %v3039
        %v3272 = vpack.c.b16 %v3042, %v3040
        %v3273 = vpack.c.b16 %v3045, %v3043
        %v3274 = vpack.c.b16 %v3046, %v3044
        %v3275 = vpack.c.b16 %v3049, %v3047
        %v3276 = vpack.c.b16 %v3050, %v3048
        %v3277 = vpack.c.b16 %v3053, %v3051
        %v3278 = vpack.c.b16 %v3054, %v3052
        %v3279 = vpack.c.b16 %v3057, %v3055
        %v3280 = vpack.c.b16 %v3058, %v3056
        %v3281 = vpack.c.b16 %v3061, %v3059
        %v3282 = vpack.c.b16 %v3062, %v3060
        %v3283 = vpack.c.b16 %v3065, %v3063
        %v3284 = vpack.c.b16 %v3066, %v3064
        %v3285 = vpack.c.b16 %v3069, %v3067
        %v3286 = vpack.c.b16 %v3070, %v3068
        %v3287 = vpack.c.b16 %v3073, %v3071
        %v3288 = vpack.c.b16 %v3074, %v3072
        %v3289 = vpack.c.b16 %v3077, %v3075
        %v3290 = vpack.c.b16 %v3078, %v3076
        %v3291 = vpack.c.b16 %v3081, %v3079
        %v3292 = vpack.c.b16 %v3082, %v3080
        %v3293 = vpack.c.b16 %v3085, %v3083
        %v3294 = vpack.c.b16 %v3086, %v3084
        %v3295 = vpack.c.b16 %v3089, %v3087
        %v3296 = vpack.c.b16 %v3090, %v3088
        %v3297 = vpack.c.b16 %v3093, %v3091
        %v3298 = vpack.c.b16 %v3094, %v3092
        %v3299 = vpack.c.b16 %v3097, %v3095
        %v3300 = vpack.c.b16 %v3098, %v3096
        %v3301 = vpack.c.b16 %v3101, %v3099
        %v3302 = vpack.c.b16 %v3102, %v3100
        %v3303 = vpack.c.b16 %v3105, %v3103
        %v3304 = vpack.c.b16 %v3106, %v3104
        %v3305 = vpack.c.b16 %v3109, %v3107
        %v3306 = vpack.c.b16 %v3110, %v3108
        %v3307 = vpack.c.b16 %v3113, %v3111
        %v3308 = vpack.c.b16 %v3114, %v3112
        %v3309 = vpack.c.b16 %v3117, %v3115
        %v3310 = vpack.c.b16 %v3118, %v3116
        %v3311 = vpack.c.b16 %v3121, %v3119
        %v3312 = vpack.c.b16 %v3122, %v3120
        %v3313 = vpack.c.b16 %v3125, %v3123
        %v3314 = vpack.c.b16 %v3126, %v3124
        %v3315 = vpack.c.b16 %v3129, %v3127
        %v3316 = vpack.c.b16 %v3130, %v3128
        %v3317 = vpack.c.b16 %v3133, %v3131
        %v3318 = vpack.c.b16 %v3134, %v3132
        %v3319 = vpack.c.b16 %v3137, %v3135
        %v3320 = vpack.c.b16 %v3138, %v3136
        %v3321 = vpack.c.b16 %v3141, %v3139
        %v3322 = vpack.c.b16 %v3142, %v3140
        %v3323 = vpack.c.b16 %v3145, %v3143
        %v3324 = vpack.c.b16 %v3146, %v3144
        %v3325 = vpack.c.b16 %v3149, %v3147
        %v3326 = vpack.c.b16 %v3150, %v3148
        %v3327 = vpack.c.b16 %v3153, %v3151
        %v3328 = vpack.c.b16 %v3154, %v3152
        %v3329 = vpack.c.b16 %v3157, %v3155
        %v3330 = vpack.c.b16 %v3158, %v3156
        %v3331 = vpack.c.b16 %v3161, %v3159
        %v3332 = vpack.c.b16 %v3162, %v3160
        %v3333 = vpack.c.b16 %v3165, %v3163
        %v3334 = vpack.c.b16 %v3166, %v3164
        %v3335 = vpack.c.b16 %v3169, %v3167
        %v3336 = vpack.c.b16 %v3170, %v3168
        %v3337 = vpack.c.b16 %v3173, %v3171
        %v3338 = vpack.c.b16 %v3174, %v3172
        %v3339 = vpack.c.b16 %v3177, %v3175
        %v3340 = vpack.c.b16 %v3178, %v3176
        %v3341 = vpack.c.b16 %v3181, %v3179
        %v3342 = vpack.c.b16 %v3182, %v3180
        %v3343 = vpack.c.b16 %v3185, %v3183
        %v3344 = vpack.c.b16 %v3186, %v3184
        %v3345 = vpack.c.b16 %v3189, %v3187
        %v3346 = vpack.c.b16 %v3190, %v3188
        %v3347 = vpack.c.b16 %v3193, %v3191
        %v3348 = vpack.c.b16 %v3194, %v3192
        %v3349 = vpack.c.b16 %v3197, %v3195
        %v3350 = vpack.c.b16 %v3198, %v3196
        %v3351 = vpack.c.b16 %v3201, %v3199
        %v3352 = vpack.c.b16 %v3202, %v3200
        %v3353 = vpack.c.b16 %v3205, %v3203
        %v3354 = vpack.c.b16 %v3206, %v3204
        %v3355 = vpack.c.b16 %v3209, %v3207
        %v3356 = vpack.c.b16 %v3210, %v3208
        %v3357 = vpack.c.b16 %v3213, %v3211
        %v3358 = vpack.c.b16 %v3214, %v3212
        %v3359 = vpack.c.b16 %v3217, %v3215
        %v3360 = vpack.c.b16 %v3218, %v3216
        %v3361 = vpack.c.b16 %v3221, %v3219
        %v3362 = vpack.c.b16 %v3222, %v3220
        %v3363 = vpack.c.b16 %v3225, %v3223
        %v3364 = vpack.c.b16 %v3226, %v3224
        %v3365 = vpack.c.b16 %v3229, %v3227
        %v3366 = vpack.c.b16 %v3230, %v3228
        %v3367 = vpack.c.b16 %v3233, %v3231
        %v3368 = vpack.c.b16 %v3234, %v3232
        %v3369 = vpack.c.b16 %v3237, %v3235
        %v3370 = vpack.c.b16 %v3238, %v3236
        %v3371 = vpack.c.b16 %v3241, %v3239
        %v3372 = vpack.c.b16 %v3242, %v3240
        %v3373 = vpack.c.b16 %v3245, %v3243
        %v3374 = vpack.c.b16 %v3246, %v3244
        %3503 = vmatprep.subr.bf16.mxu0 %v3248
        %3504 = vmatpush1.bf16.msra.mxu0 %v3247
        %3505 = vmatprep.subr.bf16.mxu0 %v3250
        %3506 = vmatpush1.bf16.msra.mxu0 %v3249
        %3507 = vmatprep.subr.bf16.mxu0 %v3252
        %3508 = vmatpush1.bf16.msra.mxu0 %v3251
        %3509 = vmatprep.subr.bf16.mxu0 %v3254
        %3510 = vmatpush1.bf16.msra.mxu0 %v3253
        %3511 = vmatprep.subr.bf16.mxu0 %v3256
        %3512 = vmatpush1.bf16.msra.mxu0 %v3255
        %3513 = vmatprep.subr.bf16.mxu0 %v3258
        %3514 = vmatpush1.bf16.msra.mxu0 %v3257
        %3515 = vmatprep.subr.bf16.mxu0 %v3260
        %3516 = vmatpush1.bf16.msra.mxu0 %v3259
        %3517 = vmatprep.subr.bf16.mxu0 %v3262
        %3518 = vmatpush1.bf16.msra.mxu0 %v3261
        %3519 = vmatprep.subr.bf16.mxu0 %v3264
        %3520 = vmatpush1.bf16.msra.mxu0 %v3263
        %3521 = vmatprep.subr.bf16.mxu0 %v3266
        %3522 = vmatpush1.bf16.msra.mxu0 %v3265
        %3523 = vmatprep.subr.bf16.mxu0 %v3268
        %3524 = vmatpush1.bf16.msra.mxu0 %v3267
        %3525 = vmatprep.subr.bf16.mxu0 %v3270
        %3526 = vmatpush1.bf16.msra.mxu0 %v3269
        %3527 = vmatprep.subr.bf16.mxu0 %v3272
        %3528 = vmatpush1.bf16.msra.mxu0 %v3271
        %3529 = vmatprep.subr.bf16.mxu0 %v3274
        %3530 = vmatpush1.bf16.msra.mxu0 %v3273
        %3531 = vmatprep.subr.bf16.mxu0 %v3276
        %3532 = vmatpush1.bf16.msra.mxu0 %v3275
        %3533 = vmatprep.subr.bf16.mxu0 %v3278
        %3534 = vmatpush1.bf16.msra.mxu0 %v3277
        %3535 = vmatprep.mubr.bf16.mxu0 %v2848
        %3536 = vmatmul.mubr.bf16.gmra.mrb[0].mxu0 %v2847
        %v3537 = vpop.f32.mrb[0].mxu0
        %v3538 = vadd.f32 %v2828, %v3537
        %v3539 = vpop.f32.mrb[0].mxu0
        %v3540 = vadd.f32 %v2832, %v3539
        %v3541 = vpop.f32.mrb[0].mxu0
        %v3542 = vpop.f32.mrb[0].mxu0
        %3543 = vdwg.mxu0
        %3544 = vmatprep.subr.bf16.mxu0 %v3280
        %3545 = vmatpush1.bf16.msra.mxu0 %v3279
        %3546 = vmatprep.subr.bf16.mxu0 %v3282
        %3547 = vmatpush1.bf16.msra.mxu0 %v3281
        %3548 = vmatprep.subr.bf16.mxu0 %v3284
        %3549 = vmatpush1.bf16.msra.mxu0 %v3283
        %3550 = vmatprep.subr.bf16.mxu0 %v3286
        %3551 = vmatpush1.bf16.msra.mxu0 %v3285
        %3552 = vmatprep.subr.bf16.mxu0 %v3288
        %3553 = vmatpush1.bf16.msra.mxu0 %v3287
        %3554 = vmatprep.subr.bf16.mxu0 %v3290
        %3555 = vmatpush1.bf16.msra.mxu0 %v3289
        %3556 = vmatprep.subr.bf16.mxu0 %v3292
        %3557 = vmatpush1.bf16.msra.mxu0 %v3291
        %3558 = vmatprep.subr.bf16.mxu0 %v3294
        %3559 = vmatpush1.bf16.msra.mxu0 %v3293
        %3560 = vmatprep.subr.bf16.mxu0 %v3296
        %3561 = vmatpush1.bf16.msra.mxu0 %v3295
        %3562 = vmatprep.subr.bf16.mxu0 %v3298
        %3563 = vmatpush1.bf16.msra.mxu0 %v3297
        %3564 = vmatprep.subr.bf16.mxu0 %v3300
        %3565 = vmatpush1.bf16.msra.mxu0 %v3299
        %3566 = vmatprep.subr.bf16.mxu0 %v3302
        %3567 = vmatpush1.bf16.msra.mxu0 %v3301
        %3568 = vmatprep.subr.bf16.mxu0 %v3304
        %3569 = vmatpush1.bf16.msra.mxu0 %v3303
        %3570 = vmatprep.subr.bf16.mxu0 %v3306
        %3571 = vmatpush1.bf16.msra.mxu0 %v3305
        %3572 = vmatprep.subr.bf16.mxu0 %v3308
        %3573 = vmatpush1.bf16.msra.mxu0 %v3307
        %3574 = vmatprep.subr.bf16.mxu0 %v3310
        %3575 = vmatpush1.bf16.msra.mxu0 %v3309
        %3576 = vmatprep.mubr.bf16.mxu0 %v2850
        %3577 = vmatmul.mubr.bf16.gmra.mrb[0].mxu0 %v2849
        %v3578 = vpop.f32.mrb[0].mxu0
        %v3579 = vadd.f32 %v3538, %v3578
        %v3580 = vpop.f32.mrb[0].mxu0
        %v3581 = vadd.f32 %v3540, %v3580
        %v3582 = vpop.f32.mrb[0].mxu0
        %v3583 = vpop.f32.mrb[0].mxu0
        %3584 = vdwg.mxu0
        %3585 = vmatprep.subr.bf16.mxu0 %v3312
        %3586 = vmatpush1.bf16.msra.mxu0 %v3311
        %3587 = vmatprep.subr.bf16.mxu0 %v3314
        %3588 = vmatpush1.bf16.msra.mxu0 %v3313
        %3589 = vmatprep.subr.bf16.mxu0 %v3316
        %3590 = vmatpush1.bf16.msra.mxu0 %v3315
        %3591 = vmatprep.subr.bf16.mxu0 %v3318
        %3592 = vmatpush1.bf16.msra.mxu0 %v3317
        %3593 = vmatprep.subr.bf16.mxu0 %v3320
        %3594 = vmatpush1.bf16.msra.mxu0 %v3319
        %3595 = vmatprep.subr.bf16.mxu0 %v3322
        %3596 = vmatpush1.bf16.msra.mxu0 %v3321
        %3597 = vmatprep.subr.bf16.mxu0 %v3324
        %3598 = vmatpush1.bf16.msra.mxu0 %v3323
        %3599 = vmatprep.subr.bf16.mxu0 %v3326
        %3600 = vmatpush1.bf16.msra.mxu0 %v3325
        %3601 = vmatprep.subr.bf16.mxu0 %v3328
        %3602 = vmatpush1.bf16.msra.mxu0 %v3327
        %3603 = vmatprep.subr.bf16.mxu0 %v3330
        %3604 = vmatpush1.bf16.msra.mxu0 %v3329
        %3605 = vmatprep.subr.bf16.mxu0 %v3332
        %3606 = vmatpush1.bf16.msra.mxu0 %v3331
        %3607 = vmatprep.subr.bf16.mxu0 %v3334
        %3608 = vmatpush1.bf16.msra.mxu0 %v3333
        %3609 = vmatprep.subr.bf16.mxu0 %v3336
        %3610 = vmatpush1.bf16.msra.mxu0 %v3335
        %3611 = vmatprep.subr.bf16.mxu0 %v3338
        %3612 = vmatpush1.bf16.msra.mxu0 %v3337
        %3613 = vmatprep.subr.bf16.mxu0 %v3340
        %3614 = vmatpush1.bf16.msra.mxu0 %v3339
        %3615 = vmatprep.subr.bf16.mxu0 %v3342
        %3616 = vmatpush1.bf16.msra.mxu0 %v3341
        %3617 = vmatprep.mubr.bf16.mxu0 %v2852
        %3618 = vmatmul.mubr.bf16.gmra.mrb[0].mxu0 %v2851
        %v3619 = vpop.f32.mrb[0].mxu0
        %v3620 = vadd.f32 %v3579, %v3619
        %v3621 = vpop.f32.mrb[0].mxu0
        %v3622 = vadd.f32 %v3581, %v3621
        %v3623 = vpop.f32.mrb[0].mxu0
        %v3624 = vpop.f32.mrb[0].mxu0
        %3625 = vdwg.mxu0
        %3626 = vmatprep.subr.bf16.mxu0 %v3344
        %3627 = vmatpush1.bf16.msra.mxu0 %v3343
        %3628 = vmatprep.subr.bf16.mxu0 %v3346
        %3629 = vmatpush1.bf16.msra.mxu0 %v3345
        %3630 = vmatprep.subr.bf16.mxu0 %v3348
        %3631 = vmatpush1.bf16.msra.mxu0 %v3347
        %3632 = vmatprep.subr.bf16.mxu0 %v3350
        %3633 = vmatpush1.bf16.msra.mxu0 %v3349
        %3634 = vmatprep.subr.bf16.mxu0 %v3352
        %3635 = vmatpush1.bf16.msra.mxu0 %v3351
        %3636 = vmatprep.subr.bf16.mxu0 %v3354
        %3637 = vmatpush1.bf16.msra.mxu0 %v3353
        %3638 = vmatprep.subr.bf16.mxu0 %v3356
        %3639 = vmatpush1.bf16.msra.mxu0 %v3355
        %3640 = vmatprep.subr.bf16.mxu0 %v3358
        %3641 = vmatpush1.bf16.msra.mxu0 %v3357
        %3642 = vmatprep.subr.bf16.mxu0 %v3360
        %3643 = vmatpush1.bf16.msra.mxu0 %v3359
        %3644 = vmatprep.subr.bf16.mxu0 %v3362
        %3645 = vmatpush1.bf16.msra.mxu0 %v3361
        %3646 = vmatprep.subr.bf16.mxu0 %v3364
        %3647 = vmatpush1.bf16.msra.mxu0 %v3363
        %3648 = vmatprep.subr.bf16.mxu0 %v3366
        %3649 = vmatpush1.bf16.msra.mxu0 %v3365
        %3650 = vmatprep.subr.bf16.mxu0 %v3368
        %3651 = vmatpush1.bf16.msra.mxu0 %v3367
        %3652 = vmatprep.subr.bf16.mxu0 %v3370
        %3653 = vmatpush1.bf16.msra.mxu0 %v3369
        %3654 = vmatprep.subr.bf16.mxu0 %v3372
        %3655 = vmatpush1.bf16.msra.mxu0 %v3371
        %3656 = vmatprep.subr.bf16.mxu0 %v3374
        %3657 = vmatpush1.bf16.msra.mxu0 %v3373
        %3658 = vmatprep.mubr.bf16.mxu0 %v2854
        %3659 = vmatmul.mubr.bf16.gmra.mrb[0].mxu0 %v2853
        %v3660 = vpop.f32.mrb[0].mxu0
        %v3661 = vadd.f32 %v3620, %v3660
        %v3662 = vpop.f32.mrb[0].mxu0
        %v3663 = vadd.f32 %v3622, %v3662
        %v3664 = vpop.f32.mrb[0].mxu0
        %v3665 = vpop.f32.mrb[0].mxu0
        %3666 = vdwg.mxu0
        %v3667 = vmax.f32 %v3661, 0.0
        %v3668 = vmax.f32 %v3663, 0.0
        %v3669 = vpack.c.bf16 %v3667, %v3667
        %v3670 = vpack.c.bf16 %v3668, %v3668
        %v3671 = vld [vmem:[%s7] sm:$0xf]
        %v3672 = vld [vmem:[%s7 + $0x4] sm:$0xf]
        %v3673 = vld [vmem:[%s7 + $0x8] sm:$0xf]
        %v3674 = vld [vmem:[%s7 + $0xc] sm:$0xf]
        %v3675 = vld [vmem:[%s7 + $0x10] sm:$0xf]
        %v3676 = vld [vmem:[%s7 + $0x14] sm:$0xf]
        %v3677 = vld [vmem:[%s7 + $0x18] sm:$0xf]
        %v3678 = vld [vmem:[%s7 + $0x1c] sm:$0xf]
        %v3679 = vld [vmem:[%s7 + $0x20] sm:$0xf]
        %v3680 = vld [vmem:[%s7 + $0x24] sm:$0xf]
        %v3681 = vld [vmem:[%s7 + $0x28] sm:$0xf]
        %v3682 = vld [vmem:[%s7 + $0x2c] sm:$0xf]
        %v3683 = vld [vmem:[%s7 + $0x30] sm:$0xf]
        %v3684 = vld [vmem:[%s7 + $0x34] sm:$0xf]
        %v3685 = vld [vmem:[%s7 + $0x38] sm:$0xf]
        %v3686 = vld [vmem:[%s7 + $0x3c] sm:$0xf]
        %v3687 = vld [vmem:[%s7 + $0x40] sm:$0xf]
        %v3688 = vld [vmem:[%s7 + $0x44] sm:$0xf]
        %v3689 = vld [vmem:[%s7 + $0x48] sm:$0xf]
        %v3690 = vld [vmem:[%s7 + $0x4c] sm:$0xf]
        %v3691 = vld [vmem:[%s7 + $0x50] sm:$0xf]
        %v3692 = vld [vmem:[%s7 + $0x54] sm:$0xf]
        %v3693 = vld [vmem:[%s7 + $0x58] sm:$0xf]
        %v3694 = vld [vmem:[%s7 + $0x5c] sm:$0xf]
        %v3695 = vld [vmem:[%s7 + $0x60] sm:$0xf]
        %v3696 = vld [vmem:[%s7 + $0x64] sm:$0xf]
        %v3697 = vld [vmem:[%s7 + $0x68] sm:$0xf]
        %v3698 = vld [vmem:[%s7 + $0x6c] sm:$0xf]
        %v3699 = vld [vmem:[%s7 + $0x70] sm:$0xf]
        %v3700 = vld [vmem:[%s7 + $0x74] sm:$0xf]
        %v3701 = vld [vmem:[%s7 + $0x78] sm:$0xf]
        %v3702 = vld [vmem:[%s7 + $0x7c] sm:$0xf]
        %v3703 = vld [vmem:[%s8] sm:$0x1]
        %v3705 = vlaneseq
        %v3706 = vshrl.u32 %v3705, 7
        %v3707 = vsub.s32 0, %v3706
        %v3708 = vrot.slane %v3703, %v3707
        %v3742 = vunpack.c.l.b16 %v3671
        %v3743 = vunpack.c.l.b16 %v3672
        %v3744 = vunpack.c.l.b16 %v3673
        %v3745 = vunpack.c.l.b16 %v3674
        %v3746 = vunpack.c.l.b16 %v3675
        %v3747 = vunpack.c.l.b16 %v3676
        %v3748 = vunpack.c.l.b16 %v3677
        %v3749 = vunpack.c.l.b16 %v3678
        %v3750 = vunpack.c.l.b16 %v3679
        %v3751 = vunpack.c.l.b16 %v3680
        %v3752 = vunpack.c.l.b16 %v3681
        %v3753 = vunpack.c.l.b16 %v3682
        %v3754 = vunpack.c.l.b16 %v3683
        %v3755 = vunpack.c.l.b16 %v3684
        %v3756 = vunpack.c.l.b16 %v3685
        %v3757 = vunpack.c.l.b16 %v3686
        %v3758 = vunpack.c.l.b16 %v3687
        %v3759 = vunpack.c.l.b16 %v3688
        %v3760 = vunpack.c.l.b16 %v3689
        %v3761 = vunpack.c.l.b16 %v3690
        %v3762 = vunpack.c.l.b16 %v3691
        %v3763 = vunpack.c.l.b16 %v3692
        %v3764 = vunpack.c.l.b16 %v3693
        %v3765 = vunpack.c.l.b16 %v3694
        %v3766 = vunpack.c.l.b16 %v3695
        %v3767 = vunpack.c.l.b16 %v3696
        %v3768 = vunpack.c.l.b16 %v3697
        %v3769 = vunpack.c.l.b16 %v3698
        %v3770 = vunpack.c.l.b16 %v3699
        %v3771 = vunpack.c.l.b16 %v3700
        %v3772 = vunpack.c.l.b16 %v3701
        %v3773 = vunpack.c.l.b16 %v3702
        %v3774 = vpack.c.b16 %v3743, %v3742
        %v3775 = vpack.c.b16 %v3745, %v3744
        %v3776 = vpack.c.b16 %v3747, %v3746
        %v3777 = vpack.c.b16 %v3749, %v3748
        %v3778 = vpack.c.b16 %v3751, %v3750
        %v3779 = vpack.c.b16 %v3753, %v3752
        %v3780 = vpack.c.b16 %v3755, %v3754
        %v3781 = vpack.c.b16 %v3757, %v3756
        %v3782 = vpack.c.b16 %v3759, %v3758
        %v3783 = vpack.c.b16 %v3761, %v3760
        %v3784 = vpack.c.b16 %v3763, %v3762
        %v3785 = vpack.c.b16 %v3765, %v3764
        %v3786 = vpack.c.b16 %v3767, %v3766
        %v3787 = vpack.c.b16 %v3769, %v3768
        %v3788 = vpack.c.b16 %v3771, %v3770
        %v3789 = vpack.c.b16 %v3773, %v3772
        %3806 = vmatprep.subr.bf16.mxu0 0
        %3807 = vmatpush1.bf16.msra.mxu0 %v3774
        %3808 = vmatprep.subr.bf16.mxu0 0
        %3809 = vmatpush1.bf16.msra.mxu0 %v3775
        %3810 = vmatprep.subr.bf16.mxu0 0
        %3811 = vmatpush1.bf16.msra.mxu0 %v3776
        %3812 = vmatprep.subr.bf16.mxu0 0
        %3813 = vmatpush1.bf16.msra.mxu0 %v3777
        %3814 = vmatprep.subr.bf16.mxu0 0
        %3815 = vmatpush1.bf16.msra.mxu0 %v3778
        %3816 = vmatprep.subr.bf16.mxu0 0
        %3817 = vmatpush1.bf16.msra.mxu0 %v3779
        %3818 = vmatprep.subr.bf16.mxu0 0
        %3819 = vmatpush1.bf16.msra.mxu0 %v3780
        %3820 = vmatprep.subr.bf16.mxu0 0
        %3821 = vmatpush1.bf16.msra.mxu0 %v3781
        %3822 = vmatprep.subr.bf16.mxu0 0
        %3823 = vmatpush1.bf16.msra.mxu0 %v3782
        %3824 = vmatprep.subr.bf16.mxu0 0
        %3825 = vmatpush1.bf16.msra.mxu0 %v3783
        %3826 = vmatprep.subr.bf16.mxu0 0
        %3827 = vmatpush1.bf16.msra.mxu0 %v3784
        %3828 = vmatprep.subr.bf16.mxu0 0
        %3829 = vmatpush1.bf16.msra.mxu0 %v3785
        %3830 = vmatprep.subr.bf16.mxu0 0
        %3831 = vmatpush1.bf16.msra.mxu0 %v3786
        %3832 = vmatprep.subr.bf16.mxu0 0
        %3833 = vmatpush1.bf16.msra.mxu0 %v3787
        %3834 = vmatprep.subr.bf16.mxu0 0
        %3835 = vmatpush1.bf16.msra.mxu0 %v3788
        %3836 = vmatprep.subr.bf16.mxu0 0
        %3837 = vmatpush1.bf16.msra.mxu0 %v3789
        %3838 = vmatprep.mubr.bf16.mxu0 %v3670
        %3839 = vmatmul.mubr.bf16.gmra.mrb[0].mxu0 %v3669
        %v3840 = vpop.f32.mrb[0].mxu0
        %v3841 = vadd.f32 %v3708, %v3840
        %v3842 = vpop.f32.mrb[0].mxu0
        %v3843 = vpop.f32.mrb[0].mxu0
        %v3844 = vpop.f32.mrb[0].mxu0
        %3845 = vdwg.mxu0
        %3846 = vst [vmem:[%s356] sm:$0xff] %v3841
        %s3847 = sand.u32 %s227, 1
        %s3848 = scalar_lea.sflag [#allocation6], %s3847
        %s3849 = sand.u32 %s227, 1
        %s3850 = smul.addr %s3849, 8
        %s3851 = scalar_lea.vmem [#allocation9], %s3850
        // Predicated region
        $region65: #{tpu_custom_call.1} parent=55 // pred_check
          %p3852 = pneg %p237
        $region66: #{tpu_custom_call.1} parent=55 // pred_check_branch
          %3854 = sbr.rel (%p3852) target = $region68
        $region67: #{tpu_custom_call.1} parent=55 // pred_region
          %s3856 = ssub.s32 128, 128
          %3857 = vsyncadd %s3848, %s3856
          %s3858 = smul.addr %s25, 128
          %s3859 = scalar_lea.hbm %s9, %s3858
          %s3861 = sshll.u32 %s3851, 4
          %s3862 = int_to_ptr.vmem [resolvable:$true] %s3861
          %3864 = dma.vmem_to_hbm [thread:$0]  %s3862, 128, %s3859, %s3848
        $region68: #{tpu_custom_call.1} parent=55 // pred_fallthru
          _
      $region56: #{tpu_custom_call.1} parent=5 // pred_fallthru
        _
      %p3865 = scmp.le.s32.totalorder 2, %s20
      // Predicated region
      $region69: #{tpu_custom_call.1} parent=5 // pred_check
        %p3866 = pneg %p3865
      $region70: #{tpu_custom_call.1} parent=5 // pred_check_branch
        %3868 = sbr.rel (%p3866) target = $region72
      $region71: #{tpu_custom_call.1} parent=5 // pred_region
        %s3869 = ssub.s32 %s20, 2
        // Predicated region
        $region73: #{tpu_custom_call.1} parent=71 // pred_check
          %p3870 = pneg %p243
        $region74: #{tpu_custom_call.1} parent=71 // pred_check_branch
          %3872 = sbr.rel (%p3870) target = $region76
        $region75: #{tpu_custom_call.1} parent=71 // pred_region
          %s3873 = sand.u32 %s228, 1
          %s3874 = scalar_lea.sflag [#allocation6], %s3873
          %s3875 = sand.u32 %s228, 1
          %s3876 = smul.addr %s3875, 8
          %s3877 = scalar_lea.vmem [#allocation9], %s3876
          %3878 = dma.done %s3874, 128
        $region76: #{tpu_custom_call.1} parent=71 // pred_fallthru
          _
      $region72: #{tpu_custom_call.1} parent=5 // pred_fallthru
        _
    $region6: #{tpu_custom_call.1} parent=1 // loop_footer
      %s24 = sadd.s32 1, %s20
    $region7: #{tpu_custom_call.1} parent=1 // loop_footer_branch
      %19 = sbr.rel target = $region3
    $region8: #{tpu_custom_call.1} parent=1 // loop_exit
      _
    %3879 = vsyncpa [#allocation5], 1
    %s3880 = scalar_lea.sflag [#allocation5], 1
    %3881 = vsyncpa %s3880, 1
    %3882 = vsyncpa [#allocation8], 1
    %3883 = vsyncpa [#allocation6], 1
    %s3884 = scalar_lea.sflag [#allocation6], 1
    %3885 = vsyncpa %s3884, 1

</llo_original>
